<compile_context>
chip_gen: v5e
topology: v5e:2x2
jax: 0.10.0
libtpu: 0.0.40
codegen_flags: <defaults>
</compile_context>

<pallas_src>
import math
from itertools import combinations

import jax
import jax.numpy as jnp
from jax.experimental import pallas as pl
from jax.experimental.pallas import tpu as pltpu

# ----------------------------- configuration --------------------------------
DIMS = 32          # hidden size
HEADS = 8          # attention heads (BottleneckTransformerLayer default)
HEAD_DIM = DIMS // HEADS
RATIO = 4          # FFN expansion ratio
NUM_TOKENS = 4     # bottleneck tokens
TSS = 3            # temporal_set_size
SEQ_LEN = 8        # frames per clip (small synthetic setting)
NUM_LAYERS = 1
EPS = 1e-5         # LayerNorm eps (PyTorch default)

_TUPLES = jnp.asarray(list(combinations(range(SEQ_LEN), TSS)), dtype=jnp.int32)
TUPLES_LEN = _TUPLES.shape[0]          # C(8, 3) = 56

_INV_D = 1.0 / DIMS
_ATT_SCALE = 1.0 / math.sqrt(HEAD_DIM)


# --------------------------- in-kernel helpers --------------------------------
def _ln(x, g, b):
    # PyTorch LayerNorm: biased variance, eps inside the sqrt.
    mu = jnp.sum(x, axis=-1, keepdims=True) * _INV_D
    xc = x - mu
    var = jnp.sum(xc * xc, axis=-1, keepdims=True) * _INV_D
    return xc * jax.lax.rsqrt(var + EPS) * g + b


def _mha(q_x, kv_x, w_qkv, b_qkv, w_o, b_o):
    # w_qkv: (D, 3D) = [Wq^T | Wk^T | Wv^T], b_qkv: (1, 3D); w_o: (D, D); b_o: (1, D)
    qp = jnp.dot(q_x, w_qkv[:, :DIMS], preferred_element_type=jnp.float32) + b_qkv[:, :DIMS]
    kvp = jnp.dot(kv_x, w_qkv[:, DIMS:], preferred_element_type=jnp.float32) + b_qkv[:, DIMS:]
    kp = kvp[:, :DIMS]
    vp = kvp[:, DIMS:]
    ctx_parts = []
    for h in range(HEADS):                           # static unrolled head loop
        sl = slice(h * HEAD_DIM, (h + 1) * HEAD_DIM)
        qh, kh, vh = qp[:, sl], kp[:, sl], vp[:, sl]
        s = jnp.dot(qh, kh.T, preferred_element_type=jnp.float32) * _ATT_SCALE
        s = s - jnp.max(s, axis=-1, keepdims=True)
        p = jnp.exp(s)
        r = pl.reciprocal(jnp.sum(p, axis=-1, keepdims=True), approx=True)
        ctx_parts.append(jnp.dot(p, vh, preferred_element_type=jnp.float32) * r)
    ctx = jnp.concatenate(ctx_parts, axis=-1)        # (Tq, D)
    return jnp.dot(ctx, w_o, preferred_element_type=jnp.float32) + b_o


def _ffn(x, w1, b1, w2, b2):
    h = jnp.maximum(jnp.dot(x, w1, preferred_element_type=jnp.float32) + b1, 0.0)
    return jnp.dot(h, w2, preferred_element_type=jnp.float32) + b2


# ------------------------------- fused kernel ---------------------------------
def _fused_forward_kernel(q_in_ref, k_in_ref,
                          wq_ref, bq_ref, gq_ref, betaq_ref,
                          wk_ref, bk_ref, gk_ref, betak_ref,
                          token_ref,
                          ln_g_ref, ln_b_ref,
                          w_qkv_ref, b_qkv_ref, w_o_ref, b_o_ref,
                          w1_ref, b1_ref, w2_ref, b2_ref,
                          a_out_ref, b_out_ref):
    q_in = q_in_ref[0].astype(jnp.float32)           # (TL, TSS*D)
    k_in = k_in_ref[0].astype(jnp.float32)

    # Initial projections + LayerNorm (q_linear/norm_q, k_linear/norm_k).
    a = _ln(jnp.dot(q_in, wq_ref[...], preferred_element_type=jnp.float32) + bq_ref[...],
            gq_ref[...], betaq_ref[...])
    b = _ln(jnp.dot(k_in, wk_ref[...], preferred_element_type=jnp.float32) + bk_ref[...],
            gk_ref[...], betak_ref[...])
    t = token_ref[...].astype(jnp.float32)           # (NUM_TOKENS, D), same for all batch

    for l in range(NUM_LAYERS):                      # static unrolled layer loop
        def ln_g(n, l=l):
            return ln_g_ref[l, n:n + 1, :]

        def ln_b(n, l=l):
            return ln_b_ref[l, n:n + 1, :]

        def att(m, q_x, kv_x, l=l):
            return _mha(q_x, kv_x,
                        w_qkv_ref[l, m], b_qkv_ref[l, m:m + 1, :],
                        w_o_ref[l, m], b_o_ref[l, m:m + 1, :])

        def ffn(m, x, l=l):
            return _ffn(x,
                        w1_ref[l, m], b1_ref[l, m:m + 1, :],
                        w2_ref[l, m], b2_ref[l, m:m + 1, :])

        da = _ln(a, ln_g(0), ln_b(0))                # norm1
        db = _ln(b, ln_g(1), ln_b(1))                # norm2
        dt = _ln(t, ln_g(2), ln_b(2))                # norm3
        t = t + att(0, dt, da) + att(1, dt, db)      # att1, att2 (+ residual)
        dt = _ln(t, ln_g(3), ln_b(3))                # norm4
        a = a + att(2, da, dt)                       # att3
        b = b + att(3, db, dt)                       # att4
        da = _ln(a, ln_g(4), ln_b(4))                # norm5
        db = _ln(b, ln_g(5), ln_b(5))                # norm6
        a = a + ffn(0, da)                           # ffn1
        b = b + ffn(1, db)                           # ffn2

    a_out_ref[0] = a.astype(a_out_ref.dtype)
    b_out_ref[0] = b.astype(b_out_ref.dtype)


# --------------------------------- wrapper -------------------------------------
def bottleneck_transformer(a_frames, b_frames, packed):
    # a_frames, b_frames: (B, SEQ_LEN, DIMS).  packed: tuple from pack_params().
    B = a_frames.shape[0]
    TL = TUPLES_LEN
    # torch: stack([index_select(x, -2, p).reshape(n, -1) for p in tuples], dim=-2)
    queries = a_frames[:, _TUPLES, :].reshape(B, TL, TSS * DIMS)
    keys = b_frames[:, _TUPLES, :].reshape(B, TL, TSS * DIMS)

    act_spec = pl.BlockSpec((1, TL, TSS * DIMS), lambda i: (i, 0, 0))
    weight_specs = [
        pl.BlockSpec(w.shape, (lambda i, z=(0,) * w.ndim: z)) for w in packed
    ]
    out_specs = (pl.BlockSpec((1, TL, DIMS), lambda i: (i, 0, 0)),
                 pl.BlockSpec((1, TL, DIMS), lambda i: (i, 0, 0)))

    out_a, out_b = pl.pallas_call(
        _fused_forward_kernel,
        out_shape=(jax.ShapeDtypeStruct((B, TL, DIMS), jnp.float32),
                   jax.ShapeDtypeStruct((B, TL, DIMS), jnp.float32)),
        grid=(B,),
        in_specs=[act_spec, act_spec] + weight_specs,
        out_specs=out_specs,
        compiler_params=pltpu.CompilerParams(dimension_semantics=("parallel",)),
    )(queries, keys, *packed)
    return out_a, out_b


# ------------------------------ parameter packing -------------------------------
def pack_params(params):
    """One-time repack: transpose nn.Linear weights to (in,out), fuse QKV, stack per layer."""
    t = jnp.transpose
    r = lambda v: v.reshape(1, -1)
    layers = params["layers"]
    atts = ("att1", "att2", "att3", "att4")
    ffns = ("ffn1", "ffn2")

    ln_g = jnp.stack([jnp.stack([lp[f"norm{n}"]["g"] for n in range(1, 7)]) for lp in layers])
    ln_b = jnp.stack([jnp.stack([lp[f"norm{n}"]["b"] for n in range(1, 7)]) for lp in layers])
    w_qkv = jnp.stack([jnp.stack([
        jnp.concatenate([t(lp[a]["wq"]), t(lp[a]["wk"]), t(lp[a]["wv"])], axis=1)
        for a in atts]) for lp in layers])                                   # (L,4,D,3D)
    b_qkv = jnp.stack([jnp.stack([
        jnp.concatenate([lp[a]["bq"], lp[a]["bk"], lp[a]["bv"]]) for a in atts])
        for lp in layers])                                                   # (L,4,3D)
    w_o = jnp.stack([jnp.stack([t(lp[a]["wo"]) for a in atts]) for lp in layers])   # (L,4,D,D)
    b_o = jnp.stack([jnp.stack([lp[a]["bo"] for a in atts]) for lp in layers])      # (L,4,D)
    w1 = jnp.stack([jnp.stack([t(lp[f]["w1"]) for f in ffns]) for lp in layers])    # (L,2,D,D*R)
    b1 = jnp.stack([jnp.stack([lp[f]["b1"] for f in ffns]) for lp in layers])       # (L,2,D*R)
    w2 = jnp.stack([jnp.stack([t(lp[f]["w2"]) for f in ffns]) for lp in layers])    # (L,2,D*R,D)
    b2 = jnp.stack([jnp.stack([lp[f]["b2"] for f in ffns]) for lp in layers])       # (L,2,D)

    return (
        t(params["q_linear"]["w"]), r(params["q_linear"]["b"]),
        r(params["norm_q"]["g"]), r(params["norm_q"]["b"]),
        t(params["k_linear"]["w"]), r(params["k_linear"]["b"]),
        r(params["norm_k"]["g"]), r(params["norm_k"]["b"]),
        params["token"],
        ln_g, ln_b, w_qkv, b_qkv, w_o, b_o, w1, b1, w2, b2,
    )


# ------------------------------ parameters -----------------------------------
def init_params(key):
    keys = iter(jax.random.split(key, 128))

    def linear(din, dout):
        w = jax.random.normal(next(keys), (dout, din), jnp.float32) * 0.02
        b = jax.random.normal(next(keys), (dout,), jnp.float32) * 0.02
        return {"w": w, "b": b}

    def ln():
        return {"g": jnp.ones((DIMS,), jnp.float32), "b": jnp.zeros((DIMS,), jnp.float32)}

    def mha():
        lq, lk, lv, lo = linear(DIMS, DIMS), linear(DIMS, DIMS), linear(DIMS, DIMS), linear(DIMS, DIMS)
        return {"wq": lq["w"], "bq": lq["b"], "wk": lk["w"], "bk": lk["b"],
                "wv": lv["w"], "bv": lv["b"], "wo": lo["w"], "bo": lo["b"]}

    def ffn_params():
        l1, l2 = linear(DIMS, DIMS * RATIO), linear(DIMS * RATIO, DIMS)
        return {"w1": l1["w"], "b1": l1["b"], "w2": l2["w"], "b2": l2["b"]}

    params = {
        "q_linear": linear(DIMS * TSS, DIMS),
        "k_linear": linear(DIMS * TSS, DIMS),
        "norm_q": ln(),
        "norm_k": ln(),
        "token": jax.random.normal(next(keys), (NUM_TOKENS, DIMS), jnp.float32) * 0.02,
        "layers": [],
    }
    for _ in range(NUM_LAYERS):
        params["layers"].append({
            "att1": mha(), "att2": mha(), "att3": mha(), "att4": mha(),
            "ffn1": ffn_params(), "ffn2": ffn_params(),
            "norm1": ln(), "norm2": ln(), "norm3": ln(),
            "norm4": ln(), "norm5": ln(), "norm6": ln(),
        })
    return params


# ------------------------------ pure-JAX reference -----------------------------
def _reference_forward(a_frames, b_frames, params):
    B = a_frames.shape[0]
    TL = TUPLES_LEN

    def ln(x, g, b):
        mu = x.mean(-1, keepdims=True)
        var = ((x - mu) ** 2).mean(-1, keepdims=True)
        return (x - mu) / jnp.sqrt(var + EPS) * g + b

    def lin(x, p):
        return x @ p["w"].T + p["b"]

    def mha(q, k, v, p):
        qp, kp, vp = q @ p["wq"].T + p["bq"], k @ p["wk"].T + p["bk"], v @ p["wv"].T + p["bv"]
        Bq, Tq, D = qp.shape
        Tk = kp.shape[1]
        qh = qp.reshape(Bq, Tq, HEADS, HEAD_DIM)
        kh = kp.reshape(Bq, Tk, HEADS, HEAD_DIM)
        vh = vp.reshape(Bq, Tk, HEADS, HEAD_DIM)
        s = jnp.einsum("bqhd,bkhd->bhqk", qh, kh) * _ATT_SCALE
        pr = jax.nn.softmax(s, axis=-1)
        ctx = jnp.einsum("bhqk,bkhd->bqhd", pr, vh).reshape(Bq, Tq, D)
        return ctx @ p["wo"].T + p["bo"]

    def ffn(x, p):
        return jnp.maximum(x @ p["w1"].T + p["b1"], 0.0) @ p["w2"].T + p["b2"]

    queries = a_frames[:, _TUPLES, :].reshape(B, TL, TSS * DIMS)
    keys = b_frames[:, _TUPLES, :].reshape(B, TL, TSS * DIMS)
    a = ln(lin(queries, params["q_linear"]), params["norm_q"]["g"], params["norm_q"]["b"])
    b = ln(lin(keys, params["k_linear"]), params["norm_k"]["g"], params["norm_k"]["b"])
    t = jnp.broadcast_to(params["token"][None], (B, NUM_TOKENS, DIMS))
    for lp in params["layers"]:
        da = ln(a, lp["norm1"]["g"], lp["norm1"]["b"])
        db = ln(b, lp["norm2"]["g"], lp["norm2"]["b"])
        dt = ln(t, lp["norm3"]["g"], lp["norm3"]["b"])
        t = t + mha(dt, da, da, lp["att1"]) + mha(dt, db, db, lp["att2"])
        dt = ln(t, lp["norm4"]["g"], lp["norm4"]["b"])
        a = a + mha(da, dt, dt, lp["att3"])
        b = b + mha(db, dt, dt, lp["att4"])
        da = ln(a, lp["norm5"]["g"], lp["norm5"]["b"])
        db = ln(b, lp["norm6"]["g"], lp["norm6"]["b"])
        a = a + ffn(da, lp["ffn1"])
        b = b + ffn(db, lp["ffn2"])
    return a, b


# --------------------------------- main ---------------------------------------
if __name__ == "__main__":
    key = jax.random.PRNGKey(0)
    k_a, k_b, k_p = jax.random.split(key, 3)
    B = 2
    a_in = jax.random.normal(k_a, (B, SEQ_LEN, DIMS), jnp.float32)
    b_in = jax.random.normal(k_b, (B, SEQ_LEN, DIMS), jnp.float32)
    params = init_params(k_p)
    packed = pack_params(params)          # one-time weight transpose / fuse / stack

    fwd = jax.jit(bottleneck_transformer)
    out_a, out_b = fwd(a_in, b_in, packed)
    jax.block_until_ready((out_a, out_b))

    assert out_a.shape == (B, TUPLES_LEN, DIMS)
    assert out_b.shape == out_a.shape
    assert bool(jnp.all(jnp.isfinite(out_a))) and bool(jnp.all(jnp.isfinite(out_b)))

    ref_a, ref_b = _reference_forward(a_in, b_in, params)
    assert bool(jnp.allclose(out_a, ref_a, rtol=5e-2, atol=5e-2))
    assert bool(jnp.allclose(out_b, ref_b, rtol=5e-2, atol=5e-2))

    print("KERNEL_OK")
</pallas_src>

<mosaic_0001>
module attributes {stable_mosaic.version = 11 : i64} {
  func.func @_fused_forward_kernel(%arg0: i32, %arg1: memref<1x56x96xf32, #tpu.memory_space<vmem>>, %arg2: memref<1x56x96xf32, #tpu.memory_space<vmem>>, %arg3: memref<96x32xf32, #tpu.memory_space<vmem>>, %arg4: memref<1x32xf32, #tpu.memory_space<vmem>>, %arg5: memref<1x32xf32, #tpu.memory_space<vmem>>, %arg6: memref<1x32xf32, #tpu.memory_space<vmem>>, %arg7: memref<96x32xf32, #tpu.memory_space<vmem>>, %arg8: memref<1x32xf32, #tpu.memory_space<vmem>>, %arg9: memref<1x32xf32, #tpu.memory_space<vmem>>, %arg10: memref<1x32xf32, #tpu.memory_space<vmem>>, %arg11: memref<4x32xf32, #tpu.memory_space<vmem>>, %arg12: memref<1x6x32xf32, #tpu.memory_space<vmem>>, %arg13: memref<1x6x32xf32, #tpu.memory_space<vmem>>, %arg14: memref<1x4x32x96xf32, #tpu.memory_space<vmem>>, %arg15: memref<1x4x96xf32, #tpu.memory_space<vmem>>, %arg16: memref<1x4x32x32xf32, #tpu.memory_space<vmem>>, %arg17: memref<1x4x32xf32, #tpu.memory_space<vmem>>, %arg18: memref<1x2x32x128xf32, #tpu.memory_space<vmem>>, %arg19: memref<1x2x128xf32, #tpu.memory_space<vmem>>, %arg20: memref<1x2x128x32xf32, #tpu.memory_space<vmem>>, %arg21: memref<1x2x32xf32, #tpu.memory_space<vmem>>, %arg22: memref<1x56x32xf32, #tpu.memory_space<vmem>>, %arg23: memref<1x56x32xf32, #tpu.memory_space<vmem>>) attributes {dimension_semantics = [#tpu.dimension_semantics<parallel>], iteration_bounds = array<i64: 2>, scalar_prefetch = 0 : i64, scratch_operands = 0 : i64, tpu.core_type = #tpu.core_type<tc>, window_params = [{transform_indices = @transform_0, window_bounds = array<i64: 1, 56, 96>}, {transform_indices = @transform_1, window_bounds = array<i64: 1, 56, 96>}, {pipeline_mode = #tpu.pipeline_mode<synchronous>, transform_indices = @transform_2, window_bounds = array<i64: 96, 32>}, {pipeline_mode = #tpu.pipeline_mode<synchronous>, transform_indices = @transform_3, window_bounds = array<i64: 1, 32>}, {pipeline_mode = #tpu.pipeline_mode<synchronous>, transform_indices = @transform_4, window_bounds = array<i64: 1, 32>}, {pipeline_mode = #tpu.pipeline_mode<synchronous>, transform_indices = @transform_5, window_bounds = array<i64: 1, 32>}, {pipeline_mode = #tpu.pipeline_mode<synchronous>, transform_indices = @transform_6, window_bounds = array<i64: 96, 32>}, {pipeline_mode = #tpu.pipeline_mode<synchronous>, transform_indices = @transform_7, window_bounds = array<i64: 1, 32>}, {pipeline_mode = #tpu.pipeline_mode<synchronous>, transform_indices = @transform_8, window_bounds = array<i64: 1, 32>}, {pipeline_mode = #tpu.pipeline_mode<synchronous>, transform_indices = @transform_9, window_bounds = array<i64: 1, 32>}, {pipeline_mode = #tpu.pipeline_mode<synchronous>, transform_indices = @transform_10, window_bounds = array<i64: 4, 32>}, {pipeline_mode = #tpu.pipeline_mode<synchronous>, transform_indices = @transform_11, window_bounds = array<i64: 1, 6, 32>}, {pipeline_mode = #tpu.pipeline_mode<synchronous>, transform_indices = @transform_12, window_bounds = array<i64: 1, 6, 32>}, {pipeline_mode = #tpu.pipeline_mode<synchronous>, transform_indices = @transform_13, window_bounds = array<i64: 1, 4, 32, 96>}, {pipeline_mode = #tpu.pipeline_mode<synchronous>, transform_indices = @transform_14, window_bounds = array<i64: 1, 4, 96>}, {pipeline_mode = #tpu.pipeline_mode<synchronous>, transform_indices = @transform_15, window_bounds = array<i64: 1, 4, 32, 32>}, {pipeline_mode = #tpu.pipeline_mode<synchronous>, transform_indices = @transform_16, window_bounds = array<i64: 1, 4, 32>}, {pipeline_mode = #tpu.pipeline_mode<synchronous>, transform_indices = @transform_17, window_bounds = array<i64: 1, 2, 32, 128>}, {pipeline_mode = #tpu.pipeline_mode<synchronous>, transform_indices = @transform_18, window_bounds = array<i64: 1, 2, 128>}, {pipeline_mode = #tpu.pipeline_mode<synchronous>, transform_indices = @transform_19, window_bounds = array<i64: 1, 2, 128, 32>}, {pipeline_mode = #tpu.pipeline_mode<synchronous>, transform_indices = @transform_20, window_bounds = array<i64: 1, 2, 32>}, {transform_indices = @transform_21, window_bounds = array<i64: 1, 56, 32>}, {transform_indices = @transform_22, window_bounds = array<i64: 1, 56, 32>}]} {
    %c0 = arith.constant 0 : index
    %c0_0 = arith.constant 0 : index
    %c0_1 = arith.constant 0 : index
    %0 = vector.load %arg1[%c0, %c0_0, %c0_1] : memref<1x56x96xf32, #tpu.memory_space<vmem>>, vector<1x56x96xf32>
    %1 = vector.shape_cast %0 : vector<1x56x96xf32> to vector<56x96xf32>
    %c0_2 = arith.constant 0 : index
    %c0_3 = arith.constant 0 : index
    %c0_4 = arith.constant 0 : index
    %2 = vector.load %arg2[%c0_2, %c0_3, %c0_4] : memref<1x56x96xf32, #tpu.memory_space<vmem>>, vector<1x56x96xf32>
    %3 = vector.shape_cast %2 : vector<1x56x96xf32> to vector<56x96xf32>
    %c0_5 = arith.constant 0 : index
    %c0_6 = arith.constant 0 : index
    %4 = vector.load %arg3[%c0_5, %c0_6] : memref<96x32xf32, #tpu.memory_space<vmem>>, vector<96x32xf32>
    %cst = arith.constant dense<0.000000e+00> : vector<56x32xf32>
    %5 = tpu.matmul %1, %4, %cst {dimension_numbers = #tpu.dot_dimension_numbers<[1], [0], [0], [1], [0, 0, 1, 1], [], []>} : vector<56x96xf32>, vector<96x32xf32>, vector<56x32xf32> -> vector<56x32xf32>
    %c0_7 = arith.constant 0 : index
    %c0_8 = arith.constant 0 : index
    %6 = vector.load %arg4[%c0_7, %c0_8] : memref<1x32xf32, #tpu.memory_space<vmem>>, vector<1x32xf32>
    %7 = vector.broadcast %6 : vector<1x32xf32> to vector<56x32xf32>
    %8 = arith.addf %5, %7 : vector<56x32xf32>
    %c0_9 = arith.constant 0 : index
    %c0_10 = arith.constant 0 : index
    %9 = vector.load %arg5[%c0_9, %c0_10] : memref<1x32xf32, #tpu.memory_space<vmem>>, vector<1x32xf32>
    %c0_11 = arith.constant 0 : index
    %c0_12 = arith.constant 0 : index
    %10 = vector.load %arg6[%c0_11, %c0_12] : memref<1x32xf32, #tpu.memory_space<vmem>>, vector<1x32xf32>
    %cst_13 = arith.constant dense<0.000000e+00> : vector<56xf32>
    %11 = vector.multi_reduction <add>, %8, %cst_13 [1] : vector<56x32xf32> to vector<56xf32>
    %12 = vector.shape_cast %11 : vector<56xf32> to vector<56x1xf32>
    %cst_14 = arith.constant 3.125000e-02 : f32
    %13 = vector.broadcast %cst_14 : f32 to vector<56x1xf32>
    %14 = arith.mulf %12, %13 : vector<56x1xf32>
    %15 = vector.broadcast %14 : vector<56x1xf32> to vector<56x32xf32>
    %16 = arith.subf %8, %15 : vector<56x32xf32>
    %17 = arith.mulf %16, %16 : vector<56x32xf32>
    %cst_15 = arith.constant dense<0.000000e+00> : vector<56xf32>
    %18 = vector.multi_reduction <add>, %17, %cst_15 [1] : vector<56x32xf32> to vector<56xf32>
    %19 = vector.shape_cast %18 : vector<56xf32> to vector<56x1xf32>
    %cst_16 = arith.constant 3.125000e-02 : f32
    %20 = vector.broadcast %cst_16 : f32 to vector<56x1xf32>
    %21 = arith.mulf %19, %20 : vector<56x1xf32>
    %cst_17 = arith.constant 9.99999974E-6 : f32
    %22 = vector.broadcast %cst_17 : f32 to vector<56x1xf32>
    %23 = arith.addf %21, %22 : vector<56x1xf32>
    %24 = math.rsqrt %23 : vector<56x1xf32>
    %25 = vector.broadcast %24 : vector<56x1xf32> to vector<56x32xf32>
    %26 = arith.mulf %16, %25 : vector<56x32xf32>
    %27 = vector.broadcast %9 : vector<1x32xf32> to vector<56x32xf32>
    %28 = arith.mulf %26, %27 : vector<56x32xf32>
    %29 = vector.broadcast %10 : vector<1x32xf32> to vector<56x32xf32>
    %30 = arith.addf %28, %29 : vector<56x32xf32>
    %c0_18 = arith.constant 0 : index
    %c0_19 = arith.constant 0 : index
    %31 = vector.load %arg7[%c0_18, %c0_19] : memref<96x32xf32, #tpu.memory_space<vmem>>, vector<96x32xf32>
    %cst_20 = arith.constant dense<0.000000e+00> : vector<56x32xf32>
    %32 = tpu.matmul %3, %31, %cst_20 {dimension_numbers = #tpu.dot_dimension_numbers<[1], [0], [0], [1], [0, 0, 1, 1], [], []>} : vector<56x96xf32>, vector<96x32xf32>, vector<56x32xf32> -> vector<56x32xf32>
    %c0_21 = arith.constant 0 : index
    %c0_22 = arith.constant 0 : index
    %33 = vector.load %arg8[%c0_21, %c0_22] : memref<1x32xf32, #tpu.memory_space<vmem>>, vector<1x32xf32>
    %34 = vector.broadcast %33 : vector<1x32xf32> to vector<56x32xf32>
    %35 = arith.addf %32, %34 : vector<56x32xf32>
    %c0_23 = arith.constant 0 : index
    %c0_24 = arith.constant 0 : index
    %36 = vector.load %arg9[%c0_23, %c0_24] : memref<1x32xf32, #tpu.memory_space<vmem>>, vector<1x32xf32>
    %c0_25 = arith.constant 0 : index
    %c0_26 = arith.constant 0 : index
    %37 = vector.load %arg10[%c0_25, %c0_26] : memref<1x32xf32, #tpu.memory_space<vmem>>, vector<1x32xf32>
    %cst_27 = arith.constant dense<0.000000e+00> : vector<56xf32>
    %38 = vector.multi_reduction <add>, %35, %cst_27 [1] : vector<56x32xf32> to vector<56xf32>
    %39 = vector.shape_cast %38 : vector<56xf32> to vector<56x1xf32>
    %cst_28 = arith.constant 3.125000e-02 : f32
    %40 = vector.broadcast %cst_28 : f32 to vector<56x1xf32>
    %41 = arith.mulf %39, %40 : vector<56x1xf32>
    %42 = vector.broadcast %41 : vector<56x1xf32> to vector<56x32xf32>
    %43 = arith.subf %35, %42 : vector<56x32xf32>
    %44 = arith.mulf %43, %43 : vector<56x32xf32>
    %cst_29 = arith.constant dense<0.000000e+00> : vector<56xf32>
    %45 = vector.multi_reduction <add>, %44, %cst_29 [1] : vector<56x32xf32> to vector<56xf32>
    %46 = vector.shape_cast %45 : vector<56xf32> to vector<56x1xf32>
    %cst_30 = arith.constant 3.125000e-02 : f32
    %47 = vector.broadcast %cst_30 : f32 to vector<56x1xf32>
    %48 = arith.mulf %46, %47 : vector<56x1xf32>
    %cst_31 = arith.constant 9.99999974E-6 : f32
    %49 = vector.broadcast %cst_31 : f32 to vector<56x1xf32>
    %50 = arith.addf %48, %49 : vector<56x1xf32>
    %51 = math.rsqrt %50 : vector<56x1xf32>
    %52 = vector.broadcast %51 : vector<56x1xf32> to vector<56x32xf32>
    %53 = arith.mulf %43, %52 : vector<56x32xf32>
    %54 = vector.broadcast %36 : vector<1x32xf32> to vector<56x32xf32>
    %55 = arith.mulf %53, %54 : vector<56x32xf32>
    %56 = vector.broadcast %37 : vector<1x32xf32> to vector<56x32xf32>
    %57 = arith.addf %55, %56 : vector<56x32xf32>
    %c0_32 = arith.constant 0 : index
    %c0_33 = arith.constant 0 : index
    %58 = vector.load %arg11[%c0_32, %c0_33] : memref<4x32xf32, #tpu.memory_space<vmem>>, vector<4x32xf32>
    %c0_34 = arith.constant 0 : index
    %c0_35 = arith.constant 0 : index
    %c0_36 = arith.constant 0 : index
    %59 = vector.load %arg12[%c0_34, %c0_35, %c0_36] : memref<1x6x32xf32, #tpu.memory_space<vmem>>, vector<1x1x32xf32>
    %60 = vector.shape_cast %59 : vector<1x1x32xf32> to vector<1x32xf32>
    %c0_37 = arith.constant 0 : index
    %c0_38 = arith.constant 0 : index
    %c0_39 = arith.constant 0 : index
    %61 = vector.load %arg13[%c0_37, %c0_38, %c0_39] : memref<1x6x32xf32, #tpu.memory_space<vmem>>, vector<1x1x32xf32>
    %62 = vector.shape_cast %61 : vector<1x1x32xf32> to vector<1x32xf32>
    %cst_40 = arith.constant dense<0.000000e+00> : vector<56xf32>
    %63 = vector.multi_reduction <add>, %30, %cst_40 [1] : vector<56x32xf32> to vector<56xf32>
    %64 = vector.shape_cast %63 : vector<56xf32> to vector<56x1xf32>
    %cst_41 = arith.constant 3.125000e-02 : f32
    %65 = vector.broadcast %cst_41 : f32 to vector<56x1xf32>
    %66 = arith.mulf %64, %65 : vector<56x1xf32>
    %67 = vector.broadcast %66 : vector<56x1xf32> to vector<56x32xf32>
    %68 = arith.subf %30, %67 : vector<56x32xf32>
    %69 = arith.mulf %68, %68 : vector<56x32xf32>
    %cst_42 = arith.constant dense<0.000000e+00> : vector<56xf32>
    %70 = vector.multi_reduction <add>, %69, %cst_42 [1] : vector<56x32xf32> to vector<56xf32>
    %71 = vector.shape_cast %70 : vector<56xf32> to vector<56x1xf32>
    %cst_43 = arith.constant 3.125000e-02 : f32
    %72 = vector.broadcast %cst_43 : f32 to vector<56x1xf32>
    %73 = arith.mulf %71, %72 : vector<56x1xf32>
    %cst_44 = arith.constant 9.99999974E-6 : f32
    %74 = vector.broadcast %cst_44 : f32 to vector<56x1xf32>
    %75 = arith.addf %73, %74 : vector<56x1xf32>
    %76 = math.rsqrt %75 : vector<56x1xf32>
    %77 = vector.broadcast %76 : vector<56x1xf32> to vector<56x32xf32>
    %78 = arith.mulf %68, %77 : vector<56x32xf32>
    %79 = vector.broadcast %60 : vector<1x32xf32> to vector<56x32xf32>
    %80 = arith.mulf %78, %79 : vector<56x32xf32>
    %81 = vector.broadcast %62 : vector<1x32xf32> to vector<56x32xf32>
    %82 = arith.addf %80, %81 : vector<56x32xf32>
    %c0_45 = arith.constant 0 : index
    %c1 = arith.constant 1 : index
    %c0_46 = arith.constant 0 : index
    %83 = vector.load %arg12[%c0_45, %c1, %c0_46] : memref<1x6x32xf32, #tpu.memory_space<vmem>>, vector<1x1x32xf32>
    %84 = vector.shape_cast %83 : vector<1x1x32xf32> to vector<1x32xf32>
    %c0_47 = arith.constant 0 : index
    %c1_48 = arith.constant 1 : index
    %c0_49 = arith.constant 0 : index
    %85 = vector.load %arg13[%c0_47, %c1_48, %c0_49] : memref<1x6x32xf32, #tpu.memory_space<vmem>>, vector<1x1x32xf32>
    %86 = vector.shape_cast %85 : vector<1x1x32xf32> to vector<1x32xf32>
    %cst_50 = arith.constant dense<0.000000e+00> : vector<56xf32>
    %87 = vector.multi_reduction <add>, %57, %cst_50 [1] : vector<56x32xf32> to vector<56xf32>
    %88 = vector.shape_cast %87 : vector<56xf32> to vector<56x1xf32>
    %cst_51 = arith.constant 3.125000e-02 : f32
    %89 = vector.broadcast %cst_51 : f32 to vector<56x1xf32>
    %90 = arith.mulf %88, %89 : vector<56x1xf32>
    %91 = vector.broadcast %90 : vector<56x1xf32> to vector<56x32xf32>
    %92 = arith.subf %57, %91 : vector<56x32xf32>
    %93 = arith.mulf %92, %92 : vector<56x32xf32>
    %cst_52 = arith.constant dense<0.000000e+00> : vector<56xf32>
    %94 = vector.multi_reduction <add>, %93, %cst_52 [1] : vector<56x32xf32> to vector<56xf32>
    %95 = vector.shape_cast %94 : vector<56xf32> to vector<56x1xf32>
    %cst_53 = arith.constant 3.125000e-02 : f32
    %96 = vector.broadcast %cst_53 : f32 to vector<56x1xf32>
    %97 = arith.mulf %95, %96 : vector<56x1xf32>
    %cst_54 = arith.constant 9.99999974E-6 : f32
    %98 = vector.broadcast %cst_54 : f32 to vector<56x1xf32>
    %99 = arith.addf %97, %98 : vector<56x1xf32>
    %100 = math.rsqrt %99 : vector<56x1xf32>
    %101 = vector.broadcast %100 : vector<56x1xf32> to vector<56x32xf32>
    %102 = arith.mulf %92, %101 : vector<56x32xf32>
    %103 = vector.broadcast %84 : vector<1x32xf32> to vector<56x32xf32>
    %104 = arith.mulf %102, %103 : vector<56x32xf32>
    %105 = vector.broadcast %86 : vector<1x32xf32> to vector<56x32xf32>
    %106 = arith.addf %104, %105 : vector<56x32xf32>
    %c0_55 = arith.constant 0 : index
    %c2 = arith.constant 2 : index
    %c0_56 = arith.constant 0 : index
    %107 = vector.load %arg12[%c0_55, %c2, %c0_56] : memref<1x6x32xf32, #tpu.memory_space<vmem>>, vector<1x1x32xf32>
    %108 = vector.shape_cast %107 : vector<1x1x32xf32> to vector<1x32xf32>
    %c0_57 = arith.constant 0 : index
    %c2_58 = arith.constant 2 : index
    %c0_59 = arith.constant 0 : index
    %109 = vector.load %arg13[%c0_57, %c2_58, %c0_59] : memref<1x6x32xf32, #tpu.memory_space<vmem>>, vector<1x1x32xf32>
    %110 = vector.shape_cast %109 : vector<1x1x32xf32> to vector<1x32xf32>
    %cst_60 = arith.constant dense<0.000000e+00> : vector<4xf32>
    %111 = vector.multi_reduction <add>, %58, %cst_60 [1] : vector<4x32xf32> to vector<4xf32>
    %112 = vector.shape_cast %111 : vector<4xf32> to vector<4x1xf32>
    %cst_61 = arith.constant 3.125000e-02 : f32
    %113 = vector.broadcast %cst_61 : f32 to vector<4x1xf32>
    %114 = arith.mulf %112, %113 : vector<4x1xf32>
    %115 = vector.broadcast %114 : vector<4x1xf32> to vector<4x32xf32>
    %116 = arith.subf %58, %115 : vector<4x32xf32>
    %117 = arith.mulf %116, %116 : vector<4x32xf32>
    %cst_62 = arith.constant dense<0.000000e+00> : vector<4xf32>
    %118 = vector.multi_reduction <add>, %117, %cst_62 [1] : vector<4x32xf32> to vector<4xf32>
    %119 = vector.shape_cast %118 : vector<4xf32> to vector<4x1xf32>
    %cst_63 = arith.constant 3.125000e-02 : f32
    %120 = vector.broadcast %cst_63 : f32 to vector<4x1xf32>
    %121 = arith.mulf %119, %120 : vector<4x1xf32>
    %cst_64 = arith.constant 9.99999974E-6 : f32
    %122 = vector.broadcast %cst_64 : f32 to vector<4x1xf32>
    %123 = arith.addf %121, %122 : vector<4x1xf32>
    %124 = math.rsqrt %123 : vector<4x1xf32>
    %125 = vector.broadcast %124 : vector<4x1xf32> to vector<4x32xf32>
    %126 = arith.mulf %116, %125 : vector<4x32xf32>
    %127 = vector.broadcast %108 : vector<1x32xf32> to vector<4x32xf32>
    %128 = arith.mulf %126, %127 : vector<4x32xf32>
    %129 = vector.broadcast %110 : vector<1x32xf32> to vector<4x32xf32>
    %130 = arith.addf %128, %129 : vector<4x32xf32>
    %c0_65 = arith.constant 0 : index
    %c0_66 = arith.constant 0 : index
    %c0_67 = arith.constant 0 : index
    %c0_68 = arith.constant 0 : index
    %131 = vector.load %arg14[%c0_65, %c0_66, %c0_67, %c0_68] : memref<1x4x32x96xf32, #tpu.memory_space<vmem>>, vector<1x1x32x96xf32>
    %132 = vector.shape_cast %131 : vector<1x1x32x96xf32> to vector<32x96xf32>
    %c0_69 = arith.constant 0 : index
    %c0_70 = arith.constant 0 : index
    %c0_71 = arith.constant 0 : index
    %133 = vector.load %arg15[%c0_69, %c0_70, %c0_71] : memref<1x4x96xf32, #tpu.memory_space<vmem>>, vector<1x1x96xf32>
    %134 = vector.shape_cast %133 : vector<1x1x96xf32> to vector<1x96xf32>
    %c0_72 = arith.constant 0 : index
    %c0_73 = arith.constant 0 : index
    %c0_74 = arith.constant 0 : index
    %c0_75 = arith.constant 0 : index
    %135 = vector.load %arg16[%c0_72, %c0_73, %c0_74, %c0_75] : memref<1x4x32x32xf32, #tpu.memory_space<vmem>>, vector<1x1x32x32xf32>
    %136 = vector.shape_cast %135 : vector<1x1x32x32xf32> to vector<32x32xf32>
    %c0_76 = arith.constant 0 : index
    %c0_77 = arith.constant 0 : index
    %c0_78 = arith.constant 0 : index
    %137 = vector.load %arg17[%c0_76, %c0_77, %c0_78] : memref<1x4x32xf32, #tpu.memory_space<vmem>>, vector<1x1x32xf32>
    %138 = vector.shape_cast %137 : vector<1x1x32xf32> to vector<1x32xf32>
    %139 = vector.extract_strided_slice %132 {offsets = [0, 0], sizes = [32, 32], strides = [1, 1]} : vector<32x96xf32> to vector<32x32xf32>
    %cst_79 = arith.constant dense<0.000000e+00> : vector<4x32xf32>
    %140 = tpu.matmul %130, %139, %cst_79 {dimension_numbers = #tpu.dot_dimension_numbers<[1], [0], [0], [1], [0, 0, 1, 1], [], []>} : vector<4x32xf32>, vector<32x32xf32>, vector<4x32xf32> -> vector<4x32xf32>
    %141 = vector.extract_strided_slice %134 {offsets = [0, 0], sizes = [1, 32], strides = [1, 1]} : vector<1x96xf32> to vector<1x32xf32>
    %142 = vector.broadcast %141 : vector<1x32xf32> to vector<4x32xf32>
    %143 = arith.addf %140, %142 : vector<4x32xf32>
    %144 = vector.extract_strided_slice %132 {offsets = [0, 32], sizes = [32, 64], strides = [1, 1]} : vector<32x96xf32> to vector<32x64xf32>
    %cst_80 = arith.constant dense<0.000000e+00> : vector<56x64xf32>
    %145 = tpu.matmul %82, %144, %cst_80 {dimension_numbers = #tpu.dot_dimension_numbers<[1], [0], [0], [1], [0, 0, 1, 1], [], []>} : vector<56x32xf32>, vector<32x64xf32>, vector<56x64xf32> -> vector<56x64xf32>
    %146 = vector.extract_strided_slice %134 {offsets = [0, 32], sizes = [1, 64], strides = [1, 1]} : vector<1x96xf32> to vector<1x64xf32>
    %147 = vector.broadcast %146 : vector<1x64xf32> to vector<56x64xf32>
    %148 = arith.addf %145, %147 : vector<56x64xf32>
    %149 = vector.extract_strided_slice %148 {offsets = [0, 0], sizes = [56, 32], strides = [1, 1]} : vector<56x64xf32> to vector<56x32xf32>
    %150 = vector.extract_strided_slice %148 {offsets = [0, 32], sizes = [56, 32], strides = [1, 1]} : vector<56x64xf32> to vector<56x32xf32>
    %151 = vector.extract_strided_slice %143 {offsets = [0, 0], sizes = [4, 4], strides = [1, 1]} : vector<4x32xf32> to vector<4x4xf32>
    %152 = vector.extract_strided_slice %149 {offsets = [0, 0], sizes = [56, 4], strides = [1, 1]} : vector<56x32xf32> to vector<56x4xf32>
    %153 = vector.extract_strided_slice %150 {offsets = [0, 0], sizes = [56, 4], strides = [1, 1]} : vector<56x32xf32> to vector<56x4xf32>
    %154 = tpu.transpose %152, [1, 0] : vector<56x4xf32> -> vector<4x56xf32>
    %cst_81 = arith.constant dense<0.000000e+00> : vector<4x56xf32>
    %155 = tpu.matmul %151, %154, %cst_81 {dimension_numbers = #tpu.dot_dimension_numbers<[1], [0], [0], [1], [0, 0, 1, 1], [], []>} : vector<4x4xf32>, vector<4x56xf32>, vector<4x56xf32> -> vector<4x56xf32>
    %cst_82 = arith.constant 5.000000e-01 : f32
    %156 = vector.broadcast %cst_82 : f32 to vector<4x56xf32>
    %157 = arith.mulf %155, %156 : vector<4x56xf32>
    %cst_83 = arith.constant dense<0xFF800000> : vector<4xf32>
    %158 = vector.multi_reduction <maximumf>, %157, %cst_83 [1] : vector<4x56xf32> to vector<4xf32>
    %159 = vector.shape_cast %158 : vector<4xf32> to vector<4x1xf32>
    %160 = vector.broadcast %159 : vector<4x1xf32> to vector<4x56xf32>
    %161 = arith.subf %157, %160 : vector<4x56xf32>
    %162 = math.exp %161 : vector<4x56xf32>
    %cst_84 = arith.constant dense<0.000000e+00> : vector<4xf32>
    %163 = vector.multi_reduction <add>, %162, %cst_84 [1] : vector<4x56xf32> to vector<4xf32>
    %164 = vector.shape_cast %163 : vector<4xf32> to vector<4x1xf32>
    %165 = tpu.reciprocal %164 {approx = true} : vector<4x1xf32> -> vector<4x1xf32>
    %cst_85 = arith.constant dense<0.000000e+00> : vector<4x4xf32>
    %166 = tpu.matmul %162, %153, %cst_85 {dimension_numbers = #tpu.dot_dimension_numbers<[1], [0], [0], [1], [0, 0, 1, 1], [], []>} : vector<4x56xf32>, vector<56x4xf32>, vector<4x4xf32> -> vector<4x4xf32>
    %167 = vector.broadcast %165 : vector<4x1xf32> to vector<4x4xf32>
    %168 = arith.mulf %166, %167 : vector<4x4xf32>
    %169 = vector.extract_strided_slice %143 {offsets = [0, 4], sizes = [4, 4], strides = [1, 1]} : vector<4x32xf32> to vector<4x4xf32>
    %170 = vector.extract_strided_slice %149 {offsets = [0, 4], sizes = [56, 4], strides = [1, 1]} : vector<56x32xf32> to vector<56x4xf32>
    %171 = vector.extract_strided_slice %150 {offsets = [0, 4], sizes = [56, 4], strides = [1, 1]} : vector<56x32xf32> to vector<56x4xf32>
    %172 = tpu.transpose %170, [1, 0] : vector<56x4xf32> -> vector<4x56xf32>
    %cst_86 = arith.constant dense<0.000000e+00> : vector<4x56xf32>
    %173 = tpu.matmul %169, %172, %cst_86 {dimension_numbers = #tpu.dot_dimension_numbers<[1], [0], [0], [1], [0, 0, 1, 1], [], []>} : vector<4x4xf32>, vector<4x56xf32>, vector<4x56xf32> -> vector<4x56xf32>
    %cst_87 = arith.constant 5.000000e-01 : f32
    %174 = vector.broadcast %cst_87 : f32 to vector<4x56xf32>
    %175 = arith.mulf %173, %174 : vector<4x56xf32>
    %cst_88 = arith.constant dense<0xFF800000> : vector<4xf32>
    %176 = vector.multi_reduction <maximumf>, %175, %cst_88 [1] : vector<4x56xf32> to vector<4xf32>
    %177 = vector.shape_cast %176 : vector<4xf32> to vector<4x1xf32>
    %178 = vector.broadcast %177 : vector<4x1xf32> to vector<4x56xf32>
    %179 = arith.subf %175, %178 : vector<4x56xf32>
    %180 = math.exp %179 : vector<4x56xf32>
    %cst_89 = arith.constant dense<0.000000e+00> : vector<4xf32>
    %181 = vector.multi_reduction <add>, %180, %cst_89 [1] : vector<4x56xf32> to vector<4xf32>
    %182 = vector.shape_cast %181 : vector<4xf32> to vector<4x1xf32>
    %183 = tpu.reciprocal %182 {approx = true} : vector<4x1xf32> -> vector<4x1xf32>
    %cst_90 = arith.constant dense<0.000000e+00> : vector<4x4xf32>
    %184 = tpu.matmul %180, %171, %cst_90 {dimension_numbers = #tpu.dot_dimension_numbers<[1], [0], [0], [1], [0, 0, 1, 1], [], []>} : vector<4x56xf32>, vector<56x4xf32>, vector<4x4xf32> -> vector<4x4xf32>
    %185 = vector.broadcast %183 : vector<4x1xf32> to vector<4x4xf32>
    %186 = arith.mulf %184, %185 : vector<4x4xf32>
    %187 = vector.extract_strided_slice %143 {offsets = [0, 8], sizes = [4, 4], strides = [1, 1]} : vector<4x32xf32> to vector<4x4xf32>
    %188 = vector.extract_strided_slice %149 {offsets = [0, 8], sizes = [56, 4], strides = [1, 1]} : vector<56x32xf32> to vector<56x4xf32>
    %189 = vector.extract_strided_slice %150 {offsets = [0, 8], sizes = [56, 4], strides = [1, 1]} : vector<56x32xf32> to vector<56x4xf32>
    %190 = tpu.transpose %188, [1, 0] : vector<56x4xf32> -> vector<4x56xf32>
    %cst_91 = arith.constant dense<0.000000e+00> : vector<4x56xf32>
    %191 = tpu.matmul %187, %190, %cst_91 {dimension_numbers = #tpu.dot_dimension_numbers<[1], [0], [0], [1], [0, 0, 1, 1], [], []>} : vector<4x4xf32>, vector<4x56xf32>, vector<4x56xf32> -> vector<4x56xf32>
    %cst_92 = arith.constant 5.000000e-01 : f32
    %192 = vector.broadcast %cst_92 : f32 to vector<4x56xf32>
    %193 = arith.mulf %191, %192 : vector<4x56xf32>
    %cst_93 = arith.constant dense<0xFF800000> : vector<4xf32>
    %194 = vector.multi_reduction <maximumf>, %193, %cst_93 [1] : vector<4x56xf32> to vector<4xf32>
    %195 = vector.shape_cast %194 : vector<4xf32> to vector<4x1xf32>
    %196 = vector.broadcast %195 : vector<4x1xf32> to vector<4x56xf32>
    %197 = arith.subf %193, %196 : vector<4x56xf32>
    %198 = math.exp %197 : vector<4x56xf32>
    %cst_94 = arith.constant dense<0.000000e+00> : vector<4xf32>
    %199 = vector.multi_reduction <add>, %198, %cst_94 [1] : vector<4x56xf32> to vector<4xf32>
    %200 = vector.shape_cast %199 : vector<4xf32> to vector<4x1xf32>
    %201 = tpu.reciprocal %200 {approx = true} : vector<4x1xf32> -> vector<4x1xf32>
    %cst_95 = arith.constant dense<0.000000e+00> : vector<4x4xf32>
    %202 = tpu.matmul %198, %189, %cst_95 {dimension_numbers = #tpu.dot_dimension_numbers<[1], [0], [0], [1], [0, 0, 1, 1], [], []>} : vector<4x56xf32>, vector<56x4xf32>, vector<4x4xf32> -> vector<4x4xf32>
    %203 = vector.broadcast %201 : vector<4x1xf32> to vector<4x4xf32>
    %204 = arith.mulf %202, %203 : vector<4x4xf32>
    %205 = vector.extract_strided_slice %143 {offsets = [0, 12], sizes = [4, 4], strides = [1, 1]} : vector<4x32xf32> to vector<4x4xf32>
    %206 = vector.extract_strided_slice %149 {offsets = [0, 12], sizes = [56, 4], strides = [1, 1]} : vector<56x32xf32> to vector<56x4xf32>
    %207 = vector.extract_strided_slice %150 {offsets = [0, 12], sizes = [56, 4], strides = [1, 1]} : vector<56x32xf32> to vector<56x4xf32>
    %208 = tpu.transpose %206, [1, 0] : vector<56x4xf32> -> vector<4x56xf32>
    %cst_96 = arith.constant dense<0.000000e+00> : vector<4x56xf32>
    %209 = tpu.matmul %205, %208, %cst_96 {dimension_numbers = #tpu.dot_dimension_numbers<[1], [0], [0], [1], [0, 0, 1, 1], [], []>} : vector<4x4xf32>, vector<4x56xf32>, vector<4x56xf32> -> vector<4x56xf32>
    %cst_97 = arith.constant 5.000000e-01 : f32
    %210 = vector.broadcast %cst_97 : f32 to vector<4x56xf32>
    %211 = arith.mulf %209, %210 : vector<4x56xf32>
    %cst_98 = arith.constant dense<0xFF800000> : vector<4xf32>
    %212 = vector.multi_reduction <maximumf>, %211, %cst_98 [1] : vector<4x56xf32> to vector<4xf32>
    %213 = vector.shape_cast %212 : vector<4xf32> to vector<4x1xf32>
    %214 = vector.broadcast %213 : vector<4x1xf32> to vector<4x56xf32>
    %215 = arith.subf %211, %214 : vector<4x56xf32>
    %216 = math.exp %215 : vector<4x56xf32>
    %cst_99 = arith.constant dense<0.000000e+00> : vector<4xf32>
    %217 = vector.multi_reduction <add>, %216, %cst_99 [1] : vector<4x56xf32> to vector<4xf32>
    %218 = vector.shape_cast %217 : vector<4xf32> to vector<4x1xf32>
    %219 = tpu.reciprocal %218 {approx = true} : vector<4x1xf32> -> vector<4x1xf32>
    %cst_100 = arith.constant dense<0.000000e+00> : vector<4x4xf32>
    %220 = tpu.matmul %216, %207, %cst_100 {dimension_numbers = #tpu.dot_dimension_numbers<[1], [0], [0], [1], [0, 0, 1, 1], [], []>} : vector<4x56xf32>, vector<56x4xf32>, vector<4x4xf32> -> vector<4x4xf32>
    %221 = vector.broadcast %219 : vector<4x1xf32> to vector<4x4xf32>
    %222 = arith.mulf %220, %221 : vector<4x4xf32>
    %223 = vector.extract_strided_slice %143 {offsets = [0, 16], sizes = [4, 4], strides = [1, 1]} : vector<4x32xf32> to vector<4x4xf32>
    %224 = vector.extract_strided_slice %149 {offsets = [0, 16], sizes = [56, 4], strides = [1, 1]} : vector<56x32xf32> to vector<56x4xf32>
    %225 = vector.extract_strided_slice %150 {offsets = [0, 16], sizes = [56, 4], strides = [1, 1]} : vector<56x32xf32> to vector<56x4xf32>
    %226 = tpu.transpose %224, [1, 0] : vector<56x4xf32> -> vector<4x56xf32>
    %cst_101 = arith.constant dense<0.000000e+00> : vector<4x56xf32>
    %227 = tpu.matmul %223, %226, %cst_101 {dimension_numbers = #tpu.dot_dimension_numbers<[1], [0], [0], [1], [0, 0, 1, 1], [], []>} : vector<4x4xf32>, vector<4x56xf32>, vector<4x56xf32> -> vector<4x56xf32>
    %cst_102 = arith.constant 5.000000e-01 : f32
    %228 = vector.broadcast %cst_102 : f32 to vector<4x56xf32>
    %229 = arith.mulf %227, %228 : vector<4x56xf32>
    %cst_103 = arith.constant dense<0xFF800000> : vector<4xf32>
    %230 = vector.multi_reduction <maximumf>, %229, %cst_103 [1] : vector<4x56xf32> to vector<4xf32>
    %231 = vector.shape_cast %230 : vector<4xf32> to vector<4x1xf32>
    %232 = vector.broadcast %231 : vector<4x1xf32> to vector<4x56xf32>
    %233 = arith.subf %229, %232 : vector<4x56xf32>
    %234 = math.exp %233 : vector<4x56xf32>
    %cst_104 = arith.constant dense<0.000000e+00> : vector<4xf32>
    %235 = vector.multi_reduction <add>, %234, %cst_104 [1] : vector<4x56xf32> to vector<4xf32>
    %236 = vector.shape_cast %235 : vector<4xf32> to vector<4x1xf32>
    %237 = tpu.reciprocal %236 {approx = true} : vector<4x1xf32> -> vector<4x1xf32>
    %cst_105 = arith.constant dense<0.000000e+00> : vector<4x4xf32>
    %238 = tpu.matmul %234, %225, %cst_105 {dimension_numbers = #tpu.dot_dimension_numbers<[1], [0], [0], [1], [0, 0, 1, 1], [], []>} : vector<4x56xf32>, vector<56x4xf32>, vector<4x4xf32> -> vector<4x4xf32>
    %239 = vector.broadcast %237 : vector<4x1xf32> to vector<4x4xf32>
    %240 = arith.mulf %238, %239 : vector<4x4xf32>
    %241 = vector.extract_strided_slice %143 {offsets = [0, 20], sizes = [4, 4], strides = [1, 1]} : vector<4x32xf32> to vector<4x4xf32>
    %242 = vector.extract_strided_slice %149 {offsets = [0, 20], sizes = [56, 4], strides = [1, 1]} : vector<56x32xf32> to vector<56x4xf32>
    %243 = vector.extract_strided_slice %150 {offsets = [0, 20], sizes = [56, 4], strides = [1, 1]} : vector<56x32xf32> to vector<56x4xf32>
    %244 = tpu.transpose %242, [1, 0] : vector<56x4xf32> -> vector<4x56xf32>
    %cst_106 = arith.constant dense<0.000000e+00> : vector<4x56xf32>
    %245 = tpu.matmul %241, %244, %cst_106 {dimension_numbers = #tpu.dot_dimension_numbers<[1], [0], [0], [1], [0, 0, 1, 1], [], []>} : vector<4x4xf32>, vector<4x56xf32>, vector<4x56xf32> -> vector<4x56xf32>
    %cst_107 = arith.constant 5.000000e-01 : f32
    %246 = vector.broadcast %cst_107 : f32 to vector<4x56xf32>
    %247 = arith.mulf %245, %246 : vector<4x56xf32>
    %cst_108 = arith.constant dense<0xFF800000> : vector<4xf32>
    %248 = vector.multi_reduction <maximumf>, %247, %cst_108 [1] : vector<4x56xf32> to vector<4xf32>
    %249 = vector.shape_cast %248 : vector<4xf32> to vector<4x1xf32>
    %250 = vector.broadcast %249 : vector<4x1xf32> to vector<4x56xf32>
    %251 = arith.subf %247, %250 : vector<4x56xf32>
    %252 = math.exp %251 : vector<4x56xf32>
    %cst_109 = arith.constant dense<0.000000e+00> : vector<4xf32>
    %253 = vector.multi_reduction <add>, %252, %cst_109 [1] : vector<4x56xf32> to vector<4xf32>
    %254 = vector.shape_cast %253 : vector<4xf32> to vector<4x1xf32>
    %255 = tpu.reciprocal %254 {approx = true} : vector<4x1xf32> -> vector<4x1xf32>
    %cst_110 = arith.constant dense<0.000000e+00> : vector<4x4xf32>
    %256 = tpu.matmul %252, %243, %cst_110 {dimension_numbers = #tpu.dot_dimension_numbers<[1], [0], [0], [1], [0, 0, 1, 1], [], []>} : vector<4x56xf32>, vector<56x4xf32>, vector<4x4xf32> -> vector<4x4xf32>
    %257 = vector.broadcast %255 : vector<4x1xf32> to vector<4x4xf32>
    %258 = arith.mulf %256, %257 : vector<4x4xf32>
    %259 = vector.extract_strided_slice %143 {offsets = [0, 24], sizes = [4, 4], strides = [1, 1]} : vector<4x32xf32> to vector<4x4xf32>
    %260 = vector.extract_strided_slice %149 {offsets = [0, 24], sizes = [56, 4], strides = [1, 1]} : vector<56x32xf32> to vector<56x4xf32>
    %261 = vector.extract_strided_slice %150 {offsets = [0, 24], sizes = [56, 4], strides = [1, 1]} : vector<56x32xf32> to vector<56x4xf32>
    %262 = tpu.transpose %260, [1, 0] : vector<56x4xf32> -> vector<4x56xf32>
    %cst_111 = arith.constant dense<0.000000e+00> : vector<4x56xf32>
    %263 = tpu.matmul %259, %262, %cst_111 {dimension_numbers = #tpu.dot_dimension_numbers<[1], [0], [0], [1], [0, 0, 1, 1], [], []>} : vector<4x4xf32>, vector<4x56xf32>, vector<4x56xf32> -> vector<4x56xf32>
    %cst_112 = arith.constant 5.000000e-01 : f32
    %264 = vector.broadcast %cst_112 : f32 to vector<4x56xf32>
    %265 = arith.mulf %263, %264 : vector<4x56xf32>
    %cst_113 = arith.constant dense<0xFF800000> : vector<4xf32>
    %266 = vector.multi_reduction <maximumf>, %265, %cst_113 [1] : vector<4x56xf32> to vector<4xf32>
    %267 = vector.shape_cast %266 : vector<4xf32> to vector<4x1xf32>
    %268 = vector.broadcast %267 : vector<4x1xf32> to vector<4x56xf32>
    %269 = arith.subf %265, %268 : vector<4x56xf32>
    %270 = math.exp %269 : vector<4x56xf32>
    %cst_114 = arith.constant dense<0.000000e+00> : vector<4xf32>
    %271 = vector.multi_reduction <add>, %270, %cst_114 [1] : vector<4x56xf32> to vector<4xf32>
    %272 = vector.shape_cast %271 : vector<4xf32> to vector<4x1xf32>
    %273 = tpu.reciprocal %272 {approx = true} : vector<4x1xf32> -> vector<4x1xf32>
    %cst_115 = arith.constant dense<0.000000e+00> : vector<4x4xf32>
    %274 = tpu.matmul %270, %261, %cst_115 {dimension_numbers = #tpu.dot_dimension_numbers<[1], [0], [0], [1], [0, 0, 1, 1], [], []>} : vector<4x56xf32>, vector<56x4xf32>, vector<4x4xf32> -> vector<4x4xf32>
    %275 = vector.broadcast %273 : vector<4x1xf32> to vector<4x4xf32>
    %276 = arith.mulf %274, %275 : vector<4x4xf32>
    %277 = vector.extract_strided_slice %143 {offsets = [0, 28], sizes = [4, 4], strides = [1, 1]} : vector<4x32xf32> to vector<4x4xf32>
    %278 = vector.extract_strided_slice %149 {offsets = [0, 28], sizes = [56, 4], strides = [1, 1]} : vector<56x32xf32> to vector<56x4xf32>
    %279 = vector.extract_strided_slice %150 {offsets = [0, 28], sizes = [56, 4], strides = [1, 1]} : vector<56x32xf32> to vector<56x4xf32>
    %280 = tpu.transpose %278, [1, 0] : vector<56x4xf32> -> vector<4x56xf32>
    %cst_116 = arith.constant dense<0.000000e+00> : vector<4x56xf32>
    %281 = tpu.matmul %277, %280, %cst_116 {dimension_numbers = #tpu.dot_dimension_numbers<[1], [0], [0], [1], [0, 0, 1, 1], [], []>} : vector<4x4xf32>, vector<4x56xf32>, vector<4x56xf32> -> vector<4x56xf32>
    %cst_117 = arith.constant 5.000000e-01 : f32
    %282 = vector.broadcast %cst_117 : f32 to vector<4x56xf32>
    %283 = arith.mulf %281, %282 : vector<4x56xf32>
    %cst_118 = arith.constant dense<0xFF800000> : vector<4xf32>
    %284 = vector.multi_reduction <maximumf>, %283, %cst_118 [1] : vector<4x56xf32> to vector<4xf32>
    %285 = vector.shape_cast %284 : vector<4xf32> to vector<4x1xf32>
    %286 = vector.broadcast %285 : vector<4x1xf32> to vector<4x56xf32>
    %287 = arith.subf %283, %286 : vector<4x56xf32>
    %288 = math.exp %287 : vector<4x56xf32>
    %cst_119 = arith.constant dense<0.000000e+00> : vector<4xf32>
    %289 = vector.multi_reduction <add>, %288, %cst_119 [1] : vector<4x56xf32> to vector<4xf32>
    %290 = vector.shape_cast %289 : vector<4xf32> to vector<4x1xf32>
    %291 = tpu.reciprocal %290 {approx = true} : vector<4x1xf32> -> vector<4x1xf32>
    %cst_120 = arith.constant dense<0.000000e+00> : vector<4x4xf32>
    %292 = tpu.matmul %288, %279, %cst_120 {dimension_numbers = #tpu.dot_dimension_numbers<[1], [0], [0], [1], [0, 0, 1, 1], [], []>} : vector<4x56xf32>, vector<56x4xf32>, vector<4x4xf32> -> vector<4x4xf32>
    %293 = vector.broadcast %291 : vector<4x1xf32> to vector<4x4xf32>
    %294 = arith.mulf %292, %293 : vector<4x4xf32>
    %295 = tpu.concatenate %168, %186, %204, %222, %240, %258, %276, %294 in 1 : vector<4x4xf32>, vector<4x4xf32>, vector<4x4xf32>, vector<4x4xf32>, vector<4x4xf32>, vector<4x4xf32>, vector<4x4xf32>, vector<4x4xf32> -> vector<4x32xf32>
    %cst_121 = arith.constant dense<0.000000e+00> : vector<4x32xf32>
    %296 = tpu.matmul %295, %136, %cst_121 {dimension_numbers = #tpu.dot_dimension_numbers<[1], [0], [0], [1], [0, 0, 1, 1], [], []>} : vector<4x32xf32>, vector<32x32xf32>, vector<4x32xf32> -> vector<4x32xf32>
    %297 = vector.broadcast %138 : vector<1x32xf32> to vector<4x32xf32>
    %298 = arith.addf %296, %297 : vector<4x32xf32>
    %299 = arith.addf %58, %298 : vector<4x32xf32>
    %c0_122 = arith.constant 0 : index
    %c1_123 = arith.constant 1 : index
    %c0_124 = arith.constant 0 : index
    %c0_125 = arith.constant 0 : index
    %300 = vector.load %arg14[%c0_122, %c1_123, %c0_124, %c0_125] : memref<1x4x32x96xf32, #tpu.memory_space<vmem>>, vector<1x1x32x96xf32>
    %301 = vector.shape_cast %300 : vector<1x1x32x96xf32> to vector<32x96xf32>
    %c0_126 = arith.constant 0 : index
    %c1_127 = arith.constant 1 : index
    %c0_128 = arith.constant 0 : index
    %302 = vector.load %arg15[%c0_126, %c1_127, %c0_128] : memref<1x4x96xf32, #tpu.memory_space<vmem>>, vector<1x1x96xf32>
    %303 = vector.shape_cast %302 : vector<1x1x96xf32> to vector<1x96xf32>
    %c0_129 = arith.constant 0 : index
    %c1_130 = arith.constant 1 : index
    %c0_131 = arith.constant 0 : index
    %c0_132 = arith.constant 0 : index
    %304 = vector.load %arg16[%c0_129, %c1_130, %c0_131, %c0_132] : memref<1x4x32x32xf32, #tpu.memory_space<vmem>>, vector<1x1x32x32xf32>
    %305 = vector.shape_cast %304 : vector<1x1x32x32xf32> to vector<32x32xf32>
    %c0_133 = arith.constant 0 : index
    %c1_134 = arith.constant 1 : index
    %c0_135 = arith.constant 0 : index
    %306 = vector.load %arg17[%c0_133, %c1_134, %c0_135] : memref<1x4x32xf32, #tpu.memory_space<vmem>>, vector<1x1x32xf32>
    %307 = vector.shape_cast %306 : vector<1x1x32xf32> to vector<1x32xf32>
    %308 = vector.extract_strided_slice %301 {offsets = [0, 0], sizes = [32, 32], strides = [1, 1]} : vector<32x96xf32> to vector<32x32xf32>
    %cst_136 = arith.constant dense<0.000000e+00> : vector<4x32xf32>
    %309 = tpu.matmul %130, %308, %cst_136 {dimension_numbers = #tpu.dot_dimension_numbers<[1], [0], [0], [1], [0, 0, 1, 1], [], []>} : vector<4x32xf32>, vector<32x32xf32>, vector<4x32xf32> -> vector<4x32xf32>
    %310 = vector.extract_strided_slice %303 {offsets = [0, 0], sizes = [1, 32], strides = [1, 1]} : vector<1x96xf32> to vector<1x32xf32>
    %311 = vector.broadcast %310 : vector<1x32xf32> to vector<4x32xf32>
    %312 = arith.addf %309, %311 : vector<4x32xf32>
    %313 = vector.extract_strided_slice %301 {offsets = [0, 32], sizes = [32, 64], strides = [1, 1]} : vector<32x96xf32> to vector<32x64xf32>
    %cst_137 = arith.constant dense<0.000000e+00> : vector<56x64xf32>
    %314 = tpu.matmul %106, %313, %cst_137 {dimension_numbers = #tpu.dot_dimension_numbers<[1], [0], [0], [1], [0, 0, 1, 1], [], []>} : vector<56x32xf32>, vector<32x64xf32>, vector<56x64xf32> -> vector<56x64xf32>
    %315 = vector.extract_strided_slice %303 {offsets = [0, 32], sizes = [1, 64], strides = [1, 1]} : vector<1x96xf32> to vector<1x64xf32>
    %316 = vector.broadcast %315 : vector<1x64xf32> to vector<56x64xf32>
    %317 = arith.addf %314, %316 : vector<56x64xf32>
    %318 = vector.extract_strided_slice %317 {offsets = [0, 0], sizes = [56, 32], strides = [1, 1]} : vector<56x64xf32> to vector<56x32xf32>
    %319 = vector.extract_strided_slice %317 {offsets = [0, 32], sizes = [56, 32], strides = [1, 1]} : vector<56x64xf32> to vector<56x32xf32>
    %320 = vector.extract_strided_slice %312 {offsets = [0, 0], sizes = [4, 4], strides = [1, 1]} : vector<4x32xf32> to vector<4x4xf32>
    %321 = vector.extract_strided_slice %318 {offsets = [0, 0], sizes = [56, 4], strides = [1, 1]} : vector<56x32xf32> to vector<56x4xf32>
    %322 = vector.extract_strided_slice %319 {offsets = [0, 0], sizes = [56, 4], strides = [1, 1]} : vector<56x32xf32> to vector<56x4xf32>
    %323 = tpu.transpose %321, [1, 0] : vector<56x4xf32> -> vector<4x56xf32>
    %cst_138 = arith.constant dense<0.000000e+00> : vector<4x56xf32>
    %324 = tpu.matmul %320, %323, %cst_138 {dimension_numbers = #tpu.dot_dimension_numbers<[1], [0], [0], [1], [0, 0, 1, 1], [], []>} : vector<4x4xf32>, vector<4x56xf32>, vector<4x56xf32> -> vector<4x56xf32>
    %cst_139 = arith.constant 5.000000e-01 : f32
    %325 = vector.broadcast %cst_139 : f32 to vector<4x56xf32>
    %326 = arith.mulf %324, %325 : vector<4x56xf32>
    %cst_140 = arith.constant dense<0xFF800000> : vector<4xf32>
    %327 = vector.multi_reduction <maximumf>, %326, %cst_140 [1] : vector<4x56xf32> to vector<4xf32>
    %328 = vector.shape_cast %327 : vector<4xf32> to vector<4x1xf32>
    %329 = vector.broadcast %328 : vector<4x1xf32> to vector<4x56xf32>
    %330 = arith.subf %326, %329 : vector<4x56xf32>
    %331 = math.exp %330 : vector<4x56xf32>
    %cst_141 = arith.constant dense<0.000000e+00> : vector<4xf32>
    %332 = vector.multi_reduction <add>, %331, %cst_141 [1] : vector<4x56xf32> to vector<4xf32>
    %333 = vector.shape_cast %332 : vector<4xf32> to vector<4x1xf32>
    %334 = tpu.reciprocal %333 {approx = true} : vector<4x1xf32> -> vector<4x1xf32>
    %cst_142 = arith.constant dense<0.000000e+00> : vector<4x4xf32>
    %335 = tpu.matmul %331, %322, %cst_142 {dimension_numbers = #tpu.dot_dimension_numbers<[1], [0], [0], [1], [0, 0, 1, 1], [], []>} : vector<4x56xf32>, vector<56x4xf32>, vector<4x4xf32> -> vector<4x4xf32>
    %336 = vector.broadcast %334 : vector<4x1xf32> to vector<4x4xf32>
    %337 = arith.mulf %335, %336 : vector<4x4xf32>
    %338 = vector.extract_strided_slice %312 {offsets = [0, 4], sizes = [4, 4], strides = [1, 1]} : vector<4x32xf32> to vector<4x4xf32>
    %339 = vector.extract_strided_slice %318 {offsets = [0, 4], sizes = [56, 4], strides = [1, 1]} : vector<56x32xf32> to vector<56x4xf32>
    %340 = vector.extract_strided_slice %319 {offsets = [0, 4], sizes = [56, 4], strides = [1, 1]} : vector<56x32xf32> to vector<56x4xf32>
    %341 = tpu.transpose %339, [1, 0] : vector<56x4xf32> -> vector<4x56xf32>
    %cst_143 = arith.constant dense<0.000000e+00> : vector<4x56xf32>
    %342 = tpu.matmul %338, %341, %cst_143 {dimension_numbers = #tpu.dot_dimension_numbers<[1], [0], [0], [1], [0, 0, 1, 1], [], []>} : vector<4x4xf32>, vector<4x56xf32>, vector<4x56xf32> -> vector<4x56xf32>
    %cst_144 = arith.constant 5.000000e-01 : f32
    %343 = vector.broadcast %cst_144 : f32 to vector<4x56xf32>
    %344 = arith.mulf %342, %343 : vector<4x56xf32>
    %cst_145 = arith.constant dense<0xFF800000> : vector<4xf32>
    %345 = vector.multi_reduction <maximumf>, %344, %cst_145 [1] : vector<4x56xf32> to vector<4xf32>
    %346 = vector.shape_cast %345 : vector<4xf32> to vector<4x1xf32>
    %347 = vector.broadcast %346 : vector<4x1xf32> to vector<4x56xf32>
    %348 = arith.subf %344, %347 : vector<4x56xf32>
    %349 = math.exp %348 : vector<4x56xf32>
    %cst_146 = arith.constant dense<0.000000e+00> : vector<4xf32>
    %350 = vector.multi_reduction <add>, %349, %cst_146 [1] : vector<4x56xf32> to vector<4xf32>
    %351 = vector.shape_cast %350 : vector<4xf32> to vector<4x1xf32>
    %352 = tpu.reciprocal %351 {approx = true} : vector<4x1xf32> -> vector<4x1xf32>
    %cst_147 = arith.constant dense<0.000000e+00> : vector<4x4xf32>
    %353 = tpu.matmul %349, %340, %cst_147 {dimension_numbers = #tpu.dot_dimension_numbers<[1], [0], [0], [1], [0, 0, 1, 1], [], []>} : vector<4x56xf32>, vector<56x4xf32>, vector<4x4xf32> -> vector<4x4xf32>
    %354 = vector.broadcast %352 : vector<4x1xf32> to vector<4x4xf32>
    %355 = arith.mulf %353, %354 : vector<4x4xf32>
    %356 = vector.extract_strided_slice %312 {offsets = [0, 8], sizes = [4, 4], strides = [1, 1]} : vector<4x32xf32> to vector<4x4xf32>
    %357 = vector.extract_strided_slice %318 {offsets = [0, 8], sizes = [56, 4], strides = [1, 1]} : vector<56x32xf32> to vector<56x4xf32>
    %358 = vector.extract_strided_slice %319 {offsets = [0, 8], sizes = [56, 4], strides = [1, 1]} : vector<56x32xf32> to vector<56x4xf32>
    %359 = tpu.transpose %357, [1, 0] : vector<56x4xf32> -> vector<4x56xf32>
    %cst_148 = arith.constant dense<0.000000e+00> : vector<4x56xf32>
    %360 = tpu.matmul %356, %359, %cst_148 {dimension_numbers = #tpu.dot_dimension_numbers<[1], [0], [0], [1], [0, 0, 1, 1], [], []>} : vector<4x4xf32>, vector<4x56xf32>, vector<4x56xf32> -> vector<4x56xf32>
    %cst_149 = arith.constant 5.000000e-01 : f32
    %361 = vector.broadcast %cst_149 : f32 to vector<4x56xf32>
    %362 = arith.mulf %360, %361 : vector<4x56xf32>
    %cst_150 = arith.constant dense<0xFF800000> : vector<4xf32>
    %363 = vector.multi_reduction <maximumf>, %362, %cst_150 [1] : vector<4x56xf32> to vector<4xf32>
    %364 = vector.shape_cast %363 : vector<4xf32> to vector<4x1xf32>
    %365 = vector.broadcast %364 : vector<4x1xf32> to vector<4x56xf32>
    %366 = arith.subf %362, %365 : vector<4x56xf32>
    %367 = math.exp %366 : vector<4x56xf32>
    %cst_151 = arith.constant dense<0.000000e+00> : vector<4xf32>
    %368 = vector.multi_reduction <add>, %367, %cst_151 [1] : vector<4x56xf32> to vector<4xf32>
    %369 = vector.shape_cast %368 : vector<4xf32> to vector<4x1xf32>
    %370 = tpu.reciprocal %369 {approx = true} : vector<4x1xf32> -> vector<4x1xf32>
    %cst_152 = arith.constant dense<0.000000e+00> : vector<4x4xf32>
    %371 = tpu.matmul %367, %358, %cst_152 {dimension_numbers = #tpu.dot_dimension_numbers<[1], [0], [0], [1], [0, 0, 1, 1], [], []>} : vector<4x56xf32>, vector<56x4xf32>, vector<4x4xf32> -> vector<4x4xf32>
    %372 = vector.broadcast %370 : vector<4x1xf32> to vector<4x4xf32>
    %373 = arith.mulf %371, %372 : vector<4x4xf32>
    %374 = vector.extract_strided_slice %312 {offsets = [0, 12], sizes = [4, 4], strides = [1, 1]} : vector<4x32xf32> to vector<4x4xf32>
    %375 = vector.extract_strided_slice %318 {offsets = [0, 12], sizes = [56, 4], strides = [1, 1]} : vector<56x32xf32> to vector<56x4xf32>
    %376 = vector.extract_strided_slice %319 {offsets = [0, 12], sizes = [56, 4], strides = [1, 1]} : vector<56x32xf32> to vector<56x4xf32>
    %377 = tpu.transpose %375, [1, 0] : vector<56x4xf32> -> vector<4x56xf32>
    %cst_153 = arith.constant dense<0.000000e+00> : vector<4x56xf32>
    %378 = tpu.matmul %374, %377, %cst_153 {dimension_numbers = #tpu.dot_dimension_numbers<[1], [0], [0], [1], [0, 0, 1, 1], [], []>} : vector<4x4xf32>, vector<4x56xf32>, vector<4x56xf32> -> vector<4x56xf32>
    %cst_154 = arith.constant 5.000000e-01 : f32
    %379 = vector.broadcast %cst_154 : f32 to vector<4x56xf32>
    %380 = arith.mulf %378, %379 : vector<4x56xf32>
    %cst_155 = arith.constant dense<0xFF800000> : vector<4xf32>
    %381 = vector.multi_reduction <maximumf>, %380, %cst_155 [1] : vector<4x56xf32> to vector<4xf32>
    %382 = vector.shape_cast %381 : vector<4xf32> to vector<4x1xf32>
    %383 = vector.broadcast %382 : vector<4x1xf32> to vector<4x56xf32>
    %384 = arith.subf %380, %383 : vector<4x56xf32>
    %385 = math.exp %384 : vector<4x56xf32>
    %cst_156 = arith.constant dense<0.000000e+00> : vector<4xf32>
    %386 = vector.multi_reduction <add>, %385, %cst_156 [1] : vector<4x56xf32> to vector<4xf32>
    %387 = vector.shape_cast %386 : vector<4xf32> to vector<4x1xf32>
    %388 = tpu.reciprocal %387 {approx = true} : vector<4x1xf32> -> vector<4x1xf32>
    %cst_157 = arith.constant dense<0.000000e+00> : vector<4x4xf32>
    %389 = tpu.matmul %385, %376, %cst_157 {dimension_numbers = #tpu.dot_dimension_numbers<[1], [0], [0], [1], [0, 0, 1, 1], [], []>} : vector<4x56xf32>, vector<56x4xf32>, vector<4x4xf32> -> vector<4x4xf32>
    %390 = vector.broadcast %388 : vector<4x1xf32> to vector<4x4xf32>
    %391 = arith.mulf %389, %390 : vector<4x4xf32>
    %392 = vector.extract_strided_slice %312 {offsets = [0, 16], sizes = [4, 4], strides = [1, 1]} : vector<4x32xf32> to vector<4x4xf32>
    %393 = vector.extract_strided_slice %318 {offsets = [0, 16], sizes = [56, 4], strides = [1, 1]} : vector<56x32xf32> to vector<56x4xf32>
    %394 = vector.extract_strided_slice %319 {offsets = [0, 16], sizes = [56, 4], strides = [1, 1]} : vector<56x32xf32> to vector<56x4xf32>
    %395 = tpu.transpose %393, [1, 0] : vector<56x4xf32> -> vector<4x56xf32>
    %cst_158 = arith.constant dense<0.000000e+00> : vector<4x56xf32>
    %396 = tpu.matmul %392, %395, %cst_158 {dimension_numbers = #tpu.dot_dimension_numbers<[1], [0], [0], [1], [0, 0, 1, 1], [], []>} : vector<4x4xf32>, vector<4x56xf32>, vector<4x56xf32> -> vector<4x56xf32>
    %cst_159 = arith.constant 5.000000e-01 : f32
    %397 = vector.broadcast %cst_159 : f32 to vector<4x56xf32>
    %398 = arith.mulf %396, %397 : vector<4x56xf32>
    %cst_160 = arith.constant dense<0xFF800000> : vector<4xf32>
    %399 = vector.multi_reduction <maximumf>, %398, %cst_160 [1] : vector<4x56xf32> to vector<4xf32>
    %400 = vector.shape_cast %399 : vector<4xf32> to vector<4x1xf32>
    %401 = vector.broadcast %400 : vector<4x1xf32> to vector<4x56xf32>
    %402 = arith.subf %398, %401 : vector<4x56xf32>
    %403 = math.exp %402 : vector<4x56xf32>
    %cst_161 = arith.constant dense<0.000000e+00> : vector<4xf32>
    %404 = vector.multi_reduction <add>, %403, %cst_161 [1] : vector<4x56xf32> to vector<4xf32>
    %405 = vector.shape_cast %404 : vector<4xf32> to vector<4x1xf32>
    %406 = tpu.reciprocal %405 {approx = true} : vector<4x1xf32> -> vector<4x1xf32>
    %cst_162 = arith.constant dense<0.000000e+00> : vector<4x4xf32>
    %407 = tpu.matmul %403, %394, %cst_162 {dimension_numbers = #tpu.dot_dimension_numbers<[1], [0], [0], [1], [0, 0, 1, 1], [], []>} : vector<4x56xf32>, vector<56x4xf32>, vector<4x4xf32> -> vector<4x4xf32>
    %408 = vector.broadcast %406 : vector<4x1xf32> to vector<4x4xf32>
    %409 = arith.mulf %407, %408 : vector<4x4xf32>
    %410 = vector.extract_strided_slice %312 {offsets = [0, 20], sizes = [4, 4], strides = [1, 1]} : vector<4x32xf32> to vector<4x4xf32>
    %411 = vector.extract_strided_slice %318 {offsets = [0, 20], sizes = [56, 4], strides = [1, 1]} : vector<56x32xf32> to vector<56x4xf32>
    %412 = vector.extract_strided_slice %319 {offsets = [0, 20], sizes = [56, 4], strides = [1, 1]} : vector<56x32xf32> to vector<56x4xf32>
    %413 = tpu.transpose %411, [1, 0] : vector<56x4xf32> -> vector<4x56xf32>
    %cst_163 = arith.constant dense<0.000000e+00> : vector<4x56xf32>
    %414 = tpu.matmul %410, %413, %cst_163 {dimension_numbers = #tpu.dot_dimension_numbers<[1], [0], [0], [1], [0, 0, 1, 1], [], []>} : vector<4x4xf32>, vector<4x56xf32>, vector<4x56xf32> -> vector<4x56xf32>
    %cst_164 = arith.constant 5.000000e-01 : f32
    %415 = vector.broadcast %cst_164 : f32 to vector<4x56xf32>
    %416 = arith.mulf %414, %415 : vector<4x56xf32>
    %cst_165 = arith.constant dense<0xFF800000> : vector<4xf32>
    %417 = vector.multi_reduction <maximumf>, %416, %cst_165 [1] : vector<4x56xf32> to vector<4xf32>
    %418 = vector.shape_cast %417 : vector<4xf32> to vector<4x1xf32>
    %419 = vector.broadcast %418 : vector<4x1xf32> to vector<4x56xf32>
    %420 = arith.subf %416, %419 : vector<4x56xf32>
    %421 = math.exp %420 : vector<4x56xf32>
    %cst_166 = arith.constant dense<0.000000e+00> : vector<4xf32>
    %422 = vector.multi_reduction <add>, %421, %cst_166 [1] : vector<4x56xf32> to vector<4xf32>
    %423 = vector.shape_cast %422 : vector<4xf32> to vector<4x1xf32>
    %424 = tpu.reciprocal %423 {approx = true} : vector<4x1xf32> -> vector<4x1xf32>
    %cst_167 = arith.constant dense<0.000000e+00> : vector<4x4xf32>
    %425 = tpu.matmul %421, %412, %cst_167 {dimension_numbers = #tpu.dot_dimension_numbers<[1], [0], [0], [1], [0, 0, 1, 1], [], []>} : vector<4x56xf32>, vector<56x4xf32>, vector<4x4xf32> -> vector<4x4xf32>
    %426 = vector.broadcast %424 : vector<4x1xf32> to vector<4x4xf32>
    %427 = arith.mulf %425, %426 : vector<4x4xf32>
    %428 = vector.extract_strided_slice %312 {offsets = [0, 24], sizes = [4, 4], strides = [1, 1]} : vector<4x32xf32> to vector<4x4xf32>
    %429 = vector.extract_strided_slice %318 {offsets = [0, 24], sizes = [56, 4], strides = [1, 1]} : vector<56x32xf32> to vector<56x4xf32>
    %430 = vector.extract_strided_slice %319 {offsets = [0, 24], sizes = [56, 4], strides = [1, 1]} : vector<56x32xf32> to vector<56x4xf32>
    %431 = tpu.transpose %429, [1, 0] : vector<56x4xf32> -> vector<4x56xf32>
    %cst_168 = arith.constant dense<0.000000e+00> : vector<4x56xf32>
    %432 = tpu.matmul %428, %431, %cst_168 {dimension_numbers = #tpu.dot_dimension_numbers<[1], [0], [0], [1], [0, 0, 1, 1], [], []>} : vector<4x4xf32>, vector<4x56xf32>, vector<4x56xf32> -> vector<4x56xf32>
    %cst_169 = arith.constant 5.000000e-01 : f32
    %433 = vector.broadcast %cst_169 : f32 to vector<4x56xf32>
    %434 = arith.mulf %432, %433 : vector<4x56xf32>
    %cst_170 = arith.constant dense<0xFF800000> : vector<4xf32>
    %435 = vector.multi_reduction <maximumf>, %434, %cst_170 [1] : vector<4x56xf32> to vector<4xf32>
    %436 = vector.shape_cast %435 : vector<4xf32> to vector<4x1xf32>
    %437 = vector.broadcast %436 : vector<4x1xf32> to vector<4x56xf32>
    %438 = arith.subf %434, %437 : vector<4x56xf32>
    %439 = math.exp %438 : vector<4x56xf32>
    %cst_171 = arith.constant dense<0.000000e+00> : vector<4xf32>
    %440 = vector.multi_reduction <add>, %439, %cst_171 [1] : vector<4x56xf32> to vector<4xf32>
    %441 = vector.shape_cast %440 : vector<4xf32> to vector<4x1xf32>
    %442 = tpu.reciprocal %441 {approx = true} : vector<4x1xf32> -> vector<4x1xf32>
    %cst_172 = arith.constant dense<0.000000e+00> : vector<4x4xf32>
    %443 = tpu.matmul %439, %430, %cst_172 {dimension_numbers = #tpu.dot_dimension_numbers<[1], [0], [0], [1], [0, 0, 1, 1], [], []>} : vector<4x56xf32>, vector<56x4xf32>, vector<4x4xf32> -> vector<4x4xf32>
    %444 = vector.broadcast %442 : vector<4x1xf32> to vector<4x4xf32>
    %445 = arith.mulf %443, %444 : vector<4x4xf32>
    %446 = vector.extract_strided_slice %312 {offsets = [0, 28], sizes = [4, 4], strides = [1, 1]} : vector<4x32xf32> to vector<4x4xf32>
    %447 = vector.extract_strided_slice %318 {offsets = [0, 28], sizes = [56, 4], strides = [1, 1]} : vector<56x32xf32> to vector<56x4xf32>
    %448 = vector.extract_strided_slice %319 {offsets = [0, 28], sizes = [56, 4], strides = [1, 1]} : vector<56x32xf32> to vector<56x4xf32>
    %449 = tpu.transpose %447, [1, 0] : vector<56x4xf32> -> vector<4x56xf32>
    %cst_173 = arith.constant dense<0.000000e+00> : vector<4x56xf32>
    %450 = tpu.matmul %446, %449, %cst_173 {dimension_numbers = #tpu.dot_dimension_numbers<[1], [0], [0], [1], [0, 0, 1, 1], [], []>} : vector<4x4xf32>, vector<4x56xf32>, vector<4x56xf32> -> vector<4x56xf32>
    %cst_174 = arith.constant 5.000000e-01 : f32
    %451 = vector.broadcast %cst_174 : f32 to vector<4x56xf32>
    %452 = arith.mulf %450, %451 : vector<4x56xf32>
    %cst_175 = arith.constant dense<0xFF800000> : vector<4xf32>
    %453 = vector.multi_reduction <maximumf>, %452, %cst_175 [1] : vector<4x56xf32> to vector<4xf32>
    %454 = vector.shape_cast %453 : vector<4xf32> to vector<4x1xf32>
    %455 = vector.broadcast %454 : vector<4x1xf32> to vector<4x56xf32>
    %456 = arith.subf %452, %455 : vector<4x56xf32>
    %457 = math.exp %456 : vector<4x56xf32>
    %cst_176 = arith.constant dense<0.000000e+00> : vector<4xf32>
    %458 = vector.multi_reduction <add>, %457, %cst_176 [1] : vector<4x56xf32> to vector<4xf32>
    %459 = vector.shape_cast %458 : vector<4xf32> to vector<4x1xf32>
    %460 = tpu.reciprocal %459 {approx = true} : vector<4x1xf32> -> vector<4x1xf32>
    %cst_177 = arith.constant dense<0.000000e+00> : vector<4x4xf32>
    %461 = tpu.matmul %457, %448, %cst_177 {dimension_numbers = #tpu.dot_dimension_numbers<[1], [0], [0], [1], [0, 0, 1, 1], [], []>} : vector<4x56xf32>, vector<56x4xf32>, vector<4x4xf32> -> vector<4x4xf32>
    %462 = vector.broadcast %460 : vector<4x1xf32> to vector<4x4xf32>
    %463 = arith.mulf %461, %462 : vector<4x4xf32>
    %464 = tpu.concatenate %337, %355, %373, %391, %409, %427, %445, %463 in 1 : vector<4x4xf32>, vector<4x4xf32>, vector<4x4xf32>, vector<4x4xf32>, vector<4x4xf32>, vector<4x4xf32>, vector<4x4xf32>, vector<4x4xf32> -> vector<4x32xf32>
    %cst_178 = arith.constant dense<0.000000e+00> : vector<4x32xf32>
    %465 = tpu.matmul %464, %305, %cst_178 {dimension_numbers = #tpu.dot_dimension_numbers<[1], [0], [0], [1], [0, 0, 1, 1], [], []>} : vector<4x32xf32>, vector<32x32xf32>, vector<4x32xf32> -> vector<4x32xf32>
    %466 = vector.broadcast %307 : vector<1x32xf32> to vector<4x32xf32>
    %467 = arith.addf %465, %466 : vector<4x32xf32>
    %468 = arith.addf %299, %467 : vector<4x32xf32>
    %c0_179 = arith.constant 0 : index
    %c3 = arith.constant 3 : index
    %c0_180 = arith.constant 0 : index
    %469 = vector.load %arg12[%c0_179, %c3, %c0_180] : memref<1x6x32xf32, #tpu.memory_space<vmem>>, vector<1x1x32xf32>
    %470 = vector.shape_cast %469 : vector<1x1x32xf32> to vector<1x32xf32>
    %c0_181 = arith.constant 0 : index
    %c3_182 = arith.constant 3 : index
    %c0_183 = arith.constant 0 : index
    %471 = vector.load %arg13[%c0_181, %c3_182, %c0_183] : memref<1x6x32xf32, #tpu.memory_space<vmem>>, vector<1x1x32xf32>
    %472 = vector.shape_cast %471 : vector<1x1x32xf32> to vector<1x32xf32>
    %cst_184 = arith.constant dense<0.000000e+00> : vector<4xf32>
    %473 = vector.multi_reduction <add>, %468, %cst_184 [1] : vector<4x32xf32> to vector<4xf32>
    %474 = vector.shape_cast %473 : vector<4xf32> to vector<4x1xf32>
    %cst_185 = arith.constant 3.125000e-02 : f32
    %475 = vector.broadcast %cst_185 : f32 to vector<4x1xf32>
    %476 = arith.mulf %474, %475 : vector<4x1xf32>
    %477 = vector.broadcast %476 : vector<4x1xf32> to vector<4x32xf32>
    %478 = arith.subf %468, %477 : vector<4x32xf32>
    %479 = arith.mulf %478, %478 : vector<4x32xf32>
    %cst_186 = arith.constant dense<0.000000e+00> : vector<4xf32>
    %480 = vector.multi_reduction <add>, %479, %cst_186 [1] : vector<4x32xf32> to vector<4xf32>
    %481 = vector.shape_cast %480 : vector<4xf32> to vector<4x1xf32>
    %cst_187 = arith.constant 3.125000e-02 : f32
    %482 = vector.broadcast %cst_187 : f32 to vector<4x1xf32>
    %483 = arith.mulf %481, %482 : vector<4x1xf32>
    %cst_188 = arith.constant 9.99999974E-6 : f32
    %484 = vector.broadcast %cst_188 : f32 to vector<4x1xf32>
    %485 = arith.addf %483, %484 : vector<4x1xf32>
    %486 = math.rsqrt %485 : vector<4x1xf32>
    %487 = vector.broadcast %486 : vector<4x1xf32> to vector<4x32xf32>
    %488 = arith.mulf %478, %487 : vector<4x32xf32>
    %489 = vector.broadcast %470 : vector<1x32xf32> to vector<4x32xf32>
    %490 = arith.mulf %488, %489 : vector<4x32xf32>
    %491 = vector.broadcast %472 : vector<1x32xf32> to vector<4x32xf32>
    %492 = arith.addf %490, %491 : vector<4x32xf32>
    %c0_189 = arith.constant 0 : index
    %c2_190 = arith.constant 2 : index
    %c0_191 = arith.constant 0 : index
    %c0_192 = arith.constant 0 : index
    %493 = vector.load %arg14[%c0_189, %c2_190, %c0_191, %c0_192] : memref<1x4x32x96xf32, #tpu.memory_space<vmem>>, vector<1x1x32x96xf32>
    %494 = vector.shape_cast %493 : vector<1x1x32x96xf32> to vector<32x96xf32>
    %c0_193 = arith.constant 0 : index
    %c2_194 = arith.constant 2 : index
    %c0_195 = arith.constant 0 : index
    %495 = vector.load %arg15[%c0_193, %c2_194, %c0_195] : memref<1x4x96xf32, #tpu.memory_space<vmem>>, vector<1x1x96xf32>
    %496 = vector.shape_cast %495 : vector<1x1x96xf32> to vector<1x96xf32>
    %c0_196 = arith.constant 0 : index
    %c2_197 = arith.constant 2 : index
    %c0_198 = arith.constant 0 : index
    %c0_199 = arith.constant 0 : index
    %497 = vector.load %arg16[%c0_196, %c2_197, %c0_198, %c0_199] : memref<1x4x32x32xf32, #tpu.memory_space<vmem>>, vector<1x1x32x32xf32>
    %498 = vector.shape_cast %497 : vector<1x1x32x32xf32> to vector<32x32xf32>
    %c0_200 = arith.constant 0 : index
    %c2_201 = arith.constant 2 : index
    %c0_202 = arith.constant 0 : index
    %499 = vector.load %arg17[%c0_200, %c2_201, %c0_202] : memref<1x4x32xf32, #tpu.memory_space<vmem>>, vector<1x1x32xf32>
    %500 = vector.shape_cast %499 : vector<1x1x32xf32> to vector<1x32xf32>
    %501 = vector.extract_strided_slice %494 {offsets = [0, 0], sizes = [32, 32], strides = [1, 1]} : vector<32x96xf32> to vector<32x32xf32>
    %cst_203 = arith.constant dense<0.000000e+00> : vector<56x32xf32>
    %502 = tpu.matmul %82, %501, %cst_203 {dimension_numbers = #tpu.dot_dimension_numbers<[1], [0], [0], [1], [0, 0, 1, 1], [], []>} : vector<56x32xf32>, vector<32x32xf32>, vector<56x32xf32> -> vector<56x32xf32>
    %503 = vector.extract_strided_slice %496 {offsets = [0, 0], sizes = [1, 32], strides = [1, 1]} : vector<1x96xf32> to vector<1x32xf32>
    %504 = vector.broadcast %503 : vector<1x32xf32> to vector<56x32xf32>
    %505 = arith.addf %502, %504 : vector<56x32xf32>
    %506 = vector.extract_strided_slice %494 {offsets = [0, 32], sizes = [32, 64], strides = [1, 1]} : vector<32x96xf32> to vector<32x64xf32>
    %cst_204 = arith.constant dense<0.000000e+00> : vector<4x64xf32>
    %507 = tpu.matmul %492, %506, %cst_204 {dimension_numbers = #tpu.dot_dimension_numbers<[1], [0], [0], [1], [0, 0, 1, 1], [], []>} : vector<4x32xf32>, vector<32x64xf32>, vector<4x64xf32> -> vector<4x64xf32>
    %508 = vector.extract_strided_slice %496 {offsets = [0, 32], sizes = [1, 64], strides = [1, 1]} : vector<1x96xf32> to vector<1x64xf32>
    %509 = vector.broadcast %508 : vector<1x64xf32> to vector<4x64xf32>
    %510 = arith.addf %507, %509 : vector<4x64xf32>
    %511 = vector.extract_strided_slice %510 {offsets = [0, 0], sizes = [4, 32], strides = [1, 1]} : vector<4x64xf32> to vector<4x32xf32>
    %512 = vector.extract_strided_slice %510 {offsets = [0, 32], sizes = [4, 32], strides = [1, 1]} : vector<4x64xf32> to vector<4x32xf32>
    %513 = vector.extract_strided_slice %505 {offsets = [0, 0], sizes = [56, 4], strides = [1, 1]} : vector<56x32xf32> to vector<56x4xf32>
    %514 = vector.extract_strided_slice %511 {offsets = [0, 0], sizes = [4, 4], strides = [1, 1]} : vector<4x32xf32> to vector<4x4xf32>
    %515 = vector.extract_strided_slice %512 {offsets = [0, 0], sizes = [4, 4], strides = [1, 1]} : vector<4x32xf32> to vector<4x4xf32>
    %516 = tpu.transpose %514, [1, 0] : vector<4x4xf32> -> vector<4x4xf32>
    %cst_205 = arith.constant dense<0.000000e+00> : vector<56x4xf32>
    %517 = tpu.matmul %513, %516, %cst_205 {dimension_numbers = #tpu.dot_dimension_numbers<[1], [0], [0], [1], [0, 0, 1, 1], [], []>} : vector<56x4xf32>, vector<4x4xf32>, vector<56x4xf32> -> vector<56x4xf32>
    %cst_206 = arith.constant 5.000000e-01 : f32
    %518 = vector.broadcast %cst_206 : f32 to vector<56x4xf32>
    %519 = arith.mulf %517, %518 : vector<56x4xf32>
    %cst_207 = arith.constant dense<0xFF800000> : vector<56xf32>
    %520 = vector.multi_reduction <maximumf>, %519, %cst_207 [1] : vector<56x4xf32> to vector<56xf32>
    %521 = vector.shape_cast %520 : vector<56xf32> to vector<56x1xf32>
    %522 = vector.broadcast %521 : vector<56x1xf32> to vector<56x4xf32>
    %523 = arith.subf %519, %522 : vector<56x4xf32>
    %524 = math.exp %523 : vector<56x4xf32>
    %cst_208 = arith.constant dense<0.000000e+00> : vector<56xf32>
    %525 = vector.multi_reduction <add>, %524, %cst_208 [1] : vector<56x4xf32> to vector<56xf32>
    %526 = vector.shape_cast %525 : vector<56xf32> to vector<56x1xf32>
    %527 = tpu.reciprocal %526 {approx = true} : vector<56x1xf32> -> vector<56x1xf32>
    %cst_209 = arith.constant dense<0.000000e+00> : vector<56x4xf32>
    %528 = tpu.matmul %524, %515, %cst_209 {dimension_numbers = #tpu.dot_dimension_numbers<[1], [0], [0], [1], [0, 0, 1, 1], [], []>} : vector<56x4xf32>, vector<4x4xf32>, vector<56x4xf32> -> vector<56x4xf32>
    %529 = vector.broadcast %527 : vector<56x1xf32> to vector<56x4xf32>
    %530 = arith.mulf %528, %529 : vector<56x4xf32>
    %531 = vector.extract_strided_slice %505 {offsets = [0, 4], sizes = [56, 4], strides = [1, 1]} : vector<56x32xf32> to vector<56x4xf32>
    %532 = vector.extract_strided_slice %511 {offsets = [0, 4], sizes = [4, 4], strides = [1, 1]} : vector<4x32xf32> to vector<4x4xf32>
    %533 = vector.extract_strided_slice %512 {offsets = [0, 4], sizes = [4, 4], strides = [1, 1]} : vector<4x32xf32> to vector<4x4xf32>
    %534 = tpu.transpose %532, [1, 0] : vector<4x4xf32> -> vector<4x4xf32>
    %cst_210 = arith.constant dense<0.000000e+00> : vector<56x4xf32>
    %535 = tpu.matmul %531, %534, %cst_210 {dimension_numbers = #tpu.dot_dimension_numbers<[1], [0], [0], [1], [0, 0, 1, 1], [], []>} : vector<56x4xf32>, vector<4x4xf32>, vector<56x4xf32> -> vector<56x4xf32>
    %cst_211 = arith.constant 5.000000e-01 : f32
    %536 = vector.broadcast %cst_211 : f32 to vector<56x4xf32>
    %537 = arith.mulf %535, %536 : vector<56x4xf32>
    %cst_212 = arith.constant dense<0xFF800000> : vector<56xf32>
    %538 = vector.multi_reduction <maximumf>, %537, %cst_212 [1] : vector<56x4xf32> to vector<56xf32>
    %539 = vector.shape_cast %538 : vector<56xf32> to vector<56x1xf32>
    %540 = vector.broadcast %539 : vector<56x1xf32> to vector<56x4xf32>
    %541 = arith.subf %537, %540 : vector<56x4xf32>
    %542 = math.exp %541 : vector<56x4xf32>
    %cst_213 = arith.constant dense<0.000000e+00> : vector<56xf32>
    %543 = vector.multi_reduction <add>, %542, %cst_213 [1] : vector<56x4xf32> to vector<56xf32>
    %544 = vector.shape_cast %543 : vector<56xf32> to vector<56x1xf32>
    %545 = tpu.reciprocal %544 {approx = true} : vector<56x1xf32> -> vector<56x1xf32>
    %cst_214 = arith.constant dense<0.000000e+00> : vector<56x4xf32>
    %546 = tpu.matmul %542, %533, %cst_214 {dimension_numbers = #tpu.dot_dimension_numbers<[1], [0], [0], [1], [0, 0, 1, 1], [], []>} : vector<56x4xf32>, vector<4x4xf32>, vector<56x4xf32> -> vector<56x4xf32>
    %547 = vector.broadcast %545 : vector<56x1xf32> to vector<56x4xf32>
    %548 = arith.mulf %546, %547 : vector<56x4xf32>
    %549 = vector.extract_strided_slice %505 {offsets = [0, 8], sizes = [56, 4], strides = [1, 1]} : vector<56x32xf32> to vector<56x4xf32>
    %550 = vector.extract_strided_slice %511 {offsets = [0, 8], sizes = [4, 4], strides = [1, 1]} : vector<4x32xf32> to vector<4x4xf32>
    %551 = vector.extract_strided_slice %512 {offsets = [0, 8], sizes = [4, 4], strides = [1, 1]} : vector<4x32xf32> to vector<4x4xf32>
    %552 = tpu.transpose %550, [1, 0] : vector<4x4xf32> -> vector<4x4xf32>
    %cst_215 = arith.constant dense<0.000000e+00> : vector<56x4xf32>
    %553 = tpu.matmul %549, %552, %cst_215 {dimension_numbers = #tpu.dot_dimension_numbers<[1], [0], [0], [1], [0, 0, 1, 1], [], []>} : vector<56x4xf32>, vector<4x4xf32>, vector<56x4xf32> -> vector<56x4xf32>
    %cst_216 = arith.constant 5.000000e-01 : f32
    %554 = vector.broadcast %cst_216 : f32 to vector<56x4xf32>
    %555 = arith.mulf %553, %554 : vector<56x4xf32>
    %cst_217 = arith.constant dense<0xFF800000> : vector<56xf32>
    %556 = vector.multi_reduction <maximumf>, %555, %cst_217 [1] : vector<56x4xf32> to vector<56xf32>
    %557 = vector.shape_cast %556 : vector<56xf32> to vector<56x1xf32>
    %558 = vector.broadcast %557 : vector<56x1xf32> to vector<56x4xf32>
    %559 = arith.subf %555, %558 : vector<56x4xf32>
    %560 = math.exp %559 : vector<56x4xf32>
    %cst_218 = arith.constant dense<0.000000e+00> : vector<56xf32>
    %561 = vector.multi_reduction <add>, %560, %cst_218 [1] : vector<56x4xf32> to vector<56xf32>
    %562 = vector.shape_cast %561 : vector<56xf32> to vector<56x1xf32>
    %563 = tpu.reciprocal %562 {approx = true} : vector<56x1xf32> -> vector<56x1xf32>
    %cst_219 = arith.constant dense<0.000000e+00> : vector<56x4xf32>
    %564 = tpu.matmul %560, %551, %cst_219 {dimension_numbers = #tpu.dot_dimension_numbers<[1], [0], [0], [1], [0, 0, 1, 1], [], []>} : vector<56x4xf32>, vector<4x4xf32>, vector<56x4xf32> -> vector<56x4xf32>
    %565 = vector.broadcast %563 : vector<56x1xf32> to vector<56x4xf32>
    %566 = arith.mulf %564, %565 : vector<56x4xf32>
    %567 = vector.extract_strided_slice %505 {offsets = [0, 12], sizes = [56, 4], strides = [1, 1]} : vector<56x32xf32> to vector<56x4xf32>
    %568 = vector.extract_strided_slice %511 {offsets = [0, 12], sizes = [4, 4], strides = [1, 1]} : vector<4x32xf32> to vector<4x4xf32>
    %569 = vector.extract_strided_slice %512 {offsets = [0, 12], sizes = [4, 4], strides = [1, 1]} : vector<4x32xf32> to vector<4x4xf32>
    %570 = tpu.transpose %568, [1, 0] : vector<4x4xf32> -> vector<4x4xf32>
    %cst_220 = arith.constant dense<0.000000e+00> : vector<56x4xf32>
    %571 = tpu.matmul %567, %570, %cst_220 {dimension_numbers = #tpu.dot_dimension_numbers<[1], [0], [0], [1], [0, 0, 1, 1], [], []>} : vector<56x4xf32>, vector<4x4xf32>, vector<56x4xf32> -> vector<56x4xf32>
    %cst_221 = arith.constant 5.000000e-01 : f32
    %572 = vector.broadcast %cst_221 : f32 to vector<56x4xf32>
    %573 = arith.mulf %571, %572 : vector<56x4xf32>
    %cst_222 = arith.constant dense<0xFF800000> : vector<56xf32>
    %574 = vector.multi_reduction <maximumf>, %573, %cst_222 [1] : vector<56x4xf32> to vector<56xf32>
    %575 = vector.shape_cast %574 : vector<56xf32> to vector<56x1xf32>
    %576 = vector.broadcast %575 : vector<56x1xf32> to vector<56x4xf32>
    %577 = arith.subf %573, %576 : vector<56x4xf32>
    %578 = math.exp %577 : vector<56x4xf32>
    %cst_223 = arith.constant dense<0.000000e+00> : vector<56xf32>
    %579 = vector.multi_reduction <add>, %578, %cst_223 [1] : vector<56x4xf32> to vector<56xf32>
    %580 = vector.shape_cast %579 : vector<56xf32> to vector<56x1xf32>
    %581 = tpu.reciprocal %580 {approx = true} : vector<56x1xf32> -> vector<56x1xf32>
    %cst_224 = arith.constant dense<0.000000e+00> : vector<56x4xf32>
    %582 = tpu.matmul %578, %569, %cst_224 {dimension_numbers = #tpu.dot_dimension_numbers<[1], [0], [0], [1], [0, 0, 1, 1], [], []>} : vector<56x4xf32>, vector<4x4xf32>, vector<56x4xf32> -> vector<56x4xf32>
    %583 = vector.broadcast %581 : vector<56x1xf32> to vector<56x4xf32>
    %584 = arith.mulf %582, %583 : vector<56x4xf32>
    %585 = vector.extract_strided_slice %505 {offsets = [0, 16], sizes = [56, 4], strides = [1, 1]} : vector<56x32xf32> to vector<56x4xf32>
    %586 = vector.extract_strided_slice %511 {offsets = [0, 16], sizes = [4, 4], strides = [1, 1]} : vector<4x32xf32> to vector<4x4xf32>
    %587 = vector.extract_strided_slice %512 {offsets = [0, 16], sizes = [4, 4], strides = [1, 1]} : vector<4x32xf32> to vector<4x4xf32>
    %588 = tpu.transpose %586, [1, 0] : vector<4x4xf32> -> vector<4x4xf32>
    %cst_225 = arith.constant dense<0.000000e+00> : vector<56x4xf32>
    %589 = tpu.matmul %585, %588, %cst_225 {dimension_numbers = #tpu.dot_dimension_numbers<[1], [0], [0], [1], [0, 0, 1, 1], [], []>} : vector<56x4xf32>, vector<4x4xf32>, vector<56x4xf32> -> vector<56x4xf32>
    %cst_226 = arith.constant 5.000000e-01 : f32
    %590 = vector.broadcast %cst_226 : f32 to vector<56x4xf32>
    %591 = arith.mulf %589, %590 : vector<56x4xf32>
    %cst_227 = arith.constant dense<0xFF800000> : vector<56xf32>
    %592 = vector.multi_reduction <maximumf>, %591, %cst_227 [1] : vector<56x4xf32> to vector<56xf32>
    %593 = vector.shape_cast %592 : vector<56xf32> to vector<56x1xf32>
    %594 = vector.broadcast %593 : vector<56x1xf32> to vector<56x4xf32>
    %595 = arith.subf %591, %594 : vector<56x4xf32>
    %596 = math.exp %595 : vector<56x4xf32>
    %cst_228 = arith.constant dense<0.000000e+00> : vector<56xf32>
    %597 = vector.multi_reduction <add>, %596, %cst_228 [1] : vector<56x4xf32> to vector<56xf32>
    %598 = vector.shape_cast %597 : vector<56xf32> to vector<56x1xf32>
    %599 = tpu.reciprocal %598 {approx = true} : vector<56x1xf32> -> vector<56x1xf32>
    %cst_229 = arith.constant dense<0.000000e+00> : vector<56x4xf32>
    %600 = tpu.matmul %596, %587, %cst_229 {dimension_numbers = #tpu.dot_dimension_numbers<[1], [0], [0], [1], [0, 0, 1, 1], [], []>} : vector<56x4xf32>, vector<4x4xf32>, vector<56x4xf32> -> vector<56x4xf32>
    %601 = vector.broadcast %599 : vector<56x1xf32> to vector<56x4xf32>
    %602 = arith.mulf %600, %601 : vector<56x4xf32>
    %603 = vector.extract_strided_slice %505 {offsets = [0, 20], sizes = [56, 4], strides = [1, 1]} : vector<56x32xf32> to vector<56x4xf32>
    %604 = vector.extract_strided_slice %511 {offsets = [0, 20], sizes = [4, 4], strides = [1, 1]} : vector<4x32xf32> to vector<4x4xf32>
    %605 = vector.extract_strided_slice %512 {offsets = [0, 20], sizes = [4, 4], strides = [1, 1]} : vector<4x32xf32> to vector<4x4xf32>
    %606 = tpu.transpose %604, [1, 0] : vector<4x4xf32> -> vector<4x4xf32>
    %cst_230 = arith.constant dense<0.000000e+00> : vector<56x4xf32>
    %607 = tpu.matmul %603, %606, %cst_230 {dimension_numbers = #tpu.dot_dimension_numbers<[1], [0], [0], [1], [0, 0, 1, 1], [], []>} : vector<56x4xf32>, vector<4x4xf32>, vector<56x4xf32> -> vector<56x4xf32>
    %cst_231 = arith.constant 5.000000e-01 : f32
    %608 = vector.broadcast %cst_231 : f32 to vector<56x4xf32>
    %609 = arith.mulf %607, %608 : vector<56x4xf32>
    %cst_232 = arith.constant dense<0xFF800000> : vector<56xf32>
    %610 = vector.multi_reduction <maximumf>, %609, %cst_232 [1] : vector<56x4xf32> to vector<56xf32>
    %611 = vector.shape_cast %610 : vector<56xf32> to vector<56x1xf32>
    %612 = vector.broadcast %611 : vector<56x1xf32> to vector<56x4xf32>
    %613 = arith.subf %609, %612 : vector<56x4xf32>
    %614 = math.exp %613 : vector<56x4xf32>
    %cst_233 = arith.constant dense<0.000000e+00> : vector<56xf32>
    %615 = vector.multi_reduction <add>, %614, %cst_233 [1] : vector<56x4xf32> to vector<56xf32>
    %616 = vector.shape_cast %615 : vector<56xf32> to vector<56x1xf32>
    %617 = tpu.reciprocal %616 {approx = true} : vector<56x1xf32> -> vector<56x1xf32>
    %cst_234 = arith.constant dense<0.000000e+00> : vector<56x4xf32>
    %618 = tpu.matmul %614, %605, %cst_234 {dimension_numbers = #tpu.dot_dimension_numbers<[1], [0], [0], [1], [0, 0, 1, 1], [], []>} : vector<56x4xf32>, vector<4x4xf32>, vector<56x4xf32> -> vector<56x4xf32>
    %619 = vector.broadcast %617 : vector<56x1xf32> to vector<56x4xf32>
    %620 = arith.mulf %618, %619 : vector<56x4xf32>
    %621 = vector.extract_strided_slice %505 {offsets = [0, 24], sizes = [56, 4], strides = [1, 1]} : vector<56x32xf32> to vector<56x4xf32>
    %622 = vector.extract_strided_slice %511 {offsets = [0, 24], sizes = [4, 4], strides = [1, 1]} : vector<4x32xf32> to vector<4x4xf32>
    %623 = vector.extract_strided_slice %512 {offsets = [0, 24], sizes = [4, 4], strides = [1, 1]} : vector<4x32xf32> to vector<4x4xf32>
    %624 = tpu.transpose %622, [1, 0] : vector<4x4xf32> -> vector<4x4xf32>
    %cst_235 = arith.constant dense<0.000000e+00> : vector<56x4xf32>
    %625 = tpu.matmul %621, %624, %cst_235 {dimension_numbers = #tpu.dot_dimension_numbers<[1], [0], [0], [1], [0, 0, 1, 1], [], []>} : vector<56x4xf32>, vector<4x4xf32>, vector<56x4xf32> -> vector<56x4xf32>
    %cst_236 = arith.constant 5.000000e-01 : f32
    %626 = vector.broadcast %cst_236 : f32 to vector<56x4xf32>
    %627 = arith.mulf %625, %626 : vector<56x4xf32>
    %cst_237 = arith.constant dense<0xFF800000> : vector<56xf32>
    %628 = vector.multi_reduction <maximumf>, %627, %cst_237 [1] : vector<56x4xf32> to vector<56xf32>
    %629 = vector.shape_cast %628 : vector<56xf32> to vector<56x1xf32>
    %630 = vector.broadcast %629 : vector<56x1xf32> to vector<56x4xf32>
    %631 = arith.subf %627, %630 : vector<56x4xf32>
    %632 = math.exp %631 : vector<56x4xf32>
    %cst_238 = arith.constant dense<0.000000e+00> : vector<56xf32>
    %633 = vector.multi_reduction <add>, %632, %cst_238 [1] : vector<56x4xf32> to vector<56xf32>
    %634 = vector.shape_cast %633 : vector<56xf32> to vector<56x1xf32>
    %635 = tpu.reciprocal %634 {approx = true} : vector<56x1xf32> -> vector<56x1xf32>
    %cst_239 = arith.constant dense<0.000000e+00> : vector<56x4xf32>
    %636 = tpu.matmul %632, %623, %cst_239 {dimension_numbers = #tpu.dot_dimension_numbers<[1], [0], [0], [1], [0, 0, 1, 1], [], []>} : vector<56x4xf32>, vector<4x4xf32>, vector<56x4xf32> -> vector<56x4xf32>
    %637 = vector.broadcast %635 : vector<56x1xf32> to vector<56x4xf32>
    %638 = arith.mulf %636, %637 : vector<56x4xf32>
    %639 = vector.extract_strided_slice %505 {offsets = [0, 28], sizes = [56, 4], strides = [1, 1]} : vector<56x32xf32> to vector<56x4xf32>
    %640 = vector.extract_strided_slice %511 {offsets = [0, 28], sizes = [4, 4], strides = [1, 1]} : vector<4x32xf32> to vector<4x4xf32>
    %641 = vector.extract_strided_slice %512 {offsets = [0, 28], sizes = [4, 4], strides = [1, 1]} : vector<4x32xf32> to vector<4x4xf32>
    %642 = tpu.transpose %640, [1, 0] : vector<4x4xf32> -> vector<4x4xf32>
    %cst_240 = arith.constant dense<0.000000e+00> : vector<56x4xf32>
    %643 = tpu.matmul %639, %642, %cst_240 {dimension_numbers = #tpu.dot_dimension_numbers<[1], [0], [0], [1], [0, 0, 1, 1], [], []>} : vector<56x4xf32>, vector<4x4xf32>, vector<56x4xf32> -> vector<56x4xf32>
    %cst_241 = arith.constant 5.000000e-01 : f32
    %644 = vector.broadcast %cst_241 : f32 to vector<56x4xf32>
    %645 = arith.mulf %643, %644 : vector<56x4xf32>
    %cst_242 = arith.constant dense<0xFF800000> : vector<56xf32>
    %646 = vector.multi_reduction <maximumf>, %645, %cst_242 [1] : vector<56x4xf32> to vector<56xf32>
    %647 = vector.shape_cast %646 : vector<56xf32> to vector<56x1xf32>
    %648 = vector.broadcast %647 : vector<56x1xf32> to vector<56x4xf32>
    %649 = arith.subf %645, %648 : vector<56x4xf32>
    %650 = math.exp %649 : vector<56x4xf32>
    %cst_243 = arith.constant dense<0.000000e+00> : vector<56xf32>
    %651 = vector.multi_reduction <add>, %650, %cst_243 [1] : vector<56x4xf32> to vector<56xf32>
    %652 = vector.shape_cast %651 : vector<56xf32> to vector<56x1xf32>
    %653 = tpu.reciprocal %652 {approx = true} : vector<56x1xf32> -> vector<56x1xf32>
    %cst_244 = arith.constant dense<0.000000e+00> : vector<56x4xf32>
    %654 = tpu.matmul %650, %641, %cst_244 {dimension_numbers = #tpu.dot_dimension_numbers<[1], [0], [0], [1], [0, 0, 1, 1], [], []>} : vector<56x4xf32>, vector<4x4xf32>, vector<56x4xf32> -> vector<56x4xf32>
    %655 = vector.broadcast %653 : vector<56x1xf32> to vector<56x4xf32>
    %656 = arith.mulf %654, %655 : vector<56x4xf32>
    %657 = tpu.concatenate %530, %548, %566, %584, %602, %620, %638, %656 in 1 : vector<56x4xf32>, vector<56x4xf32>, vector<56x4xf32>, vector<56x4xf32>, vector<56x4xf32>, vector<56x4xf32>, vector<56x4xf32>, vector<56x4xf32> -> vector<56x32xf32>
    %cst_245 = arith.constant dense<0.000000e+00> : vector<56x32xf32>
    %658 = tpu.matmul %657, %498, %cst_245 {dimension_numbers = #tpu.dot_dimension_numbers<[1], [0], [0], [1], [0, 0, 1, 1], [], []>} : vector<56x32xf32>, vector<32x32xf32>, vector<56x32xf32> -> vector<56x32xf32>
    %659 = vector.broadcast %500 : vector<1x32xf32> to vector<56x32xf32>
    %660 = arith.addf %658, %659 : vector<56x32xf32>
    %661 = arith.addf %30, %660 : vector<56x32xf32>
    %c0_246 = arith.constant 0 : index
    %c3_247 = arith.constant 3 : index
    %c0_248 = arith.constant 0 : index
    %c0_249 = arith.constant 0 : index
    %662 = vector.load %arg14[%c0_246, %c3_247, %c0_248, %c0_249] : memref<1x4x32x96xf32, #tpu.memory_space<vmem>>, vector<1x1x32x96xf32>
    %663 = vector.shape_cast %662 : vector<1x1x32x96xf32> to vector<32x96xf32>
    %c0_250 = arith.constant 0 : index
    %c3_251 = arith.constant 3 : index
    %c0_252 = arith.constant 0 : index
    %664 = vector.load %arg15[%c0_250, %c3_251, %c0_252] : memref<1x4x96xf32, #tpu.memory_space<vmem>>, vector<1x1x96xf32>
    %665 = vector.shape_cast %664 : vector<1x1x96xf32> to vector<1x96xf32>
    %c0_253 = arith.constant 0 : index
    %c3_254 = arith.constant 3 : index
    %c0_255 = arith.constant 0 : index
    %c0_256 = arith.constant 0 : index
    %666 = vector.load %arg16[%c0_253, %c3_254, %c0_255, %c0_256] : memref<1x4x32x32xf32, #tpu.memory_space<vmem>>, vector<1x1x32x32xf32>
    %667 = vector.shape_cast %666 : vector<1x1x32x32xf32> to vector<32x32xf32>
    %c0_257 = arith.constant 0 : index
    %c3_258 = arith.constant 3 : index
    %c0_259 = arith.constant 0 : index
    %668 = vector.load %arg17[%c0_257, %c3_258, %c0_259] : memref<1x4x32xf32, #tpu.memory_space<vmem>>, vector<1x1x32xf32>
    %669 = vector.shape_cast %668 : vector<1x1x32xf32> to vector<1x32xf32>
    %670 = vector.extract_strided_slice %663 {offsets = [0, 0], sizes = [32, 32], strides = [1, 1]} : vector<32x96xf32> to vector<32x32xf32>
    %cst_260 = arith.constant dense<0.000000e+00> : vector<56x32xf32>
    %671 = tpu.matmul %106, %670, %cst_260 {dimension_numbers = #tpu.dot_dimension_numbers<[1], [0], [0], [1], [0, 0, 1, 1], [], []>} : vector<56x32xf32>, vector<32x32xf32>, vector<56x32xf32> -> vector<56x32xf32>
    %672 = vector.extract_strided_slice %665 {offsets = [0, 0], sizes = [1, 32], strides = [1, 1]} : vector<1x96xf32> to vector<1x32xf32>
    %673 = vector.broadcast %672 : vector<1x32xf32> to vector<56x32xf32>
    %674 = arith.addf %671, %673 : vector<56x32xf32>
    %675 = vector.extract_strided_slice %663 {offsets = [0, 32], sizes = [32, 64], strides = [1, 1]} : vector<32x96xf32> to vector<32x64xf32>
    %cst_261 = arith.constant dense<0.000000e+00> : vector<4x64xf32>
    %676 = tpu.matmul %492, %675, %cst_261 {dimension_numbers = #tpu.dot_dimension_numbers<[1], [0], [0], [1], [0, 0, 1, 1], [], []>} : vector<4x32xf32>, vector<32x64xf32>, vector<4x64xf32> -> vector<4x64xf32>
    %677 = vector.extract_strided_slice %665 {offsets = [0, 32], sizes = [1, 64], strides = [1, 1]} : vector<1x96xf32> to vector<1x64xf32>
    %678 = vector.broadcast %677 : vector<1x64xf32> to vector<4x64xf32>
    %679 = arith.addf %676, %678 : vector<4x64xf32>
    %680 = vector.extract_strided_slice %679 {offsets = [0, 0], sizes = [4, 32], strides = [1, 1]} : vector<4x64xf32> to vector<4x32xf32>
    %681 = vector.extract_strided_slice %679 {offsets = [0, 32], sizes = [4, 32], strides = [1, 1]} : vector<4x64xf32> to vector<4x32xf32>
    %682 = vector.extract_strided_slice %674 {offsets = [0, 0], sizes = [56, 4], strides = [1, 1]} : vector<56x32xf32> to vector<56x4xf32>
    %683 = vector.extract_strided_slice %680 {offsets = [0, 0], sizes = [4, 4], strides = [1, 1]} : vector<4x32xf32> to vector<4x4xf32>
    %684 = vector.extract_strided_slice %681 {offsets = [0, 0], sizes = [4, 4], strides = [1, 1]} : vector<4x32xf32> to vector<4x4xf32>
    %685 = tpu.transpose %683, [1, 0] : vector<4x4xf32> -> vector<4x4xf32>
    %cst_262 = arith.constant dense<0.000000e+00> : vector<56x4xf32>
    %686 = tpu.matmul %682, %685, %cst_262 {dimension_numbers = #tpu.dot_dimension_numbers<[1], [0], [0], [1], [0, 0, 1, 1], [], []>} : vector<56x4xf32>, vector<4x4xf32>, vector<56x4xf32> -> vector<56x4xf32>
    %cst_263 = arith.constant 5.000000e-01 : f32
    %687 = vector.broadcast %cst_263 : f32 to vector<56x4xf32>
    %688 = arith.mulf %686, %687 : vector<56x4xf32>
    %cst_264 = arith.constant dense<0xFF800000> : vector<56xf32>
    %689 = vector.multi_reduction <maximumf>, %688, %cst_264 [1] : vector<56x4xf32> to vector<56xf32>
    %690 = vector.shape_cast %689 : vector<56xf32> to vector<56x1xf32>
    %691 = vector.broadcast %690 : vector<56x1xf32> to vector<56x4xf32>
    %692 = arith.subf %688, %691 : vector<56x4xf32>
    %693 = math.exp %692 : vector<56x4xf32>
    %cst_265 = arith.constant dense<0.000000e+00> : vector<56xf32>
    %694 = vector.multi_reduction <add>, %693, %cst_265 [1] : vector<56x4xf32> to vector<56xf32>
    %695 = vector.shape_cast %694 : vector<56xf32> to vector<56x1xf32>
    %696 = tpu.reciprocal %695 {approx = true} : vector<56x1xf32> -> vector<56x1xf32>
    %cst_266 = arith.constant dense<0.000000e+00> : vector<56x4xf32>
    %697 = tpu.matmul %693, %684, %cst_266 {dimension_numbers = #tpu.dot_dimension_numbers<[1], [0], [0], [1], [0, 0, 1, 1], [], []>} : vector<56x4xf32>, vector<4x4xf32>, vector<56x4xf32> -> vector<56x4xf32>
    %698 = vector.broadcast %696 : vector<56x1xf32> to vector<56x4xf32>
    %699 = arith.mulf %697, %698 : vector<56x4xf32>
    %700 = vector.extract_strided_slice %674 {offsets = [0, 4], sizes = [56, 4], strides = [1, 1]} : vector<56x32xf32> to vector<56x4xf32>
    %701 = vector.extract_strided_slice %680 {offsets = [0, 4], sizes = [4, 4], strides = [1, 1]} : vector<4x32xf32> to vector<4x4xf32>
    %702 = vector.extract_strided_slice %681 {offsets = [0, 4], sizes = [4, 4], strides = [1, 1]} : vector<4x32xf32> to vector<4x4xf32>
    %703 = tpu.transpose %701, [1, 0] : vector<4x4xf32> -> vector<4x4xf32>
    %cst_267 = arith.constant dense<0.000000e+00> : vector<56x4xf32>
    %704 = tpu.matmul %700, %703, %cst_267 {dimension_numbers = #tpu.dot_dimension_numbers<[1], [0], [0], [1], [0, 0, 1, 1], [], []>} : vector<56x4xf32>, vector<4x4xf32>, vector<56x4xf32> -> vector<56x4xf32>
    %cst_268 = arith.constant 5.000000e-01 : f32
    %705 = vector.broadcast %cst_268 : f32 to vector<56x4xf32>
    %706 = arith.mulf %704, %705 : vector<56x4xf32>
    %cst_269 = arith.constant dense<0xFF800000> : vector<56xf32>
    %707 = vector.multi_reduction <maximumf>, %706, %cst_269 [1] : vector<56x4xf32> to vector<56xf32>
    %708 = vector.shape_cast %707 : vector<56xf32> to vector<56x1xf32>
    %709 = vector.broadcast %708 : vector<56x1xf32> to vector<56x4xf32>
    %710 = arith.subf %706, %709 : vector<56x4xf32>
    %711 = math.exp %710 : vector<56x4xf32>
    %cst_270 = arith.constant dense<0.000000e+00> : vector<56xf32>
    %712 = vector.multi_reduction <add>, %711, %cst_270 [1] : vector<56x4xf32> to vector<56xf32>
    %713 = vector.shape_cast %712 : vector<56xf32> to vector<56x1xf32>
    %714 = tpu.reciprocal %713 {approx = true} : vector<56x1xf32> -> vector<56x1xf32>
    %cst_271 = arith.constant dense<0.000000e+00> : vector<56x4xf32>
    %715 = tpu.matmul %711, %702, %cst_271 {dimension_numbers = #tpu.dot_dimension_numbers<[1], [0], [0], [1], [0, 0, 1, 1], [], []>} : vector<56x4xf32>, vector<4x4xf32>, vector<56x4xf32> -> vector<56x4xf32>
    %716 = vector.broadcast %714 : vector<56x1xf32> to vector<56x4xf32>
    %717 = arith.mulf %715, %716 : vector<56x4xf32>
    %718 = vector.extract_strided_slice %674 {offsets = [0, 8], sizes = [56, 4], strides = [1, 1]} : vector<56x32xf32> to vector<56x4xf32>
    %719 = vector.extract_strided_slice %680 {offsets = [0, 8], sizes = [4, 4], strides = [1, 1]} : vector<4x32xf32> to vector<4x4xf32>
    %720 = vector.extract_strided_slice %681 {offsets = [0, 8], sizes = [4, 4], strides = [1, 1]} : vector<4x32xf32> to vector<4x4xf32>
    %721 = tpu.transpose %719, [1, 0] : vector<4x4xf32> -> vector<4x4xf32>
    %cst_272 = arith.constant dense<0.000000e+00> : vector<56x4xf32>
    %722 = tpu.matmul %718, %721, %cst_272 {dimension_numbers = #tpu.dot_dimension_numbers<[1], [0], [0], [1], [0, 0, 1, 1], [], []>} : vector<56x4xf32>, vector<4x4xf32>, vector<56x4xf32> -> vector<56x4xf32>
    %cst_273 = arith.constant 5.000000e-01 : f32
    %723 = vector.broadcast %cst_273 : f32 to vector<56x4xf32>
    %724 = arith.mulf %722, %723 : vector<56x4xf32>
    %cst_274 = arith.constant dense<0xFF800000> : vector<56xf32>
    %725 = vector.multi_reduction <maximumf>, %724, %cst_274 [1] : vector<56x4xf32> to vector<56xf32>
    %726 = vector.shape_cast %725 : vector<56xf32> to vector<56x1xf32>
    %727 = vector.broadcast %726 : vector<56x1xf32> to vector<56x4xf32>
    %728 = arith.subf %724, %727 : vector<56x4xf32>
    %729 = math.exp %728 : vector<56x4xf32>
    %cst_275 = arith.constant dense<0.000000e+00> : vector<56xf32>
    %730 = vector.multi_reduction <add>, %729, %cst_275 [1] : vector<56x4xf32> to vector<56xf32>
    %731 = vector.shape_cast %730 : vector<56xf32> to vector<56x1xf32>
    %732 = tpu.reciprocal %731 {approx = true} : vector<56x1xf32> -> vector<56x1xf32>
    %cst_276 = arith.constant dense<0.000000e+00> : vector<56x4xf32>
    %733 = tpu.matmul %729, %720, %cst_276 {dimension_numbers = #tpu.dot_dimension_numbers<[1], [0], [0], [1], [0, 0, 1, 1], [], []>} : vector<56x4xf32>, vector<4x4xf32>, vector<56x4xf32> -> vector<56x4xf32>
    %734 = vector.broadcast %732 : vector<56x1xf32> to vector<56x4xf32>
    %735 = arith.mulf %733, %734 : vector<56x4xf32>
    %736 = vector.extract_strided_slice %674 {offsets = [0, 12], sizes = [56, 4], strides = [1, 1]} : vector<56x32xf32> to vector<56x4xf32>
    %737 = vector.extract_strided_slice %680 {offsets = [0, 12], sizes = [4, 4], strides = [1, 1]} : vector<4x32xf32> to vector<4x4xf32>
    %738 = vector.extract_strided_slice %681 {offsets = [0, 12], sizes = [4, 4], strides = [1, 1]} : vector<4x32xf32> to vector<4x4xf32>
    %739 = tpu.transpose %737, [1, 0] : vector<4x4xf32> -> vector<4x4xf32>
    %cst_277 = arith.constant dense<0.000000e+00> : vector<56x4xf32>
    %740 = tpu.matmul %736, %739, %cst_277 {dimension_numbers = #tpu.dot_dimension_numbers<[1], [0], [0], [1], [0, 0, 1, 1], [], []>} : vector<56x4xf32>, vector<4x4xf32>, vector<56x4xf32> -> vector<56x4xf32>
    %cst_278 = arith.constant 5.000000e-01 : f32
    %741 = vector.broadcast %cst_278 : f32 to vector<56x4xf32>
    %742 = arith.mulf %740, %741 : vector<56x4xf32>
    %cst_279 = arith.constant dense<0xFF800000> : vector<56xf32>
    %743 = vector.multi_reduction <maximumf>, %742, %cst_279 [1] : vector<56x4xf32> to vector<56xf32>
    %744 = vector.shape_cast %743 : vector<56xf32> to vector<56x1xf32>
    %745 = vector.broadcast %744 : vector<56x1xf32> to vector<56x4xf32>
    %746 = arith.subf %742, %745 : vector<56x4xf32>
    %747 = math.exp %746 : vector<56x4xf32>
    %cst_280 = arith.constant dense<0.000000e+00> : vector<56xf32>
    %748 = vector.multi_reduction <add>, %747, %cst_280 [1] : vector<56x4xf32> to vector<56xf32>
    %749 = vector.shape_cast %748 : vector<56xf32> to vector<56x1xf32>
    %750 = tpu.reciprocal %749 {approx = true} : vector<56x1xf32> -> vector<56x1xf32>
    %cst_281 = arith.constant dense<0.000000e+00> : vector<56x4xf32>
    %751 = tpu.matmul %747, %738, %cst_281 {dimension_numbers = #tpu.dot_dimension_numbers<[1], [0], [0], [1], [0, 0, 1, 1], [], []>} : vector<56x4xf32>, vector<4x4xf32>, vector<56x4xf32> -> vector<56x4xf32>
    %752 = vector.broadcast %750 : vector<56x1xf32> to vector<56x4xf32>
    %753 = arith.mulf %751, %752 : vector<56x4xf32>
    %754 = vector.extract_strided_slice %674 {offsets = [0, 16], sizes = [56, 4], strides = [1, 1]} : vector<56x32xf32> to vector<56x4xf32>
    %755 = vector.extract_strided_slice %680 {offsets = [0, 16], sizes = [4, 4], strides = [1, 1]} : vector<4x32xf32> to vector<4x4xf32>
    %756 = vector.extract_strided_slice %681 {offsets = [0, 16], sizes = [4, 4], strides = [1, 1]} : vector<4x32xf32> to vector<4x4xf32>
    %757 = tpu.transpose %755, [1, 0] : vector<4x4xf32> -> vector<4x4xf32>
    %cst_282 = arith.constant dense<0.000000e+00> : vector<56x4xf32>
    %758 = tpu.matmul %754, %757, %cst_282 {dimension_numbers = #tpu.dot_dimension_numbers<[1], [0], [0], [1], [0, 0, 1, 1], [], []>} : vector<56x4xf32>, vector<4x4xf32>, vector<56x4xf32> -> vector<56x4xf32>
    %cst_283 = arith.constant 5.000000e-01 : f32
    %759 = vector.broadcast %cst_283 : f32 to vector<56x4xf32>
    %760 = arith.mulf %758, %759 : vector<56x4xf32>
    %cst_284 = arith.constant dense<0xFF800000> : vector<56xf32>
    %761 = vector.multi_reduction <maximumf>, %760, %cst_284 [1] : vector<56x4xf32> to vector<56xf32>
    %762 = vector.shape_cast %761 : vector<56xf32> to vector<56x1xf32>
    %763 = vector.broadcast %762 : vector<56x1xf32> to vector<56x4xf32>
    %764 = arith.subf %760, %763 : vector<56x4xf32>
    %765 = math.exp %764 : vector<56x4xf32>
    %cst_285 = arith.constant dense<0.000000e+00> : vector<56xf32>
    %766 = vector.multi_reduction <add>, %765, %cst_285 [1] : vector<56x4xf32> to vector<56xf32>
    %767 = vector.shape_cast %766 : vector<56xf32> to vector<56x1xf32>
    %768 = tpu.reciprocal %767 {approx = true} : vector<56x1xf32> -> vector<56x1xf32>
    %cst_286 = arith.constant dense<0.000000e+00> : vector<56x4xf32>
    %769 = tpu.matmul %765, %756, %cst_286 {dimension_numbers = #tpu.dot_dimension_numbers<[1], [0], [0], [1], [0, 0, 1, 1], [], []>} : vector<56x4xf32>, vector<4x4xf32>, vector<56x4xf32> -> vector<56x4xf32>
    %770 = vector.broadcast %768 : vector<56x1xf32> to vector<56x4xf32>
    %771 = arith.mulf %769, %770 : vector<56x4xf32>
    %772 = vector.extract_strided_slice %674 {offsets = [0, 20], sizes = [56, 4], strides = [1, 1]} : vector<56x32xf32> to vector<56x4xf32>
    %773 = vector.extract_strided_slice %680 {offsets = [0, 20], sizes = [4, 4], strides = [1, 1]} : vector<4x32xf32> to vector<4x4xf32>
    %774 = vector.extract_strided_slice %681 {offsets = [0, 20], sizes = [4, 4], strides = [1, 1]} : vector<4x32xf32> to vector<4x4xf32>
    %775 = tpu.transpose %773, [1, 0] : vector<4x4xf32> -> vector<4x4xf32>
    %cst_287 = arith.constant dense<0.000000e+00> : vector<56x4xf32>
    %776 = tpu.matmul %772, %775, %cst_287 {dimension_numbers = #tpu.dot_dimension_numbers<[1], [0], [0], [1], [0, 0, 1, 1], [], []>} : vector<56x4xf32>, vector<4x4xf32>, vector<56x4xf32> -> vector<56x4xf32>
    %cst_288 = arith.constant 5.000000e-01 : f32
    %777 = vector.broadcast %cst_288 : f32 to vector<56x4xf32>
    %778 = arith.mulf %776, %777 : vector<56x4xf32>
    %cst_289 = arith.constant dense<0xFF800000> : vector<56xf32>
    %779 = vector.multi_reduction <maximumf>, %778, %cst_289 [1] : vector<56x4xf32> to vector<56xf32>
    %780 = vector.shape_cast %779 : vector<56xf32> to vector<56x1xf32>
    %781 = vector.broadcast %780 : vector<56x1xf32> to vector<56x4xf32>
    %782 = arith.subf %778, %781 : vector<56x4xf32>
    %783 = math.exp %782 : vector<56x4xf32>
    %cst_290 = arith.constant dense<0.000000e+00> : vector<56xf32>
    %784 = vector.multi_reduction <add>, %783, %cst_290 [1] : vector<56x4xf32> to vector<56xf32>
    %785 = vector.shape_cast %784 : vector<56xf32> to vector<56x1xf32>
    %786 = tpu.reciprocal %785 {approx = true} : vector<56x1xf32> -> vector<56x1xf32>
    %cst_291 = arith.constant dense<0.000000e+00> : vector<56x4xf32>
    %787 = tpu.matmul %783, %774, %cst_291 {dimension_numbers = #tpu.dot_dimension_numbers<[1], [0], [0], [1], [0, 0, 1, 1], [], []>} : vector<56x4xf32>, vector<4x4xf32>, vector<56x4xf32> -> vector<56x4xf32>
    %788 = vector.broadcast %786 : vector<56x1xf32> to vector<56x4xf32>
    %789 = arith.mulf %787, %788 : vector<56x4xf32>
    %790 = vector.extract_strided_slice %674 {offsets = [0, 24], sizes = [56, 4], strides = [1, 1]} : vector<56x32xf32> to vector<56x4xf32>
    %791 = vector.extract_strided_slice %680 {offsets = [0, 24], sizes = [4, 4], strides = [1, 1]} : vector<4x32xf32> to vector<4x4xf32>
    %792 = vector.extract_strided_slice %681 {offsets = [0, 24], sizes = [4, 4], strides = [1, 1]} : vector<4x32xf32> to vector<4x4xf32>
    %793 = tpu.transpose %791, [1, 0] : vector<4x4xf32> -> vector<4x4xf32>
    %cst_292 = arith.constant dense<0.000000e+00> : vector<56x4xf32>
    %794 = tpu.matmul %790, %793, %cst_292 {dimension_numbers = #tpu.dot_dimension_numbers<[1], [0], [0], [1], [0, 0, 1, 1], [], []>} : vector<56x4xf32>, vector<4x4xf32>, vector<56x4xf32> -> vector<56x4xf32>
    %cst_293 = arith.constant 5.000000e-01 : f32
    %795 = vector.broadcast %cst_293 : f32 to vector<56x4xf32>
    %796 = arith.mulf %794, %795 : vector<56x4xf32>
    %cst_294 = arith.constant dense<0xFF800000> : vector<56xf32>
    %797 = vector.multi_reduction <maximumf>, %796, %cst_294 [1] : vector<56x4xf32> to vector<56xf32>
    %798 = vector.shape_cast %797 : vector<56xf32> to vector<56x1xf32>
    %799 = vector.broadcast %798 : vector<56x1xf32> to vector<56x4xf32>
    %800 = arith.subf %796, %799 : vector<56x4xf32>
    %801 = math.exp %800 : vector<56x4xf32>
    %cst_295 = arith.constant dense<0.000000e+00> : vector<56xf32>
    %802 = vector.multi_reduction <add>, %801, %cst_295 [1] : vector<56x4xf32> to vector<56xf32>
    %803 = vector.shape_cast %802 : vector<56xf32> to vector<56x1xf32>
    %804 = tpu.reciprocal %803 {approx = true} : vector<56x1xf32> -> vector<56x1xf32>
    %cst_296 = arith.constant dense<0.000000e+00> : vector<56x4xf32>
    %805 = tpu.matmul %801, %792, %cst_296 {dimension_numbers = #tpu.dot_dimension_numbers<[1], [0], [0], [1], [0, 0, 1, 1], [], []>} : vector<56x4xf32>, vector<4x4xf32>, vector<56x4xf32> -> vector<56x4xf32>
    %806 = vector.broadcast %804 : vector<56x1xf32> to vector<56x4xf32>
    %807 = arith.mulf %805, %806 : vector<56x4xf32>
    %808 = vector.extract_strided_slice %674 {offsets = [0, 28], sizes = [56, 4], strides = [1, 1]} : vector<56x32xf32> to vector<56x4xf32>
    %809 = vector.extract_strided_slice %680 {offsets = [0, 28], sizes = [4, 4], strides = [1, 1]} : vector<4x32xf32> to vector<4x4xf32>
    %810 = vector.extract_strided_slice %681 {offsets = [0, 28], sizes = [4, 4], strides = [1, 1]} : vector<4x32xf32> to vector<4x4xf32>
    %811 = tpu.transpose %809, [1, 0] : vector<4x4xf32> -> vector<4x4xf32>
    %cst_297 = arith.constant dense<0.000000e+00> : vector<56x4xf32>
    %812 = tpu.matmul %808, %811, %cst_297 {dimension_numbers = #tpu.dot_dimension_numbers<[1], [0], [0], [1], [0, 0, 1, 1], [], []>} : vector<56x4xf32>, vector<4x4xf32>, vector<56x4xf32> -> vector<56x4xf32>
    %cst_298 = arith.constant 5.000000e-01 : f32
    %813 = vector.broadcast %cst_298 : f32 to vector<56x4xf32>
    %814 = arith.mulf %812, %813 : vector<56x4xf32>
    %cst_299 = arith.constant dense<0xFF800000> : vector<56xf32>
    %815 = vector.multi_reduction <maximumf>, %814, %cst_299 [1] : vector<56x4xf32> to vector<56xf32>
    %816 = vector.shape_cast %815 : vector<56xf32> to vector<56x1xf32>
    %817 = vector.broadcast %816 : vector<56x1xf32> to vector<56x4xf32>
    %818 = arith.subf %814, %817 : vector<56x4xf32>
    %819 = math.exp %818 : vector<56x4xf32>
    %cst_300 = arith.constant dense<0.000000e+00> : vector<56xf32>
    %820 = vector.multi_reduction <add>, %819, %cst_300 [1] : vector<56x4xf32> to vector<56xf32>
    %821 = vector.shape_cast %820 : vector<56xf32> to vector<56x1xf32>
    %822 = tpu.reciprocal %821 {approx = true} : vector<56x1xf32> -> vector<56x1xf32>
    %cst_301 = arith.constant dense<0.000000e+00> : vector<56x4xf32>
    %823 = tpu.matmul %819, %810, %cst_301 {dimension_numbers = #tpu.dot_dimension_numbers<[1], [0], [0], [1], [0, 0, 1, 1], [], []>} : vector<56x4xf32>, vector<4x4xf32>, vector<56x4xf32> -> vector<56x4xf32>
    %824 = vector.broadcast %822 : vector<56x1xf32> to vector<56x4xf32>
    %825 = arith.mulf %823, %824 : vector<56x4xf32>
    %826 = tpu.concatenate %699, %717, %735, %753, %771, %789, %807, %825 in 1 : vector<56x4xf32>, vector<56x4xf32>, vector<56x4xf32>, vector<56x4xf32>, vector<56x4xf32>, vector<56x4xf32>, vector<56x4xf32>, vector<56x4xf32> -> vector<56x32xf32>
    %cst_302 = arith.constant dense<0.000000e+00> : vector<56x32xf32>
    %827 = tpu.matmul %826, %667, %cst_302 {dimension_numbers = #tpu.dot_dimension_numbers<[1], [0], [0], [1], [0, 0, 1, 1], [], []>} : vector<56x32xf32>, vector<32x32xf32>, vector<56x32xf32> -> vector<56x32xf32>
    %828 = vector.broadcast %669 : vector<1x32xf32> to vector<56x32xf32>
    %829 = arith.addf %827, %828 : vector<56x32xf32>
    %830 = arith.addf %57, %829 : vector<56x32xf32>
    %c0_303 = arith.constant 0 : index
    %c4 = arith.constant 4 : index
    %c0_304 = arith.constant 0 : index
    %831 = vector.load %arg12[%c0_303, %c4, %c0_304] : memref<1x6x32xf32, #tpu.memory_space<vmem>>, vector<1x1x32xf32>
    %832 = vector.shape_cast %831 : vector<1x1x32xf32> to vector<1x32xf32>
    %c0_305 = arith.constant 0 : index
    %c4_306 = arith.constant 4 : index
    %c0_307 = arith.constant 0 : index
    %833 = vector.load %arg13[%c0_305, %c4_306, %c0_307] : memref<1x6x32xf32, #tpu.memory_space<vmem>>, vector<1x1x32xf32>
    %834 = vector.shape_cast %833 : vector<1x1x32xf32> to vector<1x32xf32>
    %cst_308 = arith.constant dense<0.000000e+00> : vector<56xf32>
    %835 = vector.multi_reduction <add>, %661, %cst_308 [1] : vector<56x32xf32> to vector<56xf32>
    %836 = vector.shape_cast %835 : vector<56xf32> to vector<56x1xf32>
    %cst_309 = arith.constant 3.125000e-02 : f32
    %837 = vector.broadcast %cst_309 : f32 to vector<56x1xf32>
    %838 = arith.mulf %836, %837 : vector<56x1xf32>
    %839 = vector.broadcast %838 : vector<56x1xf32> to vector<56x32xf32>
    %840 = arith.subf %661, %839 : vector<56x32xf32>
    %841 = arith.mulf %840, %840 : vector<56x32xf32>
    %cst_310 = arith.constant dense<0.000000e+00> : vector<56xf32>
    %842 = vector.multi_reduction <add>, %841, %cst_310 [1] : vector<56x32xf32> to vector<56xf32>
    %843 = vector.shape_cast %842 : vector<56xf32> to vector<56x1xf32>
    %cst_311 = arith.constant 3.125000e-02 : f32
    %844 = vector.broadcast %cst_311 : f32 to vector<56x1xf32>
    %845 = arith.mulf %843, %844 : vector<56x1xf32>
    %cst_312 = arith.constant 9.99999974E-6 : f32
    %846 = vector.broadcast %cst_312 : f32 to vector<56x1xf32>
    %847 = arith.addf %845, %846 : vector<56x1xf32>
    %848 = math.rsqrt %847 : vector<56x1xf32>
    %849 = vector.broadcast %848 : vector<56x1xf32> to vector<56x32xf32>
    %850 = arith.mulf %840, %849 : vector<56x32xf32>
    %851 = vector.broadcast %832 : vector<1x32xf32> to vector<56x32xf32>
    %852 = arith.mulf %850, %851 : vector<56x32xf32>
    %853 = vector.broadcast %834 : vector<1x32xf32> to vector<56x32xf32>
    %854 = arith.addf %852, %853 : vector<56x32xf32>
    %c0_313 = arith.constant 0 : index
    %c5 = arith.constant 5 : index
    %c0_314 = arith.constant 0 : index
    %855 = vector.load %arg12[%c0_313, %c5, %c0_314] : memref<1x6x32xf32, #tpu.memory_space<vmem>>, vector<1x1x32xf32>
    %856 = vector.shape_cast %855 : vector<1x1x32xf32> to vector<1x32xf32>
    %c0_315 = arith.constant 0 : index
    %c5_316 = arith.constant 5 : index
    %c0_317 = arith.constant 0 : index
    %857 = vector.load %arg13[%c0_315, %c5_316, %c0_317] : memref<1x6x32xf32, #tpu.memory_space<vmem>>, vector<1x1x32xf32>
    %858 = vector.shape_cast %857 : vector<1x1x32xf32> to vector<1x32xf32>
    %cst_318 = arith.constant dense<0.000000e+00> : vector<56xf32>
    %859 = vector.multi_reduction <add>, %830, %cst_318 [1] : vector<56x32xf32> to vector<56xf32>
    %860 = vector.shape_cast %859 : vector<56xf32> to vector<56x1xf32>
    %cst_319 = arith.constant 3.125000e-02 : f32
    %861 = vector.broadcast %cst_319 : f32 to vector<56x1xf32>
    %862 = arith.mulf %860, %861 : vector<56x1xf32>
    %863 = vector.broadcast %862 : vector<56x1xf32> to vector<56x32xf32>
    %864 = arith.subf %830, %863 : vector<56x32xf32>
    %865 = arith.mulf %864, %864 : vector<56x32xf32>
    %cst_320 = arith.constant dense<0.000000e+00> : vector<56xf32>
    %866 = vector.multi_reduction <add>, %865, %cst_320 [1] : vector<56x32xf32> to vector<56xf32>
    %867 = vector.shape_cast %866 : vector<56xf32> to vector<56x1xf32>
    %cst_321 = arith.constant 3.125000e-02 : f32
    %868 = vector.broadcast %cst_321 : f32 to vector<56x1xf32>
    %869 = arith.mulf %867, %868 : vector<56x1xf32>
    %cst_322 = arith.constant 9.99999974E-6 : f32
    %870 = vector.broadcast %cst_322 : f32 to vector<56x1xf32>
    %871 = arith.addf %869, %870 : vector<56x1xf32>
    %872 = math.rsqrt %871 : vector<56x1xf32>
    %873 = vector.broadcast %872 : vector<56x1xf32> to vector<56x32xf32>
    %874 = arith.mulf %864, %873 : vector<56x32xf32>
    %875 = vector.broadcast %856 : vector<1x32xf32> to vector<56x32xf32>
    %876 = arith.mulf %874, %875 : vector<56x32xf32>
    %877 = vector.broadcast %858 : vector<1x32xf32> to vector<56x32xf32>
    %878 = arith.addf %876, %877 : vector<56x32xf32>
    %c0_323 = arith.constant 0 : index
    %c0_324 = arith.constant 0 : index
    %c0_325 = arith.constant 0 : index
    %c0_326 = arith.constant 0 : index
    %879 = vector.load %arg18[%c0_323, %c0_324, %c0_325, %c0_326] : memref<1x2x32x128xf32, #tpu.memory_space<vmem>>, vector<1x1x32x128xf32>
    %880 = vector.shape_cast %879 : vector<1x1x32x128xf32> to vector<32x128xf32>
    %c0_327 = arith.constant 0 : index
    %c0_328 = arith.constant 0 : index
    %c0_329 = arith.constant 0 : index
    %881 = vector.load %arg19[%c0_327, %c0_328, %c0_329] : memref<1x2x128xf32, #tpu.memory_space<vmem>>, vector<1x1x128xf32>
    %882 = vector.shape_cast %881 : vector<1x1x128xf32> to vector<1x128xf32>
    %c0_330 = arith.constant 0 : index
    %c0_331 = arith.constant 0 : index
    %c0_332 = arith.constant 0 : index
    %c0_333 = arith.constant 0 : index
    %883 = vector.load %arg20[%c0_330, %c0_331, %c0_332, %c0_333] : memref<1x2x128x32xf32, #tpu.memory_space<vmem>>, vector<1x1x128x32xf32>
    %884 = vector.shape_cast %883 : vector<1x1x128x32xf32> to vector<128x32xf32>
    %c0_334 = arith.constant 0 : index
    %c0_335 = arith.constant 0 : index
    %c0_336 = arith.constant 0 : index
    %885 = vector.load %arg21[%c0_334, %c0_335, %c0_336] : memref<1x2x32xf32, #tpu.memory_space<vmem>>, vector<1x1x32xf32>
    %886 = vector.shape_cast %885 : vector<1x1x32xf32> to vector<1x32xf32>
    %cst_337 = arith.constant dense<0.000000e+00> : vector<56x128xf32>
    %887 = tpu.matmul %854, %880, %cst_337 {dimension_numbers = #tpu.dot_dimension_numbers<[1], [0], [0], [1], [0, 0, 1, 1], [], []>} : vector<56x32xf32>, vector<32x128xf32>, vector<56x128xf32> -> vector<56x128xf32>
    %888 = vector.broadcast %882 : vector<1x128xf32> to vector<56x128xf32>
    %889 = arith.addf %887, %888 : vector<56x128xf32>
    %cst_338 = arith.constant 0.000000e+00 : f32
    %890 = vector.broadcast %cst_338 : f32 to vector<56x128xf32>
    %891 = arith.maximumf %889, %890 : vector<56x128xf32>
    %cst_339 = arith.constant dense<0.000000e+00> : vector<56x32xf32>
    %892 = tpu.matmul %891, %884, %cst_339 {dimension_numbers = #tpu.dot_dimension_numbers<[1], [0], [0], [1], [0, 0, 1, 1], [], []>} : vector<56x128xf32>, vector<128x32xf32>, vector<56x32xf32> -> vector<56x32xf32>
    %893 = vector.broadcast %886 : vector<1x32xf32> to vector<56x32xf32>
    %894 = arith.addf %892, %893 : vector<56x32xf32>
    %895 = arith.addf %661, %894 : vector<56x32xf32>
    %c0_340 = arith.constant 0 : index
    %c1_341 = arith.constant 1 : index
    %c0_342 = arith.constant 0 : index
    %c0_343 = arith.constant 0 : index
    %896 = vector.load %arg18[%c0_340, %c1_341, %c0_342, %c0_343] : memref<1x2x32x128xf32, #tpu.memory_space<vmem>>, vector<1x1x32x128xf32>
    %897 = vector.shape_cast %896 : vector<1x1x32x128xf32> to vector<32x128xf32>
    %c0_344 = arith.constant 0 : index
    %c1_345 = arith.constant 1 : index
    %c0_346 = arith.constant 0 : index
    %898 = vector.load %arg19[%c0_344, %c1_345, %c0_346] : memref<1x2x128xf32, #tpu.memory_space<vmem>>, vector<1x1x128xf32>
    %899 = vector.shape_cast %898 : vector<1x1x128xf32> to vector<1x128xf32>
    %c0_347 = arith.constant 0 : index
    %c1_348 = arith.constant 1 : index
    %c0_349 = arith.constant 0 : index
    %c0_350 = arith.constant 0 : index
    %900 = vector.load %arg20[%c0_347, %c1_348, %c0_349, %c0_350] : memref<1x2x128x32xf32, #tpu.memory_space<vmem>>, vector<1x1x128x32xf32>
    %901 = vector.shape_cast %900 : vector<1x1x128x32xf32> to vector<128x32xf32>
    %c0_351 = arith.constant 0 : index
    %c1_352 = arith.constant 1 : index
    %c0_353 = arith.constant 0 : index
    %902 = vector.load %arg21[%c0_351, %c1_352, %c0_353] : memref<1x2x32xf32, #tpu.memory_space<vmem>>, vector<1x1x32xf32>
    %903 = vector.shape_cast %902 : vector<1x1x32xf32> to vector<1x32xf32>
    %cst_354 = arith.constant dense<0.000000e+00> : vector<56x128xf32>
    %904 = tpu.matmul %878, %897, %cst_354 {dimension_numbers = #tpu.dot_dimension_numbers<[1], [0], [0], [1], [0, 0, 1, 1], [], []>} : vector<56x32xf32>, vector<32x128xf32>, vector<56x128xf32> -> vector<56x128xf32>
    %905 = vector.broadcast %899 : vector<1x128xf32> to vector<56x128xf32>
    %906 = arith.addf %904, %905 : vector<56x128xf32>
    %cst_355 = arith.constant 0.000000e+00 : f32
    %907 = vector.broadcast %cst_355 : f32 to vector<56x128xf32>
    %908 = arith.maximumf %906, %907 : vector<56x128xf32>
    %cst_356 = arith.constant dense<0.000000e+00> : vector<56x32xf32>
    %909 = tpu.matmul %908, %901, %cst_356 {dimension_numbers = #tpu.dot_dimension_numbers<[1], [0], [0], [1], [0, 0, 1, 1], [], []>} : vector<56x128xf32>, vector<128x32xf32>, vector<56x32xf32> -> vector<56x32xf32>
    %910 = vector.broadcast %903 : vector<1x32xf32> to vector<56x32xf32>
    %911 = arith.addf %909, %910 : vector<56x32xf32>
    %912 = arith.addf %830, %911 : vector<56x32xf32>
    %c0_357 = arith.constant 0 : index
    %c0_358 = arith.constant 0 : index
    %c0_359 = arith.constant 0 : index
    %913 = vector.load %arg22[%c0_357, %c0_358, %c0_359] : memref<1x56x32xf32, #tpu.memory_space<vmem>>, vector<1x56x32xf32>
    %914 = vector.shape_cast %913 : vector<1x56x32xf32> to vector<56x32xf32>
    %915 = vector.shape_cast %895 : vector<56x32xf32> to vector<1x56x32xf32>
    tpu.vector_store %arg22[%c0_357, %c0_358, %c0_359], %915 {strides = array<i32>} : memref<1x56x32xf32, #tpu.memory_space<vmem>>, vector<1x56x32xf32>,
    %c0_360 = arith.constant 0 : index
    %c0_361 = arith.constant 0 : index
    %c0_362 = arith.constant 0 : index
    %916 = vector.load %arg23[%c0_360, %c0_361, %c0_362] : memref<1x56x32xf32, #tpu.memory_space<vmem>>, vector<1x56x32xf32>
    %917 = vector.shape_cast %916 : vector<1x56x32xf32> to vector<56x32xf32>
    %918 = vector.shape_cast %912 : vector<56x32xf32> to vector<1x56x32xf32>
    tpu.vector_store %arg23[%c0_360, %c0_361, %c0_362], %918 {strides = array<i32>} : memref<1x56x32xf32, #tpu.memory_space<vmem>>, vector<1x56x32xf32>,
    return
  }
  func.func @transform_0(%arg0: i32) -> (i32, i32, i32) {
    %c0_i32 = arith.constant 0 : i32
    %c0_i32_0 = arith.constant 0 : i32
    %c0_i32_1 = arith.constant 0 : i32
    return %arg0, %c0_i32, %c0_i32_0 : i32, i32, i32
  }
  func.func @transform_1(%arg0: i32) -> (i32, i32, i32) {
    %c0_i32 = arith.constant 0 : i32
    %c0_i32_0 = arith.constant 0 : i32
    %c0_i32_1 = arith.constant 0 : i32
    return %arg0, %c0_i32, %c0_i32_0 : i32, i32, i32
  }
  func.func @transform_2(%arg0: i32) -> (i32, i32) {
    %c0_i32 = arith.constant 0 : i32
    %c0_i32_0 = arith.constant 0 : i32
    %c0_i32_1 = arith.constant 0 : i32
    return %c0_i32, %c0_i32_0 : i32, i32
  }
  func.func @transform_3(%arg0: i32) -> (i32, i32) {
    %c0_i32 = arith.constant 0 : i32
    %c0_i32_0 = arith.constant 0 : i32
    %c0_i32_1 = arith.constant 0 : i32
    return %c0_i32, %c0_i32_0 : i32, i32
  }
  func.func @transform_4(%arg0: i32) -> (i32, i32) {
    %c0_i32 = arith.constant 0 : i32
    %c0_i32_0 = arith.constant 0 : i32
    %c0_i32_1 = arith.constant 0 : i32
    return %c0_i32, %c0_i32_0 : i32, i32
  }
  func.func @transform_5(%arg0: i32) -> (i32, i32) {
    %c0_i32 = arith.constant 0 : i32
    %c0_i32_0 = arith.constant 0 : i32
    %c0_i32_1 = arith.constant 0 : i32
    return %c0_i32, %c0_i32_0 : i32, i32
  }
  func.func @transform_6(%arg0: i32) -> (i32, i32) {
    %c0_i32 = arith.constant 0 : i32
    %c0_i32_0 = arith.constant 0 : i32
    %c0_i32_1 = arith.constant 0 : i32
    return %c0_i32, %c0_i32_0 : i32, i32
  }
  func.func @transform_7(%arg0: i32) -> (i32, i32) {
    %c0_i32 = arith.constant 0 : i32
    %c0_i32_0 = arith.constant 0 : i32
    %c0_i32_1 = arith.constant 0 : i32
    return %c0_i32, %c0_i32_0 : i32, i32
  }
  func.func @transform_8(%arg0: i32) -> (i32, i32) {
    %c0_i32 = arith.constant 0 : i32
    %c0_i32_0 = arith.constant 0 : i32
    %c0_i32_1 = arith.constant 0 : i32
    return %c0_i32, %c0_i32_0 : i32, i32
  }
  func.func @transform_9(%arg0: i32) -> (i32, i32) {
    %c0_i32 = arith.constant 0 : i32
    %c0_i32_0 = arith.constant 0 : i32
    %c0_i32_1 = arith.constant 0 : i32
    return %c0_i32, %c0_i32_0 : i32, i32
  }
  func.func @transform_10(%arg0: i32) -> (i32, i32) {
    %c0_i32 = arith.constant 0 : i32
    %c0_i32_0 = arith.constant 0 : i32
    %c0_i32_1 = arith.constant 0 : i32
    return %c0_i32, %c0_i32_0 : i32, i32
  }
  func.func @transform_11(%arg0: i32) -> (i32, i32, i32) {
    %c0_i32 = arith.constant 0 : i32
    %c0_i32_0 = arith.constant 0 : i32
    %c0_i32_1 = arith.constant 0 : i32
    %c0_i32_2 = arith.constant 0 : i32
    return %c0_i32, %c0_i32_0, %c0_i32_1 : i32, i32, i32
  }
  func.func @transform_12(%arg0: i32) -> (i32, i32, i32) {
    %c0_i32 = arith.constant 0 : i32
    %c0_i32_0 = arith.constant 0 : i32
    %c0_i32_1 = arith.constant 0 : i32
    %c0_i32_2 = arith.constant 0 : i32
    return %c0_i32, %c0_i32_0, %c0_i32_1 : i32, i32, i32
  }
  func.func @transform_13(%arg0: i32) -> (i32, i32, i32, i32) {
    %c0_i32 = arith.constant 0 : i32
    %c0_i32_0 = arith.constant 0 : i32
    %c0_i32_1 = arith.constant 0 : i32
    %c0_i32_2 = arith.constant 0 : i32
    %c0_i32_3 = arith.constant 0 : i32
    return %c0_i32, %c0_i32_0, %c0_i32_1, %c0_i32_2 : i32, i32, i32, i32
  }
  func.func @transform_14(%arg0: i32) -> (i32, i32, i32) {
    %c0_i32 = arith.constant 0 : i32
    %c0_i32_0 = arith.constant 0 : i32
    %c0_i32_1 = arith.constant 0 : i32
    %c0_i32_2 = arith.constant 0 : i32
    return %c0_i32, %c0_i32_0, %c0_i32_1 : i32, i32, i32
  }
  func.func @transform_15(%arg0: i32) -> (i32, i32, i32, i32) {
    %c0_i32 = arith.constant 0 : i32
    %c0_i32_0 = arith.constant 0 : i32
    %c0_i32_1 = arith.constant 0 : i32
    %c0_i32_2 = arith.constant 0 : i32
    %c0_i32_3 = arith.constant 0 : i32
    return %c0_i32, %c0_i32_0, %c0_i32_1, %c0_i32_2 : i32, i32, i32, i32
  }
  func.func @transform_16(%arg0: i32) -> (i32, i32, i32) {
    %c0_i32 = arith.constant 0 : i32
    %c0_i32_0 = arith.constant 0 : i32
    %c0_i32_1 = arith.constant 0 : i32
    %c0_i32_2 = arith.constant 0 : i32
    return %c0_i32, %c0_i32_0, %c0_i32_1 : i32, i32, i32
  }
  func.func @transform_17(%arg0: i32) -> (i32, i32, i32, i32) {
    %c0_i32 = arith.constant 0 : i32
    %c0_i32_0 = arith.constant 0 : i32
    %c0_i32_1 = arith.constant 0 : i32
    %c0_i32_2 = arith.constant 0 : i32
    %c0_i32_3 = arith.constant 0 : i32
    return %c0_i32, %c0_i32_0, %c0_i32_1, %c0_i32_2 : i32, i32, i32, i32
  }
  func.func @transform_18(%arg0: i32) -> (i32, i32, i32) {
    %c0_i32 = arith.constant 0 : i32
    %c0_i32_0 = arith.constant 0 : i32
    %c0_i32_1 = arith.constant 0 : i32
    %c0_i32_2 = arith.constant 0 : i32
    return %c0_i32, %c0_i32_0, %c0_i32_1 : i32, i32, i32
  }
  func.func @transform_19(%arg0: i32) -> (i32, i32, i32, i32) {
    %c0_i32 = arith.constant 0 : i32
    %c0_i32_0 = arith.constant 0 : i32
    %c0_i32_1 = arith.constant 0 : i32
    %c0_i32_2 = arith.constant 0 : i32
    %c0_i32_3 = arith.constant 0 : i32
    return %c0_i32, %c0_i32_0, %c0_i32_1, %c0_i32_2 : i32, i32, i32, i32
  }
  func.func @transform_20(%arg0: i32) -> (i32, i32, i32) {
    %c0_i32 = arith.constant 0 : i32
    %c0_i32_0 = arith.constant 0 : i32
    %c0_i32_1 = arith.constant 0 : i32
    %c0_i32_2 = arith.constant 0 : i32
    return %c0_i32, %c0_i32_0, %c0_i32_1 : i32, i32, i32
  }
  func.func @transform_21(%arg0: i32) -> (i32, i32, i32) {
    %c0_i32 = arith.constant 0 : i32
    %c0_i32_0 = arith.constant 0 : i32
    %c0_i32_1 = arith.constant 0 : i32
    return %arg0, %c0_i32, %c0_i32_0 : i32, i32, i32
  }
  func.func @transform_22(%arg0: i32) -> (i32, i32, i32) {
    %c0_i32 = arith.constant 0 : i32
    %c0_i32_0 = arith.constant 0 : i32
    %c0_i32_1 = arith.constant 0 : i32
    return %arg0, %c0_i32, %c0_i32_0 : i32, i32, i32
  }
}

</mosaic_0001>

<llo_original>
// kernel: bottleneck_transformer.1
$region0: #{bottleneck_transformer.1}
  #allocation0 [shape = 'u32[]', space=smem, size = 0x4, offset = 0x4, fixed_abs, tag = 'smem constant byte address 0x4 - core index']
  #allocation1 [shape = 'u32[72,128]{1,0:T(1,128)}', space=vmem, size = 0x9000, scoped, tag = 'internal scratch']
  %s0 = inlined_call_operand.vmem [shape: f32[2,56,96], index: 0, kind: input, shape index: {}]
  %s1 = inlined_call_operand.vmem [shape: f32[2,56,96], index: 1, kind: input, shape index: {}]
  %s2 = inlined_call_operand.vmem [shape: f32[96,32], index: 2, kind: input, shape index: {}]
  %s3 = inlined_call_operand.vmem [shape: f32[1,32], index: 3, kind: input, shape index: {}]
  %s4 = inlined_call_operand.vmem [shape: f32[1,32], index: 4, kind: input, shape index: {}]
  %s5 = inlined_call_operand.vmem [shape: f32[1,32], index: 5, kind: input, shape index: {}]
  %s6 = inlined_call_operand.vmem [shape: f32[96,32], index: 6, kind: input, shape index: {}]
  %s7 = inlined_call_operand.vmem [shape: f32[1,32], index: 7, kind: input, shape index: {}]
  %s8 = inlined_call_operand.vmem [shape: f32[1,32], index: 8, kind: input, shape index: {}]
  %s9 = inlined_call_operand.vmem [shape: f32[1,32], index: 9, kind: input, shape index: {}]
  %s10 = inlined_call_operand.vmem [shape: f32[4,32], index: 10, kind: input, shape index: {}]
  %s11 = inlined_call_operand.vmem [shape: f32[1,6,32], index: 11, kind: input, shape index: {}]
  %s12 = inlined_call_operand.vmem [shape: f32[1,6,32], index: 12, kind: input, shape index: {}]
  %s13 = inlined_call_operand.vmem [shape: f32[1,4,32,96], index: 13, kind: input, shape index: {}]
  %s14 = inlined_call_operand.vmem [shape: f32[1,4,96], index: 14, kind: input, shape index: {}]
  %s15 = inlined_call_operand.vmem [shape: f32[1,4,32,32], index: 15, kind: input, shape index: {}]
  %s16 = inlined_call_operand.vmem [shape: f32[1,4,32], index: 16, kind: input, shape index: {}]
  %s17 = inlined_call_operand.vmem [shape: f32[1,2,32,128], index: 17, kind: input, shape index: {}]
  %s18 = inlined_call_operand.vmem [shape: f32[1,2,128], index: 18, kind: input, shape index: {}]
  %s19 = inlined_call_operand.vmem [shape: f32[1,2,128,32], index: 19, kind: input, shape index: {}]
  %s20 = inlined_call_operand.vmem [shape: f32[1,2,32], index: 20, kind: input, shape index: {}]
  %s21 = inlined_call_operand.vmem [shape: f32[2,56,32], index: 21, kind: output, shape index: {0}]
  %s22 = inlined_call_operand.vmem [shape: f32[2,56,32], index: 22, kind: output, shape index: {1}]
  %23 = xla_tuple %s21, %s22
  %s24 = sld [smem:[#allocation0]]
  $region125: #{bottleneck_transformer.1} parent=0
    _
  %s26 = ssub.s32 1, %s24
  %s27 = scalar_select 0, %s26, %s24
  loop: start=0, step=1, limit=4
  $region2: #{bottleneck_transformer.1} parent=0 // loop_pre_header
    _
  $region3: #{bottleneck_transformer.1} parent=0 // loop_header
    %s29 = sphi 0, %s33
    %p30 = scmp.ge.s32.totalorder %s29, 4
    %s39 = sphi 0, %s41
    %s42 = sphi 0, %s39
    %s43 = sphi 0, %s42
    %s59 = sphi 0, %s43
    %s65 = sphi 0, %s67
    %s68 = sphi 0, %s65
    %s69 = sphi 0, %s68
    %s85 = sphi 0, %s69
    %s89 = sphi 0, %s89
    %s91 = sphi 0, %s89
    %s92 = sphi 0, %s91
    %s106 = sphi 0, %s92
    %s110 = sphi 0, %s110
    %s112 = sphi 0, %s110
    %s113 = sphi 0, %s112
    %s127 = sphi 0, %s113
    %s131 = sphi 0, %s131
    %s133 = sphi 0, %s131
    %s134 = sphi 0, %s133
    %s148 = sphi 0, %s134
    %s152 = sphi 0, %s152
    %s154 = sphi 0, %s152
    %s155 = sphi 0, %s154
    %s169 = sphi 0, %s155
    %s173 = sphi 0, %s173
    %s175 = sphi 0, %s173
    %s176 = sphi 0, %s175
    %s190 = sphi 0, %s176
    %s194 = sphi 0, %s194
    %s196 = sphi 0, %s194
    %s197 = sphi 0, %s196
    %s211 = sphi 0, %s197
    %s215 = sphi 0, %s215
    %s217 = sphi 0, %s215
    %s218 = sphi 0, %s217
    %s232 = sphi 0, %s218
    %s236 = sphi 0, %s236
    %s238 = sphi 0, %s236
    %s239 = sphi 0, %s238
    %s253 = sphi 0, %s239
    %s257 = sphi 0, %s257
    %s259 = sphi 0, %s257
    %s260 = sphi 0, %s259
    %s274 = sphi 0, %s260
    %s278 = sphi 0, %s278
    %s280 = sphi 0, %s278
    %s281 = sphi 0, %s280
    %s295 = sphi 0, %s281
    %s299 = sphi 0, %s299
    %s301 = sphi 0, %s299
    %s302 = sphi 0, %s301
    %s316 = sphi 0, %s302
    %s320 = sphi 0, %s320
    %s322 = sphi 0, %s320
    %s323 = sphi 0, %s322
    %s337 = sphi 0, %s323
    %s341 = sphi 0, %s341
    %s343 = sphi 0, %s341
    %s344 = sphi 0, %s343
    %s358 = sphi 0, %s344
    %s362 = sphi 0, %s362
    %s364 = sphi 0, %s362
    %s365 = sphi 0, %s364
    %s379 = sphi 0, %s365
    %s383 = sphi 0, %s383
    %s385 = sphi 0, %s383
    %s386 = sphi 0, %s385
    %s400 = sphi 0, %s386
    %s404 = sphi 0, %s404
    %s406 = sphi 0, %s404
    %s407 = sphi 0, %s406
    %s421 = sphi 0, %s407
    %s425 = sphi 0, %s425
    %s427 = sphi 0, %s425
    %s428 = sphi 0, %s427
    %s442 = sphi 0, %s428
    %s446 = sphi 0, %s446
    %s448 = sphi 0, %s446
    %s449 = sphi 0, %s448
    %s463 = sphi 0, %s449
    %s467 = sphi 0, %s467
    %s469 = sphi 0, %s467
    %s470 = sphi 0, %s469
    %s484 = sphi 0, %s470
    %s490 = sphi 0, %s492
    %s493 = sphi 0, %s490
    %s494 = sphi 0, %s493
    %s510 = sphi 0, %s494
    %s516 = sphi 0, %s518
    %s519 = sphi 0, %s516
    %s520 = sphi 0, %s519
    %s536 = sphi 0, %s520
  $region4: #{bottleneck_transformer.1} parent=0 // loop_header_branch
    %32 = sbr.rel (%p30) target = $region8
  $region5: #{bottleneck_transformer.1} parent=0 // loop_body
    %s34 = ssub.s32 %s29, 1
    %s35 = ssub.s32 %s29, 2
    %s36 = sadd.s32 %s29, 1
    %s37 = ssub.s32 %s29, %s36
    %p38 = scmp.eq.s32.totalorder %s37, 0
    %s40 = sadd.s32 %s39, 1
    %s41 = scalar_select %p38, %s39, %s40
    %p44 = pneg %p38
    %p45 = scmp.eq.s32.totalorder %s29, 1
    %p46 = por %p44, %p45
    %p47 = scmp.ne.s32.totalorder %s39, %s42
    %p48 = scmp.eq.s32.totalorder %s29, 0
    %p49 = por %p47, %p48
    %p50 = scmp.ne.s32.totalorder %s39, %s42
    %p51 = scmp.eq.s32.totalorder %s34, 1
    %p52 = por %p50, %p51
    %p53 = scmp.ne.s32.totalorder %s42, %s43
    %p54 = scmp.eq.s32.totalorder %s34, 0
    %p55 = por %p53, %p54
    %p56 = scmp.ne.s32.totalorder %s42, %s43
    %p57 = scmp.eq.s32.totalorder %s35, 1
    %p58 = por %p56, %p57
    %p60 = scmp.ne.s32.totalorder %s43, %s59
    %p61 = scmp.eq.s32.totalorder %s35, 0
    %p62 = por %p60, %p61
    %s63 = ssub.s32 %s29, %s36
    %p64 = scmp.eq.s32.totalorder %s63, 0
    %s66 = sadd.s32 %s65, 1
    %s67 = scalar_select %p64, %s65, %s66
    %p70 = pneg %p64
    %p71 = scmp.eq.s32.totalorder %s29, 1
    %p72 = por %p70, %p71
    %p73 = scmp.ne.s32.totalorder %s65, %s68
    %p74 = scmp.eq.s32.totalorder %s29, 0
    %p75 = por %p73, %p74
    %p76 = scmp.ne.s32.totalorder %s65, %s68
    %p77 = scmp.eq.s32.totalorder %s34, 1
    %p78 = por %p76, %p77
    %p79 = scmp.ne.s32.totalorder %s68, %s69
    %p80 = scmp.eq.s32.totalorder %s34, 0
    %p81 = por %p79, %p80
    %p82 = scmp.ne.s32.totalorder %s68, %s69
    %p83 = scmp.eq.s32.totalorder %s35, 1
    %p84 = por %p82, %p83
    %p86 = scmp.ne.s32.totalorder %s69, %s85
    %p87 = scmp.eq.s32.totalorder %s35, 0
    %p88 = por %p86, %p87
    %s90 = sadd.s32 %s89, 1
    %p93 = scmp.eq.s32.totalorder %s29, 1
    %p94 = scmp.ne.s32.totalorder %s89, %s91
    %p95 = scmp.eq.s32.totalorder %s29, 0
    %p96 = por %p94, %p95
    %p97 = scmp.ne.s32.totalorder %s89, %s91
    %p98 = scmp.eq.s32.totalorder %s34, 1
    %p99 = por %p97, %p98
    %p100 = scmp.ne.s32.totalorder %s91, %s92
    %p101 = scmp.eq.s32.totalorder %s34, 0
    %p102 = por %p100, %p101
    %p103 = scmp.ne.s32.totalorder %s91, %s92
    %p104 = scmp.eq.s32.totalorder %s35, 1
    %p105 = por %p103, %p104
    %p107 = scmp.ne.s32.totalorder %s92, %s106
    %p108 = scmp.eq.s32.totalorder %s35, 0
    %p109 = por %p107, %p108
    %s111 = sadd.s32 %s110, 1
    %p114 = scmp.eq.s32.totalorder %s29, 1
    %p115 = scmp.ne.s32.totalorder %s110, %s112
    %p116 = scmp.eq.s32.totalorder %s29, 0
    %p117 = por %p115, %p116
    %p118 = scmp.ne.s32.totalorder %s110, %s112
    %p119 = scmp.eq.s32.totalorder %s34, 1
    %p120 = por %p118, %p119
    %p121 = scmp.ne.s32.totalorder %s112, %s113
    %p122 = scmp.eq.s32.totalorder %s34, 0
    %p123 = por %p121, %p122
    %p124 = scmp.ne.s32.totalorder %s112, %s113
    %p125 = scmp.eq.s32.totalorder %s35, 1
    %p126 = por %p124, %p125
    %p128 = scmp.ne.s32.totalorder %s113, %s127
    %p129 = scmp.eq.s32.totalorder %s35, 0
    %p130 = por %p128, %p129
    %s132 = sadd.s32 %s131, 1
    %p135 = scmp.eq.s32.totalorder %s29, 1
    %p136 = scmp.ne.s32.totalorder %s131, %s133
    %p137 = scmp.eq.s32.totalorder %s29, 0
    %p138 = por %p136, %p137
    %p139 = scmp.ne.s32.totalorder %s131, %s133
    %p140 = scmp.eq.s32.totalorder %s34, 1
    %p141 = por %p139, %p140
    %p142 = scmp.ne.s32.totalorder %s133, %s134
    %p143 = scmp.eq.s32.totalorder %s34, 0
    %p144 = por %p142, %p143
    %p145 = scmp.ne.s32.totalorder %s133, %s134
    %p146 = scmp.eq.s32.totalorder %s35, 1
    %p147 = por %p145, %p146
    %p149 = scmp.ne.s32.totalorder %s134, %s148
    %p150 = scmp.eq.s32.totalorder %s35, 0
    %p151 = por %p149, %p150
    %s153 = sadd.s32 %s152, 1
    %p156 = scmp.eq.s32.totalorder %s29, 1
    %p157 = scmp.ne.s32.totalorder %s152, %s154
    %p158 = scmp.eq.s32.totalorder %s29, 0
    %p159 = por %p157, %p158
    %p160 = scmp.ne.s32.totalorder %s152, %s154
    %p161 = scmp.eq.s32.totalorder %s34, 1
    %p162 = por %p160, %p161
    %p163 = scmp.ne.s32.totalorder %s154, %s155
    %p164 = scmp.eq.s32.totalorder %s34, 0
    %p165 = por %p163, %p164
    %p166 = scmp.ne.s32.totalorder %s154, %s155
    %p167 = scmp.eq.s32.totalorder %s35, 1
    %p168 = por %p166, %p167
    %p170 = scmp.ne.s32.totalorder %s155, %s169
    %p171 = scmp.eq.s32.totalorder %s35, 0
    %p172 = por %p170, %p171
    %s174 = sadd.s32 %s173, 1
    %p177 = scmp.eq.s32.totalorder %s29, 1
    %p178 = scmp.ne.s32.totalorder %s173, %s175
    %p179 = scmp.eq.s32.totalorder %s29, 0
    %p180 = por %p178, %p179
    %p181 = scmp.ne.s32.totalorder %s173, %s175
    %p182 = scmp.eq.s32.totalorder %s34, 1
    %p183 = por %p181, %p182
    %p184 = scmp.ne.s32.totalorder %s175, %s176
    %p185 = scmp.eq.s32.totalorder %s34, 0
    %p186 = por %p184, %p185
    %p187 = scmp.ne.s32.totalorder %s175, %s176
    %p188 = scmp.eq.s32.totalorder %s35, 1
    %p189 = por %p187, %p188
    %p191 = scmp.ne.s32.totalorder %s176, %s190
    %p192 = scmp.eq.s32.totalorder %s35, 0
    %p193 = por %p191, %p192
    %s195 = sadd.s32 %s194, 1
    %p198 = scmp.eq.s32.totalorder %s29, 1
    %p199 = scmp.ne.s32.totalorder %s194, %s196
    %p200 = scmp.eq.s32.totalorder %s29, 0
    %p201 = por %p199, %p200
    %p202 = scmp.ne.s32.totalorder %s194, %s196
    %p203 = scmp.eq.s32.totalorder %s34, 1
    %p204 = por %p202, %p203
    %p205 = scmp.ne.s32.totalorder %s196, %s197
    %p206 = scmp.eq.s32.totalorder %s34, 0
    %p207 = por %p205, %p206
    %p208 = scmp.ne.s32.totalorder %s196, %s197
    %p209 = scmp.eq.s32.totalorder %s35, 1
    %p210 = por %p208, %p209
    %p212 = scmp.ne.s32.totalorder %s197, %s211
    %p213 = scmp.eq.s32.totalorder %s35, 0
    %p214 = por %p212, %p213
    %s216 = sadd.s32 %s215, 1
    %p219 = scmp.eq.s32.totalorder %s29, 1
    %p220 = scmp.ne.s32.totalorder %s215, %s217
    %p221 = scmp.eq.s32.totalorder %s29, 0
    %p222 = por %p220, %p221
    %p223 = scmp.ne.s32.totalorder %s215, %s217
    %p224 = scmp.eq.s32.totalorder %s34, 1
    %p225 = por %p223, %p224
    %p226 = scmp.ne.s32.totalorder %s217, %s218
    %p227 = scmp.eq.s32.totalorder %s34, 0
    %p228 = por %p226, %p227
    %p229 = scmp.ne.s32.totalorder %s217, %s218
    %p230 = scmp.eq.s32.totalorder %s35, 1
    %p231 = por %p229, %p230
    %p233 = scmp.ne.s32.totalorder %s218, %s232
    %p234 = scmp.eq.s32.totalorder %s35, 0
    %p235 = por %p233, %p234
    %s237 = sadd.s32 %s236, 1
    %p240 = scmp.eq.s32.totalorder %s29, 1
    %p241 = scmp.ne.s32.totalorder %s236, %s238
    %p242 = scmp.eq.s32.totalorder %s29, 0
    %p243 = por %p241, %p242
    %p244 = scmp.ne.s32.totalorder %s236, %s238
    %p245 = scmp.eq.s32.totalorder %s34, 1
    %p246 = por %p244, %p245
    %p247 = scmp.ne.s32.totalorder %s238, %s239
    %p248 = scmp.eq.s32.totalorder %s34, 0
    %p249 = por %p247, %p248
    %p250 = scmp.ne.s32.totalorder %s238, %s239
    %p251 = scmp.eq.s32.totalorder %s35, 1
    %p252 = por %p250, %p251
    %p254 = scmp.ne.s32.totalorder %s239, %s253
    %p255 = scmp.eq.s32.totalorder %s35, 0
    %p256 = por %p254, %p255
    %s258 = sadd.s32 %s257, 1
    %p261 = scmp.eq.s32.totalorder %s29, 1
    %p262 = scmp.ne.s32.totalorder %s257, %s259
    %p263 = scmp.eq.s32.totalorder %s29, 0
    %p264 = por %p262, %p263
    %p265 = scmp.ne.s32.totalorder %s257, %s259
    %p266 = scmp.eq.s32.totalorder %s34, 1
    %p267 = por %p265, %p266
    %p268 = scmp.ne.s32.totalorder %s259, %s260
    %p269 = scmp.eq.s32.totalorder %s34, 0
    %p270 = por %p268, %p269
    %p271 = scmp.ne.s32.totalorder %s259, %s260
    %p272 = scmp.eq.s32.totalorder %s35, 1
    %p273 = por %p271, %p272
    %p275 = scmp.ne.s32.totalorder %s260, %s274
    %p276 = scmp.eq.s32.totalorder %s35, 0
    %p277 = por %p275, %p276
    %s279 = sadd.s32 %s278, 1
    %p282 = scmp.eq.s32.totalorder %s29, 1
    %p283 = scmp.ne.s32.totalorder %s278, %s280
    %p284 = scmp.eq.s32.totalorder %s29, 0
    %p285 = por %p283, %p284
    %p286 = scmp.ne.s32.totalorder %s278, %s280
    %p287 = scmp.eq.s32.totalorder %s34, 1
    %p288 = por %p286, %p287
    %p289 = scmp.ne.s32.totalorder %s280, %s281
    %p290 = scmp.eq.s32.totalorder %s34, 0
    %p291 = por %p289, %p290
    %p292 = scmp.ne.s32.totalorder %s280, %s281
    %p293 = scmp.eq.s32.totalorder %s35, 1
    %p294 = por %p292, %p293
    %p296 = scmp.ne.s32.totalorder %s281, %s295
    %p297 = scmp.eq.s32.totalorder %s35, 0
    %p298 = por %p296, %p297
    %s300 = sadd.s32 %s299, 1
    %p303 = scmp.eq.s32.totalorder %s29, 1
    %p304 = scmp.ne.s32.totalorder %s299, %s301
    %p305 = scmp.eq.s32.totalorder %s29, 0
    %p306 = por %p304, %p305
    %p307 = scmp.ne.s32.totalorder %s299, %s301
    %p308 = scmp.eq.s32.totalorder %s34, 1
    %p309 = por %p307, %p308
    %p310 = scmp.ne.s32.totalorder %s301, %s302
    %p311 = scmp.eq.s32.totalorder %s34, 0
    %p312 = por %p310, %p311
    %p313 = scmp.ne.s32.totalorder %s301, %s302
    %p314 = scmp.eq.s32.totalorder %s35, 1
    %p315 = por %p313, %p314
    %p317 = scmp.ne.s32.totalorder %s302, %s316
    %p318 = scmp.eq.s32.totalorder %s35, 0
    %p319 = por %p317, %p318
    %s321 = sadd.s32 %s320, 1
    %p324 = scmp.eq.s32.totalorder %s29, 1
    %p325 = scmp.ne.s32.totalorder %s320, %s322
    %p326 = scmp.eq.s32.totalorder %s29, 0
    %p327 = por %p325, %p326
    %p328 = scmp.ne.s32.totalorder %s320, %s322
    %p329 = scmp.eq.s32.totalorder %s34, 1
    %p330 = por %p328, %p329
    %p331 = scmp.ne.s32.totalorder %s322, %s323
    %p332 = scmp.eq.s32.totalorder %s34, 0
    %p333 = por %p331, %p332
    %p334 = scmp.ne.s32.totalorder %s322, %s323
    %p335 = scmp.eq.s32.totalorder %s35, 1
    %p336 = por %p334, %p335
    %p338 = scmp.ne.s32.totalorder %s323, %s337
    %p339 = scmp.eq.s32.totalorder %s35, 0
    %p340 = por %p338, %p339
    %s342 = sadd.s32 %s341, 1
    %p345 = scmp.eq.s32.totalorder %s29, 1
    %p346 = scmp.ne.s32.totalorder %s341, %s343
    %p347 = scmp.eq.s32.totalorder %s29, 0
    %p348 = por %p346, %p347
    %p349 = scmp.ne.s32.totalorder %s341, %s343
    %p350 = scmp.eq.s32.totalorder %s34, 1
    %p351 = por %p349, %p350
    %p352 = scmp.ne.s32.totalorder %s343, %s344
    %p353 = scmp.eq.s32.totalorder %s34, 0
    %p354 = por %p352, %p353
    %p355 = scmp.ne.s32.totalorder %s343, %s344
    %p356 = scmp.eq.s32.totalorder %s35, 1
    %p357 = por %p355, %p356
    %p359 = scmp.ne.s32.totalorder %s344, %s358
    %p360 = scmp.eq.s32.totalorder %s35, 0
    %p361 = por %p359, %p360
    %s363 = sadd.s32 %s362, 1
    %p366 = scmp.eq.s32.totalorder %s29, 1
    %p367 = scmp.ne.s32.totalorder %s362, %s364
    %p368 = scmp.eq.s32.totalorder %s29, 0
    %p369 = por %p367, %p368
    %p370 = scmp.ne.s32.totalorder %s362, %s364
    %p371 = scmp.eq.s32.totalorder %s34, 1
    %p372 = por %p370, %p371
    %p373 = scmp.ne.s32.totalorder %s364, %s365
    %p374 = scmp.eq.s32.totalorder %s34, 0
    %p375 = por %p373, %p374
    %p376 = scmp.ne.s32.totalorder %s364, %s365
    %p377 = scmp.eq.s32.totalorder %s35, 1
    %p378 = por %p376, %p377
    %p380 = scmp.ne.s32.totalorder %s365, %s379
    %p381 = scmp.eq.s32.totalorder %s35, 0
    %p382 = por %p380, %p381
    %s384 = sadd.s32 %s383, 1
    %p387 = scmp.eq.s32.totalorder %s29, 1
    %p388 = scmp.ne.s32.totalorder %s383, %s385
    %p389 = scmp.eq.s32.totalorder %s29, 0
    %p390 = por %p388, %p389
    %p391 = scmp.ne.s32.totalorder %s383, %s385
    %p392 = scmp.eq.s32.totalorder %s34, 1
    %p393 = por %p391, %p392
    %p394 = scmp.ne.s32.totalorder %s385, %s386
    %p395 = scmp.eq.s32.totalorder %s34, 0
    %p396 = por %p394, %p395
    %p397 = scmp.ne.s32.totalorder %s385, %s386
    %p398 = scmp.eq.s32.totalorder %s35, 1
    %p399 = por %p397, %p398
    %p401 = scmp.ne.s32.totalorder %s386, %s400
    %p402 = scmp.eq.s32.totalorder %s35, 0
    %p403 = por %p401, %p402
    %s405 = sadd.s32 %s404, 1
    %p408 = scmp.eq.s32.totalorder %s29, 1
    %p409 = scmp.ne.s32.totalorder %s404, %s406
    %p410 = scmp.eq.s32.totalorder %s29, 0
    %p411 = por %p409, %p410
    %p412 = scmp.ne.s32.totalorder %s404, %s406
    %p413 = scmp.eq.s32.totalorder %s34, 1
    %p414 = por %p412, %p413
    %p415 = scmp.ne.s32.totalorder %s406, %s407
    %p416 = scmp.eq.s32.totalorder %s34, 0
    %p417 = por %p415, %p416
    %p418 = scmp.ne.s32.totalorder %s406, %s407
    %p419 = scmp.eq.s32.totalorder %s35, 1
    %p420 = por %p418, %p419
    %p422 = scmp.ne.s32.totalorder %s407, %s421
    %p423 = scmp.eq.s32.totalorder %s35, 0
    %p424 = por %p422, %p423
    %s426 = sadd.s32 %s425, 1
    %p429 = scmp.eq.s32.totalorder %s29, 1
    %p430 = scmp.ne.s32.totalorder %s425, %s427
    %p431 = scmp.eq.s32.totalorder %s29, 0
    %p432 = por %p430, %p431
    %p433 = scmp.ne.s32.totalorder %s425, %s427
    %p434 = scmp.eq.s32.totalorder %s34, 1
    %p435 = por %p433, %p434
    %p436 = scmp.ne.s32.totalorder %s427, %s428
    %p437 = scmp.eq.s32.totalorder %s34, 0
    %p438 = por %p436, %p437
    %p439 = scmp.ne.s32.totalorder %s427, %s428
    %p440 = scmp.eq.s32.totalorder %s35, 1
    %p441 = por %p439, %p440
    %p443 = scmp.ne.s32.totalorder %s428, %s442
    %p444 = scmp.eq.s32.totalorder %s35, 0
    %p445 = por %p443, %p444
    %s447 = sadd.s32 %s446, 1
    %p450 = scmp.eq.s32.totalorder %s29, 1
    %p451 = scmp.ne.s32.totalorder %s446, %s448
    %p452 = scmp.eq.s32.totalorder %s29, 0
    %p453 = por %p451, %p452
    %p454 = scmp.ne.s32.totalorder %s446, %s448
    %p455 = scmp.eq.s32.totalorder %s34, 1
    %p456 = por %p454, %p455
    %p457 = scmp.ne.s32.totalorder %s448, %s449
    %p458 = scmp.eq.s32.totalorder %s34, 0
    %p459 = por %p457, %p458
    %p460 = scmp.ne.s32.totalorder %s448, %s449
    %p461 = scmp.eq.s32.totalorder %s35, 1
    %p462 = por %p460, %p461
    %p464 = scmp.ne.s32.totalorder %s449, %s463
    %p465 = scmp.eq.s32.totalorder %s35, 0
    %p466 = por %p464, %p465
    %s468 = sadd.s32 %s467, 1
    %p471 = scmp.eq.s32.totalorder %s29, 1
    %p472 = scmp.ne.s32.totalorder %s467, %s469
    %p473 = scmp.eq.s32.totalorder %s29, 0
    %p474 = por %p472, %p473
    %p475 = scmp.ne.s32.totalorder %s467, %s469
    %p476 = scmp.eq.s32.totalorder %s34, 1
    %p477 = por %p475, %p476
    %p478 = scmp.ne.s32.totalorder %s469, %s470
    %p479 = scmp.eq.s32.totalorder %s34, 0
    %p480 = por %p478, %p479
    %p481 = scmp.ne.s32.totalorder %s469, %s470
    %p482 = scmp.eq.s32.totalorder %s35, 1
    %p483 = por %p481, %p482
    %p485 = scmp.ne.s32.totalorder %s470, %s484
    %p486 = scmp.eq.s32.totalorder %s35, 0
    %p487 = por %p485, %p486
    %s488 = ssub.s32 %s29, %s36
    %p489 = scmp.eq.s32.totalorder %s488, 0
    %s491 = sadd.s32 %s490, 1
    %s492 = scalar_select %p489, %s490, %s491
    %p495 = pneg %p489
    %p496 = scmp.eq.s32.totalorder %s29, 1
    %p497 = por %p495, %p496
    %p498 = scmp.ne.s32.totalorder %s490, %s493
    %p499 = scmp.eq.s32.totalorder %s29, 0
    %p500 = por %p498, %p499
    %p501 = scmp.ne.s32.totalorder %s490, %s493
    %p502 = scmp.eq.s32.totalorder %s34, 1
    %p503 = por %p501, %p502
    %p504 = scmp.ne.s32.totalorder %s493, %s494
    %p505 = scmp.eq.s32.totalorder %s34, 0
    %p506 = por %p504, %p505
    %p507 = scmp.ne.s32.totalorder %s493, %s494
    %p508 = scmp.eq.s32.totalorder %s35, 1
    %p509 = por %p507, %p508
    %p511 = scmp.ne.s32.totalorder %s494, %s510
    %p512 = scmp.eq.s32.totalorder %s35, 0
    %p513 = por %p511, %p512
    %s514 = ssub.s32 %s29, %s36
    %p515 = scmp.eq.s32.totalorder %s514, 0
    %s517 = sadd.s32 %s516, 1
    %s518 = scalar_select %p515, %s516, %s517
    %p521 = pneg %p515
    %p522 = scmp.eq.s32.totalorder %s29, 1
    %p523 = por %p521, %p522
    %p524 = scmp.ne.s32.totalorder %s516, %s519
    %p525 = scmp.eq.s32.totalorder %s29, 0
    %p526 = por %p524, %p525
    %p527 = scmp.ne.s32.totalorder %s516, %s519
    %p528 = scmp.eq.s32.totalorder %s34, 1
    %p529 = por %p527, %p528
    %p530 = scmp.ne.s32.totalorder %s519, %s520
    %p531 = scmp.eq.s32.totalorder %s34, 0
    %p532 = por %p530, %p531
    %p533 = scmp.ne.s32.totalorder %s519, %s520
    %p534 = scmp.eq.s32.totalorder %s35, 1
    %p535 = por %p533, %p534
    %p537 = scmp.ne.s32.totalorder %s520, %s536
    %p538 = scmp.eq.s32.totalorder %s35, 0
    %p539 = por %p537, %p538
    %p540 = scmp.le.s32.totalorder 1, %s29
    %p541 = scmp.lt.s32.totalorder %s29, 3
    %p542 = pnand %p540, %p541
    %p543 = pneg %p542
    // Predicated region
    $region9: #{bottleneck_transformer.1} parent=5 // pred_check
      _
    $region10: #{bottleneck_transformer.1} parent=5 // pred_check_branch
      %545 = sbr.rel (%p542) target = $region12
    $region11: #{bottleneck_transformer.1} parent=5 // pred_region
      %s546 = ssub.s32 %s29, 1
      // Predicated region
      $region13: #{bottleneck_transformer.1} parent=11 // pred_check
        %p547 = pneg %p102
      $region14: #{bottleneck_transformer.1} parent=11 // pred_check_branch
        %549 = sbr.rel (%p547) target = $region16
      $region15: #{bottleneck_transformer.1} parent=11 // pred_region
        _
      $region16: #{bottleneck_transformer.1} parent=11 // pred_fallthru
        _
      // Predicated region
      $region17: #{bottleneck_transformer.1} parent=11 // pred_check
        %p550 = pneg %p123
      $region18: #{bottleneck_transformer.1} parent=11 // pred_check_branch
        %552 = sbr.rel (%p550) target = $region20
      $region19: #{bottleneck_transformer.1} parent=11 // pred_region
        _
      $region20: #{bottleneck_transformer.1} parent=11 // pred_fallthru
        _
      // Predicated region
      $region21: #{bottleneck_transformer.1} parent=11 // pred_check
        %p553 = pneg %p144
      $region22: #{bottleneck_transformer.1} parent=11 // pred_check_branch
        %555 = sbr.rel (%p553) target = $region24
      $region23: #{bottleneck_transformer.1} parent=11 // pred_region
        _
      $region24: #{bottleneck_transformer.1} parent=11 // pred_fallthru
        _
      // Predicated region
      $region25: #{bottleneck_transformer.1} parent=11 // pred_check
        %p556 = pneg %p165
      $region26: #{bottleneck_transformer.1} parent=11 // pred_check_branch
        %558 = sbr.rel (%p556) target = $region28
      $region27: #{bottleneck_transformer.1} parent=11 // pred_region
        _
      $region28: #{bottleneck_transformer.1} parent=11 // pred_fallthru
        _
      // Predicated region
      $region29: #{bottleneck_transformer.1} parent=11 // pred_check
        %p559 = pneg %p186
      $region30: #{bottleneck_transformer.1} parent=11 // pred_check_branch
        %561 = sbr.rel (%p559) target = $region32
      $region31: #{bottleneck_transformer.1} parent=11 // pred_region
        _
      $region32: #{bottleneck_transformer.1} parent=11 // pred_fallthru
        _
      // Predicated region
      $region33: #{bottleneck_transformer.1} parent=11 // pred_check
        %p562 = pneg %p207
      $region34: #{bottleneck_transformer.1} parent=11 // pred_check_branch
        %564 = sbr.rel (%p562) target = $region36
      $region35: #{bottleneck_transformer.1} parent=11 // pred_region
        _
      $region36: #{bottleneck_transformer.1} parent=11 // pred_fallthru
        _
      // Predicated region
      $region37: #{bottleneck_transformer.1} parent=11 // pred_check
        %p565 = pneg %p228
      $region38: #{bottleneck_transformer.1} parent=11 // pred_check_branch
        %567 = sbr.rel (%p565) target = $region40
      $region39: #{bottleneck_transformer.1} parent=11 // pred_region
        _
      $region40: #{bottleneck_transformer.1} parent=11 // pred_fallthru
        _
      // Predicated region
      $region41: #{bottleneck_transformer.1} parent=11 // pred_check
        %p568 = pneg %p249
      $region42: #{bottleneck_transformer.1} parent=11 // pred_check_branch
        %570 = sbr.rel (%p568) target = $region44
      $region43: #{bottleneck_transformer.1} parent=11 // pred_region
        _
      $region44: #{bottleneck_transformer.1} parent=11 // pred_fallthru
        _
      // Predicated region
      $region45: #{bottleneck_transformer.1} parent=11 // pred_check
        %p571 = pneg %p270
      $region46: #{bottleneck_transformer.1} parent=11 // pred_check_branch
        %573 = sbr.rel (%p571) target = $region48
      $region47: #{bottleneck_transformer.1} parent=11 // pred_region
        _
      $region48: #{bottleneck_transformer.1} parent=11 // pred_fallthru
        _
      // Predicated region
      $region49: #{bottleneck_transformer.1} parent=11 // pred_check
        %p574 = pneg %p291
      $region50: #{bottleneck_transformer.1} parent=11 // pred_check_branch
        %576 = sbr.rel (%p574) target = $region52
      $region51: #{bottleneck_transformer.1} parent=11 // pred_region
        _
      $region52: #{bottleneck_transformer.1} parent=11 // pred_fallthru
        _
      // Predicated region
      $region53: #{bottleneck_transformer.1} parent=11 // pred_check
        %p577 = pneg %p312
      $region54: #{bottleneck_transformer.1} parent=11 // pred_check_branch
        %579 = sbr.rel (%p577) target = $region56
      $region55: #{bottleneck_transformer.1} parent=11 // pred_region
        _
      $region56: #{bottleneck_transformer.1} parent=11 // pred_fallthru
        _
      // Predicated region
      $region57: #{bottleneck_transformer.1} parent=11 // pred_check
        %p580 = pneg %p333
      $region58: #{bottleneck_transformer.1} parent=11 // pred_check_branch
        %582 = sbr.rel (%p580) target = $region60
      $region59: #{bottleneck_transformer.1} parent=11 // pred_region
        _
      $region60: #{bottleneck_transformer.1} parent=11 // pred_fallthru
        _
      // Predicated region
      $region61: #{bottleneck_transformer.1} parent=11 // pred_check
        %p583 = pneg %p354
      $region62: #{bottleneck_transformer.1} parent=11 // pred_check_branch
        %585 = sbr.rel (%p583) target = $region64
      $region63: #{bottleneck_transformer.1} parent=11 // pred_region
        _
      $region64: #{bottleneck_transformer.1} parent=11 // pred_fallthru
        _
      // Predicated region
      $region65: #{bottleneck_transformer.1} parent=11 // pred_check
        %p586 = pneg %p375
      $region66: #{bottleneck_transformer.1} parent=11 // pred_check_branch
        %588 = sbr.rel (%p586) target = $region68
      $region67: #{bottleneck_transformer.1} parent=11 // pred_region
        _
      $region68: #{bottleneck_transformer.1} parent=11 // pred_fallthru
        _
      // Predicated region
      $region69: #{bottleneck_transformer.1} parent=11 // pred_check
        %p589 = pneg %p396
      $region70: #{bottleneck_transformer.1} parent=11 // pred_check_branch
        %591 = sbr.rel (%p589) target = $region72
      $region71: #{bottleneck_transformer.1} parent=11 // pred_region
        _
      $region72: #{bottleneck_transformer.1} parent=11 // pred_fallthru
        _
      // Predicated region
      $region73: #{bottleneck_transformer.1} parent=11 // pred_check
        %p592 = pneg %p417
      $region74: #{bottleneck_transformer.1} parent=11 // pred_check_branch
        %594 = sbr.rel (%p592) target = $region76
      $region75: #{bottleneck_transformer.1} parent=11 // pred_region
        _
      $region76: #{bottleneck_transformer.1} parent=11 // pred_fallthru
        _
      // Predicated region
      $region77: #{bottleneck_transformer.1} parent=11 // pred_check
        %p595 = pneg %p438
      $region78: #{bottleneck_transformer.1} parent=11 // pred_check_branch
        %597 = sbr.rel (%p595) target = $region80
      $region79: #{bottleneck_transformer.1} parent=11 // pred_region
        _
      $region80: #{bottleneck_transformer.1} parent=11 // pred_fallthru
        _
      // Predicated region
      $region81: #{bottleneck_transformer.1} parent=11 // pred_check
        %p598 = pneg %p459
      $region82: #{bottleneck_transformer.1} parent=11 // pred_check_branch
        %600 = sbr.rel (%p598) target = $region84
      $region83: #{bottleneck_transformer.1} parent=11 // pred_region
        _
      $region84: #{bottleneck_transformer.1} parent=11 // pred_fallthru
        _
      // Predicated region
      $region85: #{bottleneck_transformer.1} parent=11 // pred_check
        %p601 = pneg %p480
      $region86: #{bottleneck_transformer.1} parent=11 // pred_check_branch
        %603 = sbr.rel (%p601) target = $region88
      $region87: #{bottleneck_transformer.1} parent=11 // pred_region
        _
      $region88: #{bottleneck_transformer.1} parent=11 // pred_fallthru
        _
    $region12: #{bottleneck_transformer.1} parent=5 // pred_fallthru
      _
    %p604 = scmp.lt.s32.totalorder %s29, 2
    // Predicated region
    $region89: #{bottleneck_transformer.1} parent=5 // pred_check
      %p605 = pneg %p604
    $region90: #{bottleneck_transformer.1} parent=5 // pred_check_branch
      %607 = sbr.rel (%p605) target = $region92
    $region91: #{bottleneck_transformer.1} parent=5 // pred_region
      // Predicated region
      $region93: #{bottleneck_transformer.1} parent=91 // pred_check
        %p608 = pneg %p49
      $region94: #{bottleneck_transformer.1} parent=91 // pred_check_branch
        %610 = sbr.rel (%p608) target = $region96
      $region95: #{bottleneck_transformer.1} parent=91 // pred_region
        %p611 = scmp.lt.s32.totalorder %s29, 1
        %s612 = scalar_select %p611, %s29, 1
        %s613 = smul.addr %s612, 7
        %s614 = smul.addr %s613, 8
        %s615 = scalar_lea.vmem %s0, %s614
      $region96: #{bottleneck_transformer.1} parent=91 // pred_fallthru
        _
      // Predicated region
      $region97: #{bottleneck_transformer.1} parent=91 // pred_check
        %p616 = pneg %p75
      $region98: #{bottleneck_transformer.1} parent=91 // pred_check_branch
        %618 = sbr.rel (%p616) target = $region100
      $region99: #{bottleneck_transformer.1} parent=91 // pred_region
        %p619 = scmp.lt.s32.totalorder %s29, 1
        %s620 = scalar_select %p619, %s29, 1
        %s621 = smul.addr %s620, 7
        %s622 = smul.addr %s621, 8
        %s623 = scalar_lea.vmem %s1, %s622
      $region100: #{bottleneck_transformer.1} parent=91 // pred_fallthru
        _
    $region92: #{bottleneck_transformer.1} parent=5 // pred_fallthru
      _
    %p624 = scmp.le.s32.totalorder 1, %s29
    %p625 = scmp.lt.s32.totalorder %s29, 3
    %p626 = pnand %p624, %p625
    %p627 = pneg %p626
    // Predicated region
    $region101: #{bottleneck_transformer.1} parent=5 // pred_check
      _
    $region102: #{bottleneck_transformer.1} parent=5 // pred_check_branch
      %629 = sbr.rel (%p626) target = $region104
    $region103: #{bottleneck_transformer.1} parent=5 // pred_region
      %s630 = ssub.s32 %s29, 1
      %p631 = scmp.lt.s32.totalorder %s34, 1
      %s632 = scalar_select %p631, %s34, 1
      %s633 = smul.addr %s632, 7
      %s634 = smul.addr %s633, 8
      %s635 = scalar_lea.vmem %s0, %s634
      %p636 = pneg %p55
      %p637 = pneg %p52
      %p638 = scmp.lt.s32.totalorder %s34, 1
      %s639 = scalar_select %p638, %s34, 1
      %s640 = smul.addr %s639, 7
      %s641 = smul.addr %s640, 8
      %s642 = scalar_lea.vmem %s1, %s641
      %p643 = pneg %p81
      %p644 = pneg %p78
      %p645 = pneg %p102
      %p646 = pneg %p99
      %p647 = pneg %p123
      %p648 = pneg %p120
      %p649 = pneg %p144
      %p650 = pneg %p141
      %p651 = pneg %p165
      %p652 = pneg %p162
      %p653 = pneg %p186
      %p654 = pneg %p183
      %p655 = pneg %p207
      %p656 = pneg %p204
      %p657 = pneg %p228
      %p658 = pneg %p225
      %p659 = pneg %p249
      %p660 = pneg %p246
      %p661 = pneg %p270
      %p662 = pneg %p267
      %p663 = pneg %p291
      %p664 = pneg %p288
      %p665 = pneg %p312
      %p666 = pneg %p309
      %p667 = pneg %p333
      %p668 = pneg %p330
      %p669 = pneg %p354
      %p670 = pneg %p351
      %p671 = pneg %p375
      %p672 = pneg %p372
      %p673 = pneg %p396
      %p674 = pneg %p393
      %p675 = pneg %p417
      %p676 = pneg %p414
      %p677 = pneg %p438
      %p678 = pneg %p435
      %p679 = pneg %p459
      %p680 = pneg %p456
      %p681 = pneg %p480
      %p682 = pneg %p477
      %p683 = pneg %p506
      %p684 = pneg %p503
      %p685 = scmp.lt.s32.totalorder %s34, 1
      %s686 = scalar_select %p685, %s34, 1
      %s687 = smul.addr %s686, 7
      %s688 = smul.addr %s687, 8
      %s689 = scalar_lea.vmem %s21, %s688
      %p690 = pneg %p532
      %p691 = pneg %p529
      %p692 = scmp.lt.s32.totalorder %s34, 1
      %s693 = scalar_select %p692, %s34, 1
      %s694 = smul.addr %s693, 7
      %s695 = smul.addr %s694, 8
      %s696 = scalar_lea.vmem %s22, %s695
      %p697 = scmp.lt.s32.totalorder %s34, 1
      %s698 = scalar_select %p697, %s34, 1
      %s699 = smul.addr %s698, 7
      %s700 = smul.addr %s699, 8
      %s701 = scalar_lea.vmem %s0, %s700
      %p702 = scmp.lt.s32.totalorder %s34, 1
      %s703 = scalar_select %p702, %s34, 1
      %s704 = smul.addr %s703, 7
      %s705 = smul.addr %s704, 8
      %s706 = scalar_lea.vmem %s1, %s705
      %p707 = scmp.lt.s32.totalorder %s34, 1
      %s708 = scalar_select %p707, %s34, 1
      %s709 = smul.addr %s708, 7
      %s710 = smul.addr %s709, 8
      %s711 = scalar_lea.vmem %s21, %s710
      %p712 = scmp.lt.s32.totalorder %s34, 1
      %s713 = scalar_select %p712, %s34, 1
      %s714 = smul.addr %s713, 7
      %s715 = smul.addr %s714, 8
      %s716 = scalar_lea.vmem %s22, %s715
      %v717 = vld [vmem:[%s701] sm:$0xff]
      %v718 = vld [vmem:[%s701 + $0x8] sm:$0xff]
      %v719 = vld [vmem:[%s701 + $0x10] sm:$0xff]
      %v720 = vld [vmem:[%s701 + $0x18] sm:$0xff]
      %v721 = vld [vmem:[%s701 + $0x20] sm:$0xff]
      %v722 = vld [vmem:[%s701 + $0x28] sm:$0xff]
      %v723 = vld [vmem:[%s701 + $0x30] sm:$0xff]
      %v724 = vld [vmem:[%s706] sm:$0xff]
      %v725 = vld [vmem:[%s706 + $0x8] sm:$0xff]
      %v726 = vld [vmem:[%s706 + $0x10] sm:$0xff]
      %v727 = vld [vmem:[%s706 + $0x18] sm:$0xff]
      %v728 = vld [vmem:[%s706 + $0x20] sm:$0xff]
      %v729 = vld [vmem:[%s706 + $0x28] sm:$0xff]
      %v730 = vld [vmem:[%s706 + $0x30] sm:$0xff]
      %v731 = vld [vmem:[%s2] sm:$0xff]
      %v732 = vld [vmem:[%s2 + $0x8] sm:$0xff]
      %v733 = vld [vmem:[%s2 + $0x10] sm:$0xff]
      %v734 = vld [vmem:[%s2 + $0x18] sm:$0xff]
      %v735 = vld [vmem:[%s2 + $0x20] sm:$0xff]
      %v736 = vld [vmem:[%s2 + $0x28] sm:$0xff]
      %v737 = vld [vmem:[%s2 + $0x30] sm:$0xff]
      %v738 = vld [vmem:[%s2 + $0x38] sm:$0xff]
      %v739 = vld [vmem:[%s2 + $0x40] sm:$0xff]
      %v740 = vld [vmem:[%s2 + $0x48] sm:$0xff]
      %v741 = vld [vmem:[%s2 + $0x50] sm:$0xff]
      %v742 = vld [vmem:[%s2 + $0x58] sm:$0xff]
      %v743 = vld [vmem:[%s3] sm:$0x1]
      %v745 = vperm.slane %v743, 0
      %vm747 = vcmask 785408
      %v749 = vsel %vm747, %v717, 0
      %v752 = vsel %vm747, %v718, 0
      %v755 = vsel %vm747, %v719, 0
      %v758 = vsel %vm747, %v720, 0
      %v761 = vsel %vm747, %v721, 0
      %v764 = vsel %vm747, %v722, 0
      %v767 = vsel %vm747, %v723, 0
      %769 = vmatpush.msra.mxu0 0.0
      %770 = vmatpush.msra.mxu0 0.0
      %771 = vmatpush.msra.mxu0 0.0
      %772 = vmatpush.msra.mxu0 0.0
      %773 = vmatpush.msra.mxu0 %v742
      %774 = vmatpush.msra.mxu0 %v741
      %775 = vmatpush.msra.mxu0 %v740
      %776 = vmatpush.msra.mxu0 %v739
      %777 = vmatpush.msra.mxu0 %v738
      %778 = vmatpush.msra.mxu0 %v737
      %779 = vmatpush.msra.mxu0 %v736
      %780 = vmatpush.msra.mxu0 %v735
      %781 = vmatpush.msra.mxu0 %v734
      %782 = vmatpush.msra.mxu0 %v733
      %783 = vmatpush.msra.mxu0 %v732
      %784 = vmatpush.msra.mxu0 %v731
      %785 = vmatmul.f32.gmra.mxu0 %v749
      %v786 = vpop.f32.mrf.mxu0
      %v787 = vadd.f32 %v745, %v786
      %788 = vmatmul.f32.gmra.mxu0 %v752
      %v789 = vpop.f32.mrf.mxu0
      %v790 = vadd.f32 %v745, %v789
      %791 = vmatmul.f32.gmra.mxu0 %v755
      %v792 = vpop.f32.mrf.mxu0
      %v793 = vadd.f32 %v745, %v792
      %794 = vmatmul.f32.gmra.mxu0 %v758
      %v795 = vpop.f32.mrf.mxu0
      %v796 = vadd.f32 %v745, %v795
      %797 = vmatmul.f32.gmra.mxu0 %v761
      %v798 = vpop.f32.mrf.mxu0
      %v799 = vadd.f32 %v745, %v798
      %800 = vmatmul.f32.gmra.mxu0 %v764
      %v801 = vpop.f32.mrf.mxu0
      %v802 = vadd.f32 %v745, %v801
      %803 = vmatmul.f32.gmra.mxu0 %v767
      %v804 = vpop.f32.mrf.mxu0
      %v805 = vadd.f32 %v745, %v804
      %806 = vdwg.mxu0
      %v807 = vld [vmem:[%s4] sm:$0x1]
      %v808 = vld [vmem:[%s5] sm:$0x1]
      %vm809 = vcmask 261120
      %v810 = vsel %vm809, %v787, 0.0
      %811 = vadd.xlane.f32.xlu0 %v810
      %v812 = vpop.xlane.xlu0 %811
      %v813 = vsel %vm809, %v790, 0.0
      %814 = vadd.xlane.f32.xlu0 %v813
      %v815 = vpop.xlane.xlu0 %814
      %v816 = vsel %vm809, %v793, 0.0
      %817 = vadd.xlane.f32.xlu0 %v816
      %v818 = vpop.xlane.xlu0 %817
      %v819 = vsel %vm809, %v796, 0.0
      %820 = vadd.xlane.f32.xlu0 %v819
      %v821 = vpop.xlane.xlu0 %820
      %v822 = vsel %vm809, %v799, 0.0
      %823 = vadd.xlane.f32.xlu0 %v822
      %v824 = vpop.xlane.xlu0 %823
      %v825 = vsel %vm809, %v802, 0.0
      %826 = vadd.xlane.f32.xlu0 %v825
      %v827 = vpop.xlane.xlu0 %826
      %v828 = vsel %vm809, %v805, 0.0
      %829 = vadd.xlane.f32.xlu0 %v828
      %v830 = vpop.xlane.xlu0 %829
      %v831 = vmul.f32 %v812, 0.03125
      %v832 = vmul.f32 %v815, 0.03125
      %v833 = vmul.f32 %v818, 0.03125
      %v834 = vmul.f32 %v821, 0.03125
      %v835 = vmul.f32 %v824, 0.03125
      %v836 = vmul.f32 %v827, 0.03125
      %v837 = vmul.f32 %v830, 0.03125
      %v838 = vsub.f32 %v787, %v831
      %v839 = vsub.f32 %v790, %v832
      %v840 = vsub.f32 %v793, %v833
      %v841 = vsub.f32 %v796, %v834
      %v842 = vsub.f32 %v799, %v835
      %v843 = vsub.f32 %v802, %v836
      %v844 = vsub.f32 %v805, %v837
      %v845 = vmul.f32 %v838, %v838
      %v846 = vmul.f32 %v839, %v839
      %v847 = vmul.f32 %v840, %v840
      %v848 = vmul.f32 %v841, %v841
      %v849 = vmul.f32 %v842, %v842
      %v850 = vmul.f32 %v843, %v843
      %v851 = vmul.f32 %v844, %v844
      %v852 = vsel %vm809, %v845, 0.0
      %853 = vadd.xlane.f32.xlu0 %v852
      %v854 = vpop.xlane.xlu0 %853
      %v855 = vsel %vm809, %v846, 0.0
      %856 = vadd.xlane.f32.xlu0 %v855
      %v857 = vpop.xlane.xlu0 %856
      %v858 = vsel %vm809, %v847, 0.0
      %859 = vadd.xlane.f32.xlu0 %v858
      %v860 = vpop.xlane.xlu0 %859
      %v861 = vsel %vm809, %v848, 0.0
      %862 = vadd.xlane.f32.xlu0 %v861
      %v863 = vpop.xlane.xlu0 %862
      %v864 = vsel %vm809, %v849, 0.0
      %865 = vadd.xlane.f32.xlu0 %v864
      %v866 = vpop.xlane.xlu0 %865
      %v867 = vsel %vm809, %v850, 0.0
      %868 = vadd.xlane.f32.xlu0 %v867
      %v869 = vpop.xlane.xlu0 %868
      %v870 = vsel %vm809, %v851, 0.0
      %871 = vadd.xlane.f32.xlu0 %v870
      %v872 = vpop.xlane.xlu0 %871
      %v873 = vmul.f32 %v854, 0.03125
      %v874 = vmul.f32 %v857, 0.03125
      %v875 = vmul.f32 %v860, 0.03125
      %v876 = vmul.f32 %v863, 0.03125
      %v877 = vmul.f32 %v866, 0.03125
      %v878 = vmul.f32 %v869, 0.03125
      %v879 = vmul.f32 %v872, 0.03125
      %v880 = vadd.f32 %v873, 1e-05
      %v881 = vadd.f32 %v874, 1e-05
      %v882 = vadd.f32 %v875, 1e-05
      %v883 = vadd.f32 %v876, 1e-05
      %v884 = vadd.f32 %v877, 1e-05
      %v885 = vadd.f32 %v878, 1e-05
      %v886 = vadd.f32 %v879, 1e-05
      %v887 = vrsqrt.pop %v880
      %v888 = vmul.f32 %v887, %v880
      %v889 = vmul.f32 %v888, %v887
      %v890 = vmul.f32 0.5, %v889
      %v891 = vsub.f32 1.5, %v890
      %v892 = vmul.f32 %v887, %v891
      %vm893 = vweird.f32 %v880
      %vm894 = vweird.f32 %v887
      %vm895 = vmor %vm893, %vm894
      %v896 = vsel %vm895, %v887, %v892
      %v897 = vrsqrt.pop %v881
      %v898 = vmul.f32 %v897, %v881
      %v899 = vmul.f32 %v898, %v897
      %v900 = vmul.f32 0.5, %v899
      %v901 = vsub.f32 1.5, %v900
      %v902 = vmul.f32 %v897, %v901
      %vm903 = vweird.f32 %v881
      %vm904 = vweird.f32 %v897
      %vm905 = vmor %vm903, %vm904
      %v906 = vsel %vm905, %v897, %v902
      %v907 = vrsqrt.pop %v882
      %v908 = vmul.f32 %v907, %v882
      %v909 = vmul.f32 %v908, %v907
      %v910 = vmul.f32 0.5, %v909
      %v911 = vsub.f32 1.5, %v910
      %v912 = vmul.f32 %v907, %v911
      %vm913 = vweird.f32 %v882
      %vm914 = vweird.f32 %v907
      %vm915 = vmor %vm913, %vm914
      %v916 = vsel %vm915, %v907, %v912
      %v917 = vrsqrt.pop %v883
      %v918 = vmul.f32 %v917, %v883
      %v919 = vmul.f32 %v918, %v917
      %v920 = vmul.f32 0.5, %v919
      %v921 = vsub.f32 1.5, %v920
      %v922 = vmul.f32 %v917, %v921
      %vm923 = vweird.f32 %v883
      %vm924 = vweird.f32 %v917
      %vm925 = vmor %vm923, %vm924
      %v926 = vsel %vm925, %v917, %v922
      %v927 = vrsqrt.pop %v884
      %v928 = vmul.f32 %v927, %v884
      %v929 = vmul.f32 %v928, %v927
      %v930 = vmul.f32 0.5, %v929
      %v931 = vsub.f32 1.5, %v930
      %v932 = vmul.f32 %v927, %v931
      %vm933 = vweird.f32 %v884
      %vm934 = vweird.f32 %v927
      %vm935 = vmor %vm933, %vm934
      %v936 = vsel %vm935, %v927, %v932
      %v937 = vrsqrt.pop %v885
      %v938 = vmul.f32 %v937, %v885
      %v939 = vmul.f32 %v938, %v937
      %v940 = vmul.f32 0.5, %v939
      %v941 = vsub.f32 1.5, %v940
      %v942 = vmul.f32 %v937, %v941
      %vm943 = vweird.f32 %v885
      %vm944 = vweird.f32 %v937
      %vm945 = vmor %vm943, %vm944
      %v946 = vsel %vm945, %v937, %v942
      %v947 = vrsqrt.pop %v886
      %v948 = vmul.f32 %v947, %v886
      %v949 = vmul.f32 %v948, %v947
      %v950 = vmul.f32 0.5, %v949
      %v951 = vsub.f32 1.5, %v950
      %v952 = vmul.f32 %v947, %v951
      %vm953 = vweird.f32 %v886
      %vm954 = vweird.f32 %v947
      %vm955 = vmor %vm953, %vm954
      %v956 = vsel %vm955, %v947, %v952
      %v957 = vmul.f32 %v838, %v896
      %v958 = vmul.f32 %v839, %v906
      %v959 = vmul.f32 %v840, %v916
      %v960 = vmul.f32 %v841, %v926
      %v961 = vmul.f32 %v842, %v936
      %v962 = vmul.f32 %v843, %v946
      %v963 = vmul.f32 %v844, %v956
      %v965 = vperm.slane %v807, 0
      %v967 = vmul.f32 %v957, %v965
      %v968 = vmul.f32 %v958, %v965
      %v969 = vmul.f32 %v959, %v965
      %v970 = vmul.f32 %v960, %v965
      %v971 = vmul.f32 %v961, %v965
      %v972 = vmul.f32 %v962, %v965
      %v973 = vmul.f32 %v963, %v965
      %v975 = vperm.slane %v808, 0
      %v977 = vadd.f32 %v967, %v975
      %v978 = vadd.f32 %v968, %v975
      %v979 = vadd.f32 %v969, %v975
      %v980 = vadd.f32 %v970, %v975
      %v981 = vadd.f32 %v971, %v975
      %v982 = vadd.f32 %v972, %v975
      %v983 = vadd.f32 %v973, %v975
      %v984 = vld [vmem:[%s6] sm:$0xff]
      %v985 = vld [vmem:[%s6 + $0x8] sm:$0xff]
      %v986 = vld [vmem:[%s6 + $0x10] sm:$0xff]
      %v987 = vld [vmem:[%s6 + $0x18] sm:$0xff]
      %v988 = vld [vmem:[%s6 + $0x20] sm:$0xff]
      %v989 = vld [vmem:[%s6 + $0x28] sm:$0xff]
      %v990 = vld [vmem:[%s6 + $0x30] sm:$0xff]
      %v991 = vld [vmem:[%s6 + $0x38] sm:$0xff]
      %v992 = vld [vmem:[%s6 + $0x40] sm:$0xff]
      %v993 = vld [vmem:[%s6 + $0x48] sm:$0xff]
      %v994 = vld [vmem:[%s6 + $0x50] sm:$0xff]
      %v995 = vld [vmem:[%s6 + $0x58] sm:$0xff]
      %v996 = vld [vmem:[%s7] sm:$0x1]
      %v998 = vperm.slane %v996, 0
      %v1001 = vsel %vm747, %v724, 0
      %v1004 = vsel %vm747, %v725, 0
      %v1007 = vsel %vm747, %v726, 0
      %v1010 = vsel %vm747, %v727, 0
      %v1013 = vsel %vm747, %v728, 0
      %v1016 = vsel %vm747, %v729, 0
      %v1019 = vsel %vm747, %v730, 0
      %1021 = vmatpush.msra.mxu0 0.0
      %1022 = vmatpush.msra.mxu0 0.0
      %1023 = vmatpush.msra.mxu0 0.0
      %1024 = vmatpush.msra.mxu0 0.0
      %1025 = vmatpush.msra.mxu0 %v995
      %1026 = vmatpush.msra.mxu0 %v994
      %1027 = vmatpush.msra.mxu0 %v993
      %1028 = vmatpush.msra.mxu0 %v992
      %1029 = vmatpush.msra.mxu0 %v991
      %1030 = vmatpush.msra.mxu0 %v990
      %1031 = vmatpush.msra.mxu0 %v989
      %1032 = vmatpush.msra.mxu0 %v988
      %1033 = vmatpush.msra.mxu0 %v987
      %1034 = vmatpush.msra.mxu0 %v986
      %1035 = vmatpush.msra.mxu0 %v985
      %1036 = vmatpush.msra.mxu0 %v984
      %1037 = vmatmul.f32.gmra.mxu0 %v1001
      %v1038 = vpop.f32.mrf.mxu0
      %v1039 = vadd.f32 %v998, %v1038
      %1040 = vmatmul.f32.gmra.mxu0 %v1004
      %v1041 = vpop.f32.mrf.mxu0
      %v1042 = vadd.f32 %v998, %v1041
      %1043 = vmatmul.f32.gmra.mxu0 %v1007
      %v1044 = vpop.f32.mrf.mxu0
      %v1045 = vadd.f32 %v998, %v1044
      %1046 = vmatmul.f32.gmra.mxu0 %v1010
      %v1047 = vpop.f32.mrf.mxu0
      %v1048 = vadd.f32 %v998, %v1047
      %1049 = vmatmul.f32.gmra.mxu0 %v1013
      %v1050 = vpop.f32.mrf.mxu0
      %v1051 = vadd.f32 %v998, %v1050
      %1052 = vmatmul.f32.gmra.mxu0 %v1016
      %v1053 = vpop.f32.mrf.mxu0
      %v1054 = vadd.f32 %v998, %v1053
      %1055 = vmatmul.f32.gmra.mxu0 %v1019
      %v1056 = vpop.f32.mrf.mxu0
      %v1057 = vadd.f32 %v998, %v1056
      %1058 = vdwg.mxu0
      %v1059 = vld [vmem:[%s8] sm:$0x1]
      %v1060 = vld [vmem:[%s9] sm:$0x1]
      %v1061 = vsel %vm809, %v1039, 0.0
      %1062 = vadd.xlane.f32.xlu0 %v1061
      %v1063 = vpop.xlane.xlu0 %1062
      %v1064 = vsel %vm809, %v1042, 0.0
      %1065 = vadd.xlane.f32.xlu0 %v1064
      %v1066 = vpop.xlane.xlu0 %1065
      %v1067 = vsel %vm809, %v1045, 0.0
      %1068 = vadd.xlane.f32.xlu0 %v1067
      %v1069 = vpop.xlane.xlu0 %1068
      %v1070 = vsel %vm809, %v1048, 0.0
      %1071 = vadd.xlane.f32.xlu0 %v1070
      %v1072 = vpop.xlane.xlu0 %1071
      %v1073 = vsel %vm809, %v1051, 0.0
      %1074 = vadd.xlane.f32.xlu0 %v1073
      %v1075 = vpop.xlane.xlu0 %1074
      %v1076 = vsel %vm809, %v1054, 0.0
      %1077 = vadd.xlane.f32.xlu0 %v1076
      %v1078 = vpop.xlane.xlu0 %1077
      %v1079 = vsel %vm809, %v1057, 0.0
      %1080 = vadd.xlane.f32.xlu0 %v1079
      %v1081 = vpop.xlane.xlu0 %1080
      %v1082 = vmul.f32 %v1063, 0.03125
      %v1083 = vmul.f32 %v1066, 0.03125
      %v1084 = vmul.f32 %v1069, 0.03125
      %v1085 = vmul.f32 %v1072, 0.03125
      %v1086 = vmul.f32 %v1075, 0.03125
      %v1087 = vmul.f32 %v1078, 0.03125
      %v1088 = vmul.f32 %v1081, 0.03125
      %v1089 = vsub.f32 %v1039, %v1082
      %v1090 = vsub.f32 %v1042, %v1083
      %v1091 = vsub.f32 %v1045, %v1084
      %v1092 = vsub.f32 %v1048, %v1085
      %v1093 = vsub.f32 %v1051, %v1086
      %v1094 = vsub.f32 %v1054, %v1087
      %v1095 = vsub.f32 %v1057, %v1088
      %v1096 = vmul.f32 %v1089, %v1089
      %v1097 = vmul.f32 %v1090, %v1090
      %v1098 = vmul.f32 %v1091, %v1091
      %v1099 = vmul.f32 %v1092, %v1092
      %v1100 = vmul.f32 %v1093, %v1093
      %v1101 = vmul.f32 %v1094, %v1094
      %v1102 = vmul.f32 %v1095, %v1095
      %v1103 = vsel %vm809, %v1096, 0.0
      %1104 = vadd.xlane.f32.xlu0 %v1103
      %v1105 = vpop.xlane.xlu0 %1104
      %v1106 = vsel %vm809, %v1097, 0.0
      %1107 = vadd.xlane.f32.xlu0 %v1106
      %v1108 = vpop.xlane.xlu0 %1107
      %v1109 = vsel %vm809, %v1098, 0.0
      %1110 = vadd.xlane.f32.xlu0 %v1109
      %v1111 = vpop.xlane.xlu0 %1110
      %v1112 = vsel %vm809, %v1099, 0.0
      %1113 = vadd.xlane.f32.xlu0 %v1112
      %v1114 = vpop.xlane.xlu0 %1113
      %v1115 = vsel %vm809, %v1100, 0.0
      %1116 = vadd.xlane.f32.xlu0 %v1115
      %v1117 = vpop.xlane.xlu0 %1116
      %v1118 = vsel %vm809, %v1101, 0.0
      %1119 = vadd.xlane.f32.xlu0 %v1118
      %v1120 = vpop.xlane.xlu0 %1119
      %v1121 = vsel %vm809, %v1102, 0.0
      %1122 = vadd.xlane.f32.xlu0 %v1121
      %v1123 = vpop.xlane.xlu0 %1122
      %v1124 = vmul.f32 %v1105, 0.03125
      %v1125 = vmul.f32 %v1108, 0.03125
      %v1126 = vmul.f32 %v1111, 0.03125
      %v1127 = vmul.f32 %v1114, 0.03125
      %v1128 = vmul.f32 %v1117, 0.03125
      %v1129 = vmul.f32 %v1120, 0.03125
      %v1130 = vmul.f32 %v1123, 0.03125
      %v1131 = vadd.f32 %v1124, 1e-05
      %v1132 = vadd.f32 %v1125, 1e-05
      %v1133 = vadd.f32 %v1126, 1e-05
      %v1134 = vadd.f32 %v1127, 1e-05
      %v1135 = vadd.f32 %v1128, 1e-05
      %v1136 = vadd.f32 %v1129, 1e-05
      %v1137 = vadd.f32 %v1130, 1e-05
      %v1138 = vrsqrt.pop %v1131
      %v1139 = vmul.f32 %v1138, %v1131
      %v1140 = vmul.f32 %v1139, %v1138
      %v1141 = vmul.f32 0.5, %v1140
      %v1142 = vsub.f32 1.5, %v1141
      %v1143 = vmul.f32 %v1138, %v1142
      %vm1144 = vweird.f32 %v1131
      %vm1145 = vweird.f32 %v1138
      %vm1146 = vmor %vm1144, %vm1145
      %v1147 = vsel %vm1146, %v1138, %v1143
      %v1148 = vrsqrt.pop %v1132
      %v1149 = vmul.f32 %v1148, %v1132
      %v1150 = vmul.f32 %v1149, %v1148
      %v1151 = vmul.f32 0.5, %v1150
      %v1152 = vsub.f32 1.5, %v1151
      %v1153 = vmul.f32 %v1148, %v1152
      %vm1154 = vweird.f32 %v1132
      %vm1155 = vweird.f32 %v1148
      %vm1156 = vmor %vm1154, %vm1155
      %v1157 = vsel %vm1156, %v1148, %v1153
      %v1158 = vrsqrt.pop %v1133
      %v1159 = vmul.f32 %v1158, %v1133
      %v1160 = vmul.f32 %v1159, %v1158
      %v1161 = vmul.f32 0.5, %v1160
      %v1162 = vsub.f32 1.5, %v1161
      %v1163 = vmul.f32 %v1158, %v1162
      %vm1164 = vweird.f32 %v1133
      %vm1165 = vweird.f32 %v1158
      %vm1166 = vmor %vm1164, %vm1165
      %v1167 = vsel %vm1166, %v1158, %v1163
      %v1168 = vrsqrt.pop %v1134
      %v1169 = vmul.f32 %v1168, %v1134
      %v1170 = vmul.f32 %v1169, %v1168
      %v1171 = vmul.f32 0.5, %v1170
      %v1172 = vsub.f32 1.5, %v1171
      %v1173 = vmul.f32 %v1168, %v1172
      %vm1174 = vweird.f32 %v1134
      %vm1175 = vweird.f32 %v1168
      %vm1176 = vmor %vm1174, %vm1175
      %v1177 = vsel %vm1176, %v1168, %v1173
      %v1178 = vrsqrt.pop %v1135
      %v1179 = vmul.f32 %v1178, %v1135
      %v1180 = vmul.f32 %v1179, %v1178
      %v1181 = vmul.f32 0.5, %v1180
      %v1182 = vsub.f32 1.5, %v1181
      %v1183 = vmul.f32 %v1178, %v1182
      %vm1184 = vweird.f32 %v1135
      %vm1185 = vweird.f32 %v1178
      %vm1186 = vmor %vm1184, %vm1185
      %v1187 = vsel %vm1186, %v1178, %v1183
      %v1188 = vrsqrt.pop %v1136
      %v1189 = vmul.f32 %v1188, %v1136
      %v1190 = vmul.f32 %v1189, %v1188
      %v1191 = vmul.f32 0.5, %v1190
      %v1192 = vsub.f32 1.5, %v1191
      %v1193 = vmul.f32 %v1188, %v1192
      %vm1194 = vweird.f32 %v1136
      %vm1195 = vweird.f32 %v1188
      %vm1196 = vmor %vm1194, %vm1195
      %v1197 = vsel %vm1196, %v1188, %v1193
      %v1198 = vrsqrt.pop %v1137
      %v1199 = vmul.f32 %v1198, %v1137
      %v1200 = vmul.f32 %v1199, %v1198
      %v1201 = vmul.f32 0.5, %v1200
      %v1202 = vsub.f32 1.5, %v1201
      %v1203 = vmul.f32 %v1198, %v1202
      %vm1204 = vweird.f32 %v1137
      %vm1205 = vweird.f32 %v1198
      %vm1206 = vmor %vm1204, %vm1205
      %v1207 = vsel %vm1206, %v1198, %v1203
      %v1208 = vmul.f32 %v1089, %v1147
      %v1209 = vmul.f32 %v1090, %v1157
      %v1210 = vmul.f32 %v1091, %v1167
      %v1211 = vmul.f32 %v1092, %v1177
      %v1212 = vmul.f32 %v1093, %v1187
      %v1213 = vmul.f32 %v1094, %v1197
      %v1214 = vmul.f32 %v1095, %v1207
      %v1216 = vperm.slane %v1059, 0
      %v1218 = vmul.f32 %v1208, %v1216
      %v1219 = vmul.f32 %v1209, %v1216
      %v1220 = vmul.f32 %v1210, %v1216
      %v1221 = vmul.f32 %v1211, %v1216
      %v1222 = vmul.f32 %v1212, %v1216
      %v1223 = vmul.f32 %v1213, %v1216
      %v1224 = vmul.f32 %v1214, %v1216
      %v1226 = vperm.slane %v1060, 0
      %v1228 = vadd.f32 %v1218, %v1226
      %v1229 = vadd.f32 %v1219, %v1226
      %v1230 = vadd.f32 %v1220, %v1226
      %v1231 = vadd.f32 %v1221, %v1226
      %v1232 = vadd.f32 %v1222, %v1226
      %v1233 = vadd.f32 %v1223, %v1226
      %v1234 = vadd.f32 %v1224, %v1226
      %v1235 = vld [vmem:[%s10] sm:$0xf]
      %v1236 = vld [vmem:[%s11] sm:$0x1]
      %v1237 = vld [vmem:[%s12] sm:$0x1]
      %v1238 = vsel %vm809, %v977, 0.0
      %1239 = vadd.xlane.f32.xlu0 %v1238
      %v1240 = vpop.xlane.xlu0 %1239
      %v1241 = vsel %vm809, %v978, 0.0
      %1242 = vadd.xlane.f32.xlu0 %v1241
      %v1243 = vpop.xlane.xlu0 %1242
      %v1244 = vsel %vm809, %v979, 0.0
      %1245 = vadd.xlane.f32.xlu0 %v1244
      %v1246 = vpop.xlane.xlu0 %1245
      %v1247 = vsel %vm809, %v980, 0.0
      %1248 = vadd.xlane.f32.xlu0 %v1247
      %v1249 = vpop.xlane.xlu0 %1248
      %v1250 = vsel %vm809, %v981, 0.0
      %1251 = vadd.xlane.f32.xlu0 %v1250
      %v1252 = vpop.xlane.xlu0 %1251
      %v1253 = vsel %vm809, %v982, 0.0
      %1254 = vadd.xlane.f32.xlu0 %v1253
      %v1255 = vpop.xlane.xlu0 %1254
      %v1256 = vsel %vm809, %v983, 0.0
      %1257 = vadd.xlane.f32.xlu0 %v1256
      %v1258 = vpop.xlane.xlu0 %1257
      %v1259 = vmul.f32 %v1240, 0.03125
      %v1260 = vmul.f32 %v1243, 0.03125
      %v1261 = vmul.f32 %v1246, 0.03125
      %v1262 = vmul.f32 %v1249, 0.03125
      %v1263 = vmul.f32 %v1252, 0.03125
      %v1264 = vmul.f32 %v1255, 0.03125
      %v1265 = vmul.f32 %v1258, 0.03125
      %v1266 = vsub.f32 %v977, %v1259
      %v1267 = vsub.f32 %v978, %v1260
      %v1268 = vsub.f32 %v979, %v1261
      %v1269 = vsub.f32 %v980, %v1262
      %v1270 = vsub.f32 %v981, %v1263
      %v1271 = vsub.f32 %v982, %v1264
      %v1272 = vsub.f32 %v983, %v1265
      %v1273 = vmul.f32 %v1266, %v1266
      %v1274 = vmul.f32 %v1267, %v1267
      %v1275 = vmul.f32 %v1268, %v1268
      %v1276 = vmul.f32 %v1269, %v1269
      %v1277 = vmul.f32 %v1270, %v1270
      %v1278 = vmul.f32 %v1271, %v1271
      %v1279 = vmul.f32 %v1272, %v1272
      %v1280 = vsel %vm809, %v1273, 0.0
      %1281 = vadd.xlane.f32.xlu0 %v1280
      %v1282 = vpop.xlane.xlu0 %1281
      %v1283 = vsel %vm809, %v1274, 0.0
      %1284 = vadd.xlane.f32.xlu0 %v1283
      %v1285 = vpop.xlane.xlu0 %1284
      %v1286 = vsel %vm809, %v1275, 0.0
      %1287 = vadd.xlane.f32.xlu0 %v1286
      %v1288 = vpop.xlane.xlu0 %1287
      %v1289 = vsel %vm809, %v1276, 0.0
      %1290 = vadd.xlane.f32.xlu0 %v1289
      %v1291 = vpop.xlane.xlu0 %1290
      %v1292 = vsel %vm809, %v1277, 0.0
      %1293 = vadd.xlane.f32.xlu0 %v1292
      %v1294 = vpop.xlane.xlu0 %1293
      %v1295 = vsel %vm809, %v1278, 0.0
      %1296 = vadd.xlane.f32.xlu0 %v1295
      %v1297 = vpop.xlane.xlu0 %1296
      %v1298 = vsel %vm809, %v1279, 0.0
      %1299 = vadd.xlane.f32.xlu0 %v1298
      %v1300 = vpop.xlane.xlu0 %1299
      %v1301 = vmul.f32 %v1282, 0.03125
      %v1302 = vmul.f32 %v1285, 0.03125
      %v1303 = vmul.f32 %v1288, 0.03125
      %v1304 = vmul.f32 %v1291, 0.03125
      %v1305 = vmul.f32 %v1294, 0.03125
      %v1306 = vmul.f32 %v1297, 0.03125
      %v1307 = vmul.f32 %v1300, 0.03125
      %v1308 = vadd.f32 %v1301, 1e-05
      %v1309 = vadd.f32 %v1302, 1e-05
      %v1310 = vadd.f32 %v1303, 1e-05
      %v1311 = vadd.f32 %v1304, 1e-05
      %v1312 = vadd.f32 %v1305, 1e-05
      %v1313 = vadd.f32 %v1306, 1e-05
      %v1314 = vadd.f32 %v1307, 1e-05
      %v1315 = vrsqrt.pop %v1308
      %v1316 = vmul.f32 %v1315, %v1308
      %v1317 = vmul.f32 %v1316, %v1315
      %v1318 = vmul.f32 0.5, %v1317
      %v1319 = vsub.f32 1.5, %v1318
      %v1320 = vmul.f32 %v1315, %v1319
      %vm1321 = vweird.f32 %v1308
      %vm1322 = vweird.f32 %v1315
      %vm1323 = vmor %vm1321, %vm1322
      %v1324 = vsel %vm1323, %v1315, %v1320
      %v1325 = vrsqrt.pop %v1309
      %v1326 = vmul.f32 %v1325, %v1309
      %v1327 = vmul.f32 %v1326, %v1325
      %v1328 = vmul.f32 0.5, %v1327
      %v1329 = vsub.f32 1.5, %v1328
      %v1330 = vmul.f32 %v1325, %v1329
      %vm1331 = vweird.f32 %v1309
      %vm1332 = vweird.f32 %v1325
      %vm1333 = vmor %vm1331, %vm1332
      %v1334 = vsel %vm1333, %v1325, %v1330
      %v1335 = vrsqrt.pop %v1310
      %v1336 = vmul.f32 %v1335, %v1310
      %v1337 = vmul.f32 %v1336, %v1335
      %v1338 = vmul.f32 0.5, %v1337
      %v1339 = vsub.f32 1.5, %v1338
      %v1340 = vmul.f32 %v1335, %v1339
      %vm1341 = vweird.f32 %v1310
      %vm1342 = vweird.f32 %v1335
      %vm1343 = vmor %vm1341, %vm1342
      %v1344 = vsel %vm1343, %v1335, %v1340
      %v1345 = vrsqrt.pop %v1311
      %v1346 = vmul.f32 %v1345, %v1311
      %v1347 = vmul.f32 %v1346, %v1345
      %v1348 = vmul.f32 0.5, %v1347
      %v1349 = vsub.f32 1.5, %v1348
      %v1350 = vmul.f32 %v1345, %v1349
      %vm1351 = vweird.f32 %v1311
      %vm1352 = vweird.f32 %v1345
      %vm1353 = vmor %vm1351, %vm1352
      %v1354 = vsel %vm1353, %v1345, %v1350
      %v1355 = vrsqrt.pop %v1312
      %v1356 = vmul.f32 %v1355, %v1312
      %v1357 = vmul.f32 %v1356, %v1355
      %v1358 = vmul.f32 0.5, %v1357
      %v1359 = vsub.f32 1.5, %v1358
      %v1360 = vmul.f32 %v1355, %v1359
      %vm1361 = vweird.f32 %v1312
      %vm1362 = vweird.f32 %v1355
      %vm1363 = vmor %vm1361, %vm1362
      %v1364 = vsel %vm1363, %v1355, %v1360
      %v1365 = vrsqrt.pop %v1313
      %v1366 = vmul.f32 %v1365, %v1313
      %v1367 = vmul.f32 %v1366, %v1365
      %v1368 = vmul.f32 0.5, %v1367
      %v1369 = vsub.f32 1.5, %v1368
      %v1370 = vmul.f32 %v1365, %v1369
      %vm1371 = vweird.f32 %v1313
      %vm1372 = vweird.f32 %v1365
      %vm1373 = vmor %vm1371, %vm1372
      %v1374 = vsel %vm1373, %v1365, %v1370
      %v1375 = vrsqrt.pop %v1314
      %v1376 = vmul.f32 %v1375, %v1314
      %v1377 = vmul.f32 %v1376, %v1375
      %v1378 = vmul.f32 0.5, %v1377
      %v1379 = vsub.f32 1.5, %v1378
      %v1380 = vmul.f32 %v1375, %v1379
      %vm1381 = vweird.f32 %v1314
      %vm1382 = vweird.f32 %v1375
      %vm1383 = vmor %vm1381, %vm1382
      %v1384 = vsel %vm1383, %v1375, %v1380
      %v1385 = vmul.f32 %v1266, %v1324
      %v1386 = vmul.f32 %v1267, %v1334
      %v1387 = vmul.f32 %v1268, %v1344
      %v1388 = vmul.f32 %v1269, %v1354
      %v1389 = vmul.f32 %v1270, %v1364
      %v1390 = vmul.f32 %v1271, %v1374
      %v1391 = vmul.f32 %v1272, %v1384
      %v1392 = vperm.slane %v1236, 0
      %v1393 = vmul.f32 %v1385, %v1392
      %v1394 = vmul.f32 %v1386, %v1392
      %v1395 = vmul.f32 %v1387, %v1392
      %v1396 = vmul.f32 %v1388, %v1392
      %v1397 = vmul.f32 %v1389, %v1392
      %v1398 = vmul.f32 %v1390, %v1392
      %v1399 = vmul.f32 %v1391, %v1392
      %v1400 = vperm.slane %v1237, 0
      %v1401 = vadd.f32 %v1393, %v1400
      %v1402 = vadd.f32 %v1394, %v1400
      %v1403 = vadd.f32 %v1395, %v1400
      %v1404 = vadd.f32 %v1396, %v1400
      %v1405 = vadd.f32 %v1397, %v1400
      %v1406 = vadd.f32 %v1398, %v1400
      %v1407 = vadd.f32 %v1399, %v1400
      %v1408 = vld [vmem:[%s11 + $0x1] sm:$0x1]
      %v1409 = vld [vmem:[%s12 + $0x1] sm:$0x1]
      %v1410 = vsel %vm809, %v1228, 0.0
      %1411 = vadd.xlane.f32.xlu0 %v1410
      %v1412 = vpop.xlane.xlu0 %1411
      %v1413 = vsel %vm809, %v1229, 0.0
      %1414 = vadd.xlane.f32.xlu0 %v1413
      %v1415 = vpop.xlane.xlu0 %1414
      %v1416 = vsel %vm809, %v1230, 0.0
      %1417 = vadd.xlane.f32.xlu0 %v1416
      %v1418 = vpop.xlane.xlu0 %1417
      %v1419 = vsel %vm809, %v1231, 0.0
      %1420 = vadd.xlane.f32.xlu0 %v1419
      %v1421 = vpop.xlane.xlu0 %1420
      %v1422 = vsel %vm809, %v1232, 0.0
      %1423 = vadd.xlane.f32.xlu0 %v1422
      %v1424 = vpop.xlane.xlu0 %1423
      %v1425 = vsel %vm809, %v1233, 0.0
      %1426 = vadd.xlane.f32.xlu0 %v1425
      %v1427 = vpop.xlane.xlu0 %1426
      %v1428 = vsel %vm809, %v1234, 0.0
      %1429 = vadd.xlane.f32.xlu0 %v1428
      %v1430 = vpop.xlane.xlu0 %1429
      %v1431 = vmul.f32 %v1412, 0.03125
      %v1432 = vmul.f32 %v1415, 0.03125
      %v1433 = vmul.f32 %v1418, 0.03125
      %v1434 = vmul.f32 %v1421, 0.03125
      %v1435 = vmul.f32 %v1424, 0.03125
      %v1436 = vmul.f32 %v1427, 0.03125
      %v1437 = vmul.f32 %v1430, 0.03125
      %v1438 = vsub.f32 %v1228, %v1431
      %v1439 = vsub.f32 %v1229, %v1432
      %v1440 = vsub.f32 %v1230, %v1433
      %v1441 = vsub.f32 %v1231, %v1434
      %v1442 = vsub.f32 %v1232, %v1435
      %v1443 = vsub.f32 %v1233, %v1436
      %v1444 = vsub.f32 %v1234, %v1437
      %v1445 = vmul.f32 %v1438, %v1438
      %v1446 = vmul.f32 %v1439, %v1439
      %v1447 = vmul.f32 %v1440, %v1440
      %v1448 = vmul.f32 %v1441, %v1441
      %v1449 = vmul.f32 %v1442, %v1442
      %v1450 = vmul.f32 %v1443, %v1443
      %v1451 = vmul.f32 %v1444, %v1444
      %v1452 = vsel %vm809, %v1445, 0.0
      %1453 = vadd.xlane.f32.xlu0 %v1452
      %v1454 = vpop.xlane.xlu0 %1453
      %v1455 = vsel %vm809, %v1446, 0.0
      %1456 = vadd.xlane.f32.xlu0 %v1455
      %v1457 = vpop.xlane.xlu0 %1456
      %v1458 = vsel %vm809, %v1447, 0.0
      %1459 = vadd.xlane.f32.xlu0 %v1458
      %v1460 = vpop.xlane.xlu0 %1459
      %v1461 = vsel %vm809, %v1448, 0.0
      %1462 = vadd.xlane.f32.xlu0 %v1461
      %v1463 = vpop.xlane.xlu0 %1462
      %v1464 = vsel %vm809, %v1449, 0.0
      %1465 = vadd.xlane.f32.xlu0 %v1464
      %v1466 = vpop.xlane.xlu0 %1465
      %v1467 = vsel %vm809, %v1450, 0.0
      %1468 = vadd.xlane.f32.xlu0 %v1467
      %v1469 = vpop.xlane.xlu0 %1468
      %v1470 = vsel %vm809, %v1451, 0.0
      %1471 = vadd.xlane.f32.xlu0 %v1470
      %v1472 = vpop.xlane.xlu0 %1471
      %v1473 = vmul.f32 %v1454, 0.03125
      %v1474 = vmul.f32 %v1457, 0.03125
      %v1475 = vmul.f32 %v1460, 0.03125
      %v1476 = vmul.f32 %v1463, 0.03125
      %v1477 = vmul.f32 %v1466, 0.03125
      %v1478 = vmul.f32 %v1469, 0.03125
      %v1479 = vmul.f32 %v1472, 0.03125
      %v1480 = vadd.f32 %v1473, 1e-05
      %v1481 = vadd.f32 %v1474, 1e-05
      %v1482 = vadd.f32 %v1475, 1e-05
      %v1483 = vadd.f32 %v1476, 1e-05
      %v1484 = vadd.f32 %v1477, 1e-05
      %v1485 = vadd.f32 %v1478, 1e-05
      %v1486 = vadd.f32 %v1479, 1e-05
      %v1487 = vrsqrt.pop %v1480
      %v1488 = vmul.f32 %v1487, %v1480
      %v1489 = vmul.f32 %v1488, %v1487
      %v1490 = vmul.f32 0.5, %v1489
      %v1491 = vsub.f32 1.5, %v1490
      %v1492 = vmul.f32 %v1487, %v1491
      %vm1493 = vweird.f32 %v1480
      %vm1494 = vweird.f32 %v1487
      %vm1495 = vmor %vm1493, %vm1494
      %v1496 = vsel %vm1495, %v1487, %v1492
      %v1497 = vrsqrt.pop %v1481
      %v1498 = vmul.f32 %v1497, %v1481
      %v1499 = vmul.f32 %v1498, %v1497
      %v1500 = vmul.f32 0.5, %v1499
      %v1501 = vsub.f32 1.5, %v1500
      %v1502 = vmul.f32 %v1497, %v1501
      %vm1503 = vweird.f32 %v1481
      %vm1504 = vweird.f32 %v1497
      %vm1505 = vmor %vm1503, %vm1504
      %v1506 = vsel %vm1505, %v1497, %v1502
      %v1507 = vrsqrt.pop %v1482
      %v1508 = vmul.f32 %v1507, %v1482
      %v1509 = vmul.f32 %v1508, %v1507
      %v1510 = vmul.f32 0.5, %v1509
      %v1511 = vsub.f32 1.5, %v1510
      %v1512 = vmul.f32 %v1507, %v1511
      %vm1513 = vweird.f32 %v1482
      %vm1514 = vweird.f32 %v1507
      %vm1515 = vmor %vm1513, %vm1514
      %v1516 = vsel %vm1515, %v1507, %v1512
      %v1517 = vrsqrt.pop %v1483
      %v1518 = vmul.f32 %v1517, %v1483
      %v1519 = vmul.f32 %v1518, %v1517
      %v1520 = vmul.f32 0.5, %v1519
      %v1521 = vsub.f32 1.5, %v1520
      %v1522 = vmul.f32 %v1517, %v1521
      %vm1523 = vweird.f32 %v1483
      %vm1524 = vweird.f32 %v1517
      %vm1525 = vmor %vm1523, %vm1524
      %v1526 = vsel %vm1525, %v1517, %v1522
      %v1527 = vrsqrt.pop %v1484
      %v1528 = vmul.f32 %v1527, %v1484
      %v1529 = vmul.f32 %v1528, %v1527
      %v1530 = vmul.f32 0.5, %v1529
      %v1531 = vsub.f32 1.5, %v1530
      %v1532 = vmul.f32 %v1527, %v1531
      %vm1533 = vweird.f32 %v1484
      %vm1534 = vweird.f32 %v1527
      %vm1535 = vmor %vm1533, %vm1534
      %v1536 = vsel %vm1535, %v1527, %v1532
      %v1537 = vrsqrt.pop %v1485
      %v1538 = vmul.f32 %v1537, %v1485
      %v1539 = vmul.f32 %v1538, %v1537
      %v1540 = vmul.f32 0.5, %v1539
      %v1541 = vsub.f32 1.5, %v1540
      %v1542 = vmul.f32 %v1537, %v1541
      %vm1543 = vweird.f32 %v1485
      %vm1544 = vweird.f32 %v1537
      %vm1545 = vmor %vm1543, %vm1544
      %v1546 = vsel %vm1545, %v1537, %v1542
      %v1547 = vrsqrt.pop %v1486
      %v1548 = vmul.f32 %v1547, %v1486
      %v1549 = vmul.f32 %v1548, %v1547
      %v1550 = vmul.f32 0.5, %v1549
      %v1551 = vsub.f32 1.5, %v1550
      %v1552 = vmul.f32 %v1547, %v1551
      %vm1553 = vweird.f32 %v1486
      %vm1554 = vweird.f32 %v1547
      %vm1555 = vmor %vm1553, %vm1554
      %v1556 = vsel %vm1555, %v1547, %v1552
      %v1557 = vmul.f32 %v1438, %v1496
      %v1558 = vmul.f32 %v1439, %v1506
      %v1559 = vmul.f32 %v1440, %v1516
      %v1560 = vmul.f32 %v1441, %v1526
      %v1561 = vmul.f32 %v1442, %v1536
      %v1562 = vmul.f32 %v1443, %v1546
      %v1563 = vmul.f32 %v1444, %v1556
      %v1564 = vperm.slane %v1408, 0
      %v1565 = vmul.f32 %v1557, %v1564
      %v1566 = vmul.f32 %v1558, %v1564
      %v1567 = vmul.f32 %v1559, %v1564
      %v1568 = vmul.f32 %v1560, %v1564
      %v1569 = vmul.f32 %v1561, %v1564
      %v1570 = vmul.f32 %v1562, %v1564
      %v1571 = vmul.f32 %v1563, %v1564
      %v1572 = vperm.slane %v1409, 0
      %v1573 = vadd.f32 %v1565, %v1572
      %v1574 = vadd.f32 %v1566, %v1572
      %v1575 = vadd.f32 %v1567, %v1572
      %v1576 = vadd.f32 %v1568, %v1572
      %v1577 = vadd.f32 %v1569, %v1572
      %v1578 = vadd.f32 %v1570, %v1572
      %v1579 = vadd.f32 %v1571, %v1572
      %v1580 = vld [vmem:[%s11 + $0x2] sm:$0x1]
      %v1581 = vld [vmem:[%s12 + $0x2] sm:$0x1]
      %vm1582 = vcmask 257024
      %v1583 = vsel %vm1582, %v1235, 0.0
      %1584 = vadd.xlane.f32.xlu0 %v1583
      %v1585 = vpop.xlane.xlu0 %1584
      %v1586 = vmul.f32 %v1585, 0.03125
      %v1587 = vsub.f32 %v1235, %v1586
      %v1588 = vmul.f32 %v1587, %v1587
      %v1589 = vsel %vm1582, %v1588, 0.0
      %1590 = vadd.xlane.f32.xlu0 %v1589
      %v1591 = vpop.xlane.xlu0 %1590
      %v1592 = vmul.f32 %v1591, 0.03125
      %v1593 = vadd.f32 %v1592, 1e-05
      %v1594 = vrsqrt.pop %v1593
      %v1595 = vmul.f32 %v1594, %v1593
      %v1596 = vmul.f32 %v1595, %v1594
      %v1597 = vmul.f32 0.5, %v1596
      %v1598 = vsub.f32 1.5, %v1597
      %v1599 = vmul.f32 %v1594, %v1598
      %vm1600 = vweird.f32 %v1593
      %vm1601 = vweird.f32 %v1594
      %vm1602 = vmor %vm1600, %vm1601
      %v1603 = vsel %vm1602, %v1594, %v1599
      %v1604 = vmul.f32 %v1587, %v1603
      %v1605 = vperm.slane %v1580, 0
      %v1606 = vmul.f32 %v1604, %v1605
      %v1607 = vperm.slane %v1581, 0
      %v1608 = vadd.f32 %v1606, %v1607
      %v1609 = vld [vmem:[%s13] sm:$0xff]
      %v1610 = vld [vmem:[%s13 + $0x8] sm:$0xff]
      %v1611 = vld [vmem:[%s13 + $0x10] sm:$0xff]
      %v1612 = vld [vmem:[%s13 + $0x18] sm:$0xff]
      %v1613 = vld [vmem:[%s14] sm:$0x1]
      %v1614 = vld [vmem:[%s15] sm:$0xff]
      %v1615 = vld [vmem:[%s15 + $0x8] sm:$0xff]
      %v1616 = vld [vmem:[%s15 + $0x10] sm:$0xff]
      %v1617 = vld [vmem:[%s15 + $0x18] sm:$0xff]
      %v1618 = vld [vmem:[%s16] sm:$0x1]
      %v1619 = vperm.slane %v1613, 0
      %v1621 = vsel %vm809, %v1608, 0
      %1623 = vmatpush.msra.mxu0 0.0
      %1624 = vmatpush.msra.mxu0 0.0
      %1625 = vmatpush.msra.mxu0 0.0
      %1626 = vmatpush.msra.mxu0 0.0
      %1627 = vmatpush.msra.mxu0 0.0
      %1628 = vmatpush.msra.mxu0 0.0
      %1629 = vmatpush.msra.mxu0 0.0
      %1630 = vmatpush.msra.mxu0 0.0
      %1631 = vmatpush.msra.mxu0 0.0
      %1632 = vmatpush.msra.mxu0 0.0
      %1633 = vmatpush.msra.mxu0 0.0
      %1634 = vmatpush.msra.mxu0 0.0
      %1635 = vmatpush.msra.mxu0 %v1612
      %1636 = vmatpush.msra.mxu0 %v1611
      %1637 = vmatpush.msra.mxu0 %v1610
      %1638 = vmatpush.msra.mxu0 %v1609
      %1639 = vmatmul.f32.gmra.mxu0 %v1621
      %v1640 = vpop.f32.mrf.mxu0
      %v1641 = vadd.f32 %v1619, %v1640
      %1642 = vdwg.mxu0
      %1647 = vrot.lane.b32.xlu0 %v1609, 96
      %v1648 = vpop.permute.xlu0 %1647
      %1649 = vrot.lane.b32.xlu0 %v1610, 96
      %v1650 = vpop.permute.xlu0 %1649
      %1651 = vrot.lane.b32.xlu0 %v1611, 96
      %v1652 = vpop.permute.xlu0 %1651
      %1653 = vrot.lane.b32.xlu0 %v1612, 96
      %v1654 = vpop.permute.xlu0 %1653
      %1660 = vrot.lane.b32.xlu0 %v1619, 96
      %v1661 = vpop.permute.xlu0 %1660
      %v1664 = vsel %vm809, %v1401, 0
      %v1667 = vsel %vm809, %v1402, 0
      %v1670 = vsel %vm809, %v1403, 0
      %v1673 = vsel %vm809, %v1404, 0
      %v1676 = vsel %vm809, %v1405, 0
      %v1679 = vsel %vm809, %v1406, 0
      %v1682 = vsel %vm809, %v1407, 0
      %1684 = vmatpush.msra.mxu0 0.0
      %1685 = vmatpush.msra.mxu0 0.0
      %1686 = vmatpush.msra.mxu0 0.0
      %1687 = vmatpush.msra.mxu0 0.0
      %1688 = vmatpush.msra.mxu0 0.0
      %1689 = vmatpush.msra.mxu0 0.0
      %1690 = vmatpush.msra.mxu0 0.0
      %1691 = vmatpush.msra.mxu0 0.0
      %1692 = vmatpush.msra.mxu0 0.0
      %1693 = vmatpush.msra.mxu0 0.0
      %1694 = vmatpush.msra.mxu0 0.0
      %1695 = vmatpush.msra.mxu0 0.0
      %1696 = vmatpush.msra.mxu0 %v1654
      %1697 = vmatpush.msra.mxu0 %v1652
      %1698 = vmatpush.msra.mxu0 %v1650
      %1699 = vmatpush.msra.mxu0 %v1648
      %1700 = vmatmul.f32.gmra.mxu0 %v1664
      %v1701 = vpop.f32.mrf.mxu0
      %v1702 = vadd.f32 %v1661, %v1701
      %1703 = vmatmul.f32.gmra.mxu0 %v1667
      %v1704 = vpop.f32.mrf.mxu0
      %v1705 = vadd.f32 %v1661, %v1704
      %1706 = vmatmul.f32.gmra.mxu0 %v1670
      %v1707 = vpop.f32.mrf.mxu0
      %v1708 = vadd.f32 %v1661, %v1707
      %1709 = vmatmul.f32.gmra.mxu0 %v1673
      %v1710 = vpop.f32.mrf.mxu0
      %v1711 = vadd.f32 %v1661, %v1710
      %1712 = vmatmul.f32.gmra.mxu0 %v1676
      %v1713 = vpop.f32.mrf.mxu0
      %v1714 = vadd.f32 %v1661, %v1713
      %1715 = vmatmul.f32.gmra.mxu0 %v1679
      %v1716 = vpop.f32.mrf.mxu0
      %v1717 = vadd.f32 %v1661, %v1716
      %1718 = vmatmul.f32.gmra.mxu0 %v1682
      %v1719 = vpop.f32.mrf.mxu0
      %v1720 = vadd.f32 %v1661, %v1719
      %1721 = vdwg.mxu0
      %vm1722 = vcmask 31744
      %v1724 = vsel %vm1722, %v1641, 0
      %v1727 = vsel %vm1722, %v1702, 0
      %v1730 = vsel %vm1722, %v1705, 0
      %v1733 = vsel %vm1722, %v1708, 0
      %v1736 = vsel %vm1722, %v1711, 0
      %v1739 = vsel %vm1722, %v1714, 0
      %v1742 = vsel %vm1722, %v1717, 0
      %v1745 = vsel %vm1722, %v1720, 0
      %1747 = vmatpush.xpose.msra.mxu0 0.0
      %1748 = vmatpush.xpose.msra.mxu0 0.0
      %1749 = vmatpush.xpose.msra.mxu0 0.0
      %1750 = vmatpush.xpose.msra.mxu0 0.0
      %1751 = vmatpush.xpose.msra.mxu0 0.0
      %1752 = vmatpush.xpose.msra.mxu0 0.0
      %1753 = vmatpush.xpose.msra.mxu0 0.0
      %1754 = vmatpush.xpose.msra.mxu0 0.0
      %1755 = vmatpush.xpose.msra.mxu0 0.0
      %1756 = vmatpush.xpose.msra.mxu0 %v1745
      %1757 = vmatpush.xpose.msra.mxu0 %v1742
      %1758 = vmatpush.xpose.msra.mxu0 %v1739
      %1759 = vmatpush.xpose.msra.mxu0 %v1736
      %1760 = vmatpush.xpose.msra.mxu0 %v1733
      %1761 = vmatpush.xpose.msra.mxu0 %v1730
      %1762 = vmatpush.xpose.msra.mxu0 %v1727
      %1763 = vmatmul.f32.gmra.mxu0 %v1724
      %v1764 = vpop.f32.mrf.mxu0
      %v1765 = vadd.f32 0.0, %v1764
      %1766 = vdwg.mxu0
      %v1767 = vmul.f32 %v1765, 0.5
      %vm1768 = vcmask 453632
      %v1769 = vsel %vm1768, %v1767, -inf
      %1770 = vmax.xlane.f32.xlu0 %v1769
      %v1771 = vpop.xlane.xlu0 %1770
      %v1772 = vsub.f32 %v1767, %v1771
      %v1773 = vmul.f32 %v1772, 1.442695
      %v1774 = vpow.pop %v1773
      %v1775 = vsel %vm1768, %v1774, 0.0
      %1776 = vadd.xlane.f32.xlu0 %v1775
      %v1777 = vpop.xlane.xlu0 %1776
      %v1778 = vrcp.pop %v1777
      %1779 = vrot.lane.b32.xlu0 %v1702, 96
      %v1780 = vpop.permute.xlu0 %1779
      %1781 = vrot.lane.b32.xlu0 %v1705, 96
      %v1782 = vpop.permute.xlu0 %1781
      %1783 = vrot.lane.b32.xlu0 %v1708, 96
      %v1784 = vpop.permute.xlu0 %1783
      %1785 = vrot.lane.b32.xlu0 %v1711, 96
      %v1786 = vpop.permute.xlu0 %1785
      %1787 = vrot.lane.b32.xlu0 %v1714, 96
      %v1788 = vpop.permute.xlu0 %1787
      %1789 = vrot.lane.b32.xlu0 %v1717, 96
      %v1790 = vpop.permute.xlu0 %1789
      %1791 = vrot.lane.b32.xlu0 %v1720, 96
      %v1792 = vpop.permute.xlu0 %1791
      %vm1800 = vcmask 457728
      %v1802 = vsel %vm1800, %v1774, 0
      %1804 = vmatpush.msra.mxu0 0.0
      %1805 = vmatpush.msra.mxu0 0.0
      %1806 = vmatpush.msra.mxu0 0.0
      %1807 = vmatpush.msra.mxu0 0.0
      %1808 = vmatpush.msra.mxu0 0.0
      %1809 = vmatpush.msra.mxu0 0.0
      %1810 = vmatpush.msra.mxu0 0.0
      %1811 = vmatpush.msra.mxu0 0.0
      %1812 = vmatpush.msra.mxu0 0.0
      %1813 = vmatpush.msra.mxu0 %v1792
      %1814 = vmatpush.msra.mxu0 %v1790
      %1815 = vmatpush.msra.mxu0 %v1788
      %1816 = vmatpush.msra.mxu0 %v1786
      %1817 = vmatpush.msra.mxu0 %v1784
      %1818 = vmatpush.msra.mxu0 %v1782
      %1819 = vmatpush.msra.mxu0 %v1780
      %1820 = vmatmul.f32.gmra.mxu0 %v1802
      %v1821 = vpop.f32.mrf.mxu0
      %v1822 = vadd.f32 0.0, %v1821
      %1823 = vdwg.mxu0
      %v1824 = vmul.f32 %v1822, %v1778
      %1825 = vrot.lane.b32.xlu0 %v1641, 124
      %v1826 = vpop.permute.xlu0 %1825
      %1827 = vrot.lane.b32.xlu0 %v1702, 124
      %v1828 = vpop.permute.xlu0 %1827
      %1829 = vrot.lane.b32.xlu0 %v1705, 124
      %v1830 = vpop.permute.xlu0 %1829
      %1831 = vrot.lane.b32.xlu0 %v1708, 124
      %v1832 = vpop.permute.xlu0 %1831
      %1833 = vrot.lane.b32.xlu0 %v1711, 124
      %v1834 = vpop.permute.xlu0 %1833
      %1835 = vrot.lane.b32.xlu0 %v1714, 124
      %v1836 = vpop.permute.xlu0 %1835
      %1837 = vrot.lane.b32.xlu0 %v1717, 124
      %v1838 = vpop.permute.xlu0 %1837
      %1839 = vrot.lane.b32.xlu0 %v1720, 124
      %v1840 = vpop.permute.xlu0 %1839
      %v1841 = vsel %vm1722, %v1826, 0
      %v1843 = vsel %vm1722, %v1828, 0
      %v1845 = vsel %vm1722, %v1830, 0
      %v1847 = vsel %vm1722, %v1832, 0
      %v1849 = vsel %vm1722, %v1834, 0
      %v1851 = vsel %vm1722, %v1836, 0
      %v1853 = vsel %vm1722, %v1838, 0
      %v1855 = vsel %vm1722, %v1840, 0
      %1857 = vmatpush.xpose.msra.mxu0 0.0
      %1858 = vmatpush.xpose.msra.mxu0 0.0
      %1859 = vmatpush.xpose.msra.mxu0 0.0
      %1860 = vmatpush.xpose.msra.mxu0 0.0
      %1861 = vmatpush.xpose.msra.mxu0 0.0
      %1862 = vmatpush.xpose.msra.mxu0 0.0
      %1863 = vmatpush.xpose.msra.mxu0 0.0
      %1864 = vmatpush.xpose.msra.mxu0 0.0
      %1865 = vmatpush.xpose.msra.mxu0 0.0
      %1866 = vmatpush.xpose.msra.mxu0 %v1855
      %1867 = vmatpush.xpose.msra.mxu0 %v1853
      %1868 = vmatpush.xpose.msra.mxu0 %v1851
      %1869 = vmatpush.xpose.msra.mxu0 %v1849
      %1870 = vmatpush.xpose.msra.mxu0 %v1847
      %1871 = vmatpush.xpose.msra.mxu0 %v1845
      %1872 = vmatpush.xpose.msra.mxu0 %v1843
      %1873 = vmatmul.f32.gmra.mxu0 %v1841
      %v1874 = vpop.f32.mrf.mxu0
      %v1875 = vadd.f32 0.0, %v1874
      %1876 = vdwg.mxu0
      %v1877 = vmul.f32 %v1875, 0.5
      %v1878 = vsel %vm1768, %v1877, -inf
      %1879 = vmax.xlane.f32.xlu0 %v1878
      %v1880 = vpop.xlane.xlu0 %1879
      %v1881 = vsub.f32 %v1877, %v1880
      %v1882 = vmul.f32 %v1881, 1.442695
      %v1883 = vpow.pop %v1882
      %v1884 = vsel %vm1768, %v1883, 0.0
      %1885 = vadd.xlane.f32.xlu0 %v1884
      %v1886 = vpop.xlane.xlu0 %1885
      %v1887 = vrcp.pop %v1886
      %1888 = vrot.lane.b32.xlu0 %v1702, 92
      %v1889 = vpop.permute.xlu0 %1888
      %1890 = vrot.lane.b32.xlu0 %v1705, 92
      %v1891 = vpop.permute.xlu0 %1890
      %1892 = vrot.lane.b32.xlu0 %v1708, 92
      %v1893 = vpop.permute.xlu0 %1892
      %1894 = vrot.lane.b32.xlu0 %v1711, 92
      %v1895 = vpop.permute.xlu0 %1894
      %1896 = vrot.lane.b32.xlu0 %v1714, 92
      %v1897 = vpop.permute.xlu0 %1896
      %1898 = vrot.lane.b32.xlu0 %v1717, 92
      %v1899 = vpop.permute.xlu0 %1898
      %1900 = vrot.lane.b32.xlu0 %v1720, 92
      %v1901 = vpop.permute.xlu0 %1900
      %v1910 = vsel %vm1800, %v1883, 0
      %1912 = vmatpush.msra.mxu0 0.0
      %1913 = vmatpush.msra.mxu0 0.0
      %1914 = vmatpush.msra.mxu0 0.0
      %1915 = vmatpush.msra.mxu0 0.0
      %1916 = vmatpush.msra.mxu0 0.0
      %1917 = vmatpush.msra.mxu0 0.0
      %1918 = vmatpush.msra.mxu0 0.0
      %1919 = vmatpush.msra.mxu0 0.0
      %1920 = vmatpush.msra.mxu0 0.0
      %1921 = vmatpush.msra.mxu0 %v1901
      %1922 = vmatpush.msra.mxu0 %v1899
      %1923 = vmatpush.msra.mxu0 %v1897
      %1924 = vmatpush.msra.mxu0 %v1895
      %1925 = vmatpush.msra.mxu0 %v1893
      %1926 = vmatpush.msra.mxu0 %v1891
      %1927 = vmatpush.msra.mxu0 %v1889
      %1928 = vmatmul.f32.gmra.mxu0 %v1910
      %v1929 = vpop.f32.mrf.mxu0
      %v1930 = vadd.f32 0.0, %v1929
      %1931 = vdwg.mxu0
      %v1932 = vmul.f32 %v1930, %v1887
      %1933 = vrot.lane.b32.xlu0 %v1641, 120
      %v1934 = vpop.permute.xlu0 %1933
      %1935 = vrot.lane.b32.xlu0 %v1702, 120
      %v1936 = vpop.permute.xlu0 %1935
      %1937 = vrot.lane.b32.xlu0 %v1705, 120
      %v1938 = vpop.permute.xlu0 %1937
      %1939 = vrot.lane.b32.xlu0 %v1708, 120
      %v1940 = vpop.permute.xlu0 %1939
      %1941 = vrot.lane.b32.xlu0 %v1711, 120
      %v1942 = vpop.permute.xlu0 %1941
      %1943 = vrot.lane.b32.xlu0 %v1714, 120
      %v1944 = vpop.permute.xlu0 %1943
      %1945 = vrot.lane.b32.xlu0 %v1717, 120
      %v1946 = vpop.permute.xlu0 %1945
      %1947 = vrot.lane.b32.xlu0 %v1720, 120
      %v1948 = vpop.permute.xlu0 %1947
      %v1949 = vsel %vm1722, %v1934, 0
      %v1951 = vsel %vm1722, %v1936, 0
      %v1953 = vsel %vm1722, %v1938, 0
      %v1955 = vsel %vm1722, %v1940, 0
      %v1957 = vsel %vm1722, %v1942, 0
      %v1959 = vsel %vm1722, %v1944, 0
      %v1961 = vsel %vm1722, %v1946, 0
      %v1963 = vsel %vm1722, %v1948, 0
      %1965 = vmatpush.xpose.msra.mxu0 0.0
      %1966 = vmatpush.xpose.msra.mxu0 0.0
      %1967 = vmatpush.xpose.msra.mxu0 0.0
      %1968 = vmatpush.xpose.msra.mxu0 0.0
      %1969 = vmatpush.xpose.msra.mxu0 0.0
      %1970 = vmatpush.xpose.msra.mxu0 0.0
      %1971 = vmatpush.xpose.msra.mxu0 0.0
      %1972 = vmatpush.xpose.msra.mxu0 0.0
      %1973 = vmatpush.xpose.msra.mxu0 0.0
      %1974 = vmatpush.xpose.msra.mxu0 %v1963
      %1975 = vmatpush.xpose.msra.mxu0 %v1961
      %1976 = vmatpush.xpose.msra.mxu0 %v1959
      %1977 = vmatpush.xpose.msra.mxu0 %v1957
      %1978 = vmatpush.xpose.msra.mxu0 %v1955
      %1979 = vmatpush.xpose.msra.mxu0 %v1953
      %1980 = vmatpush.xpose.msra.mxu0 %v1951
      %1981 = vmatmul.f32.gmra.mxu0 %v1949
      %v1982 = vpop.f32.mrf.mxu0
      %v1983 = vadd.f32 0.0, %v1982
      %1984 = vdwg.mxu0
      %v1985 = vmul.f32 %v1983, 0.5
      %v1986 = vsel %vm1768, %v1985, -inf
      %1987 = vmax.xlane.f32.xlu0 %v1986
      %v1988 = vpop.xlane.xlu0 %1987
      %v1989 = vsub.f32 %v1985, %v1988
      %v1990 = vmul.f32 %v1989, 1.442695
      %v1991 = vpow.pop %v1990
      %v1992 = vsel %vm1768, %v1991, 0.0
      %1993 = vadd.xlane.f32.xlu0 %v1992
      %v1994 = vpop.xlane.xlu0 %1993
      %v1995 = vrcp.pop %v1994
      %1996 = vrot.lane.b32.xlu0 %v1702, 88
      %v1997 = vpop.permute.xlu0 %1996
      %1998 = vrot.lane.b32.xlu0 %v1705, 88
      %v1999 = vpop.permute.xlu0 %1998
      %2000 = vrot.lane.b32.xlu0 %v1708, 88
      %v2001 = vpop.permute.xlu0 %2000
      %2002 = vrot.lane.b32.xlu0 %v1711, 88
      %v2003 = vpop.permute.xlu0 %2002
      %2004 = vrot.lane.b32.xlu0 %v1714, 88
      %v2005 = vpop.permute.xlu0 %2004
      %2006 = vrot.lane.b32.xlu0 %v1717, 88
      %v2007 = vpop.permute.xlu0 %2006
      %2008 = vrot.lane.b32.xlu0 %v1720, 88
      %v2009 = vpop.permute.xlu0 %2008
      %v2018 = vsel %vm1800, %v1991, 0
      %2020 = vmatpush.msra.mxu0 0.0
      %2021 = vmatpush.msra.mxu0 0.0
      %2022 = vmatpush.msra.mxu0 0.0
      %2023 = vmatpush.msra.mxu0 0.0
      %2024 = vmatpush.msra.mxu0 0.0
      %2025 = vmatpush.msra.mxu0 0.0
      %2026 = vmatpush.msra.mxu0 0.0
      %2027 = vmatpush.msra.mxu0 0.0
      %2028 = vmatpush.msra.mxu0 0.0
      %2029 = vmatpush.msra.mxu0 %v2009
      %2030 = vmatpush.msra.mxu0 %v2007
      %2031 = vmatpush.msra.mxu0 %v2005
      %2032 = vmatpush.msra.mxu0 %v2003
      %2033 = vmatpush.msra.mxu0 %v2001
      %2034 = vmatpush.msra.mxu0 %v1999
      %2035 = vmatpush.msra.mxu0 %v1997
      %2036 = vmatmul.f32.gmra.mxu0 %v2018
      %v2037 = vpop.f32.mrf.mxu0
      %v2038 = vadd.f32 0.0, %v2037
      %2039 = vdwg.mxu0
      %v2040 = vmul.f32 %v2038, %v1995
      %2041 = vrot.lane.b32.xlu0 %v1641, 116
      %v2042 = vpop.permute.xlu0 %2041
      %2043 = vrot.lane.b32.xlu0 %v1702, 116
      %v2044 = vpop.permute.xlu0 %2043
      %2045 = vrot.lane.b32.xlu0 %v1705, 116
      %v2046 = vpop.permute.xlu0 %2045
      %2047 = vrot.lane.b32.xlu0 %v1708, 116
      %v2048 = vpop.permute.xlu0 %2047
      %2049 = vrot.lane.b32.xlu0 %v1711, 116
      %v2050 = vpop.permute.xlu0 %2049
      %2051 = vrot.lane.b32.xlu0 %v1714, 116
      %v2052 = vpop.permute.xlu0 %2051
      %2053 = vrot.lane.b32.xlu0 %v1717, 116
      %v2054 = vpop.permute.xlu0 %2053
      %2055 = vrot.lane.b32.xlu0 %v1720, 116
      %v2056 = vpop.permute.xlu0 %2055
      %v2057 = vsel %vm1722, %v2042, 0
      %v2059 = vsel %vm1722, %v2044, 0
      %v2061 = vsel %vm1722, %v2046, 0
      %v2063 = vsel %vm1722, %v2048, 0
      %v2065 = vsel %vm1722, %v2050, 0
      %v2067 = vsel %vm1722, %v2052, 0
      %v2069 = vsel %vm1722, %v2054, 0
      %v2071 = vsel %vm1722, %v2056, 0
      %2073 = vmatpush.xpose.msra.mxu0 0.0
      %2074 = vmatpush.xpose.msra.mxu0 0.0
      %2075 = vmatpush.xpose.msra.mxu0 0.0
      %2076 = vmatpush.xpose.msra.mxu0 0.0
      %2077 = vmatpush.xpose.msra.mxu0 0.0
      %2078 = vmatpush.xpose.msra.mxu0 0.0
      %2079 = vmatpush.xpose.msra.mxu0 0.0
      %2080 = vmatpush.xpose.msra.mxu0 0.0
      %2081 = vmatpush.xpose.msra.mxu0 0.0
      %2082 = vmatpush.xpose.msra.mxu0 %v2071
      %2083 = vmatpush.xpose.msra.mxu0 %v2069
      %2084 = vmatpush.xpose.msra.mxu0 %v2067
      %2085 = vmatpush.xpose.msra.mxu0 %v2065
      %2086 = vmatpush.xpose.msra.mxu0 %v2063
      %2087 = vmatpush.xpose.msra.mxu0 %v2061
      %2088 = vmatpush.xpose.msra.mxu0 %v2059
      %2089 = vmatmul.f32.gmra.mxu0 %v2057
      %v2090 = vpop.f32.mrf.mxu0
      %v2091 = vadd.f32 0.0, %v2090
      %2092 = vdwg.mxu0
      %v2093 = vmul.f32 %v2091, 0.5
      %v2094 = vsel %vm1768, %v2093, -inf
      %2095 = vmax.xlane.f32.xlu0 %v2094
      %v2096 = vpop.xlane.xlu0 %2095
      %v2097 = vsub.f32 %v2093, %v2096
      %v2098 = vmul.f32 %v2097, 1.442695
      %v2099 = vpow.pop %v2098
      %v2100 = vsel %vm1768, %v2099, 0.0
      %2101 = vadd.xlane.f32.xlu0 %v2100
      %v2102 = vpop.xlane.xlu0 %2101
      %v2103 = vrcp.pop %v2102
      %2104 = vrot.lane.b32.xlu0 %v1702, 84
      %v2105 = vpop.permute.xlu0 %2104
      %2106 = vrot.lane.b32.xlu0 %v1705, 84
      %v2107 = vpop.permute.xlu0 %2106
      %2108 = vrot.lane.b32.xlu0 %v1708, 84
      %v2109 = vpop.permute.xlu0 %2108
      %2110 = vrot.lane.b32.xlu0 %v1711, 84
      %v2111 = vpop.permute.xlu0 %2110
      %2112 = vrot.lane.b32.xlu0 %v1714, 84
      %v2113 = vpop.permute.xlu0 %2112
      %2114 = vrot.lane.b32.xlu0 %v1717, 84
      %v2115 = vpop.permute.xlu0 %2114
      %2116 = vrot.lane.b32.xlu0 %v1720, 84
      %v2117 = vpop.permute.xlu0 %2116
      %v2126 = vsel %vm1800, %v2099, 0
      %2128 = vmatpush.msra.mxu0 0.0
      %2129 = vmatpush.msra.mxu0 0.0
      %2130 = vmatpush.msra.mxu0 0.0
      %2131 = vmatpush.msra.mxu0 0.0
      %2132 = vmatpush.msra.mxu0 0.0
      %2133 = vmatpush.msra.mxu0 0.0
      %2134 = vmatpush.msra.mxu0 0.0
      %2135 = vmatpush.msra.mxu0 0.0
      %2136 = vmatpush.msra.mxu0 0.0
      %2137 = vmatpush.msra.mxu0 %v2117
      %2138 = vmatpush.msra.mxu0 %v2115
      %2139 = vmatpush.msra.mxu0 %v2113
      %2140 = vmatpush.msra.mxu0 %v2111
      %2141 = vmatpush.msra.mxu0 %v2109
      %2142 = vmatpush.msra.mxu0 %v2107
      %2143 = vmatpush.msra.mxu0 %v2105
      %2144 = vmatmul.f32.gmra.mxu0 %v2126
      %v2145 = vpop.f32.mrf.mxu0
      %v2146 = vadd.f32 0.0, %v2145
      %2147 = vdwg.mxu0
      %v2148 = vmul.f32 %v2146, %v2103
      %2149 = vrot.lane.b32.xlu0 %v1641, 112
      %v2150 = vpop.permute.xlu0 %2149
      %2151 = vrot.lane.b32.xlu0 %v1702, 112
      %v2152 = vpop.permute.xlu0 %2151
      %2153 = vrot.lane.b32.xlu0 %v1705, 112
      %v2154 = vpop.permute.xlu0 %2153
      %2155 = vrot.lane.b32.xlu0 %v1708, 112
      %v2156 = vpop.permute.xlu0 %2155
      %2157 = vrot.lane.b32.xlu0 %v1711, 112
      %v2158 = vpop.permute.xlu0 %2157
      %2159 = vrot.lane.b32.xlu0 %v1714, 112
      %v2160 = vpop.permute.xlu0 %2159
      %2161 = vrot.lane.b32.xlu0 %v1717, 112
      %v2162 = vpop.permute.xlu0 %2161
      %2163 = vrot.lane.b32.xlu0 %v1720, 112
      %v2164 = vpop.permute.xlu0 %2163
      %v2165 = vsel %vm1722, %v2150, 0
      %v2167 = vsel %vm1722, %v2152, 0
      %v2169 = vsel %vm1722, %v2154, 0
      %v2171 = vsel %vm1722, %v2156, 0
      %v2173 = vsel %vm1722, %v2158, 0
      %v2175 = vsel %vm1722, %v2160, 0
      %v2177 = vsel %vm1722, %v2162, 0
      %v2179 = vsel %vm1722, %v2164, 0
      %2181 = vmatpush.xpose.msra.mxu0 0.0
      %2182 = vmatpush.xpose.msra.mxu0 0.0
      %2183 = vmatpush.xpose.msra.mxu0 0.0
      %2184 = vmatpush.xpose.msra.mxu0 0.0
      %2185 = vmatpush.xpose.msra.mxu0 0.0
      %2186 = vmatpush.xpose.msra.mxu0 0.0
      %2187 = vmatpush.xpose.msra.mxu0 0.0
      %2188 = vmatpush.xpose.msra.mxu0 0.0
      %2189 = vmatpush.xpose.msra.mxu0 0.0
      %2190 = vmatpush.xpose.msra.mxu0 %v2179
      %2191 = vmatpush.xpose.msra.mxu0 %v2177
      %2192 = vmatpush.xpose.msra.mxu0 %v2175
      %2193 = vmatpush.xpose.msra.mxu0 %v2173
      %2194 = vmatpush.xpose.msra.mxu0 %v2171
      %2195 = vmatpush.xpose.msra.mxu0 %v2169
      %2196 = vmatpush.xpose.msra.mxu0 %v2167
      %2197 = vmatmul.f32.gmra.mxu0 %v2165
      %v2198 = vpop.f32.mrf.mxu0
      %v2199 = vadd.f32 0.0, %v2198
      %2200 = vdwg.mxu0
      %v2201 = vmul.f32 %v2199, 0.5
      %v2202 = vsel %vm1768, %v2201, -inf
      %2203 = vmax.xlane.f32.xlu0 %v2202
      %v2204 = vpop.xlane.xlu0 %2203
      %v2205 = vsub.f32 %v2201, %v2204
      %v2206 = vmul.f32 %v2205, 1.442695
      %v2207 = vpow.pop %v2206
      %v2208 = vsel %vm1768, %v2207, 0.0
      %2209 = vadd.xlane.f32.xlu0 %v2208
      %v2210 = vpop.xlane.xlu0 %2209
      %v2211 = vrcp.pop %v2210
      %2212 = vrot.lane.b32.xlu0 %v1702, 80
      %v2213 = vpop.permute.xlu0 %2212
      %2214 = vrot.lane.b32.xlu0 %v1705, 80
      %v2215 = vpop.permute.xlu0 %2214
      %2216 = vrot.lane.b32.xlu0 %v1708, 80
      %v2217 = vpop.permute.xlu0 %2216
      %2218 = vrot.lane.b32.xlu0 %v1711, 80
      %v2219 = vpop.permute.xlu0 %2218
      %2220 = vrot.lane.b32.xlu0 %v1714, 80
      %v2221 = vpop.permute.xlu0 %2220
      %2222 = vrot.lane.b32.xlu0 %v1717, 80
      %v2223 = vpop.permute.xlu0 %2222
      %2224 = vrot.lane.b32.xlu0 %v1720, 80
      %v2225 = vpop.permute.xlu0 %2224
      %v2234 = vsel %vm1800, %v2207, 0
      %2236 = vmatpush.msra.mxu0 0.0
      %2237 = vmatpush.msra.mxu0 0.0
      %2238 = vmatpush.msra.mxu0 0.0
      %2239 = vmatpush.msra.mxu0 0.0
      %2240 = vmatpush.msra.mxu0 0.0
      %2241 = vmatpush.msra.mxu0 0.0
      %2242 = vmatpush.msra.mxu0 0.0
      %2243 = vmatpush.msra.mxu0 0.0
      %2244 = vmatpush.msra.mxu0 0.0
      %2245 = vmatpush.msra.mxu0 %v2225
      %2246 = vmatpush.msra.mxu0 %v2223
      %2247 = vmatpush.msra.mxu0 %v2221
      %2248 = vmatpush.msra.mxu0 %v2219
      %2249 = vmatpush.msra.mxu0 %v2217
      %2250 = vmatpush.msra.mxu0 %v2215
      %2251 = vmatpush.msra.mxu0 %v2213
      %2252 = vmatmul.f32.gmra.mxu0 %v2234
      %v2253 = vpop.f32.mrf.mxu0
      %v2254 = vadd.f32 0.0, %v2253
      %2255 = vdwg.mxu0
      %v2256 = vmul.f32 %v2254, %v2211
      %2257 = vrot.lane.b32.xlu0 %v1641, 108
      %v2258 = vpop.permute.xlu0 %2257
      %2259 = vrot.lane.b32.xlu0 %v1702, 108
      %v2260 = vpop.permute.xlu0 %2259
      %2261 = vrot.lane.b32.xlu0 %v1705, 108
      %v2262 = vpop.permute.xlu0 %2261
      %2263 = vrot.lane.b32.xlu0 %v1708, 108
      %v2264 = vpop.permute.xlu0 %2263
      %2265 = vrot.lane.b32.xlu0 %v1711, 108
      %v2266 = vpop.permute.xlu0 %2265
      %2267 = vrot.lane.b32.xlu0 %v1714, 108
      %v2268 = vpop.permute.xlu0 %2267
      %2269 = vrot.lane.b32.xlu0 %v1717, 108
      %v2270 = vpop.permute.xlu0 %2269
      %2271 = vrot.lane.b32.xlu0 %v1720, 108
      %v2272 = vpop.permute.xlu0 %2271
      %v2273 = vsel %vm1722, %v2258, 0
      %v2275 = vsel %vm1722, %v2260, 0
      %v2277 = vsel %vm1722, %v2262, 0
      %v2279 = vsel %vm1722, %v2264, 0
      %v2281 = vsel %vm1722, %v2266, 0
      %v2283 = vsel %vm1722, %v2268, 0
      %v2285 = vsel %vm1722, %v2270, 0
      %v2287 = vsel %vm1722, %v2272, 0
      %2289 = vmatpush.xpose.msra.mxu0 0.0
      %2290 = vmatpush.xpose.msra.mxu0 0.0
      %2291 = vmatpush.xpose.msra.mxu0 0.0
      %2292 = vmatpush.xpose.msra.mxu0 0.0
      %2293 = vmatpush.xpose.msra.mxu0 0.0
      %2294 = vmatpush.xpose.msra.mxu0 0.0
      %2295 = vmatpush.xpose.msra.mxu0 0.0
      %2296 = vmatpush.xpose.msra.mxu0 0.0
      %2297 = vmatpush.xpose.msra.mxu0 0.0
      %2298 = vmatpush.xpose.msra.mxu0 %v2287
      %2299 = vmatpush.xpose.msra.mxu0 %v2285
      %2300 = vmatpush.xpose.msra.mxu0 %v2283
      %2301 = vmatpush.xpose.msra.mxu0 %v2281
      %2302 = vmatpush.xpose.msra.mxu0 %v2279
      %2303 = vmatpush.xpose.msra.mxu0 %v2277
      %2304 = vmatpush.xpose.msra.mxu0 %v2275
      %2305 = vmatmul.f32.gmra.mxu0 %v2273
      %v2306 = vpop.f32.mrf.mxu0
      %v2307 = vadd.f32 0.0, %v2306
      %2308 = vdwg.mxu0
      %v2309 = vmul.f32 %v2307, 0.5
      %v2310 = vsel %vm1768, %v2309, -inf
      %2311 = vmax.xlane.f32.xlu0 %v2310
      %v2312 = vpop.xlane.xlu0 %2311
      %v2313 = vsub.f32 %v2309, %v2312
      %v2314 = vmul.f32 %v2313, 1.442695
      %v2315 = vpow.pop %v2314
      %v2316 = vsel %vm1768, %v2315, 0.0
      %2317 = vadd.xlane.f32.xlu0 %v2316
      %v2318 = vpop.xlane.xlu0 %2317
      %v2319 = vrcp.pop %v2318
      %2320 = vrot.lane.b32.xlu0 %v1702, 76
      %v2321 = vpop.permute.xlu0 %2320
      %2322 = vrot.lane.b32.xlu0 %v1705, 76
      %v2323 = vpop.permute.xlu0 %2322
      %2324 = vrot.lane.b32.xlu0 %v1708, 76
      %v2325 = vpop.permute.xlu0 %2324
      %2326 = vrot.lane.b32.xlu0 %v1711, 76
      %v2327 = vpop.permute.xlu0 %2326
      %2328 = vrot.lane.b32.xlu0 %v1714, 76
      %v2329 = vpop.permute.xlu0 %2328
      %2330 = vrot.lane.b32.xlu0 %v1717, 76
      %v2331 = vpop.permute.xlu0 %2330
      %2332 = vrot.lane.b32.xlu0 %v1720, 76
      %v2333 = vpop.permute.xlu0 %2332
      %v2342 = vsel %vm1800, %v2315, 0
      %2344 = vmatpush.msra.mxu0 0.0
      %2345 = vmatpush.msra.mxu0 0.0
      %2346 = vmatpush.msra.mxu0 0.0
      %2347 = vmatpush.msra.mxu0 0.0
      %2348 = vmatpush.msra.mxu0 0.0
      %2349 = vmatpush.msra.mxu0 0.0
      %2350 = vmatpush.msra.mxu0 0.0
      %2351 = vmatpush.msra.mxu0 0.0
      %2352 = vmatpush.msra.mxu0 0.0
      %2353 = vmatpush.msra.mxu0 %v2333
      %2354 = vmatpush.msra.mxu0 %v2331
      %2355 = vmatpush.msra.mxu0 %v2329
      %2356 = vmatpush.msra.mxu0 %v2327
      %2357 = vmatpush.msra.mxu0 %v2325
      %2358 = vmatpush.msra.mxu0 %v2323
      %2359 = vmatpush.msra.mxu0 %v2321
      %2360 = vmatmul.f32.gmra.mxu0 %v2342
      %v2361 = vpop.f32.mrf.mxu0
      %v2362 = vadd.f32 0.0, %v2361
      %2363 = vdwg.mxu0
      %v2364 = vmul.f32 %v2362, %v2319
      %2365 = vrot.lane.b32.xlu0 %v1641, 104
      %v2366 = vpop.permute.xlu0 %2365
      %2367 = vrot.lane.b32.xlu0 %v1702, 104
      %v2368 = vpop.permute.xlu0 %2367
      %2369 = vrot.lane.b32.xlu0 %v1705, 104
      %v2370 = vpop.permute.xlu0 %2369
      %2371 = vrot.lane.b32.xlu0 %v1708, 104
      %v2372 = vpop.permute.xlu0 %2371
      %2373 = vrot.lane.b32.xlu0 %v1711, 104
      %v2374 = vpop.permute.xlu0 %2373
      %2375 = vrot.lane.b32.xlu0 %v1714, 104
      %v2376 = vpop.permute.xlu0 %2375
      %2377 = vrot.lane.b32.xlu0 %v1717, 104
      %v2378 = vpop.permute.xlu0 %2377
      %2379 = vrot.lane.b32.xlu0 %v1720, 104
      %v2380 = vpop.permute.xlu0 %2379
      %v2381 = vsel %vm1722, %v2366, 0
      %v2383 = vsel %vm1722, %v2368, 0
      %v2385 = vsel %vm1722, %v2370, 0
      %v2387 = vsel %vm1722, %v2372, 0
      %v2389 = vsel %vm1722, %v2374, 0
      %v2391 = vsel %vm1722, %v2376, 0
      %v2393 = vsel %vm1722, %v2378, 0
      %v2395 = vsel %vm1722, %v2380, 0
      %2397 = vmatpush.xpose.msra.mxu0 0.0
      %2398 = vmatpush.xpose.msra.mxu0 0.0
      %2399 = vmatpush.xpose.msra.mxu0 0.0
      %2400 = vmatpush.xpose.msra.mxu0 0.0
      %2401 = vmatpush.xpose.msra.mxu0 0.0
      %2402 = vmatpush.xpose.msra.mxu0 0.0
      %2403 = vmatpush.xpose.msra.mxu0 0.0
      %2404 = vmatpush.xpose.msra.mxu0 0.0
      %2405 = vmatpush.xpose.msra.mxu0 0.0
      %2406 = vmatpush.xpose.msra.mxu0 %v2395
      %2407 = vmatpush.xpose.msra.mxu0 %v2393
      %2408 = vmatpush.xpose.msra.mxu0 %v2391
      %2409 = vmatpush.xpose.msra.mxu0 %v2389
      %2410 = vmatpush.xpose.msra.mxu0 %v2387
      %2411 = vmatpush.xpose.msra.mxu0 %v2385
      %2412 = vmatpush.xpose.msra.mxu0 %v2383
      %2413 = vmatmul.f32.gmra.mxu0 %v2381
      %v2414 = vpop.f32.mrf.mxu0
      %v2415 = vadd.f32 0.0, %v2414
      %2416 = vdwg.mxu0
      %v2417 = vmul.f32 %v2415, 0.5
      %v2418 = vsel %vm1768, %v2417, -inf
      %2419 = vmax.xlane.f32.xlu0 %v2418
      %v2420 = vpop.xlane.xlu0 %2419
      %v2421 = vsub.f32 %v2417, %v2420
      %v2422 = vmul.f32 %v2421, 1.442695
      %v2423 = vpow.pop %v2422
      %v2424 = vsel %vm1768, %v2423, 0.0
      %2425 = vadd.xlane.f32.xlu0 %v2424
      %v2426 = vpop.xlane.xlu0 %2425
      %v2427 = vrcp.pop %v2426
      %2428 = vrot.lane.b32.xlu0 %v1702, 72
      %v2429 = vpop.permute.xlu0 %2428
      %2430 = vrot.lane.b32.xlu0 %v1705, 72
      %v2431 = vpop.permute.xlu0 %2430
      %2432 = vrot.lane.b32.xlu0 %v1708, 72
      %v2433 = vpop.permute.xlu0 %2432
      %2434 = vrot.lane.b32.xlu0 %v1711, 72
      %v2435 = vpop.permute.xlu0 %2434
      %2436 = vrot.lane.b32.xlu0 %v1714, 72
      %v2437 = vpop.permute.xlu0 %2436
      %2438 = vrot.lane.b32.xlu0 %v1717, 72
      %v2439 = vpop.permute.xlu0 %2438
      %2440 = vrot.lane.b32.xlu0 %v1720, 72
      %v2441 = vpop.permute.xlu0 %2440
      %v2450 = vsel %vm1800, %v2423, 0
      %2452 = vmatpush.msra.mxu0 0.0
      %2453 = vmatpush.msra.mxu0 0.0
      %2454 = vmatpush.msra.mxu0 0.0
      %2455 = vmatpush.msra.mxu0 0.0
      %2456 = vmatpush.msra.mxu0 0.0
      %2457 = vmatpush.msra.mxu0 0.0
      %2458 = vmatpush.msra.mxu0 0.0
      %2459 = vmatpush.msra.mxu0 0.0
      %2460 = vmatpush.msra.mxu0 0.0
      %2461 = vmatpush.msra.mxu0 %v2441
      %2462 = vmatpush.msra.mxu0 %v2439
      %2463 = vmatpush.msra.mxu0 %v2437
      %2464 = vmatpush.msra.mxu0 %v2435
      %2465 = vmatpush.msra.mxu0 %v2433
      %2466 = vmatpush.msra.mxu0 %v2431
      %2467 = vmatpush.msra.mxu0 %v2429
      %2468 = vmatmul.f32.gmra.mxu0 %v2450
      %v2469 = vpop.f32.mrf.mxu0
      %v2470 = vadd.f32 0.0, %v2469
      %2471 = vdwg.mxu0
      %v2472 = vmul.f32 %v2470, %v2427
      %2473 = vrot.lane.b32.xlu0 %v1641, 100
      %v2474 = vpop.permute.xlu0 %2473
      %2475 = vrot.lane.b32.xlu0 %v1702, 100
      %v2476 = vpop.permute.xlu0 %2475
      %2477 = vrot.lane.b32.xlu0 %v1705, 100
      %v2478 = vpop.permute.xlu0 %2477
      %2479 = vrot.lane.b32.xlu0 %v1708, 100
      %v2480 = vpop.permute.xlu0 %2479
      %2481 = vrot.lane.b32.xlu0 %v1711, 100
      %v2482 = vpop.permute.xlu0 %2481
      %2483 = vrot.lane.b32.xlu0 %v1714, 100
      %v2484 = vpop.permute.xlu0 %2483
      %2485 = vrot.lane.b32.xlu0 %v1717, 100
      %v2486 = vpop.permute.xlu0 %2485
      %2487 = vrot.lane.b32.xlu0 %v1720, 100
      %v2488 = vpop.permute.xlu0 %2487
      %v2489 = vsel %vm1722, %v2474, 0
      %v2491 = vsel %vm1722, %v2476, 0
      %v2493 = vsel %vm1722, %v2478, 0
      %v2495 = vsel %vm1722, %v2480, 0
      %v2497 = vsel %vm1722, %v2482, 0
      %v2499 = vsel %vm1722, %v2484, 0
      %v2501 = vsel %vm1722, %v2486, 0
      %v2503 = vsel %vm1722, %v2488, 0
      %2505 = vmatpush.xpose.msra.mxu0 0.0
      %2506 = vmatpush.xpose.msra.mxu0 0.0
      %2507 = vmatpush.xpose.msra.mxu0 0.0
      %2508 = vmatpush.xpose.msra.mxu0 0.0
      %2509 = vmatpush.xpose.msra.mxu0 0.0
      %2510 = vmatpush.xpose.msra.mxu0 0.0
      %2511 = vmatpush.xpose.msra.mxu0 0.0
      %2512 = vmatpush.xpose.msra.mxu0 0.0
      %2513 = vmatpush.xpose.msra.mxu0 0.0
      %2514 = vmatpush.xpose.msra.mxu0 %v2503
      %2515 = vmatpush.xpose.msra.mxu0 %v2501
      %2516 = vmatpush.xpose.msra.mxu0 %v2499
      %2517 = vmatpush.xpose.msra.mxu0 %v2497
      %2518 = vmatpush.xpose.msra.mxu0 %v2495
      %2519 = vmatpush.xpose.msra.mxu0 %v2493
      %2520 = vmatpush.xpose.msra.mxu0 %v2491
      %2521 = vmatmul.f32.gmra.mxu0 %v2489
      %v2522 = vpop.f32.mrf.mxu0
      %v2523 = vadd.f32 0.0, %v2522
      %2524 = vdwg.mxu0
      %v2525 = vmul.f32 %v2523, 0.5
      %v2526 = vsel %vm1768, %v2525, -inf
      %2527 = vmax.xlane.f32.xlu0 %v2526
      %v2528 = vpop.xlane.xlu0 %2527
      %v2529 = vsub.f32 %v2525, %v2528
      %v2530 = vmul.f32 %v2529, 1.442695
      %v2531 = vpow.pop %v2530
      %v2532 = vsel %vm1768, %v2531, 0.0
      %2533 = vadd.xlane.f32.xlu0 %v2532
      %v2534 = vpop.xlane.xlu0 %2533
      %v2535 = vrcp.pop %v2534
      %2536 = vrot.lane.b32.xlu0 %v1702, 68
      %v2537 = vpop.permute.xlu0 %2536
      %2538 = vrot.lane.b32.xlu0 %v1705, 68
      %v2539 = vpop.permute.xlu0 %2538
      %2540 = vrot.lane.b32.xlu0 %v1708, 68
      %v2541 = vpop.permute.xlu0 %2540
      %2542 = vrot.lane.b32.xlu0 %v1711, 68
      %v2543 = vpop.permute.xlu0 %2542
      %2544 = vrot.lane.b32.xlu0 %v1714, 68
      %v2545 = vpop.permute.xlu0 %2544
      %2546 = vrot.lane.b32.xlu0 %v1717, 68
      %v2547 = vpop.permute.xlu0 %2546
      %2548 = vrot.lane.b32.xlu0 %v1720, 68
      %v2549 = vpop.permute.xlu0 %2548
      %v2558 = vsel %vm1800, %v2531, 0
      %2560 = vmatpush.msra.mxu0 0.0
      %2561 = vmatpush.msra.mxu0 0.0
      %2562 = vmatpush.msra.mxu0 0.0
      %2563 = vmatpush.msra.mxu0 0.0
      %2564 = vmatpush.msra.mxu0 0.0
      %2565 = vmatpush.msra.mxu0 0.0
      %2566 = vmatpush.msra.mxu0 0.0
      %2567 = vmatpush.msra.mxu0 0.0
      %2568 = vmatpush.msra.mxu0 0.0
      %2569 = vmatpush.msra.mxu0 %v2549
      %2570 = vmatpush.msra.mxu0 %v2547
      %2571 = vmatpush.msra.mxu0 %v2545
      %2572 = vmatpush.msra.mxu0 %v2543
      %2573 = vmatpush.msra.mxu0 %v2541
      %2574 = vmatpush.msra.mxu0 %v2539
      %2575 = vmatpush.msra.mxu0 %v2537
      %2576 = vmatmul.f32.gmra.mxu0 %v2558
      %v2577 = vpop.f32.mrf.mxu0
      %v2578 = vadd.f32 0.0, %v2577
      %2579 = vdwg.mxu0
      %v2580 = vmul.f32 %v2578, %v2535
      %2582 = vrot.lane.b32.xlu0 %v1932, 4
      %v2583 = vpop.permute.xlu0 %2582
      %2586 = vrot.lane.b32.xlu0 %v2040, 8
      %v2587 = vpop.permute.xlu0 %2586
      %2590 = vrot.lane.b32.xlu0 %v2148, 12
      %v2591 = vpop.permute.xlu0 %2590
      %2594 = vrot.lane.b32.xlu0 %v2256, 16
      %v2595 = vpop.permute.xlu0 %2594
      %2598 = vrot.lane.b32.xlu0 %v2364, 20
      %v2599 = vpop.permute.xlu0 %2598
      %2602 = vrot.lane.b32.xlu0 %v2472, 24
      %v2603 = vpop.permute.xlu0 %2602
      %2606 = vrot.lane.b32.xlu0 %v2580, 28
      %v2607 = vpop.permute.xlu0 %2606
      %v2609 = vsel %vm1722, %v1824, %v2583
      %vm2610 = vcmask 64512
      %v2611 = vsel %vm2610, %v2609, %v2587
      %vm2612 = vcmask 97280
      %v2613 = vsel %vm2612, %v2611, %v2591
      %vm2614 = vcmask 130048
      %v2615 = vsel %vm2614, %v2613, %v2595
      %vm2616 = vcmask 162816
      %v2617 = vsel %vm2616, %v2615, %v2599
      %vm2618 = vcmask 195584
      %v2619 = vsel %vm2618, %v2617, %v2603
      %vm2620 = vcmask 228352
      %v2621 = vsel %vm2620, %v2619, %v2607
      %v2622 = vperm.slane %v1618, 0
      %v2624 = vsel %vm809, %v2621, 0
      %2626 = vmatpush.msra.mxu0 0.0
      %2627 = vmatpush.msra.mxu0 0.0
      %2628 = vmatpush.msra.mxu0 0.0
      %2629 = vmatpush.msra.mxu0 0.0
      %2630 = vmatpush.msra.mxu0 0.0
      %2631 = vmatpush.msra.mxu0 0.0
      %2632 = vmatpush.msra.mxu0 0.0
      %2633 = vmatpush.msra.mxu0 0.0
      %2634 = vmatpush.msra.mxu0 0.0
      %2635 = vmatpush.msra.mxu0 0.0
      %2636 = vmatpush.msra.mxu0 0.0
      %2637 = vmatpush.msra.mxu0 0.0
      %2638 = vmatpush.msra.mxu0 %v1617
      %2639 = vmatpush.msra.mxu0 %v1616
      %2640 = vmatpush.msra.mxu0 %v1615
      %2641 = vmatpush.msra.mxu0 %v1614
      %2642 = vmatmul.f32.gmra.mxu0 %v2624
      %v2643 = vpop.f32.mrf.mxu0
      %v2644 = vadd.f32 %v2622, %v2643
      %2645 = vdwg.mxu0
      %v2646 = vadd.f32 %v1235, %v2644
      %s2647 = scalar_lea.vmem %s13, 32
      %v2648 = vld [vmem:[%s2647] sm:$0xff]
      %v2649 = vld [vmem:[%s2647 + $0x8] sm:$0xff]
      %v2650 = vld [vmem:[%s2647 + $0x10] sm:$0xff]
      %v2651 = vld [vmem:[%s2647 + $0x18] sm:$0xff]
      %v2652 = vld [vmem:[%s14 + $0x1] sm:$0x1]
      %s2653 = scalar_lea.vmem %s15, 32
      %v2654 = vld [vmem:[%s2653] sm:$0xff]
      %v2655 = vld [vmem:[%s2653 + $0x8] sm:$0xff]
      %v2656 = vld [vmem:[%s2653 + $0x10] sm:$0xff]
      %v2657 = vld [vmem:[%s2653 + $0x18] sm:$0xff]
      %v2658 = vld [vmem:[%s16 + $0x1] sm:$0x1]
      %v2659 = vperm.slane %v2652, 0
      %2660 = vmatpush.msra.mxu0 0.0
      %2661 = vmatpush.msra.mxu0 0.0
      %2662 = vmatpush.msra.mxu0 0.0
      %2663 = vmatpush.msra.mxu0 0.0
      %2664 = vmatpush.msra.mxu0 0.0
      %2665 = vmatpush.msra.mxu0 0.0
      %2666 = vmatpush.msra.mxu0 0.0
      %2667 = vmatpush.msra.mxu0 0.0
      %2668 = vmatpush.msra.mxu0 0.0
      %2669 = vmatpush.msra.mxu0 0.0
      %2670 = vmatpush.msra.mxu0 0.0
      %2671 = vmatpush.msra.mxu0 0.0
      %2672 = vmatpush.msra.mxu0 %v2651
      %2673 = vmatpush.msra.mxu0 %v2650
      %2674 = vmatpush.msra.mxu0 %v2649
      %2675 = vmatpush.msra.mxu0 %v2648
      %2676 = vmatmul.f32.gmra.mxu0 %v1621
      %v2677 = vpop.f32.mrf.mxu0
      %v2678 = vadd.f32 %v2659, %v2677
      %2679 = vdwg.mxu0
      %2684 = vrot.lane.b32.xlu0 %v2648, 96
      %v2685 = vpop.permute.xlu0 %2684
      %2686 = vrot.lane.b32.xlu0 %v2649, 96
      %v2687 = vpop.permute.xlu0 %2686
      %2688 = vrot.lane.b32.xlu0 %v2650, 96
      %v2689 = vpop.permute.xlu0 %2688
      %2690 = vrot.lane.b32.xlu0 %v2651, 96
      %v2691 = vpop.permute.xlu0 %2690
      %2697 = vrot.lane.b32.xlu0 %v2659, 96
      %v2698 = vpop.permute.xlu0 %2697
      %v2701 = vsel %vm809, %v1573, 0
      %v2704 = vsel %vm809, %v1574, 0
      %v2707 = vsel %vm809, %v1575, 0
      %v2710 = vsel %vm809, %v1576, 0
      %v2713 = vsel %vm809, %v1577, 0
      %v2716 = vsel %vm809, %v1578, 0
      %v2719 = vsel %vm809, %v1579, 0
      %2721 = vmatpush.msra.mxu0 0.0
      %2722 = vmatpush.msra.mxu0 0.0
      %2723 = vmatpush.msra.mxu0 0.0
      %2724 = vmatpush.msra.mxu0 0.0
      %2725 = vmatpush.msra.mxu0 0.0
      %2726 = vmatpush.msra.mxu0 0.0
      %2727 = vmatpush.msra.mxu0 0.0
      %2728 = vmatpush.msra.mxu0 0.0
      %2729 = vmatpush.msra.mxu0 0.0
      %2730 = vmatpush.msra.mxu0 0.0
      %2731 = vmatpush.msra.mxu0 0.0
      %2732 = vmatpush.msra.mxu0 0.0
      %2733 = vmatpush.msra.mxu0 %v2691
      %2734 = vmatpush.msra.mxu0 %v2689
      %2735 = vmatpush.msra.mxu0 %v2687
      %2736 = vmatpush.msra.mxu0 %v2685
      %2737 = vmatmul.f32.gmra.mxu0 %v2701
      %v2738 = vpop.f32.mrf.mxu0
      %v2739 = vadd.f32 %v2698, %v2738
      %2740 = vmatmul.f32.gmra.mxu0 %v2704
      %v2741 = vpop.f32.mrf.mxu0
      %v2742 = vadd.f32 %v2698, %v2741
      %2743 = vmatmul.f32.gmra.mxu0 %v2707
      %v2744 = vpop.f32.mrf.mxu0
      %v2745 = vadd.f32 %v2698, %v2744
      %2746 = vmatmul.f32.gmra.mxu0 %v2710
      %v2747 = vpop.f32.mrf.mxu0
      %v2748 = vadd.f32 %v2698, %v2747
      %2749 = vmatmul.f32.gmra.mxu0 %v2713
      %v2750 = vpop.f32.mrf.mxu0
      %v2751 = vadd.f32 %v2698, %v2750
      %2752 = vmatmul.f32.gmra.mxu0 %v2716
      %v2753 = vpop.f32.mrf.mxu0
      %v2754 = vadd.f32 %v2698, %v2753
      %2755 = vmatmul.f32.gmra.mxu0 %v2719
      %v2756 = vpop.f32.mrf.mxu0
      %v2757 = vadd.f32 %v2698, %v2756
      %2758 = vdwg.mxu0
      %v2760 = vsel %vm1722, %v2678, 0
      %v2763 = vsel %vm1722, %v2739, 0
      %v2766 = vsel %vm1722, %v2742, 0
      %v2769 = vsel %vm1722, %v2745, 0
      %v2772 = vsel %vm1722, %v2748, 0
      %v2775 = vsel %vm1722, %v2751, 0
      %v2778 = vsel %vm1722, %v2754, 0
      %v2781 = vsel %vm1722, %v2757, 0
      %2783 = vmatpush.xpose.msra.mxu0 0.0
      %2784 = vmatpush.xpose.msra.mxu0 0.0
      %2785 = vmatpush.xpose.msra.mxu0 0.0
      %2786 = vmatpush.xpose.msra.mxu0 0.0
      %2787 = vmatpush.xpose.msra.mxu0 0.0
      %2788 = vmatpush.xpose.msra.mxu0 0.0
      %2789 = vmatpush.xpose.msra.mxu0 0.0
      %2790 = vmatpush.xpose.msra.mxu0 0.0
      %2791 = vmatpush.xpose.msra.mxu0 0.0
      %2792 = vmatpush.xpose.msra.mxu0 %v2781
      %2793 = vmatpush.xpose.msra.mxu0 %v2778
      %2794 = vmatpush.xpose.msra.mxu0 %v2775
      %2795 = vmatpush.xpose.msra.mxu0 %v2772
      %2796 = vmatpush.xpose.msra.mxu0 %v2769
      %2797 = vmatpush.xpose.msra.mxu0 %v2766
      %2798 = vmatpush.xpose.msra.mxu0 %v2763
      %2799 = vmatmul.f32.gmra.mxu0 %v2760
      %v2800 = vpop.f32.mrf.mxu0
      %v2801 = vadd.f32 0.0, %v2800
      %2802 = vdwg.mxu0
      %v2803 = vmul.f32 %v2801, 0.5
      %v2804 = vsel %vm1768, %v2803, -inf
      %2805 = vmax.xlane.f32.xlu0 %v2804
      %v2806 = vpop.xlane.xlu0 %2805
      %v2807 = vsub.f32 %v2803, %v2806
      %v2808 = vmul.f32 %v2807, 1.442695
      %v2809 = vpow.pop %v2808
      %v2810 = vsel %vm1768, %v2809, 0.0
      %2811 = vadd.xlane.f32.xlu0 %v2810
      %v2812 = vpop.xlane.xlu0 %2811
      %v2813 = vrcp.pop %v2812
      %2814 = vrot.lane.b32.xlu0 %v2739, 96
      %v2815 = vpop.permute.xlu0 %2814
      %2816 = vrot.lane.b32.xlu0 %v2742, 96
      %v2817 = vpop.permute.xlu0 %2816
      %2818 = vrot.lane.b32.xlu0 %v2745, 96
      %v2819 = vpop.permute.xlu0 %2818
      %2820 = vrot.lane.b32.xlu0 %v2748, 96
      %v2821 = vpop.permute.xlu0 %2820
      %2822 = vrot.lane.b32.xlu0 %v2751, 96
      %v2823 = vpop.permute.xlu0 %2822
      %2824 = vrot.lane.b32.xlu0 %v2754, 96
      %v2825 = vpop.permute.xlu0 %2824
      %2826 = vrot.lane.b32.xlu0 %v2757, 96
      %v2827 = vpop.permute.xlu0 %2826
      %v2836 = vsel %vm1800, %v2809, 0
      %2838 = vmatpush.msra.mxu0 0.0
      %2839 = vmatpush.msra.mxu0 0.0
      %2840 = vmatpush.msra.mxu0 0.0
      %2841 = vmatpush.msra.mxu0 0.0
      %2842 = vmatpush.msra.mxu0 0.0
      %2843 = vmatpush.msra.mxu0 0.0
      %2844 = vmatpush.msra.mxu0 0.0
      %2845 = vmatpush.msra.mxu0 0.0
      %2846 = vmatpush.msra.mxu0 0.0
      %2847 = vmatpush.msra.mxu0 %v2827
      %2848 = vmatpush.msra.mxu0 %v2825
      %2849 = vmatpush.msra.mxu0 %v2823
      %2850 = vmatpush.msra.mxu0 %v2821
      %2851 = vmatpush.msra.mxu0 %v2819
      %2852 = vmatpush.msra.mxu0 %v2817
      %2853 = vmatpush.msra.mxu0 %v2815
      %2854 = vmatmul.f32.gmra.mxu0 %v2836
      %v2855 = vpop.f32.mrf.mxu0
      %v2856 = vadd.f32 0.0, %v2855
      %2857 = vdwg.mxu0
      %v2858 = vmul.f32 %v2856, %v2813
      %2859 = vrot.lane.b32.xlu0 %v2678, 124
      %v2860 = vpop.permute.xlu0 %2859
      %2861 = vrot.lane.b32.xlu0 %v2739, 124
      %v2862 = vpop.permute.xlu0 %2861
      %2863 = vrot.lane.b32.xlu0 %v2742, 124
      %v2864 = vpop.permute.xlu0 %2863
      %2865 = vrot.lane.b32.xlu0 %v2745, 124
      %v2866 = vpop.permute.xlu0 %2865
      %2867 = vrot.lane.b32.xlu0 %v2748, 124
      %v2868 = vpop.permute.xlu0 %2867
      %2869 = vrot.lane.b32.xlu0 %v2751, 124
      %v2870 = vpop.permute.xlu0 %2869
      %2871 = vrot.lane.b32.xlu0 %v2754, 124
      %v2872 = vpop.permute.xlu0 %2871
      %2873 = vrot.lane.b32.xlu0 %v2757, 124
      %v2874 = vpop.permute.xlu0 %2873
      %v2875 = vsel %vm1722, %v2860, 0
      %v2877 = vsel %vm1722, %v2862, 0
      %v2879 = vsel %vm1722, %v2864, 0
      %v2881 = vsel %vm1722, %v2866, 0
      %v2883 = vsel %vm1722, %v2868, 0
      %v2885 = vsel %vm1722, %v2870, 0
      %v2887 = vsel %vm1722, %v2872, 0
      %v2889 = vsel %vm1722, %v2874, 0
      %2891 = vmatpush.xpose.msra.mxu0 0.0
      %2892 = vmatpush.xpose.msra.mxu0 0.0
      %2893 = vmatpush.xpose.msra.mxu0 0.0
      %2894 = vmatpush.xpose.msra.mxu0 0.0
      %2895 = vmatpush.xpose.msra.mxu0 0.0
      %2896 = vmatpush.xpose.msra.mxu0 0.0
      %2897 = vmatpush.xpose.msra.mxu0 0.0
      %2898 = vmatpush.xpose.msra.mxu0 0.0
      %2899 = vmatpush.xpose.msra.mxu0 0.0
      %2900 = vmatpush.xpose.msra.mxu0 %v2889
      %2901 = vmatpush.xpose.msra.mxu0 %v2887
      %2902 = vmatpush.xpose.msra.mxu0 %v2885
      %2903 = vmatpush.xpose.msra.mxu0 %v2883
      %2904 = vmatpush.xpose.msra.mxu0 %v2881
      %2905 = vmatpush.xpose.msra.mxu0 %v2879
      %2906 = vmatpush.xpose.msra.mxu0 %v2877
      %2907 = vmatmul.f32.gmra.mxu0 %v2875
      %v2908 = vpop.f32.mrf.mxu0
      %v2909 = vadd.f32 0.0, %v2908
      %2910 = vdwg.mxu0
      %v2911 = vmul.f32 %v2909, 0.5
      %v2912 = vsel %vm1768, %v2911, -inf
      %2913 = vmax.xlane.f32.xlu0 %v2912
      %v2914 = vpop.xlane.xlu0 %2913
      %v2915 = vsub.f32 %v2911, %v2914
      %v2916 = vmul.f32 %v2915, 1.442695
      %v2917 = vpow.pop %v2916
      %v2918 = vsel %vm1768, %v2917, 0.0
      %2919 = vadd.xlane.f32.xlu0 %v2918
      %v2920 = vpop.xlane.xlu0 %2919
      %v2921 = vrcp.pop %v2920
      %2922 = vrot.lane.b32.xlu0 %v2739, 92
      %v2923 = vpop.permute.xlu0 %2922
      %2924 = vrot.lane.b32.xlu0 %v2742, 92
      %v2925 = vpop.permute.xlu0 %2924
      %2926 = vrot.lane.b32.xlu0 %v2745, 92
      %v2927 = vpop.permute.xlu0 %2926
      %2928 = vrot.lane.b32.xlu0 %v2748, 92
      %v2929 = vpop.permute.xlu0 %2928
      %2930 = vrot.lane.b32.xlu0 %v2751, 92
      %v2931 = vpop.permute.xlu0 %2930
      %2932 = vrot.lane.b32.xlu0 %v2754, 92
      %v2933 = vpop.permute.xlu0 %2932
      %2934 = vrot.lane.b32.xlu0 %v2757, 92
      %v2935 = vpop.permute.xlu0 %2934
      %v2944 = vsel %vm1800, %v2917, 0
      %2946 = vmatpush.msra.mxu0 0.0
      %2947 = vmatpush.msra.mxu0 0.0
      %2948 = vmatpush.msra.mxu0 0.0
      %2949 = vmatpush.msra.mxu0 0.0
      %2950 = vmatpush.msra.mxu0 0.0
      %2951 = vmatpush.msra.mxu0 0.0
      %2952 = vmatpush.msra.mxu0 0.0
      %2953 = vmatpush.msra.mxu0 0.0
      %2954 = vmatpush.msra.mxu0 0.0
      %2955 = vmatpush.msra.mxu0 %v2935
      %2956 = vmatpush.msra.mxu0 %v2933
      %2957 = vmatpush.msra.mxu0 %v2931
      %2958 = vmatpush.msra.mxu0 %v2929
      %2959 = vmatpush.msra.mxu0 %v2927
      %2960 = vmatpush.msra.mxu0 %v2925
      %2961 = vmatpush.msra.mxu0 %v2923
      %2962 = vmatmul.f32.gmra.mxu0 %v2944
      %v2963 = vpop.f32.mrf.mxu0
      %v2964 = vadd.f32 0.0, %v2963
      %2965 = vdwg.mxu0
      %v2966 = vmul.f32 %v2964, %v2921
      %2967 = vrot.lane.b32.xlu0 %v2678, 120
      %v2968 = vpop.permute.xlu0 %2967
      %2969 = vrot.lane.b32.xlu0 %v2739, 120
      %v2970 = vpop.permute.xlu0 %2969
      %2971 = vrot.lane.b32.xlu0 %v2742, 120
      %v2972 = vpop.permute.xlu0 %2971
      %2973 = vrot.lane.b32.xlu0 %v2745, 120
      %v2974 = vpop.permute.xlu0 %2973
      %2975 = vrot.lane.b32.xlu0 %v2748, 120
      %v2976 = vpop.permute.xlu0 %2975
      %2977 = vrot.lane.b32.xlu0 %v2751, 120
      %v2978 = vpop.permute.xlu0 %2977
      %2979 = vrot.lane.b32.xlu0 %v2754, 120
      %v2980 = vpop.permute.xlu0 %2979
      %2981 = vrot.lane.b32.xlu0 %v2757, 120
      %v2982 = vpop.permute.xlu0 %2981
      %v2983 = vsel %vm1722, %v2968, 0
      %v2985 = vsel %vm1722, %v2970, 0
      %v2987 = vsel %vm1722, %v2972, 0
      %v2989 = vsel %vm1722, %v2974, 0
      %v2991 = vsel %vm1722, %v2976, 0
      %v2993 = vsel %vm1722, %v2978, 0
      %v2995 = vsel %vm1722, %v2980, 0
      %v2997 = vsel %vm1722, %v2982, 0
      %2999 = vmatpush.xpose.msra.mxu0 0.0
      %3000 = vmatpush.xpose.msra.mxu0 0.0
      %3001 = vmatpush.xpose.msra.mxu0 0.0
      %3002 = vmatpush.xpose.msra.mxu0 0.0
      %3003 = vmatpush.xpose.msra.mxu0 0.0
      %3004 = vmatpush.xpose.msra.mxu0 0.0
      %3005 = vmatpush.xpose.msra.mxu0 0.0
      %3006 = vmatpush.xpose.msra.mxu0 0.0
      %3007 = vmatpush.xpose.msra.mxu0 0.0
      %3008 = vmatpush.xpose.msra.mxu0 %v2997
      %3009 = vmatpush.xpose.msra.mxu0 %v2995
      %3010 = vmatpush.xpose.msra.mxu0 %v2993
      %3011 = vmatpush.xpose.msra.mxu0 %v2991
      %3012 = vmatpush.xpose.msra.mxu0 %v2989
      %3013 = vmatpush.xpose.msra.mxu0 %v2987
      %3014 = vmatpush.xpose.msra.mxu0 %v2985
      %3015 = vmatmul.f32.gmra.mxu0 %v2983
      %v3016 = vpop.f32.mrf.mxu0
      %v3017 = vadd.f32 0.0, %v3016
      %3018 = vdwg.mxu0
      %v3019 = vmul.f32 %v3017, 0.5
      %v3020 = vsel %vm1768, %v3019, -inf
      %3021 = vmax.xlane.f32.xlu0 %v3020
      %v3022 = vpop.xlane.xlu0 %3021
      %v3023 = vsub.f32 %v3019, %v3022
      %v3024 = vmul.f32 %v3023, 1.442695
      %v3025 = vpow.pop %v3024
      %v3026 = vsel %vm1768, %v3025, 0.0
      %3027 = vadd.xlane.f32.xlu0 %v3026
      %v3028 = vpop.xlane.xlu0 %3027
      %v3029 = vrcp.pop %v3028
      %3030 = vrot.lane.b32.xlu0 %v2739, 88
      %v3031 = vpop.permute.xlu0 %3030
      %3032 = vrot.lane.b32.xlu0 %v2742, 88
      %v3033 = vpop.permute.xlu0 %3032
      %3034 = vrot.lane.b32.xlu0 %v2745, 88
      %v3035 = vpop.permute.xlu0 %3034
      %3036 = vrot.lane.b32.xlu0 %v2748, 88
      %v3037 = vpop.permute.xlu0 %3036
      %3038 = vrot.lane.b32.xlu0 %v2751, 88
      %v3039 = vpop.permute.xlu0 %3038
      %3040 = vrot.lane.b32.xlu0 %v2754, 88
      %v3041 = vpop.permute.xlu0 %3040
      %3042 = vrot.lane.b32.xlu0 %v2757, 88
      %v3043 = vpop.permute.xlu0 %3042
      %v3052 = vsel %vm1800, %v3025, 0
      %3054 = vmatpush.msra.mxu0 0.0
      %3055 = vmatpush.msra.mxu0 0.0
      %3056 = vmatpush.msra.mxu0 0.0
      %3057 = vmatpush.msra.mxu0 0.0
      %3058 = vmatpush.msra.mxu0 0.0
      %3059 = vmatpush.msra.mxu0 0.0
      %3060 = vmatpush.msra.mxu0 0.0
      %3061 = vmatpush.msra.mxu0 0.0
      %3062 = vmatpush.msra.mxu0 0.0
      %3063 = vmatpush.msra.mxu0 %v3043
      %3064 = vmatpush.msra.mxu0 %v3041
      %3065 = vmatpush.msra.mxu0 %v3039
      %3066 = vmatpush.msra.mxu0 %v3037
      %3067 = vmatpush.msra.mxu0 %v3035
      %3068 = vmatpush.msra.mxu0 %v3033
      %3069 = vmatpush.msra.mxu0 %v3031
      %3070 = vmatmul.f32.gmra.mxu0 %v3052
      %v3071 = vpop.f32.mrf.mxu0
      %v3072 = vadd.f32 0.0, %v3071
      %3073 = vdwg.mxu0
      %v3074 = vmul.f32 %v3072, %v3029
      %3075 = vrot.lane.b32.xlu0 %v2678, 116
      %v3076 = vpop.permute.xlu0 %3075
      %3077 = vrot.lane.b32.xlu0 %v2739, 116
      %v3078 = vpop.permute.xlu0 %3077
      %3079 = vrot.lane.b32.xlu0 %v2742, 116
      %v3080 = vpop.permute.xlu0 %3079
      %3081 = vrot.lane.b32.xlu0 %v2745, 116
      %v3082 = vpop.permute.xlu0 %3081
      %3083 = vrot.lane.b32.xlu0 %v2748, 116
      %v3084 = vpop.permute.xlu0 %3083
      %3085 = vrot.lane.b32.xlu0 %v2751, 116
      %v3086 = vpop.permute.xlu0 %3085
      %3087 = vrot.lane.b32.xlu0 %v2754, 116
      %v3088 = vpop.permute.xlu0 %3087
      %3089 = vrot.lane.b32.xlu0 %v2757, 116
      %v3090 = vpop.permute.xlu0 %3089
      %v3091 = vsel %vm1722, %v3076, 0
      %v3093 = vsel %vm1722, %v3078, 0
      %v3095 = vsel %vm1722, %v3080, 0
      %v3097 = vsel %vm1722, %v3082, 0
      %v3099 = vsel %vm1722, %v3084, 0
      %v3101 = vsel %vm1722, %v3086, 0
      %v3103 = vsel %vm1722, %v3088, 0
      %v3105 = vsel %vm1722, %v3090, 0
      %3107 = vmatpush.xpose.msra.mxu0 0.0
      %3108 = vmatpush.xpose.msra.mxu0 0.0
      %3109 = vmatpush.xpose.msra.mxu0 0.0
      %3110 = vmatpush.xpose.msra.mxu0 0.0
      %3111 = vmatpush.xpose.msra.mxu0 0.0
      %3112 = vmatpush.xpose.msra.mxu0 0.0
      %3113 = vmatpush.xpose.msra.mxu0 0.0
      %3114 = vmatpush.xpose.msra.mxu0 0.0
      %3115 = vmatpush.xpose.msra.mxu0 0.0
      %3116 = vmatpush.xpose.msra.mxu0 %v3105
      %3117 = vmatpush.xpose.msra.mxu0 %v3103
      %3118 = vmatpush.xpose.msra.mxu0 %v3101
      %3119 = vmatpush.xpose.msra.mxu0 %v3099
      %3120 = vmatpush.xpose.msra.mxu0 %v3097
      %3121 = vmatpush.xpose.msra.mxu0 %v3095
      %3122 = vmatpush.xpose.msra.mxu0 %v3093
      %3123 = vmatmul.f32.gmra.mxu0 %v3091
      %v3124 = vpop.f32.mrf.mxu0
      %v3125 = vadd.f32 0.0, %v3124
      %3126 = vdwg.mxu0
      %v3127 = vmul.f32 %v3125, 0.5
      %v3128 = vsel %vm1768, %v3127, -inf
      %3129 = vmax.xlane.f32.xlu0 %v3128
      %v3130 = vpop.xlane.xlu0 %3129
      %v3131 = vsub.f32 %v3127, %v3130
      %v3132 = vmul.f32 %v3131, 1.442695
      %v3133 = vpow.pop %v3132
      %v3134 = vsel %vm1768, %v3133, 0.0
      %3135 = vadd.xlane.f32.xlu0 %v3134
      %v3136 = vpop.xlane.xlu0 %3135
      %v3137 = vrcp.pop %v3136
      %3138 = vrot.lane.b32.xlu0 %v2739, 84
      %v3139 = vpop.permute.xlu0 %3138
      %3140 = vrot.lane.b32.xlu0 %v2742, 84
      %v3141 = vpop.permute.xlu0 %3140
      %3142 = vrot.lane.b32.xlu0 %v2745, 84
      %v3143 = vpop.permute.xlu0 %3142
      %3144 = vrot.lane.b32.xlu0 %v2748, 84
      %v3145 = vpop.permute.xlu0 %3144
      %3146 = vrot.lane.b32.xlu0 %v2751, 84
      %v3147 = vpop.permute.xlu0 %3146
      %3148 = vrot.lane.b32.xlu0 %v2754, 84
      %v3149 = vpop.permute.xlu0 %3148
      %3150 = vrot.lane.b32.xlu0 %v2757, 84
      %v3151 = vpop.permute.xlu0 %3150
      %v3160 = vsel %vm1800, %v3133, 0
      %3162 = vmatpush.msra.mxu0 0.0
      %3163 = vmatpush.msra.mxu0 0.0
      %3164 = vmatpush.msra.mxu0 0.0
      %3165 = vmatpush.msra.mxu0 0.0
      %3166 = vmatpush.msra.mxu0 0.0
      %3167 = vmatpush.msra.mxu0 0.0
      %3168 = vmatpush.msra.mxu0 0.0
      %3169 = vmatpush.msra.mxu0 0.0
      %3170 = vmatpush.msra.mxu0 0.0
      %3171 = vmatpush.msra.mxu0 %v3151
      %3172 = vmatpush.msra.mxu0 %v3149
      %3173 = vmatpush.msra.mxu0 %v3147
      %3174 = vmatpush.msra.mxu0 %v3145
      %3175 = vmatpush.msra.mxu0 %v3143
      %3176 = vmatpush.msra.mxu0 %v3141
      %3177 = vmatpush.msra.mxu0 %v3139
      %3178 = vmatmul.f32.gmra.mxu0 %v3160
      %v3179 = vpop.f32.mrf.mxu0
      %v3180 = vadd.f32 0.0, %v3179
      %3181 = vdwg.mxu0
      %v3182 = vmul.f32 %v3180, %v3137
      %3183 = vrot.lane.b32.xlu0 %v2678, 112
      %v3184 = vpop.permute.xlu0 %3183
      %3185 = vrot.lane.b32.xlu0 %v2739, 112
      %v3186 = vpop.permute.xlu0 %3185
      %3187 = vrot.lane.b32.xlu0 %v2742, 112
      %v3188 = vpop.permute.xlu0 %3187
      %3189 = vrot.lane.b32.xlu0 %v2745, 112
      %v3190 = vpop.permute.xlu0 %3189
      %3191 = vrot.lane.b32.xlu0 %v2748, 112
      %v3192 = vpop.permute.xlu0 %3191
      %3193 = vrot.lane.b32.xlu0 %v2751, 112
      %v3194 = vpop.permute.xlu0 %3193
      %3195 = vrot.lane.b32.xlu0 %v2754, 112
      %v3196 = vpop.permute.xlu0 %3195
      %3197 = vrot.lane.b32.xlu0 %v2757, 112
      %v3198 = vpop.permute.xlu0 %3197
      %v3199 = vsel %vm1722, %v3184, 0
      %v3201 = vsel %vm1722, %v3186, 0
      %v3203 = vsel %vm1722, %v3188, 0
      %v3205 = vsel %vm1722, %v3190, 0
      %v3207 = vsel %vm1722, %v3192, 0
      %v3209 = vsel %vm1722, %v3194, 0
      %v3211 = vsel %vm1722, %v3196, 0
      %v3213 = vsel %vm1722, %v3198, 0
      %3215 = vmatpush.xpose.msra.mxu0 0.0
      %3216 = vmatpush.xpose.msra.mxu0 0.0
      %3217 = vmatpush.xpose.msra.mxu0 0.0
      %3218 = vmatpush.xpose.msra.mxu0 0.0
      %3219 = vmatpush.xpose.msra.mxu0 0.0
      %3220 = vmatpush.xpose.msra.mxu0 0.0
      %3221 = vmatpush.xpose.msra.mxu0 0.0
      %3222 = vmatpush.xpose.msra.mxu0 0.0
      %3223 = vmatpush.xpose.msra.mxu0 0.0
      %3224 = vmatpush.xpose.msra.mxu0 %v3213
      %3225 = vmatpush.xpose.msra.mxu0 %v3211
      %3226 = vmatpush.xpose.msra.mxu0 %v3209
      %3227 = vmatpush.xpose.msra.mxu0 %v3207
      %3228 = vmatpush.xpose.msra.mxu0 %v3205
      %3229 = vmatpush.xpose.msra.mxu0 %v3203
      %3230 = vmatpush.xpose.msra.mxu0 %v3201
      %3231 = vmatmul.f32.gmra.mxu0 %v3199
      %v3232 = vpop.f32.mrf.mxu0
      %v3233 = vadd.f32 0.0, %v3232
      %3234 = vdwg.mxu0
      %v3235 = vmul.f32 %v3233, 0.5
      %v3236 = vsel %vm1768, %v3235, -inf
      %3237 = vmax.xlane.f32.xlu0 %v3236
      %v3238 = vpop.xlane.xlu0 %3237
      %v3239 = vsub.f32 %v3235, %v3238
      %v3240 = vmul.f32 %v3239, 1.442695
      %v3241 = vpow.pop %v3240
      %v3242 = vsel %vm1768, %v3241, 0.0
      %3243 = vadd.xlane.f32.xlu0 %v3242
      %v3244 = vpop.xlane.xlu0 %3243
      %v3245 = vrcp.pop %v3244
      %3246 = vrot.lane.b32.xlu0 %v2739, 80
      %v3247 = vpop.permute.xlu0 %3246
      %3248 = vrot.lane.b32.xlu0 %v2742, 80
      %v3249 = vpop.permute.xlu0 %3248
      %3250 = vrot.lane.b32.xlu0 %v2745, 80
      %v3251 = vpop.permute.xlu0 %3250
      %3252 = vrot.lane.b32.xlu0 %v2748, 80
      %v3253 = vpop.permute.xlu0 %3252
      %3254 = vrot.lane.b32.xlu0 %v2751, 80
      %v3255 = vpop.permute.xlu0 %3254
      %3256 = vrot.lane.b32.xlu0 %v2754, 80
      %v3257 = vpop.permute.xlu0 %3256
      %3258 = vrot.lane.b32.xlu0 %v2757, 80
      %v3259 = vpop.permute.xlu0 %3258
      %v3268 = vsel %vm1800, %v3241, 0
      %3270 = vmatpush.msra.mxu0 0.0
      %3271 = vmatpush.msra.mxu0 0.0
      %3272 = vmatpush.msra.mxu0 0.0
      %3273 = vmatpush.msra.mxu0 0.0
      %3274 = vmatpush.msra.mxu0 0.0
      %3275 = vmatpush.msra.mxu0 0.0
      %3276 = vmatpush.msra.mxu0 0.0
      %3277 = vmatpush.msra.mxu0 0.0
      %3278 = vmatpush.msra.mxu0 0.0
      %3279 = vmatpush.msra.mxu0 %v3259
      %3280 = vmatpush.msra.mxu0 %v3257
      %3281 = vmatpush.msra.mxu0 %v3255
      %3282 = vmatpush.msra.mxu0 %v3253
      %3283 = vmatpush.msra.mxu0 %v3251
      %3284 = vmatpush.msra.mxu0 %v3249
      %3285 = vmatpush.msra.mxu0 %v3247
      %3286 = vmatmul.f32.gmra.mxu0 %v3268
      %v3287 = vpop.f32.mrf.mxu0
      %v3288 = vadd.f32 0.0, %v3287
      %3289 = vdwg.mxu0
      %v3290 = vmul.f32 %v3288, %v3245
      %3291 = vrot.lane.b32.xlu0 %v2678, 108
      %v3292 = vpop.permute.xlu0 %3291
      %3293 = vrot.lane.b32.xlu0 %v2739, 108
      %v3294 = vpop.permute.xlu0 %3293
      %3295 = vrot.lane.b32.xlu0 %v2742, 108
      %v3296 = vpop.permute.xlu0 %3295
      %3297 = vrot.lane.b32.xlu0 %v2745, 108
      %v3298 = vpop.permute.xlu0 %3297
      %3299 = vrot.lane.b32.xlu0 %v2748, 108
      %v3300 = vpop.permute.xlu0 %3299
      %3301 = vrot.lane.b32.xlu0 %v2751, 108
      %v3302 = vpop.permute.xlu0 %3301
      %3303 = vrot.lane.b32.xlu0 %v2754, 108
      %v3304 = vpop.permute.xlu0 %3303
      %3305 = vrot.lane.b32.xlu0 %v2757, 108
      %v3306 = vpop.permute.xlu0 %3305
      %v3307 = vsel %vm1722, %v3292, 0
      %v3309 = vsel %vm1722, %v3294, 0
      %v3311 = vsel %vm1722, %v3296, 0
      %v3313 = vsel %vm1722, %v3298, 0
      %v3315 = vsel %vm1722, %v3300, 0
      %v3317 = vsel %vm1722, %v3302, 0
      %v3319 = vsel %vm1722, %v3304, 0
      %v3321 = vsel %vm1722, %v3306, 0
      %3323 = vmatpush.xpose.msra.mxu0 0.0
      %3324 = vmatpush.xpose.msra.mxu0 0.0
      %3325 = vmatpush.xpose.msra.mxu0 0.0
      %3326 = vmatpush.xpose.msra.mxu0 0.0
      %3327 = vmatpush.xpose.msra.mxu0 0.0
      %3328 = vmatpush.xpose.msra.mxu0 0.0
      %3329 = vmatpush.xpose.msra.mxu0 0.0
      %3330 = vmatpush.xpose.msra.mxu0 0.0
      %3331 = vmatpush.xpose.msra.mxu0 0.0
      %3332 = vmatpush.xpose.msra.mxu0 %v3321
      %3333 = vmatpush.xpose.msra.mxu0 %v3319
      %3334 = vmatpush.xpose.msra.mxu0 %v3317
      %3335 = vmatpush.xpose.msra.mxu0 %v3315
      %3336 = vmatpush.xpose.msra.mxu0 %v3313
      %3337 = vmatpush.xpose.msra.mxu0 %v3311
      %3338 = vmatpush.xpose.msra.mxu0 %v3309
      %3339 = vmatmul.f32.gmra.mxu0 %v3307
      %v3340 = vpop.f32.mrf.mxu0
      %v3341 = vadd.f32 0.0, %v3340
      %3342 = vdwg.mxu0
      %v3343 = vmul.f32 %v3341, 0.5
      %v3344 = vsel %vm1768, %v3343, -inf
      %3345 = vmax.xlane.f32.xlu0 %v3344
      %v3346 = vpop.xlane.xlu0 %3345
      %v3347 = vsub.f32 %v3343, %v3346
      %v3348 = vmul.f32 %v3347, 1.442695
      %v3349 = vpow.pop %v3348
      %v3350 = vsel %vm1768, %v3349, 0.0
      %3351 = vadd.xlane.f32.xlu0 %v3350
      %v3352 = vpop.xlane.xlu0 %3351
      %v3353 = vrcp.pop %v3352
      %3354 = vrot.lane.b32.xlu0 %v2739, 76
      %v3355 = vpop.permute.xlu0 %3354
      %3356 = vrot.lane.b32.xlu0 %v2742, 76
      %v3357 = vpop.permute.xlu0 %3356
      %3358 = vrot.lane.b32.xlu0 %v2745, 76
      %v3359 = vpop.permute.xlu0 %3358
      %3360 = vrot.lane.b32.xlu0 %v2748, 76
      %v3361 = vpop.permute.xlu0 %3360
      %3362 = vrot.lane.b32.xlu0 %v2751, 76
      %v3363 = vpop.permute.xlu0 %3362
      %3364 = vrot.lane.b32.xlu0 %v2754, 76
      %v3365 = vpop.permute.xlu0 %3364
      %3366 = vrot.lane.b32.xlu0 %v2757, 76
      %v3367 = vpop.permute.xlu0 %3366
      %v3376 = vsel %vm1800, %v3349, 0
      %3378 = vmatpush.msra.mxu0 0.0
      %3379 = vmatpush.msra.mxu0 0.0
      %3380 = vmatpush.msra.mxu0 0.0
      %3381 = vmatpush.msra.mxu0 0.0
      %3382 = vmatpush.msra.mxu0 0.0
      %3383 = vmatpush.msra.mxu0 0.0
      %3384 = vmatpush.msra.mxu0 0.0
      %3385 = vmatpush.msra.mxu0 0.0
      %3386 = vmatpush.msra.mxu0 0.0
      %3387 = vmatpush.msra.mxu0 %v3367
      %3388 = vmatpush.msra.mxu0 %v3365
      %3389 = vmatpush.msra.mxu0 %v3363
      %3390 = vmatpush.msra.mxu0 %v3361
      %3391 = vmatpush.msra.mxu0 %v3359
      %3392 = vmatpush.msra.mxu0 %v3357
      %3393 = vmatpush.msra.mxu0 %v3355
      %3394 = vmatmul.f32.gmra.mxu0 %v3376
      %v3395 = vpop.f32.mrf.mxu0
      %v3396 = vadd.f32 0.0, %v3395
      %3397 = vdwg.mxu0
      %v3398 = vmul.f32 %v3396, %v3353
      %3399 = vrot.lane.b32.xlu0 %v2678, 104
      %v3400 = vpop.permute.xlu0 %3399
      %3401 = vrot.lane.b32.xlu0 %v2739, 104
      %v3402 = vpop.permute.xlu0 %3401
      %3403 = vrot.lane.b32.xlu0 %v2742, 104
      %v3404 = vpop.permute.xlu0 %3403
      %3405 = vrot.lane.b32.xlu0 %v2745, 104
      %v3406 = vpop.permute.xlu0 %3405
      %3407 = vrot.lane.b32.xlu0 %v2748, 104
      %v3408 = vpop.permute.xlu0 %3407
      %3409 = vrot.lane.b32.xlu0 %v2751, 104
      %v3410 = vpop.permute.xlu0 %3409
      %3411 = vrot.lane.b32.xlu0 %v2754, 104
      %v3412 = vpop.permute.xlu0 %3411
      %3413 = vrot.lane.b32.xlu0 %v2757, 104
      %v3414 = vpop.permute.xlu0 %3413
      %v3415 = vsel %vm1722, %v3400, 0
      %v3417 = vsel %vm1722, %v3402, 0
      %v3419 = vsel %vm1722, %v3404, 0
      %v3421 = vsel %vm1722, %v3406, 0
      %v3423 = vsel %vm1722, %v3408, 0
      %v3425 = vsel %vm1722, %v3410, 0
      %v3427 = vsel %vm1722, %v3412, 0
      %v3429 = vsel %vm1722, %v3414, 0
      %3431 = vmatpush.xpose.msra.mxu0 0.0
      %3432 = vmatpush.xpose.msra.mxu0 0.0
      %3433 = vmatpush.xpose.msra.mxu0 0.0
      %3434 = vmatpush.xpose.msra.mxu0 0.0
      %3435 = vmatpush.xpose.msra.mxu0 0.0
      %3436 = vmatpush.xpose.msra.mxu0 0.0
      %3437 = vmatpush.xpose.msra.mxu0 0.0
      %3438 = vmatpush.xpose.msra.mxu0 0.0
      %3439 = vmatpush.xpose.msra.mxu0 0.0
      %3440 = vmatpush.xpose.msra.mxu0 %v3429
      %3441 = vmatpush.xpose.msra.mxu0 %v3427
      %3442 = vmatpush.xpose.msra.mxu0 %v3425
      %3443 = vmatpush.xpose.msra.mxu0 %v3423
      %3444 = vmatpush.xpose.msra.mxu0 %v3421
      %3445 = vmatpush.xpose.msra.mxu0 %v3419
      %3446 = vmatpush.xpose.msra.mxu0 %v3417
      %3447 = vmatmul.f32.gmra.mxu0 %v3415
      %v3448 = vpop.f32.mrf.mxu0
      %v3449 = vadd.f32 0.0, %v3448
      %3450 = vdwg.mxu0
      %v3451 = vmul.f32 %v3449, 0.5
      %v3452 = vsel %vm1768, %v3451, -inf
      %3453 = vmax.xlane.f32.xlu0 %v3452
      %v3454 = vpop.xlane.xlu0 %3453
      %v3455 = vsub.f32 %v3451, %v3454
      %v3456 = vmul.f32 %v3455, 1.442695
      %v3457 = vpow.pop %v3456
      %v3458 = vsel %vm1768, %v3457, 0.0
      %3459 = vadd.xlane.f32.xlu0 %v3458
      %v3460 = vpop.xlane.xlu0 %3459
      %v3461 = vrcp.pop %v3460
      %3462 = vrot.lane.b32.xlu0 %v2739, 72
      %v3463 = vpop.permute.xlu0 %3462
      %3464 = vrot.lane.b32.xlu0 %v2742, 72
      %v3465 = vpop.permute.xlu0 %3464
      %3466 = vrot.lane.b32.xlu0 %v2745, 72
      %v3467 = vpop.permute.xlu0 %3466
      %3468 = vrot.lane.b32.xlu0 %v2748, 72
      %v3469 = vpop.permute.xlu0 %3468
      %3470 = vrot.lane.b32.xlu0 %v2751, 72
      %v3471 = vpop.permute.xlu0 %3470
      %3472 = vrot.lane.b32.xlu0 %v2754, 72
      %v3473 = vpop.permute.xlu0 %3472
      %3474 = vrot.lane.b32.xlu0 %v2757, 72
      %v3475 = vpop.permute.xlu0 %3474
      %v3484 = vsel %vm1800, %v3457, 0
      %3486 = vmatpush.msra.mxu0 0.0
      %3487 = vmatpush.msra.mxu0 0.0
      %3488 = vmatpush.msra.mxu0 0.0
      %3489 = vmatpush.msra.mxu0 0.0
      %3490 = vmatpush.msra.mxu0 0.0
      %3491 = vmatpush.msra.mxu0 0.0
      %3492 = vmatpush.msra.mxu0 0.0
      %3493 = vmatpush.msra.mxu0 0.0
      %3494 = vmatpush.msra.mxu0 0.0
      %3495 = vmatpush.msra.mxu0 %v3475
      %3496 = vmatpush.msra.mxu0 %v3473
      %3497 = vmatpush.msra.mxu0 %v3471
      %3498 = vmatpush.msra.mxu0 %v3469
      %3499 = vmatpush.msra.mxu0 %v3467
      %3500 = vmatpush.msra.mxu0 %v3465
      %3501 = vmatpush.msra.mxu0 %v3463
      %3502 = vmatmul.f32.gmra.mxu0 %v3484
      %v3503 = vpop.f32.mrf.mxu0
      %v3504 = vadd.f32 0.0, %v3503
      %3505 = vdwg.mxu0
      %v3506 = vmul.f32 %v3504, %v3461
      %3507 = vrot.lane.b32.xlu0 %v2678, 100
      %v3508 = vpop.permute.xlu0 %3507
      %3509 = vrot.lane.b32.xlu0 %v2739, 100
      %v3510 = vpop.permute.xlu0 %3509
      %3511 = vrot.lane.b32.xlu0 %v2742, 100
      %v3512 = vpop.permute.xlu0 %3511
      %3513 = vrot.lane.b32.xlu0 %v2745, 100
      %v3514 = vpop.permute.xlu0 %3513
      %3515 = vrot.lane.b32.xlu0 %v2748, 100
      %v3516 = vpop.permute.xlu0 %3515
      %3517 = vrot.lane.b32.xlu0 %v2751, 100
      %v3518 = vpop.permute.xlu0 %3517
      %3519 = vrot.lane.b32.xlu0 %v2754, 100
      %v3520 = vpop.permute.xlu0 %3519
      %3521 = vrot.lane.b32.xlu0 %v2757, 100
      %v3522 = vpop.permute.xlu0 %3521
      %v3523 = vsel %vm1722, %v3508, 0
      %v3525 = vsel %vm1722, %v3510, 0
      %v3527 = vsel %vm1722, %v3512, 0
      %v3529 = vsel %vm1722, %v3514, 0
      %v3531 = vsel %vm1722, %v3516, 0
      %v3533 = vsel %vm1722, %v3518, 0
      %v3535 = vsel %vm1722, %v3520, 0
      %v3537 = vsel %vm1722, %v3522, 0
      %3539 = vmatpush.xpose.msra.mxu0 0.0
      %3540 = vmatpush.xpose.msra.mxu0 0.0
      %3541 = vmatpush.xpose.msra.mxu0 0.0
      %3542 = vmatpush.xpose.msra.mxu0 0.0
      %3543 = vmatpush.xpose.msra.mxu0 0.0
      %3544 = vmatpush.xpose.msra.mxu0 0.0
      %3545 = vmatpush.xpose.msra.mxu0 0.0
      %3546 = vmatpush.xpose.msra.mxu0 0.0
      %3547 = vmatpush.xpose.msra.mxu0 0.0
      %3548 = vmatpush.xpose.msra.mxu0 %v3537
      %3549 = vmatpush.xpose.msra.mxu0 %v3535
      %3550 = vmatpush.xpose.msra.mxu0 %v3533
      %3551 = vmatpush.xpose.msra.mxu0 %v3531
      %3552 = vmatpush.xpose.msra.mxu0 %v3529
      %3553 = vmatpush.xpose.msra.mxu0 %v3527
      %3554 = vmatpush.xpose.msra.mxu0 %v3525
      %3555 = vmatmul.f32.gmra.mxu0 %v3523
      %v3556 = vpop.f32.mrf.mxu0
      %v3557 = vadd.f32 0.0, %v3556
      %3558 = vdwg.mxu0
      %v3559 = vmul.f32 %v3557, 0.5
      %v3560 = vsel %vm1768, %v3559, -inf
      %3561 = vmax.xlane.f32.xlu0 %v3560
      %v3562 = vpop.xlane.xlu0 %3561
      %v3563 = vsub.f32 %v3559, %v3562
      %v3564 = vmul.f32 %v3563, 1.442695
      %v3565 = vpow.pop %v3564
      %v3566 = vsel %vm1768, %v3565, 0.0
      %3567 = vadd.xlane.f32.xlu0 %v3566
      %v3568 = vpop.xlane.xlu0 %3567
      %v3569 = vrcp.pop %v3568
      %3570 = vrot.lane.b32.xlu0 %v2739, 68
      %v3571 = vpop.permute.xlu0 %3570
      %3572 = vrot.lane.b32.xlu0 %v2742, 68
      %v3573 = vpop.permute.xlu0 %3572
      %3574 = vrot.lane.b32.xlu0 %v2745, 68
      %v3575 = vpop.permute.xlu0 %3574
      %3576 = vrot.lane.b32.xlu0 %v2748, 68
      %v3577 = vpop.permute.xlu0 %3576
      %3578 = vrot.lane.b32.xlu0 %v2751, 68
      %v3579 = vpop.permute.xlu0 %3578
      %3580 = vrot.lane.b32.xlu0 %v2754, 68
      %v3581 = vpop.permute.xlu0 %3580
      %3582 = vrot.lane.b32.xlu0 %v2757, 68
      %v3583 = vpop.permute.xlu0 %3582
      %v3592 = vsel %vm1800, %v3565, 0
      %3594 = vmatpush.msra.mxu0 0.0
      %3595 = vmatpush.msra.mxu0 0.0
      %3596 = vmatpush.msra.mxu0 0.0
      %3597 = vmatpush.msra.mxu0 0.0
      %3598 = vmatpush.msra.mxu0 0.0
      %3599 = vmatpush.msra.mxu0 0.0
      %3600 = vmatpush.msra.mxu0 0.0
      %3601 = vmatpush.msra.mxu0 0.0
      %3602 = vmatpush.msra.mxu0 0.0
      %3603 = vmatpush.msra.mxu0 %v3583
      %3604 = vmatpush.msra.mxu0 %v3581
      %3605 = vmatpush.msra.mxu0 %v3579
      %3606 = vmatpush.msra.mxu0 %v3577
      %3607 = vmatpush.msra.mxu0 %v3575
      %3608 = vmatpush.msra.mxu0 %v3573
      %3609 = vmatpush.msra.mxu0 %v3571
      %3610 = vmatmul.f32.gmra.mxu0 %v3592
      %v3611 = vpop.f32.mrf.mxu0
      %v3612 = vadd.f32 0.0, %v3611
      %3613 = vdwg.mxu0
      %v3614 = vmul.f32 %v3612, %v3569
      %3616 = vrot.lane.b32.xlu0 %v2966, 4
      %v3617 = vpop.permute.xlu0 %3616
      %3620 = vrot.lane.b32.xlu0 %v3074, 8
      %v3621 = vpop.permute.xlu0 %3620
      %3624 = vrot.lane.b32.xlu0 %v3182, 12
      %v3625 = vpop.permute.xlu0 %3624
      %3628 = vrot.lane.b32.xlu0 %v3290, 16
      %v3629 = vpop.permute.xlu0 %3628
      %3632 = vrot.lane.b32.xlu0 %v3398, 20
      %v3633 = vpop.permute.xlu0 %3632
      %3636 = vrot.lane.b32.xlu0 %v3506, 24
      %v3637 = vpop.permute.xlu0 %3636
      %3640 = vrot.lane.b32.xlu0 %v3614, 28
      %v3641 = vpop.permute.xlu0 %3640
      %v3643 = vsel %vm1722, %v2858, %v3617
      %v3644 = vsel %vm2610, %v3643, %v3621
      %v3645 = vsel %vm2612, %v3644, %v3625
      %v3646 = vsel %vm2614, %v3645, %v3629
      %v3647 = vsel %vm2616, %v3646, %v3633
      %v3648 = vsel %vm2618, %v3647, %v3637
      %v3649 = vsel %vm2620, %v3648, %v3641
      %v3650 = vperm.slane %v2658, 0
      %v3652 = vsel %vm809, %v3649, 0
      %3654 = vmatpush.msra.mxu0 0.0
      %3655 = vmatpush.msra.mxu0 0.0
      %3656 = vmatpush.msra.mxu0 0.0
      %3657 = vmatpush.msra.mxu0 0.0
      %3658 = vmatpush.msra.mxu0 0.0
      %3659 = vmatpush.msra.mxu0 0.0
      %3660 = vmatpush.msra.mxu0 0.0
      %3661 = vmatpush.msra.mxu0 0.0
      %3662 = vmatpush.msra.mxu0 0.0
      %3663 = vmatpush.msra.mxu0 0.0
      %3664 = vmatpush.msra.mxu0 0.0
      %3665 = vmatpush.msra.mxu0 0.0
      %3666 = vmatpush.msra.mxu0 %v2657
      %3667 = vmatpush.msra.mxu0 %v2656
      %3668 = vmatpush.msra.mxu0 %v2655
      %3669 = vmatpush.msra.mxu0 %v2654
      %3670 = vmatmul.f32.gmra.mxu0 %v3652
      %v3671 = vpop.f32.mrf.mxu0
      %v3672 = vadd.f32 %v3650, %v3671
      %3673 = vdwg.mxu0
      %v3674 = vadd.f32 %v2646, %v3672
      %v3675 = vld [vmem:[%s11 + $0x3] sm:$0x1]
      %v3676 = vld [vmem:[%s12 + $0x3] sm:$0x1]
      %v3677 = vsel %vm1582, %v3674, 0.0
      %3678 = vadd.xlane.f32.xlu0 %v3677
      %v3679 = vpop.xlane.xlu0 %3678
      %v3680 = vmul.f32 %v3679, 0.03125
      %v3681 = vsub.f32 %v3674, %v3680
      %v3682 = vmul.f32 %v3681, %v3681
      %v3683 = vsel %vm1582, %v3682, 0.0
      %3684 = vadd.xlane.f32.xlu0 %v3683
      %v3685 = vpop.xlane.xlu0 %3684
      %v3686 = vmul.f32 %v3685, 0.03125
      %v3687 = vadd.f32 %v3686, 1e-05
      %v3688 = vrsqrt.pop %v3687
      %v3689 = vmul.f32 %v3688, %v3687
      %v3690 = vmul.f32 %v3689, %v3688
      %v3691 = vmul.f32 0.5, %v3690
      %v3692 = vsub.f32 1.5, %v3691
      %v3693 = vmul.f32 %v3688, %v3692
      %vm3694 = vweird.f32 %v3687
      %vm3695 = vweird.f32 %v3688
      %vm3696 = vmor %vm3694, %vm3695
      %v3697 = vsel %vm3696, %v3688, %v3693
      %v3698 = vmul.f32 %v3681, %v3697
      %v3699 = vperm.slane %v3675, 0
      %v3700 = vmul.f32 %v3698, %v3699
      %v3701 = vperm.slane %v3676, 0
      %v3702 = vadd.f32 %v3700, %v3701
      %s3703 = scalar_lea.vmem %s13, 64
      %v3704 = vld [vmem:[%s3703] sm:$0xff]
      %v3705 = vld [vmem:[%s3703 + $0x8] sm:$0xff]
      %v3706 = vld [vmem:[%s3703 + $0x10] sm:$0xff]
      %v3707 = vld [vmem:[%s3703 + $0x18] sm:$0xff]
      %v3708 = vld [vmem:[%s14 + $0x2] sm:$0x1]
      %s3709 = scalar_lea.vmem %s15, 64
      %v3710 = vld [vmem:[%s3709] sm:$0xff]
      %v3711 = vld [vmem:[%s3709 + $0x8] sm:$0xff]
      %v3712 = vld [vmem:[%s3709 + $0x10] sm:$0xff]
      %v3713 = vld [vmem:[%s3709 + $0x18] sm:$0xff]
      %v3714 = vld [vmem:[%s16 + $0x2] sm:$0x1]
      %v3715 = vperm.slane %v3708, 0
      %3716 = vmatpush.msra.mxu0 0.0
      %3717 = vmatpush.msra.mxu0 0.0
      %3718 = vmatpush.msra.mxu0 0.0
      %3719 = vmatpush.msra.mxu0 0.0
      %3720 = vmatpush.msra.mxu0 0.0
      %3721 = vmatpush.msra.mxu0 0.0
      %3722 = vmatpush.msra.mxu0 0.0
      %3723 = vmatpush.msra.mxu0 0.0
      %3724 = vmatpush.msra.mxu0 0.0
      %3725 = vmatpush.msra.mxu0 0.0
      %3726 = vmatpush.msra.mxu0 0.0
      %3727 = vmatpush.msra.mxu0 0.0
      %3728 = vmatpush.msra.mxu0 %v3707
      %3729 = vmatpush.msra.mxu0 %v3706
      %3730 = vmatpush.msra.mxu0 %v3705
      %3731 = vmatpush.msra.mxu0 %v3704
      %3732 = vmatmul.f32.gmra.mxu0 %v1664
      %v3733 = vpop.f32.mrf.mxu0
      %v3734 = vadd.f32 %v3715, %v3733
      %3735 = vmatmul.f32.gmra.mxu0 %v1667
      %v3736 = vpop.f32.mrf.mxu0
      %v3737 = vadd.f32 %v3715, %v3736
      %3738 = vmatmul.f32.gmra.mxu0 %v1670
      %v3739 = vpop.f32.mrf.mxu0
      %v3740 = vadd.f32 %v3715, %v3739
      %3741 = vmatmul.f32.gmra.mxu0 %v1673
      %v3742 = vpop.f32.mrf.mxu0
      %v3743 = vadd.f32 %v3715, %v3742
      %3744 = vmatmul.f32.gmra.mxu0 %v1676
      %v3745 = vpop.f32.mrf.mxu0
      %v3746 = vadd.f32 %v3715, %v3745
      %3747 = vmatmul.f32.gmra.mxu0 %v1679
      %v3748 = vpop.f32.mrf.mxu0
      %v3749 = vadd.f32 %v3715, %v3748
      %3750 = vmatmul.f32.gmra.mxu0 %v1682
      %v3751 = vpop.f32.mrf.mxu0
      %v3752 = vadd.f32 %v3715, %v3751
      %3753 = vdwg.mxu0
      %3758 = vrot.lane.b32.xlu0 %v3704, 96
      %v3759 = vpop.permute.xlu0 %3758
      %3760 = vrot.lane.b32.xlu0 %v3705, 96
      %v3761 = vpop.permute.xlu0 %3760
      %3762 = vrot.lane.b32.xlu0 %v3706, 96
      %v3763 = vpop.permute.xlu0 %3762
      %3764 = vrot.lane.b32.xlu0 %v3707, 96
      %v3765 = vpop.permute.xlu0 %3764
      %3771 = vrot.lane.b32.xlu0 %v3715, 96
      %v3772 = vpop.permute.xlu0 %3771
      %v3775 = vsel %vm809, %v3702, 0
      %3777 = vmatpush.msra.mxu0 0.0
      %3778 = vmatpush.msra.mxu0 0.0
      %3779 = vmatpush.msra.mxu0 0.0
      %3780 = vmatpush.msra.mxu0 0.0
      %3781 = vmatpush.msra.mxu0 0.0
      %3782 = vmatpush.msra.mxu0 0.0
      %3783 = vmatpush.msra.mxu0 0.0
      %3784 = vmatpush.msra.mxu0 0.0
      %3785 = vmatpush.msra.mxu0 0.0
      %3786 = vmatpush.msra.mxu0 0.0
      %3787 = vmatpush.msra.mxu0 0.0
      %3788 = vmatpush.msra.mxu0 0.0
      %3789 = vmatpush.msra.mxu0 %v3765
      %3790 = vmatpush.msra.mxu0 %v3763
      %3791 = vmatpush.msra.mxu0 %v3761
      %3792 = vmatpush.msra.mxu0 %v3759
      %3793 = vmatmul.f32.gmra.mxu0 %v3775
      %v3794 = vpop.f32.mrf.mxu0
      %v3795 = vadd.f32 %v3772, %v3794
      %3796 = vdwg.mxu0
      %v3798 = vsel %vm1722, %v3734, 0
      %v3801 = vsel %vm1722, %v3737, 0
      %v3804 = vsel %vm1722, %v3740, 0
      %v3807 = vsel %vm1722, %v3743, 0
      %v3810 = vsel %vm1722, %v3746, 0
      %v3813 = vsel %vm1722, %v3749, 0
      %v3816 = vsel %vm1722, %v3752, 0
      %v3819 = vsel %vm1722, %v3795, 0
      %3821 = vmatpush.xpose.msra.mxu0 0.0
      %3822 = vmatpush.xpose.msra.mxu0 0.0
      %3823 = vmatpush.xpose.msra.mxu0 0.0
      %3824 = vmatpush.xpose.msra.mxu0 0.0
      %3825 = vmatpush.xpose.msra.mxu0 0.0
      %3826 = vmatpush.xpose.msra.mxu0 0.0
      %3827 = vmatpush.xpose.msra.mxu0 0.0
      %3828 = vmatpush.xpose.msra.mxu0 0.0
      %3829 = vmatpush.xpose.msra.mxu0 0.0
      %3830 = vmatpush.xpose.msra.mxu0 0.0
      %3831 = vmatpush.xpose.msra.mxu0 0.0
      %3832 = vmatpush.xpose.msra.mxu0 0.0
      %3833 = vmatpush.xpose.msra.mxu0 0.0
      %3834 = vmatpush.xpose.msra.mxu0 0.0
      %3835 = vmatpush.xpose.msra.mxu0 0.0
      %3836 = vmatpush.xpose.msra.mxu0 %v3819
      %3837 = vmatmul.f32.gmra.mxu0 %v3798
      %v3838 = vpop.f32.mrf.mxu0
      %v3839 = vadd.f32 0.0, %v3838
      %3840 = vmatmul.f32.gmra.mxu0 %v3801
      %v3841 = vpop.f32.mrf.mxu0
      %v3842 = vadd.f32 0.0, %v3841
      %3843 = vmatmul.f32.gmra.mxu0 %v3804
      %v3844 = vpop.f32.mrf.mxu0
      %v3845 = vadd.f32 0.0, %v3844
      %3846 = vmatmul.f32.gmra.mxu0 %v3807
      %v3847 = vpop.f32.mrf.mxu0
      %v3848 = vadd.f32 0.0, %v3847
      %3849 = vmatmul.f32.gmra.mxu0 %v3810
      %v3850 = vpop.f32.mrf.mxu0
      %v3851 = vadd.f32 0.0, %v3850
      %3852 = vmatmul.f32.gmra.mxu0 %v3813
      %v3853 = vpop.f32.mrf.mxu0
      %v3854 = vadd.f32 0.0, %v3853
      %3855 = vmatmul.f32.gmra.mxu0 %v3816
      %v3856 = vpop.f32.mrf.mxu0
      %v3857 = vadd.f32 0.0, %v3856
      %3858 = vdwg.mxu0
      %v3859 = vmul.f32 %v3839, 0.5
      %v3860 = vmul.f32 %v3842, 0.5
      %v3861 = vmul.f32 %v3845, 0.5
      %v3862 = vmul.f32 %v3848, 0.5
      %v3863 = vmul.f32 %v3851, 0.5
      %v3864 = vmul.f32 %v3854, 0.5
      %v3865 = vmul.f32 %v3857, 0.5
      %v3866 = vsel %vm1722, %v3859, -inf
      %3867 = vmax.xlane.f32.xlu0 %v3866
      %v3868 = vpop.xlane.xlu0 %3867
      %v3869 = vsel %vm1722, %v3860, -inf
      %3870 = vmax.xlane.f32.xlu0 %v3869
      %v3871 = vpop.xlane.xlu0 %3870
      %v3872 = vsel %vm1722, %v3861, -inf
      %3873 = vmax.xlane.f32.xlu0 %v3872
      %v3874 = vpop.xlane.xlu0 %3873
      %v3875 = vsel %vm1722, %v3862, -inf
      %3876 = vmax.xlane.f32.xlu0 %v3875
      %v3877 = vpop.xlane.xlu0 %3876
      %v3878 = vsel %vm1722, %v3863, -inf
      %3879 = vmax.xlane.f32.xlu0 %v3878
      %v3880 = vpop.xlane.xlu0 %3879
      %v3881 = vsel %vm1722, %v3864, -inf
      %3882 = vmax.xlane.f32.xlu0 %v3881
      %v3883 = vpop.xlane.xlu0 %3882
      %v3884 = vsel %vm1722, %v3865, -inf
      %3885 = vmax.xlane.f32.xlu0 %v3884
      %v3886 = vpop.xlane.xlu0 %3885
      %v3887 = vsub.f32 %v3859, %v3868
      %v3888 = vsub.f32 %v3860, %v3871
      %v3889 = vsub.f32 %v3861, %v3874
      %v3890 = vsub.f32 %v3862, %v3877
      %v3891 = vsub.f32 %v3863, %v3880
      %v3892 = vsub.f32 %v3864, %v3883
      %v3893 = vsub.f32 %v3865, %v3886
      %v3894 = vmul.f32 %v3887, 1.442695
      %v3895 = vpow.pop %v3894
      %v3896 = vmul.f32 %v3888, 1.442695
      %v3897 = vpow.pop %v3896
      %v3898 = vmul.f32 %v3889, 1.442695
      %v3899 = vpow.pop %v3898
      %v3900 = vmul.f32 %v3890, 1.442695
      %v3901 = vpow.pop %v3900
      %v3902 = vmul.f32 %v3891, 1.442695
      %v3903 = vpow.pop %v3902
      %v3904 = vmul.f32 %v3892, 1.442695
      %v3905 = vpow.pop %v3904
      %v3906 = vmul.f32 %v3893, 1.442695
      %v3907 = vpow.pop %v3906
      %v3908 = vsel %vm1722, %v3895, 0.0
      %3909 = vadd.xlane.f32.xlu0 %v3908
      %v3910 = vpop.xlane.xlu0 %3909
      %v3911 = vsel %vm1722, %v3897, 0.0
      %3912 = vadd.xlane.f32.xlu0 %v3911
      %v3913 = vpop.xlane.xlu0 %3912
      %v3914 = vsel %vm1722, %v3899, 0.0
      %3915 = vadd.xlane.f32.xlu0 %v3914
      %v3916 = vpop.xlane.xlu0 %3915
      %v3917 = vsel %vm1722, %v3901, 0.0
      %3918 = vadd.xlane.f32.xlu0 %v3917
      %v3919 = vpop.xlane.xlu0 %3918
      %v3920 = vsel %vm1722, %v3903, 0.0
      %3921 = vadd.xlane.f32.xlu0 %v3920
      %v3922 = vpop.xlane.xlu0 %3921
      %v3923 = vsel %vm1722, %v3905, 0.0
      %3924 = vadd.xlane.f32.xlu0 %v3923
      %v3925 = vpop.xlane.xlu0 %3924
      %v3926 = vsel %vm1722, %v3907, 0.0
      %3927 = vadd.xlane.f32.xlu0 %v3926
      %v3928 = vpop.xlane.xlu0 %3927
      %v3929 = vrcp.pop %v3910
      %v3930 = vrcp.pop %v3913
      %v3931 = vrcp.pop %v3916
      %v3932 = vrcp.pop %v3919
      %v3933 = vrcp.pop %v3922
      %v3934 = vrcp.pop %v3925
      %v3935 = vrcp.pop %v3928
      %3936 = vrot.lane.b32.xlu0 %v3795, 96
      %v3937 = vpop.permute.xlu0 %3936
      %v3939 = vsel %vm1722, %v3895, 0
      %v3942 = vsel %vm1722, %v3897, 0
      %v3945 = vsel %vm1722, %v3899, 0
      %v3948 = vsel %vm1722, %v3901, 0
      %v3951 = vsel %vm1722, %v3903, 0
      %v3954 = vsel %vm1722, %v3905, 0
      %v3957 = vsel %vm1722, %v3907, 0
      %vm3959 = vcmask 1043456
      %v3960 = vsel %vm3959, %v3937, 0
      %3962 = vmatpush.msra.mxu0 0.0
      %3963 = vmatpush.msra.mxu0 0.0
      %3964 = vmatpush.msra.mxu0 0.0
      %3965 = vmatpush.msra.mxu0 0.0
      %3966 = vmatpush.msra.mxu0 0.0
      %3967 = vmatpush.msra.mxu0 0.0
      %3968 = vmatpush.msra.mxu0 0.0
      %3969 = vmatpush.msra.mxu0 0.0
      %3970 = vmatpush.msra.mxu0 0.0
      %3971 = vmatpush.msra.mxu0 0.0
      %3972 = vmatpush.msra.mxu0 0.0
      %3973 = vmatpush.msra.mxu0 0.0
      %3974 = vmatpush.msra.mxu0 0.0
      %3975 = vmatpush.msra.mxu0 0.0
      %3976 = vmatpush.msra.mxu0 0.0
      %3977 = vmatpush.msra.mxu0 %v3960
      %3978 = vmatmul.f32.gmra.mxu0 %v3939
      %v3979 = vpop.f32.mrf.mxu0
      %v3980 = vadd.f32 0.0, %v3979
      %3981 = vmatmul.f32.gmra.mxu0 %v3942
      %v3982 = vpop.f32.mrf.mxu0
      %v3983 = vadd.f32 0.0, %v3982
      %3984 = vmatmul.f32.gmra.mxu0 %v3945
      %v3985 = vpop.f32.mrf.mxu0
      %v3986 = vadd.f32 0.0, %v3985
      %3987 = vmatmul.f32.gmra.mxu0 %v3948
      %v3988 = vpop.f32.mrf.mxu0
      %v3989 = vadd.f32 0.0, %v3988
      %3990 = vmatmul.f32.gmra.mxu0 %v3951
      %v3991 = vpop.f32.mrf.mxu0
      %v3992 = vadd.f32 0.0, %v3991
      %3993 = vmatmul.f32.gmra.mxu0 %v3954
      %v3994 = vpop.f32.mrf.mxu0
      %v3995 = vadd.f32 0.0, %v3994
      %3996 = vmatmul.f32.gmra.mxu0 %v3957
      %v3997 = vpop.f32.mrf.mxu0
      %v3998 = vadd.f32 0.0, %v3997
      %3999 = vdwg.mxu0
      %v4000 = vmul.f32 %v3980, %v3929
      %v4001 = vmul.f32 %v3983, %v3930
      %v4002 = vmul.f32 %v3986, %v3931
      %v4003 = vmul.f32 %v3989, %v3932
      %v4004 = vmul.f32 %v3992, %v3933
      %v4005 = vmul.f32 %v3995, %v3934
      %v4006 = vmul.f32 %v3998, %v3935
      %4007 = vrot.lane.b32.xlu0 %v3734, 124
      %v4008 = vpop.permute.xlu0 %4007
      %4009 = vrot.lane.b32.xlu0 %v3737, 124
      %v4010 = vpop.permute.xlu0 %4009
      %4011 = vrot.lane.b32.xlu0 %v3740, 124
      %v4012 = vpop.permute.xlu0 %4011
      %4013 = vrot.lane.b32.xlu0 %v3743, 124
      %v4014 = vpop.permute.xlu0 %4013
      %4015 = vrot.lane.b32.xlu0 %v3746, 124
      %v4016 = vpop.permute.xlu0 %4015
      %4017 = vrot.lane.b32.xlu0 %v3749, 124
      %v4018 = vpop.permute.xlu0 %4017
      %4019 = vrot.lane.b32.xlu0 %v3752, 124
      %v4020 = vpop.permute.xlu0 %4019
      %4021 = vrot.lane.b32.xlu0 %v3795, 124
      %v4022 = vpop.permute.xlu0 %4021
      %v4023 = vsel %vm1722, %v4008, 0
      %v4025 = vsel %vm1722, %v4010, 0
      %v4027 = vsel %vm1722, %v4012, 0
      %v4029 = vsel %vm1722, %v4014, 0
      %v4031 = vsel %vm1722, %v4016, 0
      %v4033 = vsel %vm1722, %v4018, 0
      %v4035 = vsel %vm1722, %v4020, 0
      %v4037 = vsel %vm1722, %v4022, 0
      %4039 = vmatpush.xpose.msra.mxu0 0.0
      %4040 = vmatpush.xpose.msra.mxu0 0.0
      %4041 = vmatpush.xpose.msra.mxu0 0.0
      %4042 = vmatpush.xpose.msra.mxu0 0.0
      %4043 = vmatpush.xpose.msra.mxu0 0.0
      %4044 = vmatpush.xpose.msra.mxu0 0.0
      %4045 = vmatpush.xpose.msra.mxu0 0.0
      %4046 = vmatpush.xpose.msra.mxu0 0.0
      %4047 = vmatpush.xpose.msra.mxu0 0.0
      %4048 = vmatpush.xpose.msra.mxu0 0.0
      %4049 = vmatpush.xpose.msra.mxu0 0.0
      %4050 = vmatpush.xpose.msra.mxu0 0.0
      %4051 = vmatpush.xpose.msra.mxu0 0.0
      %4052 = vmatpush.xpose.msra.mxu0 0.0
      %4053 = vmatpush.xpose.msra.mxu0 0.0
      %4054 = vmatpush.xpose.msra.mxu0 %v4037
      %4055 = vmatmul.f32.gmra.mxu0 %v4023
      %v4056 = vpop.f32.mrf.mxu0
      %v4057 = vadd.f32 0.0, %v4056
      %4058 = vmatmul.f32.gmra.mxu0 %v4025
      %v4059 = vpop.f32.mrf.mxu0
      %v4060 = vadd.f32 0.0, %v4059
      %4061 = vmatmul.f32.gmra.mxu0 %v4027
      %v4062 = vpop.f32.mrf.mxu0
      %v4063 = vadd.f32 0.0, %v4062
      %4064 = vmatmul.f32.gmra.mxu0 %v4029
      %v4065 = vpop.f32.mrf.mxu0
      %v4066 = vadd.f32 0.0, %v4065
      %4067 = vmatmul.f32.gmra.mxu0 %v4031
      %v4068 = vpop.f32.mrf.mxu0
      %v4069 = vadd.f32 0.0, %v4068
      %4070 = vmatmul.f32.gmra.mxu0 %v4033
      %v4071 = vpop.f32.mrf.mxu0
      %v4072 = vadd.f32 0.0, %v4071
      %4073 = vmatmul.f32.gmra.mxu0 %v4035
      %v4074 = vpop.f32.mrf.mxu0
      %v4075 = vadd.f32 0.0, %v4074
      %4076 = vdwg.mxu0
      %v4077 = vmul.f32 %v4057, 0.5
      %v4078 = vmul.f32 %v4060, 0.5
      %v4079 = vmul.f32 %v4063, 0.5
      %v4080 = vmul.f32 %v4066, 0.5
      %v4081 = vmul.f32 %v4069, 0.5
      %v4082 = vmul.f32 %v4072, 0.5
      %v4083 = vmul.f32 %v4075, 0.5
      %v4084 = vsel %vm1722, %v4077, -inf
      %4085 = vmax.xlane.f32.xlu0 %v4084
      %v4086 = vpop.xlane.xlu0 %4085
      %v4087 = vsel %vm1722, %v4078, -inf
      %4088 = vmax.xlane.f32.xlu0 %v4087
      %v4089 = vpop.xlane.xlu0 %4088
      %v4090 = vsel %vm1722, %v4079, -inf
      %4091 = vmax.xlane.f32.xlu0 %v4090
      %v4092 = vpop.xlane.xlu0 %4091
      %v4093 = vsel %vm1722, %v4080, -inf
      %4094 = vmax.xlane.f32.xlu0 %v4093
      %v4095 = vpop.xlane.xlu0 %4094
      %v4096 = vsel %vm1722, %v4081, -inf
      %4097 = vmax.xlane.f32.xlu0 %v4096
      %v4098 = vpop.xlane.xlu0 %4097
      %v4099 = vsel %vm1722, %v4082, -inf
      %4100 = vmax.xlane.f32.xlu0 %v4099
      %v4101 = vpop.xlane.xlu0 %4100
      %v4102 = vsel %vm1722, %v4083, -inf
      %4103 = vmax.xlane.f32.xlu0 %v4102
      %v4104 = vpop.xlane.xlu0 %4103
      %v4105 = vsub.f32 %v4077, %v4086
      %v4106 = vsub.f32 %v4078, %v4089
      %v4107 = vsub.f32 %v4079, %v4092
      %v4108 = vsub.f32 %v4080, %v4095
      %v4109 = vsub.f32 %v4081, %v4098
      %v4110 = vsub.f32 %v4082, %v4101
      %v4111 = vsub.f32 %v4083, %v4104
      %v4112 = vmul.f32 %v4105, 1.442695
      %v4113 = vpow.pop %v4112
      %v4114 = vmul.f32 %v4106, 1.442695
      %v4115 = vpow.pop %v4114
      %v4116 = vmul.f32 %v4107, 1.442695
      %v4117 = vpow.pop %v4116
      %v4118 = vmul.f32 %v4108, 1.442695
      %v4119 = vpow.pop %v4118
      %v4120 = vmul.f32 %v4109, 1.442695
      %v4121 = vpow.pop %v4120
      %v4122 = vmul.f32 %v4110, 1.442695
      %v4123 = vpow.pop %v4122
      %v4124 = vmul.f32 %v4111, 1.442695
      %v4125 = vpow.pop %v4124
      %v4126 = vsel %vm1722, %v4113, 0.0
      %4127 = vadd.xlane.f32.xlu0 %v4126
      %v4128 = vpop.xlane.xlu0 %4127
      %v4129 = vsel %vm1722, %v4115, 0.0
      %4130 = vadd.xlane.f32.xlu0 %v4129
      %v4131 = vpop.xlane.xlu0 %4130
      %v4132 = vsel %vm1722, %v4117, 0.0
      %4133 = vadd.xlane.f32.xlu0 %v4132
      %v4134 = vpop.xlane.xlu0 %4133
      %v4135 = vsel %vm1722, %v4119, 0.0
      %4136 = vadd.xlane.f32.xlu0 %v4135
      %v4137 = vpop.xlane.xlu0 %4136
      %v4138 = vsel %vm1722, %v4121, 0.0
      %4139 = vadd.xlane.f32.xlu0 %v4138
      %v4140 = vpop.xlane.xlu0 %4139
      %v4141 = vsel %vm1722, %v4123, 0.0
      %4142 = vadd.xlane.f32.xlu0 %v4141
      %v4143 = vpop.xlane.xlu0 %4142
      %v4144 = vsel %vm1722, %v4125, 0.0
      %4145 = vadd.xlane.f32.xlu0 %v4144
      %v4146 = vpop.xlane.xlu0 %4145
      %v4147 = vrcp.pop %v4128
      %v4148 = vrcp.pop %v4131
      %v4149 = vrcp.pop %v4134
      %v4150 = vrcp.pop %v4137
      %v4151 = vrcp.pop %v4140
      %v4152 = vrcp.pop %v4143
      %v4153 = vrcp.pop %v4146
      %4154 = vrot.lane.b32.xlu0 %v3795, 92
      %v4155 = vpop.permute.xlu0 %4154
      %v4157 = vsel %vm1722, %v4113, 0
      %v4160 = vsel %vm1722, %v4115, 0
      %v4163 = vsel %vm1722, %v4117, 0
      %v4166 = vsel %vm1722, %v4119, 0
      %v4169 = vsel %vm1722, %v4121, 0
      %v4172 = vsel %vm1722, %v4123, 0
      %v4175 = vsel %vm1722, %v4125, 0
      %v4177 = vsel %vm3959, %v4155, 0
      %4179 = vmatpush.msra.mxu0 0.0
      %4180 = vmatpush.msra.mxu0 0.0
      %4181 = vmatpush.msra.mxu0 0.0
      %4182 = vmatpush.msra.mxu0 0.0
      %4183 = vmatpush.msra.mxu0 0.0
      %4184 = vmatpush.msra.mxu0 0.0
      %4185 = vmatpush.msra.mxu0 0.0
      %4186 = vmatpush.msra.mxu0 0.0
      %4187 = vmatpush.msra.mxu0 0.0
      %4188 = vmatpush.msra.mxu0 0.0
      %4189 = vmatpush.msra.mxu0 0.0
      %4190 = vmatpush.msra.mxu0 0.0
      %4191 = vmatpush.msra.mxu0 0.0
      %4192 = vmatpush.msra.mxu0 0.0
      %4193 = vmatpush.msra.mxu0 0.0
      %4194 = vmatpush.msra.mxu0 %v4177
      %4195 = vmatmul.f32.gmra.mxu0 %v4157
      %v4196 = vpop.f32.mrf.mxu0
      %v4197 = vadd.f32 0.0, %v4196
      %4198 = vmatmul.f32.gmra.mxu0 %v4160
      %v4199 = vpop.f32.mrf.mxu0
      %v4200 = vadd.f32 0.0, %v4199
      %4201 = vmatmul.f32.gmra.mxu0 %v4163
      %v4202 = vpop.f32.mrf.mxu0
      %v4203 = vadd.f32 0.0, %v4202
      %4204 = vmatmul.f32.gmra.mxu0 %v4166
      %v4205 = vpop.f32.mrf.mxu0
      %v4206 = vadd.f32 0.0, %v4205
      %4207 = vmatmul.f32.gmra.mxu0 %v4169
      %v4208 = vpop.f32.mrf.mxu0
      %v4209 = vadd.f32 0.0, %v4208
      %4210 = vmatmul.f32.gmra.mxu0 %v4172
      %v4211 = vpop.f32.mrf.mxu0
      %v4212 = vadd.f32 0.0, %v4211
      %4213 = vmatmul.f32.gmra.mxu0 %v4175
      %v4214 = vpop.f32.mrf.mxu0
      %v4215 = vadd.f32 0.0, %v4214
      %4216 = vdwg.mxu0
      %v4217 = vmul.f32 %v4197, %v4147
      %v4218 = vmul.f32 %v4200, %v4148
      %v4219 = vmul.f32 %v4203, %v4149
      %v4220 = vmul.f32 %v4206, %v4150
      %v4221 = vmul.f32 %v4209, %v4151
      %v4222 = vmul.f32 %v4212, %v4152
      %v4223 = vmul.f32 %v4215, %v4153
      %4224 = vrot.lane.b32.xlu0 %v3734, 120
      %v4225 = vpop.permute.xlu0 %4224
      %4226 = vrot.lane.b32.xlu0 %v3737, 120
      %v4227 = vpop.permute.xlu0 %4226
      %4228 = vrot.lane.b32.xlu0 %v3740, 120
      %v4229 = vpop.permute.xlu0 %4228
      %4230 = vrot.lane.b32.xlu0 %v3743, 120
      %v4231 = vpop.permute.xlu0 %4230
      %4232 = vrot.lane.b32.xlu0 %v3746, 120
      %v4233 = vpop.permute.xlu0 %4232
      %4234 = vrot.lane.b32.xlu0 %v3749, 120
      %v4235 = vpop.permute.xlu0 %4234
      %4236 = vrot.lane.b32.xlu0 %v3752, 120
      %v4237 = vpop.permute.xlu0 %4236
      %4238 = vrot.lane.b32.xlu0 %v3795, 120
      %v4239 = vpop.permute.xlu0 %4238
      %v4240 = vsel %vm1722, %v4225, 0
      %v4242 = vsel %vm1722, %v4227, 0
      %v4244 = vsel %vm1722, %v4229, 0
      %v4246 = vsel %vm1722, %v4231, 0
      %v4248 = vsel %vm1722, %v4233, 0
      %v4250 = vsel %vm1722, %v4235, 0
      %v4252 = vsel %vm1722, %v4237, 0
      %v4254 = vsel %vm1722, %v4239, 0
      %4256 = vmatpush.xpose.msra.mxu0 0.0
      %4257 = vmatpush.xpose.msra.mxu0 0.0
      %4258 = vmatpush.xpose.msra.mxu0 0.0
      %4259 = vmatpush.xpose.msra.mxu0 0.0
      %4260 = vmatpush.xpose.msra.mxu0 0.0
      %4261 = vmatpush.xpose.msra.mxu0 0.0
      %4262 = vmatpush.xpose.msra.mxu0 0.0
      %4263 = vmatpush.xpose.msra.mxu0 0.0
      %4264 = vmatpush.xpose.msra.mxu0 0.0
      %4265 = vmatpush.xpose.msra.mxu0 0.0
      %4266 = vmatpush.xpose.msra.mxu0 0.0
      %4267 = vmatpush.xpose.msra.mxu0 0.0
      %4268 = vmatpush.xpose.msra.mxu0 0.0
      %4269 = vmatpush.xpose.msra.mxu0 0.0
      %4270 = vmatpush.xpose.msra.mxu0 0.0
      %4271 = vmatpush.xpose.msra.mxu0 %v4254
      %4272 = vmatmul.f32.gmra.mxu0 %v4240
      %v4273 = vpop.f32.mrf.mxu0
      %v4274 = vadd.f32 0.0, %v4273
      %4275 = vmatmul.f32.gmra.mxu0 %v4242
      %v4276 = vpop.f32.mrf.mxu0
      %v4277 = vadd.f32 0.0, %v4276
      %4278 = vmatmul.f32.gmra.mxu0 %v4244
      %v4279 = vpop.f32.mrf.mxu0
      %v4280 = vadd.f32 0.0, %v4279
      %4281 = vmatmul.f32.gmra.mxu0 %v4246
      %v4282 = vpop.f32.mrf.mxu0
      %v4283 = vadd.f32 0.0, %v4282
      %4284 = vmatmul.f32.gmra.mxu0 %v4248
      %v4285 = vpop.f32.mrf.mxu0
      %v4286 = vadd.f32 0.0, %v4285
      %4287 = vmatmul.f32.gmra.mxu0 %v4250
      %v4288 = vpop.f32.mrf.mxu0
      %v4289 = vadd.f32 0.0, %v4288
      %4290 = vmatmul.f32.gmra.mxu0 %v4252
      %v4291 = vpop.f32.mrf.mxu0
      %v4292 = vadd.f32 0.0, %v4291
      %4293 = vdwg.mxu0
      %v4294 = vmul.f32 %v4274, 0.5
      %v4295 = vmul.f32 %v4277, 0.5
      %v4296 = vmul.f32 %v4280, 0.5
      %v4297 = vmul.f32 %v4283, 0.5
      %v4298 = vmul.f32 %v4286, 0.5
      %v4299 = vmul.f32 %v4289, 0.5
      %v4300 = vmul.f32 %v4292, 0.5
      %v4301 = vsel %vm1722, %v4294, -inf
      %4302 = vmax.xlane.f32.xlu0 %v4301
      %v4303 = vpop.xlane.xlu0 %4302
      %v4304 = vsel %vm1722, %v4295, -inf
      %4305 = vmax.xlane.f32.xlu0 %v4304
      %v4306 = vpop.xlane.xlu0 %4305
      %v4307 = vsel %vm1722, %v4296, -inf
      %4308 = vmax.xlane.f32.xlu0 %v4307
      %v4309 = vpop.xlane.xlu0 %4308
      %v4310 = vsel %vm1722, %v4297, -inf
      %4311 = vmax.xlane.f32.xlu0 %v4310
      %v4312 = vpop.xlane.xlu0 %4311
      %v4313 = vsel %vm1722, %v4298, -inf
      %4314 = vmax.xlane.f32.xlu0 %v4313
      %v4315 = vpop.xlane.xlu0 %4314
      %v4316 = vsel %vm1722, %v4299, -inf
      %4317 = vmax.xlane.f32.xlu0 %v4316
      %v4318 = vpop.xlane.xlu0 %4317
      %v4319 = vsel %vm1722, %v4300, -inf
      %4320 = vmax.xlane.f32.xlu0 %v4319
      %v4321 = vpop.xlane.xlu0 %4320
      %v4322 = vsub.f32 %v4294, %v4303
      %v4323 = vsub.f32 %v4295, %v4306
      %v4324 = vsub.f32 %v4296, %v4309
      %v4325 = vsub.f32 %v4297, %v4312
      %v4326 = vsub.f32 %v4298, %v4315
      %v4327 = vsub.f32 %v4299, %v4318
      %v4328 = vsub.f32 %v4300, %v4321
      %v4329 = vmul.f32 %v4322, 1.442695
      %v4330 = vpow.pop %v4329
      %v4331 = vmul.f32 %v4323, 1.442695
      %v4332 = vpow.pop %v4331
      %v4333 = vmul.f32 %v4324, 1.442695
      %v4334 = vpow.pop %v4333
      %v4335 = vmul.f32 %v4325, 1.442695
      %v4336 = vpow.pop %v4335
      %v4337 = vmul.f32 %v4326, 1.442695
      %v4338 = vpow.pop %v4337
      %v4339 = vmul.f32 %v4327, 1.442695
      %v4340 = vpow.pop %v4339
      %v4341 = vmul.f32 %v4328, 1.442695
      %v4342 = vpow.pop %v4341
      %v4343 = vsel %vm1722, %v4330, 0.0
      %4344 = vadd.xlane.f32.xlu0 %v4343
      %v4345 = vpop.xlane.xlu0 %4344
      %v4346 = vsel %vm1722, %v4332, 0.0
      %4347 = vadd.xlane.f32.xlu0 %v4346
      %v4348 = vpop.xlane.xlu0 %4347
      %v4349 = vsel %vm1722, %v4334, 0.0
      %4350 = vadd.xlane.f32.xlu0 %v4349
      %v4351 = vpop.xlane.xlu0 %4350
      %v4352 = vsel %vm1722, %v4336, 0.0
      %4353 = vadd.xlane.f32.xlu0 %v4352
      %v4354 = vpop.xlane.xlu0 %4353
      %v4355 = vsel %vm1722, %v4338, 0.0
      %4356 = vadd.xlane.f32.xlu0 %v4355
      %v4357 = vpop.xlane.xlu0 %4356
      %v4358 = vsel %vm1722, %v4340, 0.0
      %4359 = vadd.xlane.f32.xlu0 %v4358
      %v4360 = vpop.xlane.xlu0 %4359
      %v4361 = vsel %vm1722, %v4342, 0.0
      %4362 = vadd.xlane.f32.xlu0 %v4361
      %v4363 = vpop.xlane.xlu0 %4362
      %v4364 = vrcp.pop %v4345
      %v4365 = vrcp.pop %v4348
      %v4366 = vrcp.pop %v4351
      %v4367 = vrcp.pop %v4354
      %v4368 = vrcp.pop %v4357
      %v4369 = vrcp.pop %v4360
      %v4370 = vrcp.pop %v4363
      %4371 = vrot.lane.b32.xlu0 %v3795, 88
      %v4372 = vpop.permute.xlu0 %4371
      %v4374 = vsel %vm1722, %v4330, 0
      %v4377 = vsel %vm1722, %v4332, 0
      %v4380 = vsel %vm1722, %v4334, 0
      %v4383 = vsel %vm1722, %v4336, 0
      %v4386 = vsel %vm1722, %v4338, 0
      %v4389 = vsel %vm1722, %v4340, 0
      %v4392 = vsel %vm1722, %v4342, 0
      %v4394 = vsel %vm3959, %v4372, 0
      %4396 = vmatpush.msra.mxu0 0.0
      %4397 = vmatpush.msra.mxu0 0.0
      %4398 = vmatpush.msra.mxu0 0.0
      %4399 = vmatpush.msra.mxu0 0.0
      %4400 = vmatpush.msra.mxu0 0.0
      %4401 = vmatpush.msra.mxu0 0.0
      %4402 = vmatpush.msra.mxu0 0.0
      %4403 = vmatpush.msra.mxu0 0.0
      %4404 = vmatpush.msra.mxu0 0.0
      %4405 = vmatpush.msra.mxu0 0.0
      %4406 = vmatpush.msra.mxu0 0.0
      %4407 = vmatpush.msra.mxu0 0.0
      %4408 = vmatpush.msra.mxu0 0.0
      %4409 = vmatpush.msra.mxu0 0.0
      %4410 = vmatpush.msra.mxu0 0.0
      %4411 = vmatpush.msra.mxu0 %v4394
      %4412 = vmatmul.f32.gmra.mxu0 %v4374
      %v4413 = vpop.f32.mrf.mxu0
      %v4414 = vadd.f32 0.0, %v4413
      %4415 = vmatmul.f32.gmra.mxu0 %v4377
      %v4416 = vpop.f32.mrf.mxu0
      %v4417 = vadd.f32 0.0, %v4416
      %4418 = vmatmul.f32.gmra.mxu0 %v4380
      %v4419 = vpop.f32.mrf.mxu0
      %v4420 = vadd.f32 0.0, %v4419
      %4421 = vmatmul.f32.gmra.mxu0 %v4383
      %v4422 = vpop.f32.mrf.mxu0
      %v4423 = vadd.f32 0.0, %v4422
      %4424 = vmatmul.f32.gmra.mxu0 %v4386
      %v4425 = vpop.f32.mrf.mxu0
      %v4426 = vadd.f32 0.0, %v4425
      %4427 = vmatmul.f32.gmra.mxu0 %v4389
      %v4428 = vpop.f32.mrf.mxu0
      %v4429 = vadd.f32 0.0, %v4428
      %4430 = vmatmul.f32.gmra.mxu0 %v4392
      %v4431 = vpop.f32.mrf.mxu0
      %v4432 = vadd.f32 0.0, %v4431
      %4433 = vdwg.mxu0
      %v4434 = vmul.f32 %v4414, %v4364
      %v4435 = vmul.f32 %v4417, %v4365
      %v4436 = vmul.f32 %v4420, %v4366
      %v4437 = vmul.f32 %v4423, %v4367
      %v4438 = vmul.f32 %v4426, %v4368
      %v4439 = vmul.f32 %v4429, %v4369
      %v4440 = vmul.f32 %v4432, %v4370
      %4441 = vrot.lane.b32.xlu0 %v3734, 116
      %v4442 = vpop.permute.xlu0 %4441
      %4443 = vrot.lane.b32.xlu0 %v3737, 116
      %v4444 = vpop.permute.xlu0 %4443
      %4445 = vrot.lane.b32.xlu0 %v3740, 116
      %v4446 = vpop.permute.xlu0 %4445
      %4447 = vrot.lane.b32.xlu0 %v3743, 116
      %v4448 = vpop.permute.xlu0 %4447
      %4449 = vrot.lane.b32.xlu0 %v3746, 116
      %v4450 = vpop.permute.xlu0 %4449
      %4451 = vrot.lane.b32.xlu0 %v3749, 116
      %v4452 = vpop.permute.xlu0 %4451
      %4453 = vrot.lane.b32.xlu0 %v3752, 116
      %v4454 = vpop.permute.xlu0 %4453
      %4455 = vrot.lane.b32.xlu0 %v3795, 116
      %v4456 = vpop.permute.xlu0 %4455
      %v4457 = vsel %vm1722, %v4442, 0
      %v4459 = vsel %vm1722, %v4444, 0
      %v4461 = vsel %vm1722, %v4446, 0
      %v4463 = vsel %vm1722, %v4448, 0
      %v4465 = vsel %vm1722, %v4450, 0
      %v4467 = vsel %vm1722, %v4452, 0
      %v4469 = vsel %vm1722, %v4454, 0
      %v4471 = vsel %vm1722, %v4456, 0
      %4473 = vmatpush.xpose.msra.mxu0 0.0
      %4474 = vmatpush.xpose.msra.mxu0 0.0
      %4475 = vmatpush.xpose.msra.mxu0 0.0
      %4476 = vmatpush.xpose.msra.mxu0 0.0
      %4477 = vmatpush.xpose.msra.mxu0 0.0
      %4478 = vmatpush.xpose.msra.mxu0 0.0
      %4479 = vmatpush.xpose.msra.mxu0 0.0
      %4480 = vmatpush.xpose.msra.mxu0 0.0
      %4481 = vmatpush.xpose.msra.mxu0 0.0
      %4482 = vmatpush.xpose.msra.mxu0 0.0
      %4483 = vmatpush.xpose.msra.mxu0 0.0
      %4484 = vmatpush.xpose.msra.mxu0 0.0
      %4485 = vmatpush.xpose.msra.mxu0 0.0
      %4486 = vmatpush.xpose.msra.mxu0 0.0
      %4487 = vmatpush.xpose.msra.mxu0 0.0
      %4488 = vmatpush.xpose.msra.mxu0 %v4471
      %4489 = vmatmul.f32.gmra.mxu0 %v4457
      %v4490 = vpop.f32.mrf.mxu0
      %v4491 = vadd.f32 0.0, %v4490
      %4492 = vmatmul.f32.gmra.mxu0 %v4459
      %v4493 = vpop.f32.mrf.mxu0
      %v4494 = vadd.f32 0.0, %v4493
      %4495 = vmatmul.f32.gmra.mxu0 %v4461
      %v4496 = vpop.f32.mrf.mxu0
      %v4497 = vadd.f32 0.0, %v4496
      %4498 = vmatmul.f32.gmra.mxu0 %v4463
      %v4499 = vpop.f32.mrf.mxu0
      %v4500 = vadd.f32 0.0, %v4499
      %4501 = vmatmul.f32.gmra.mxu0 %v4465
      %v4502 = vpop.f32.mrf.mxu0
      %v4503 = vadd.f32 0.0, %v4502
      %4504 = vmatmul.f32.gmra.mxu0 %v4467
      %v4505 = vpop.f32.mrf.mxu0
      %v4506 = vadd.f32 0.0, %v4505
      %4507 = vmatmul.f32.gmra.mxu0 %v4469
      %v4508 = vpop.f32.mrf.mxu0
      %v4509 = vadd.f32 0.0, %v4508
      %4510 = vdwg.mxu0
      %v4511 = vmul.f32 %v4491, 0.5
      %v4512 = vmul.f32 %v4494, 0.5
      %v4513 = vmul.f32 %v4497, 0.5
      %v4514 = vmul.f32 %v4500, 0.5
      %v4515 = vmul.f32 %v4503, 0.5
      %v4516 = vmul.f32 %v4506, 0.5
      %v4517 = vmul.f32 %v4509, 0.5
      %v4518 = vsel %vm1722, %v4511, -inf
      %4519 = vmax.xlane.f32.xlu0 %v4518
      %v4520 = vpop.xlane.xlu0 %4519
      %v4521 = vsel %vm1722, %v4512, -inf
      %4522 = vmax.xlane.f32.xlu0 %v4521
      %v4523 = vpop.xlane.xlu0 %4522
      %v4524 = vsel %vm1722, %v4513, -inf
      %4525 = vmax.xlane.f32.xlu0 %v4524
      %v4526 = vpop.xlane.xlu0 %4525
      %v4527 = vsel %vm1722, %v4514, -inf
      %4528 = vmax.xlane.f32.xlu0 %v4527
      %v4529 = vpop.xlane.xlu0 %4528
      %v4530 = vsel %vm1722, %v4515, -inf
      %4531 = vmax.xlane.f32.xlu0 %v4530
      %v4532 = vpop.xlane.xlu0 %4531
      %v4533 = vsel %vm1722, %v4516, -inf
      %4534 = vmax.xlane.f32.xlu0 %v4533
      %v4535 = vpop.xlane.xlu0 %4534
      %v4536 = vsel %vm1722, %v4517, -inf
      %4537 = vmax.xlane.f32.xlu0 %v4536
      %v4538 = vpop.xlane.xlu0 %4537
      %v4539 = vsub.f32 %v4511, %v4520
      %v4540 = vsub.f32 %v4512, %v4523
      %v4541 = vsub.f32 %v4513, %v4526
      %v4542 = vsub.f32 %v4514, %v4529
      %v4543 = vsub.f32 %v4515, %v4532
      %v4544 = vsub.f32 %v4516, %v4535
      %v4545 = vsub.f32 %v4517, %v4538
      %v4546 = vmul.f32 %v4539, 1.442695
      %v4547 = vpow.pop %v4546
      %v4548 = vmul.f32 %v4540, 1.442695
      %v4549 = vpow.pop %v4548
      %v4550 = vmul.f32 %v4541, 1.442695
      %v4551 = vpow.pop %v4550
      %v4552 = vmul.f32 %v4542, 1.442695
      %v4553 = vpow.pop %v4552
      %v4554 = vmul.f32 %v4543, 1.442695
      %v4555 = vpow.pop %v4554
      %v4556 = vmul.f32 %v4544, 1.442695
      %v4557 = vpow.pop %v4556
      %v4558 = vmul.f32 %v4545, 1.442695
      %v4559 = vpow.pop %v4558
      %v4560 = vsel %vm1722, %v4547, 0.0
      %4561 = vadd.xlane.f32.xlu0 %v4560
      %v4562 = vpop.xlane.xlu0 %4561
      %v4563 = vsel %vm1722, %v4549, 0.0
      %4564 = vadd.xlane.f32.xlu0 %v4563
      %v4565 = vpop.xlane.xlu0 %4564
      %v4566 = vsel %vm1722, %v4551, 0.0
      %4567 = vadd.xlane.f32.xlu0 %v4566
      %v4568 = vpop.xlane.xlu0 %4567
      %v4569 = vsel %vm1722, %v4553, 0.0
      %4570 = vadd.xlane.f32.xlu0 %v4569
      %v4571 = vpop.xlane.xlu0 %4570
      %v4572 = vsel %vm1722, %v4555, 0.0
      %4573 = vadd.xlane.f32.xlu0 %v4572
      %v4574 = vpop.xlane.xlu0 %4573
      %v4575 = vsel %vm1722, %v4557, 0.0
      %4576 = vadd.xlane.f32.xlu0 %v4575
      %v4577 = vpop.xlane.xlu0 %4576
      %v4578 = vsel %vm1722, %v4559, 0.0
      %4579 = vadd.xlane.f32.xlu0 %v4578
      %v4580 = vpop.xlane.xlu0 %4579
      %v4581 = vrcp.pop %v4562
      %v4582 = vrcp.pop %v4565
      %v4583 = vrcp.pop %v4568
      %v4584 = vrcp.pop %v4571
      %v4585 = vrcp.pop %v4574
      %v4586 = vrcp.pop %v4577
      %v4587 = vrcp.pop %v4580
      %4588 = vrot.lane.b32.xlu0 %v3795, 84
      %v4589 = vpop.permute.xlu0 %4588
      %v4591 = vsel %vm1722, %v4547, 0
      %v4594 = vsel %vm1722, %v4549, 0
      %v4597 = vsel %vm1722, %v4551, 0
      %v4600 = vsel %vm1722, %v4553, 0
      %v4603 = vsel %vm1722, %v4555, 0
      %v4606 = vsel %vm1722, %v4557, 0
      %v4609 = vsel %vm1722, %v4559, 0
      %v4611 = vsel %vm3959, %v4589, 0
      %4613 = vmatpush.msra.mxu0 0.0
      %4614 = vmatpush.msra.mxu0 0.0
      %4615 = vmatpush.msra.mxu0 0.0
      %4616 = vmatpush.msra.mxu0 0.0
      %4617 = vmatpush.msra.mxu0 0.0
      %4618 = vmatpush.msra.mxu0 0.0
      %4619 = vmatpush.msra.mxu0 0.0
      %4620 = vmatpush.msra.mxu0 0.0
      %4621 = vmatpush.msra.mxu0 0.0
      %4622 = vmatpush.msra.mxu0 0.0
      %4623 = vmatpush.msra.mxu0 0.0
      %4624 = vmatpush.msra.mxu0 0.0
      %4625 = vmatpush.msra.mxu0 0.0
      %4626 = vmatpush.msra.mxu0 0.0
      %4627 = vmatpush.msra.mxu0 0.0
      %4628 = vmatpush.msra.mxu0 %v4611
      %4629 = vmatmul.f32.gmra.mxu0 %v4591
      %v4630 = vpop.f32.mrf.mxu0
      %v4631 = vadd.f32 0.0, %v4630
      %4632 = vmatmul.f32.gmra.mxu0 %v4594
      %v4633 = vpop.f32.mrf.mxu0
      %v4634 = vadd.f32 0.0, %v4633
      %4635 = vmatmul.f32.gmra.mxu0 %v4597
      %v4636 = vpop.f32.mrf.mxu0
      %v4637 = vadd.f32 0.0, %v4636
      %4638 = vmatmul.f32.gmra.mxu0 %v4600
      %v4639 = vpop.f32.mrf.mxu0
      %v4640 = vadd.f32 0.0, %v4639
      %4641 = vmatmul.f32.gmra.mxu0 %v4603
      %v4642 = vpop.f32.mrf.mxu0
      %v4643 = vadd.f32 0.0, %v4642
      %4644 = vmatmul.f32.gmra.mxu0 %v4606
      %v4645 = vpop.f32.mrf.mxu0
      %v4646 = vadd.f32 0.0, %v4645
      %4647 = vmatmul.f32.gmra.mxu0 %v4609
      %v4648 = vpop.f32.mrf.mxu0
      %v4649 = vadd.f32 0.0, %v4648
      %4650 = vdwg.mxu0
      %v4651 = vmul.f32 %v4631, %v4581
      %v4652 = vmul.f32 %v4634, %v4582
      %v4653 = vmul.f32 %v4637, %v4583
      %v4654 = vmul.f32 %v4640, %v4584
      %v4655 = vmul.f32 %v4643, %v4585
      %v4656 = vmul.f32 %v4646, %v4586
      %v4657 = vmul.f32 %v4649, %v4587
      %4658 = vrot.lane.b32.xlu0 %v3734, 112
      %v4659 = vpop.permute.xlu0 %4658
      %4660 = vrot.lane.b32.xlu0 %v3737, 112
      %v4661 = vpop.permute.xlu0 %4660
      %4662 = vrot.lane.b32.xlu0 %v3740, 112
      %v4663 = vpop.permute.xlu0 %4662
      %4664 = vrot.lane.b32.xlu0 %v3743, 112
      %v4665 = vpop.permute.xlu0 %4664
      %4666 = vrot.lane.b32.xlu0 %v3746, 112
      %v4667 = vpop.permute.xlu0 %4666
      %4668 = vrot.lane.b32.xlu0 %v3749, 112
      %v4669 = vpop.permute.xlu0 %4668
      %4670 = vrot.lane.b32.xlu0 %v3752, 112
      %v4671 = vpop.permute.xlu0 %4670
      %4672 = vrot.lane.b32.xlu0 %v3795, 112
      %v4673 = vpop.permute.xlu0 %4672
      %v4674 = vsel %vm1722, %v4659, 0
      %v4676 = vsel %vm1722, %v4661, 0
      %v4678 = vsel %vm1722, %v4663, 0
      %v4680 = vsel %vm1722, %v4665, 0
      %v4682 = vsel %vm1722, %v4667, 0
      %v4684 = vsel %vm1722, %v4669, 0
      %v4686 = vsel %vm1722, %v4671, 0
      %v4688 = vsel %vm1722, %v4673, 0
      %4690 = vmatpush.xpose.msra.mxu0 0.0
      %4691 = vmatpush.xpose.msra.mxu0 0.0
      %4692 = vmatpush.xpose.msra.mxu0 0.0
      %4693 = vmatpush.xpose.msra.mxu0 0.0
      %4694 = vmatpush.xpose.msra.mxu0 0.0
      %4695 = vmatpush.xpose.msra.mxu0 0.0
      %4696 = vmatpush.xpose.msra.mxu0 0.0
      %4697 = vmatpush.xpose.msra.mxu0 0.0
      %4698 = vmatpush.xpose.msra.mxu0 0.0
      %4699 = vmatpush.xpose.msra.mxu0 0.0
      %4700 = vmatpush.xpose.msra.mxu0 0.0
      %4701 = vmatpush.xpose.msra.mxu0 0.0
      %4702 = vmatpush.xpose.msra.mxu0 0.0
      %4703 = vmatpush.xpose.msra.mxu0 0.0
      %4704 = vmatpush.xpose.msra.mxu0 0.0
      %4705 = vmatpush.xpose.msra.mxu0 %v4688
      %4706 = vmatmul.f32.gmra.mxu0 %v4674
      %v4707 = vpop.f32.mrf.mxu0
      %v4708 = vadd.f32 0.0, %v4707
      %4709 = vmatmul.f32.gmra.mxu0 %v4676
      %v4710 = vpop.f32.mrf.mxu0
      %v4711 = vadd.f32 0.0, %v4710
      %4712 = vmatmul.f32.gmra.mxu0 %v4678
      %v4713 = vpop.f32.mrf.mxu0
      %v4714 = vadd.f32 0.0, %v4713
      %4715 = vmatmul.f32.gmra.mxu0 %v4680
      %v4716 = vpop.f32.mrf.mxu0
      %v4717 = vadd.f32 0.0, %v4716
      %4718 = vmatmul.f32.gmra.mxu0 %v4682
      %v4719 = vpop.f32.mrf.mxu0
      %v4720 = vadd.f32 0.0, %v4719
      %4721 = vmatmul.f32.gmra.mxu0 %v4684
      %v4722 = vpop.f32.mrf.mxu0
      %v4723 = vadd.f32 0.0, %v4722
      %4724 = vmatmul.f32.gmra.mxu0 %v4686
      %v4725 = vpop.f32.mrf.mxu0
      %v4726 = vadd.f32 0.0, %v4725
      %4727 = vdwg.mxu0
      %v4728 = vmul.f32 %v4708, 0.5
      %v4729 = vmul.f32 %v4711, 0.5
      %v4730 = vmul.f32 %v4714, 0.5
      %v4731 = vmul.f32 %v4717, 0.5
      %v4732 = vmul.f32 %v4720, 0.5
      %v4733 = vmul.f32 %v4723, 0.5
      %v4734 = vmul.f32 %v4726, 0.5
      %v4735 = vsel %vm1722, %v4728, -inf
      %4736 = vmax.xlane.f32.xlu0 %v4735
      %v4737 = vpop.xlane.xlu0 %4736
      %v4738 = vsel %vm1722, %v4729, -inf
      %4739 = vmax.xlane.f32.xlu0 %v4738
      %v4740 = vpop.xlane.xlu0 %4739
      %v4741 = vsel %vm1722, %v4730, -inf
      %4742 = vmax.xlane.f32.xlu0 %v4741
      %v4743 = vpop.xlane.xlu0 %4742
      %v4744 = vsel %vm1722, %v4731, -inf
      %4745 = vmax.xlane.f32.xlu0 %v4744
      %v4746 = vpop.xlane.xlu0 %4745
      %v4747 = vsel %vm1722, %v4732, -inf
      %4748 = vmax.xlane.f32.xlu0 %v4747
      %v4749 = vpop.xlane.xlu0 %4748
      %v4750 = vsel %vm1722, %v4733, -inf
      %4751 = vmax.xlane.f32.xlu0 %v4750
      %v4752 = vpop.xlane.xlu0 %4751
      %v4753 = vsel %vm1722, %v4734, -inf
      %4754 = vmax.xlane.f32.xlu0 %v4753
      %v4755 = vpop.xlane.xlu0 %4754
      %v4756 = vsub.f32 %v4728, %v4737
      %v4757 = vsub.f32 %v4729, %v4740
      %v4758 = vsub.f32 %v4730, %v4743
      %v4759 = vsub.f32 %v4731, %v4746
      %v4760 = vsub.f32 %v4732, %v4749
      %v4761 = vsub.f32 %v4733, %v4752
      %v4762 = vsub.f32 %v4734, %v4755
      %v4763 = vmul.f32 %v4756, 1.442695
      %v4764 = vpow.pop %v4763
      %v4765 = vmul.f32 %v4757, 1.442695
      %v4766 = vpow.pop %v4765
      %v4767 = vmul.f32 %v4758, 1.442695
      %v4768 = vpow.pop %v4767
      %v4769 = vmul.f32 %v4759, 1.442695
      %v4770 = vpow.pop %v4769
      %v4771 = vmul.f32 %v4760, 1.442695
      %v4772 = vpow.pop %v4771
      %v4773 = vmul.f32 %v4761, 1.442695
      %v4774 = vpow.pop %v4773
      %v4775 = vmul.f32 %v4762, 1.442695
      %v4776 = vpow.pop %v4775
      %v4777 = vsel %vm1722, %v4764, 0.0
      %4778 = vadd.xlane.f32.xlu0 %v4777
      %v4779 = vpop.xlane.xlu0 %4778
      %v4780 = vsel %vm1722, %v4766, 0.0
      %4781 = vadd.xlane.f32.xlu0 %v4780
      %v4782 = vpop.xlane.xlu0 %4781
      %v4783 = vsel %vm1722, %v4768, 0.0
      %4784 = vadd.xlane.f32.xlu0 %v4783
      %v4785 = vpop.xlane.xlu0 %4784
      %v4786 = vsel %vm1722, %v4770, 0.0
      %4787 = vadd.xlane.f32.xlu0 %v4786
      %v4788 = vpop.xlane.xlu0 %4787
      %v4789 = vsel %vm1722, %v4772, 0.0
      %4790 = vadd.xlane.f32.xlu0 %v4789
      %v4791 = vpop.xlane.xlu0 %4790
      %v4792 = vsel %vm1722, %v4774, 0.0
      %4793 = vadd.xlane.f32.xlu0 %v4792
      %v4794 = vpop.xlane.xlu0 %4793
      %v4795 = vsel %vm1722, %v4776, 0.0
      %4796 = vadd.xlane.f32.xlu0 %v4795
      %v4797 = vpop.xlane.xlu0 %4796
      %v4798 = vrcp.pop %v4779
      %v4799 = vrcp.pop %v4782
      %v4800 = vrcp.pop %v4785
      %v4801 = vrcp.pop %v4788
      %v4802 = vrcp.pop %v4791
      %v4803 = vrcp.pop %v4794
      %v4804 = vrcp.pop %v4797
      %4805 = vrot.lane.b32.xlu0 %v3795, 80
      %v4806 = vpop.permute.xlu0 %4805
      %v4808 = vsel %vm1722, %v4764, 0
      %v4811 = vsel %vm1722, %v4766, 0
      %v4814 = vsel %vm1722, %v4768, 0
      %v4817 = vsel %vm1722, %v4770, 0
      %v4820 = vsel %vm1722, %v4772, 0
      %v4823 = vsel %vm1722, %v4774, 0
      %v4826 = vsel %vm1722, %v4776, 0
      %v4828 = vsel %vm3959, %v4806, 0
      %4830 = vmatpush.msra.mxu0 0.0
      %4831 = vmatpush.msra.mxu0 0.0
      %4832 = vmatpush.msra.mxu0 0.0
      %4833 = vmatpush.msra.mxu0 0.0
      %4834 = vmatpush.msra.mxu0 0.0
      %4835 = vmatpush.msra.mxu0 0.0
      %4836 = vmatpush.msra.mxu0 0.0
      %4837 = vmatpush.msra.mxu0 0.0
      %4838 = vmatpush.msra.mxu0 0.0
      %4839 = vmatpush.msra.mxu0 0.0
      %4840 = vmatpush.msra.mxu0 0.0
      %4841 = vmatpush.msra.mxu0 0.0
      %4842 = vmatpush.msra.mxu0 0.0
      %4843 = vmatpush.msra.mxu0 0.0
      %4844 = vmatpush.msra.mxu0 0.0
      %4845 = vmatpush.msra.mxu0 %v4828
      %4846 = vmatmul.f32.gmra.mxu0 %v4808
      %v4847 = vpop.f32.mrf.mxu0
      %v4848 = vadd.f32 0.0, %v4847
      %4849 = vmatmul.f32.gmra.mxu0 %v4811
      %v4850 = vpop.f32.mrf.mxu0
      %v4851 = vadd.f32 0.0, %v4850
      %4852 = vmatmul.f32.gmra.mxu0 %v4814
      %v4853 = vpop.f32.mrf.mxu0
      %v4854 = vadd.f32 0.0, %v4853
      %4855 = vmatmul.f32.gmra.mxu0 %v4817
      %v4856 = vpop.f32.mrf.mxu0
      %v4857 = vadd.f32 0.0, %v4856
      %4858 = vmatmul.f32.gmra.mxu0 %v4820
      %v4859 = vpop.f32.mrf.mxu0
      %v4860 = vadd.f32 0.0, %v4859
      %4861 = vmatmul.f32.gmra.mxu0 %v4823
      %v4862 = vpop.f32.mrf.mxu0
      %v4863 = vadd.f32 0.0, %v4862
      %4864 = vmatmul.f32.gmra.mxu0 %v4826
      %v4865 = vpop.f32.mrf.mxu0
      %v4866 = vadd.f32 0.0, %v4865
      %4867 = vdwg.mxu0
      %v4868 = vmul.f32 %v4848, %v4798
      %v4869 = vmul.f32 %v4851, %v4799
      %v4870 = vmul.f32 %v4854, %v4800
      %v4871 = vmul.f32 %v4857, %v4801
      %v4872 = vmul.f32 %v4860, %v4802
      %v4873 = vmul.f32 %v4863, %v4803
      %v4874 = vmul.f32 %v4866, %v4804
      %4875 = vrot.lane.b32.xlu0 %v3734, 108
      %v4876 = vpop.permute.xlu0 %4875
      %4877 = vrot.lane.b32.xlu0 %v3737, 108
      %v4878 = vpop.permute.xlu0 %4877
      %4879 = vrot.lane.b32.xlu0 %v3740, 108
      %v4880 = vpop.permute.xlu0 %4879
      %4881 = vrot.lane.b32.xlu0 %v3743, 108
      %v4882 = vpop.permute.xlu0 %4881
      %4883 = vrot.lane.b32.xlu0 %v3746, 108
      %v4884 = vpop.permute.xlu0 %4883
      %4885 = vrot.lane.b32.xlu0 %v3749, 108
      %v4886 = vpop.permute.xlu0 %4885
      %4887 = vrot.lane.b32.xlu0 %v3752, 108
      %v4888 = vpop.permute.xlu0 %4887
      %4889 = vrot.lane.b32.xlu0 %v3795, 108
      %v4890 = vpop.permute.xlu0 %4889
      %v4891 = vsel %vm1722, %v4876, 0
      %v4893 = vsel %vm1722, %v4878, 0
      %v4895 = vsel %vm1722, %v4880, 0
      %v4897 = vsel %vm1722, %v4882, 0
      %v4899 = vsel %vm1722, %v4884, 0
      %v4901 = vsel %vm1722, %v4886, 0
      %v4903 = vsel %vm1722, %v4888, 0
      %v4905 = vsel %vm1722, %v4890, 0
      %4907 = vmatpush.xpose.msra.mxu0 0.0
      %4908 = vmatpush.xpose.msra.mxu0 0.0
      %4909 = vmatpush.xpose.msra.mxu0 0.0
      %4910 = vmatpush.xpose.msra.mxu0 0.0
      %4911 = vmatpush.xpose.msra.mxu0 0.0
      %4912 = vmatpush.xpose.msra.mxu0 0.0
      %4913 = vmatpush.xpose.msra.mxu0 0.0
      %4914 = vmatpush.xpose.msra.mxu0 0.0
      %4915 = vmatpush.xpose.msra.mxu0 0.0
      %4916 = vmatpush.xpose.msra.mxu0 0.0
      %4917 = vmatpush.xpose.msra.mxu0 0.0
      %4918 = vmatpush.xpose.msra.mxu0 0.0
      %4919 = vmatpush.xpose.msra.mxu0 0.0
      %4920 = vmatpush.xpose.msra.mxu0 0.0
      %4921 = vmatpush.xpose.msra.mxu0 0.0
      %4922 = vmatpush.xpose.msra.mxu0 %v4905
      %4923 = vmatmul.f32.gmra.mxu0 %v4891
      %v4924 = vpop.f32.mrf.mxu0
      %v4925 = vadd.f32 0.0, %v4924
      %4926 = vmatmul.f32.gmra.mxu0 %v4893
      %v4927 = vpop.f32.mrf.mxu0
      %v4928 = vadd.f32 0.0, %v4927
      %4929 = vmatmul.f32.gmra.mxu0 %v4895
      %v4930 = vpop.f32.mrf.mxu0
      %v4931 = vadd.f32 0.0, %v4930
      %4932 = vmatmul.f32.gmra.mxu0 %v4897
      %v4933 = vpop.f32.mrf.mxu0
      %v4934 = vadd.f32 0.0, %v4933
      %4935 = vmatmul.f32.gmra.mxu0 %v4899
      %v4936 = vpop.f32.mrf.mxu0
      %v4937 = vadd.f32 0.0, %v4936
      %4938 = vmatmul.f32.gmra.mxu0 %v4901
      %v4939 = vpop.f32.mrf.mxu0
      %v4940 = vadd.f32 0.0, %v4939
      %4941 = vmatmul.f32.gmra.mxu0 %v4903
      %v4942 = vpop.f32.mrf.mxu0
      %v4943 = vadd.f32 0.0, %v4942
      %4944 = vdwg.mxu0
      %v4945 = vmul.f32 %v4925, 0.5
      %v4946 = vmul.f32 %v4928, 0.5
      %v4947 = vmul.f32 %v4931, 0.5
      %v4948 = vmul.f32 %v4934, 0.5
      %v4949 = vmul.f32 %v4937, 0.5
      %v4950 = vmul.f32 %v4940, 0.5
      %v4951 = vmul.f32 %v4943, 0.5
      %v4952 = vsel %vm1722, %v4945, -inf
      %4953 = vmax.xlane.f32.xlu0 %v4952
      %v4954 = vpop.xlane.xlu0 %4953
      %v4955 = vsel %vm1722, %v4946, -inf
      %4956 = vmax.xlane.f32.xlu0 %v4955
      %v4957 = vpop.xlane.xlu0 %4956
      %v4958 = vsel %vm1722, %v4947, -inf
      %4959 = vmax.xlane.f32.xlu0 %v4958
      %v4960 = vpop.xlane.xlu0 %4959
      %v4961 = vsel %vm1722, %v4948, -inf
      %4962 = vmax.xlane.f32.xlu0 %v4961
      %v4963 = vpop.xlane.xlu0 %4962
      %v4964 = vsel %vm1722, %v4949, -inf
      %4965 = vmax.xlane.f32.xlu0 %v4964
      %v4966 = vpop.xlane.xlu0 %4965
      %v4967 = vsel %vm1722, %v4950, -inf
      %4968 = vmax.xlane.f32.xlu0 %v4967
      %v4969 = vpop.xlane.xlu0 %4968
      %v4970 = vsel %vm1722, %v4951, -inf
      %4971 = vmax.xlane.f32.xlu0 %v4970
      %v4972 = vpop.xlane.xlu0 %4971
      %v4973 = vsub.f32 %v4945, %v4954
      %v4974 = vsub.f32 %v4946, %v4957
      %v4975 = vsub.f32 %v4947, %v4960
      %v4976 = vsub.f32 %v4948, %v4963
      %v4977 = vsub.f32 %v4949, %v4966
      %v4978 = vsub.f32 %v4950, %v4969
      %v4979 = vsub.f32 %v4951, %v4972
      %v4980 = vmul.f32 %v4973, 1.442695
      %v4981 = vpow.pop %v4980
      %v4982 = vmul.f32 %v4974, 1.442695
      %v4983 = vpow.pop %v4982
      %v4984 = vmul.f32 %v4975, 1.442695
      %v4985 = vpow.pop %v4984
      %v4986 = vmul.f32 %v4976, 1.442695
      %v4987 = vpow.pop %v4986
      %v4988 = vmul.f32 %v4977, 1.442695
      %v4989 = vpow.pop %v4988
      %v4990 = vmul.f32 %v4978, 1.442695
      %v4991 = vpow.pop %v4990
      %v4992 = vmul.f32 %v4979, 1.442695
      %v4993 = vpow.pop %v4992
      %v4994 = vsel %vm1722, %v4981, 0.0
      %4995 = vadd.xlane.f32.xlu0 %v4994
      %v4996 = vpop.xlane.xlu0 %4995
      %v4997 = vsel %vm1722, %v4983, 0.0
      %4998 = vadd.xlane.f32.xlu0 %v4997
      %v4999 = vpop.xlane.xlu0 %4998
      %v5000 = vsel %vm1722, %v4985, 0.0
      %5001 = vadd.xlane.f32.xlu0 %v5000
      %v5002 = vpop.xlane.xlu0 %5001
      %v5003 = vsel %vm1722, %v4987, 0.0
      %5004 = vadd.xlane.f32.xlu0 %v5003
      %v5005 = vpop.xlane.xlu0 %5004
      %v5006 = vsel %vm1722, %v4989, 0.0
      %5007 = vadd.xlane.f32.xlu0 %v5006
      %v5008 = vpop.xlane.xlu0 %5007
      %v5009 = vsel %vm1722, %v4991, 0.0
      %5010 = vadd.xlane.f32.xlu0 %v5009
      %v5011 = vpop.xlane.xlu0 %5010
      %v5012 = vsel %vm1722, %v4993, 0.0
      %5013 = vadd.xlane.f32.xlu0 %v5012
      %v5014 = vpop.xlane.xlu0 %5013
      %v5015 = vrcp.pop %v4996
      %v5016 = vrcp.pop %v4999
      %v5017 = vrcp.pop %v5002
      %v5018 = vrcp.pop %v5005
      %v5019 = vrcp.pop %v5008
      %v5020 = vrcp.pop %v5011
      %v5021 = vrcp.pop %v5014
      %5022 = vrot.lane.b32.xlu0 %v3795, 76
      %v5023 = vpop.permute.xlu0 %5022
      %v5025 = vsel %vm1722, %v4981, 0
      %v5028 = vsel %vm1722, %v4983, 0
      %v5031 = vsel %vm1722, %v4985, 0
      %v5034 = vsel %vm1722, %v4987, 0
      %v5037 = vsel %vm1722, %v4989, 0
      %v5040 = vsel %vm1722, %v4991, 0
      %v5043 = vsel %vm1722, %v4993, 0
      %v5045 = vsel %vm3959, %v5023, 0
      %5047 = vmatpush.msra.mxu0 0.0
      %5048 = vmatpush.msra.mxu0 0.0
      %5049 = vmatpush.msra.mxu0 0.0
      %5050 = vmatpush.msra.mxu0 0.0
      %5051 = vmatpush.msra.mxu0 0.0
      %5052 = vmatpush.msra.mxu0 0.0
      %5053 = vmatpush.msra.mxu0 0.0
      %5054 = vmatpush.msra.mxu0 0.0
      %5055 = vmatpush.msra.mxu0 0.0
      %5056 = vmatpush.msra.mxu0 0.0
      %5057 = vmatpush.msra.mxu0 0.0
      %5058 = vmatpush.msra.mxu0 0.0
      %5059 = vmatpush.msra.mxu0 0.0
      %5060 = vmatpush.msra.mxu0 0.0
      %5061 = vmatpush.msra.mxu0 0.0
      %5062 = vmatpush.msra.mxu0 %v5045
      %5063 = vmatmul.f32.gmra.mxu0 %v5025
      %v5064 = vpop.f32.mrf.mxu0
      %v5065 = vadd.f32 0.0, %v5064
      %5066 = vmatmul.f32.gmra.mxu0 %v5028
      %v5067 = vpop.f32.mrf.mxu0
      %v5068 = vadd.f32 0.0, %v5067
      %5069 = vmatmul.f32.gmra.mxu0 %v5031
      %v5070 = vpop.f32.mrf.mxu0
      %v5071 = vadd.f32 0.0, %v5070
      %5072 = vmatmul.f32.gmra.mxu0 %v5034
      %v5073 = vpop.f32.mrf.mxu0
      %v5074 = vadd.f32 0.0, %v5073
      %5075 = vmatmul.f32.gmra.mxu0 %v5037
      %v5076 = vpop.f32.mrf.mxu0
      %v5077 = vadd.f32 0.0, %v5076
      %5078 = vmatmul.f32.gmra.mxu0 %v5040
      %v5079 = vpop.f32.mrf.mxu0
      %v5080 = vadd.f32 0.0, %v5079
      %5081 = vmatmul.f32.gmra.mxu0 %v5043
      %v5082 = vpop.f32.mrf.mxu0
      %v5083 = vadd.f32 0.0, %v5082
      %5084 = vdwg.mxu0
      %v5085 = vmul.f32 %v5065, %v5015
      %v5086 = vmul.f32 %v5068, %v5016
      %v5087 = vmul.f32 %v5071, %v5017
      %v5088 = vmul.f32 %v5074, %v5018
      %v5089 = vmul.f32 %v5077, %v5019
      %v5090 = vmul.f32 %v5080, %v5020
      %v5091 = vmul.f32 %v5083, %v5021
      %5092 = vrot.lane.b32.xlu0 %v3734, 104
      %v5093 = vpop.permute.xlu0 %5092
      %5094 = vrot.lane.b32.xlu0 %v3737, 104
      %v5095 = vpop.permute.xlu0 %5094
      %5096 = vrot.lane.b32.xlu0 %v3740, 104
      %v5097 = vpop.permute.xlu0 %5096
      %5098 = vrot.lane.b32.xlu0 %v3743, 104
      %v5099 = vpop.permute.xlu0 %5098
      %5100 = vrot.lane.b32.xlu0 %v3746, 104
      %v5101 = vpop.permute.xlu0 %5100
      %5102 = vrot.lane.b32.xlu0 %v3749, 104
      %v5103 = vpop.permute.xlu0 %5102
      %5104 = vrot.lane.b32.xlu0 %v3752, 104
      %v5105 = vpop.permute.xlu0 %5104
      %5106 = vrot.lane.b32.xlu0 %v3795, 104
      %v5107 = vpop.permute.xlu0 %5106
      %v5108 = vsel %vm1722, %v5093, 0
      %v5110 = vsel %vm1722, %v5095, 0
      %v5112 = vsel %vm1722, %v5097, 0
      %v5114 = vsel %vm1722, %v5099, 0
      %v5116 = vsel %vm1722, %v5101, 0
      %v5118 = vsel %vm1722, %v5103, 0
      %v5120 = vsel %vm1722, %v5105, 0
      %v5122 = vsel %vm1722, %v5107, 0
      %5124 = vmatpush.xpose.msra.mxu0 0.0
      %5125 = vmatpush.xpose.msra.mxu0 0.0
      %5126 = vmatpush.xpose.msra.mxu0 0.0
      %5127 = vmatpush.xpose.msra.mxu0 0.0
      %5128 = vmatpush.xpose.msra.mxu0 0.0
      %5129 = vmatpush.xpose.msra.mxu0 0.0
      %5130 = vmatpush.xpose.msra.mxu0 0.0
      %5131 = vmatpush.xpose.msra.mxu0 0.0
      %5132 = vmatpush.xpose.msra.mxu0 0.0
      %5133 = vmatpush.xpose.msra.mxu0 0.0
      %5134 = vmatpush.xpose.msra.mxu0 0.0
      %5135 = vmatpush.xpose.msra.mxu0 0.0
      %5136 = vmatpush.xpose.msra.mxu0 0.0
      %5137 = vmatpush.xpose.msra.mxu0 0.0
      %5138 = vmatpush.xpose.msra.mxu0 0.0
      %5139 = vmatpush.xpose.msra.mxu0 %v5122
      %5140 = vmatmul.f32.gmra.mxu0 %v5108
      %v5141 = vpop.f32.mrf.mxu0
      %v5142 = vadd.f32 0.0, %v5141
      %5143 = vmatmul.f32.gmra.mxu0 %v5110
      %v5144 = vpop.f32.mrf.mxu0
      %v5145 = vadd.f32 0.0, %v5144
      %5146 = vmatmul.f32.gmra.mxu0 %v5112
      %v5147 = vpop.f32.mrf.mxu0
      %v5148 = vadd.f32 0.0, %v5147
      %5149 = vmatmul.f32.gmra.mxu0 %v5114
      %v5150 = vpop.f32.mrf.mxu0
      %v5151 = vadd.f32 0.0, %v5150
      %5152 = vmatmul.f32.gmra.mxu0 %v5116
      %v5153 = vpop.f32.mrf.mxu0
      %v5154 = vadd.f32 0.0, %v5153
      %5155 = vmatmul.f32.gmra.mxu0 %v5118
      %v5156 = vpop.f32.mrf.mxu0
      %v5157 = vadd.f32 0.0, %v5156
      %5158 = vmatmul.f32.gmra.mxu0 %v5120
      %v5159 = vpop.f32.mrf.mxu0
      %v5160 = vadd.f32 0.0, %v5159
      %5161 = vdwg.mxu0
      %v5162 = vmul.f32 %v5142, 0.5
      %v5163 = vmul.f32 %v5145, 0.5
      %v5164 = vmul.f32 %v5148, 0.5
      %v5165 = vmul.f32 %v5151, 0.5
      %v5166 = vmul.f32 %v5154, 0.5
      %v5167 = vmul.f32 %v5157, 0.5
      %v5168 = vmul.f32 %v5160, 0.5
      %v5169 = vsel %vm1722, %v5162, -inf
      %5170 = vmax.xlane.f32.xlu0 %v5169
      %v5171 = vpop.xlane.xlu0 %5170
      %v5172 = vsel %vm1722, %v5163, -inf
      %5173 = vmax.xlane.f32.xlu0 %v5172
      %v5174 = vpop.xlane.xlu0 %5173
      %v5175 = vsel %vm1722, %v5164, -inf
      %5176 = vmax.xlane.f32.xlu0 %v5175
      %v5177 = vpop.xlane.xlu0 %5176
      %v5178 = vsel %vm1722, %v5165, -inf
      %5179 = vmax.xlane.f32.xlu0 %v5178
      %v5180 = vpop.xlane.xlu0 %5179
      %v5181 = vsel %vm1722, %v5166, -inf
      %5182 = vmax.xlane.f32.xlu0 %v5181
      %v5183 = vpop.xlane.xlu0 %5182
      %v5184 = vsel %vm1722, %v5167, -inf
      %5185 = vmax.xlane.f32.xlu0 %v5184
      %v5186 = vpop.xlane.xlu0 %5185
      %v5187 = vsel %vm1722, %v5168, -inf
      %5188 = vmax.xlane.f32.xlu0 %v5187
      %v5189 = vpop.xlane.xlu0 %5188
      %v5190 = vsub.f32 %v5162, %v5171
      %v5191 = vsub.f32 %v5163, %v5174
      %v5192 = vsub.f32 %v5164, %v5177
      %v5193 = vsub.f32 %v5165, %v5180
      %v5194 = vsub.f32 %v5166, %v5183
      %v5195 = vsub.f32 %v5167, %v5186
      %v5196 = vsub.f32 %v5168, %v5189
      %v5197 = vmul.f32 %v5190, 1.442695
      %v5198 = vpow.pop %v5197
      %v5199 = vmul.f32 %v5191, 1.442695
      %v5200 = vpow.pop %v5199
      %v5201 = vmul.f32 %v5192, 1.442695
      %v5202 = vpow.pop %v5201
      %v5203 = vmul.f32 %v5193, 1.442695
      %v5204 = vpow.pop %v5203
      %v5205 = vmul.f32 %v5194, 1.442695
      %v5206 = vpow.pop %v5205
      %v5207 = vmul.f32 %v5195, 1.442695
      %v5208 = vpow.pop %v5207
      %v5209 = vmul.f32 %v5196, 1.442695
      %v5210 = vpow.pop %v5209
      %v5211 = vsel %vm1722, %v5198, 0.0
      %5212 = vadd.xlane.f32.xlu0 %v5211
      %v5213 = vpop.xlane.xlu0 %5212
      %v5214 = vsel %vm1722, %v5200, 0.0
      %5215 = vadd.xlane.f32.xlu0 %v5214
      %v5216 = vpop.xlane.xlu0 %5215
      %v5217 = vsel %vm1722, %v5202, 0.0
      %5218 = vadd.xlane.f32.xlu0 %v5217
      %v5219 = vpop.xlane.xlu0 %5218
      %v5220 = vsel %vm1722, %v5204, 0.0
      %5221 = vadd.xlane.f32.xlu0 %v5220
      %v5222 = vpop.xlane.xlu0 %5221
      %v5223 = vsel %vm1722, %v5206, 0.0
      %5224 = vadd.xlane.f32.xlu0 %v5223
      %v5225 = vpop.xlane.xlu0 %5224
      %v5226 = vsel %vm1722, %v5208, 0.0
      %5227 = vadd.xlane.f32.xlu0 %v5226
      %v5228 = vpop.xlane.xlu0 %5227
      %v5229 = vsel %vm1722, %v5210, 0.0
      %5230 = vadd.xlane.f32.xlu0 %v5229
      %v5231 = vpop.xlane.xlu0 %5230
      %v5232 = vrcp.pop %v5213
      %v5233 = vrcp.pop %v5216
      %v5234 = vrcp.pop %v5219
      %v5235 = vrcp.pop %v5222
      %v5236 = vrcp.pop %v5225
      %v5237 = vrcp.pop %v5228
      %v5238 = vrcp.pop %v5231
      %5239 = vrot.lane.b32.xlu0 %v3795, 72
      %v5240 = vpop.permute.xlu0 %5239
      %v5242 = vsel %vm1722, %v5198, 0
      %v5245 = vsel %vm1722, %v5200, 0
      %v5248 = vsel %vm1722, %v5202, 0
      %v5251 = vsel %vm1722, %v5204, 0
      %v5254 = vsel %vm1722, %v5206, 0
      %v5257 = vsel %vm1722, %v5208, 0
      %v5260 = vsel %vm1722, %v5210, 0
      %v5262 = vsel %vm3959, %v5240, 0
      %5264 = vmatpush.msra.mxu0 0.0
      %5265 = vmatpush.msra.mxu0 0.0
      %5266 = vmatpush.msra.mxu0 0.0
      %5267 = vmatpush.msra.mxu0 0.0
      %5268 = vmatpush.msra.mxu0 0.0
      %5269 = vmatpush.msra.mxu0 0.0
      %5270 = vmatpush.msra.mxu0 0.0
      %5271 = vmatpush.msra.mxu0 0.0
      %5272 = vmatpush.msra.mxu0 0.0
      %5273 = vmatpush.msra.mxu0 0.0
      %5274 = vmatpush.msra.mxu0 0.0
      %5275 = vmatpush.msra.mxu0 0.0
      %5276 = vmatpush.msra.mxu0 0.0
      %5277 = vmatpush.msra.mxu0 0.0
      %5278 = vmatpush.msra.mxu0 0.0
      %5279 = vmatpush.msra.mxu0 %v5262
      %5280 = vmatmul.f32.gmra.mxu0 %v5242
      %v5281 = vpop.f32.mrf.mxu0
      %v5282 = vadd.f32 0.0, %v5281
      %5283 = vmatmul.f32.gmra.mxu0 %v5245
      %v5284 = vpop.f32.mrf.mxu0
      %v5285 = vadd.f32 0.0, %v5284
      %5286 = vmatmul.f32.gmra.mxu0 %v5248
      %v5287 = vpop.f32.mrf.mxu0
      %v5288 = vadd.f32 0.0, %v5287
      %5289 = vmatmul.f32.gmra.mxu0 %v5251
      %v5290 = vpop.f32.mrf.mxu0
      %v5291 = vadd.f32 0.0, %v5290
      %5292 = vmatmul.f32.gmra.mxu0 %v5254
      %v5293 = vpop.f32.mrf.mxu0
      %v5294 = vadd.f32 0.0, %v5293
      %5295 = vmatmul.f32.gmra.mxu0 %v5257
      %v5296 = vpop.f32.mrf.mxu0
      %v5297 = vadd.f32 0.0, %v5296
      %5298 = vmatmul.f32.gmra.mxu0 %v5260
      %v5299 = vpop.f32.mrf.mxu0
      %v5300 = vadd.f32 0.0, %v5299
      %5301 = vdwg.mxu0
      %v5302 = vmul.f32 %v5282, %v5232
      %v5303 = vmul.f32 %v5285, %v5233
      %v5304 = vmul.f32 %v5288, %v5234
      %v5305 = vmul.f32 %v5291, %v5235
      %v5306 = vmul.f32 %v5294, %v5236
      %v5307 = vmul.f32 %v5297, %v5237
      %v5308 = vmul.f32 %v5300, %v5238
      %5309 = vrot.lane.b32.xlu0 %v3734, 100
      %v5310 = vpop.permute.xlu0 %5309
      %5311 = vrot.lane.b32.xlu0 %v3737, 100
      %v5312 = vpop.permute.xlu0 %5311
      %5313 = vrot.lane.b32.xlu0 %v3740, 100
      %v5314 = vpop.permute.xlu0 %5313
      %5315 = vrot.lane.b32.xlu0 %v3743, 100
      %v5316 = vpop.permute.xlu0 %5315
      %5317 = vrot.lane.b32.xlu0 %v3746, 100
      %v5318 = vpop.permute.xlu0 %5317
      %5319 = vrot.lane.b32.xlu0 %v3749, 100
      %v5320 = vpop.permute.xlu0 %5319
      %5321 = vrot.lane.b32.xlu0 %v3752, 100
      %v5322 = vpop.permute.xlu0 %5321
      %5323 = vrot.lane.b32.xlu0 %v3795, 100
      %v5324 = vpop.permute.xlu0 %5323
      %v5325 = vsel %vm1722, %v5310, 0
      %v5327 = vsel %vm1722, %v5312, 0
      %v5329 = vsel %vm1722, %v5314, 0
      %v5331 = vsel %vm1722, %v5316, 0
      %v5333 = vsel %vm1722, %v5318, 0
      %v5335 = vsel %vm1722, %v5320, 0
      %v5337 = vsel %vm1722, %v5322, 0
      %v5339 = vsel %vm1722, %v5324, 0
      %5341 = vmatpush.xpose.msra.mxu0 0.0
      %5342 = vmatpush.xpose.msra.mxu0 0.0
      %5343 = vmatpush.xpose.msra.mxu0 0.0
      %5344 = vmatpush.xpose.msra.mxu0 0.0
      %5345 = vmatpush.xpose.msra.mxu0 0.0
      %5346 = vmatpush.xpose.msra.mxu0 0.0
      %5347 = vmatpush.xpose.msra.mxu0 0.0
      %5348 = vmatpush.xpose.msra.mxu0 0.0
      %5349 = vmatpush.xpose.msra.mxu0 0.0
      %5350 = vmatpush.xpose.msra.mxu0 0.0
      %5351 = vmatpush.xpose.msra.mxu0 0.0
      %5352 = vmatpush.xpose.msra.mxu0 0.0
      %5353 = vmatpush.xpose.msra.mxu0 0.0
      %5354 = vmatpush.xpose.msra.mxu0 0.0
      %5355 = vmatpush.xpose.msra.mxu0 0.0
      %5356 = vmatpush.xpose.msra.mxu0 %v5339
      %5357 = vmatmul.f32.gmra.mxu0 %v5325
      %v5358 = vpop.f32.mrf.mxu0
      %v5359 = vadd.f32 0.0, %v5358
      %5360 = vmatmul.f32.gmra.mxu0 %v5327
      %v5361 = vpop.f32.mrf.mxu0
      %v5362 = vadd.f32 0.0, %v5361
      %5363 = vmatmul.f32.gmra.mxu0 %v5329
      %v5364 = vpop.f32.mrf.mxu0
      %v5365 = vadd.f32 0.0, %v5364
      %5366 = vmatmul.f32.gmra.mxu0 %v5331
      %v5367 = vpop.f32.mrf.mxu0
      %v5368 = vadd.f32 0.0, %v5367
      %5369 = vmatmul.f32.gmra.mxu0 %v5333
      %v5370 = vpop.f32.mrf.mxu0
      %v5371 = vadd.f32 0.0, %v5370
      %5372 = vmatmul.f32.gmra.mxu0 %v5335
      %v5373 = vpop.f32.mrf.mxu0
      %v5374 = vadd.f32 0.0, %v5373
      %5375 = vmatmul.f32.gmra.mxu0 %v5337
      %v5376 = vpop.f32.mrf.mxu0
      %v5377 = vadd.f32 0.0, %v5376
      %5378 = vdwg.mxu0
      %v5379 = vmul.f32 %v5359, 0.5
      %v5380 = vmul.f32 %v5362, 0.5
      %v5381 = vmul.f32 %v5365, 0.5
      %v5382 = vmul.f32 %v5368, 0.5
      %v5383 = vmul.f32 %v5371, 0.5
      %v5384 = vmul.f32 %v5374, 0.5
      %v5385 = vmul.f32 %v5377, 0.5
      %v5386 = vsel %vm1722, %v5379, -inf
      %5387 = vmax.xlane.f32.xlu0 %v5386
      %v5388 = vpop.xlane.xlu0 %5387
      %v5389 = vsel %vm1722, %v5380, -inf
      %5390 = vmax.xlane.f32.xlu0 %v5389
      %v5391 = vpop.xlane.xlu0 %5390
      %v5392 = vsel %vm1722, %v5381, -inf
      %5393 = vmax.xlane.f32.xlu0 %v5392
      %v5394 = vpop.xlane.xlu0 %5393
      %v5395 = vsel %vm1722, %v5382, -inf
      %5396 = vmax.xlane.f32.xlu0 %v5395
      %v5397 = vpop.xlane.xlu0 %5396
      %v5398 = vsel %vm1722, %v5383, -inf
      %5399 = vmax.xlane.f32.xlu0 %v5398
      %v5400 = vpop.xlane.xlu0 %5399
      %v5401 = vsel %vm1722, %v5384, -inf
      %5402 = vmax.xlane.f32.xlu0 %v5401
      %v5403 = vpop.xlane.xlu0 %5402
      %v5404 = vsel %vm1722, %v5385, -inf
      %5405 = vmax.xlane.f32.xlu0 %v5404
      %v5406 = vpop.xlane.xlu0 %5405
      %v5407 = vsub.f32 %v5379, %v5388
      %v5408 = vsub.f32 %v5380, %v5391
      %v5409 = vsub.f32 %v5381, %v5394
      %v5410 = vsub.f32 %v5382, %v5397
      %v5411 = vsub.f32 %v5383, %v5400
      %v5412 = vsub.f32 %v5384, %v5403
      %v5413 = vsub.f32 %v5385, %v5406
      %v5414 = vmul.f32 %v5407, 1.442695
      %v5415 = vpow.pop %v5414
      %v5416 = vmul.f32 %v5408, 1.442695
      %v5417 = vpow.pop %v5416
      %v5418 = vmul.f32 %v5409, 1.442695
      %v5419 = vpow.pop %v5418
      %v5420 = vmul.f32 %v5410, 1.442695
      %v5421 = vpow.pop %v5420
      %v5422 = vmul.f32 %v5411, 1.442695
      %v5423 = vpow.pop %v5422
      %v5424 = vmul.f32 %v5412, 1.442695
      %v5425 = vpow.pop %v5424
      %v5426 = vmul.f32 %v5413, 1.442695
      %v5427 = vpow.pop %v5426
      %v5428 = vsel %vm1722, %v5415, 0.0
      %5429 = vadd.xlane.f32.xlu0 %v5428
      %v5430 = vpop.xlane.xlu0 %5429
      %v5431 = vsel %vm1722, %v5417, 0.0
      %5432 = vadd.xlane.f32.xlu0 %v5431
      %v5433 = vpop.xlane.xlu0 %5432
      %v5434 = vsel %vm1722, %v5419, 0.0
      %5435 = vadd.xlane.f32.xlu0 %v5434
      %v5436 = vpop.xlane.xlu0 %5435
      %v5437 = vsel %vm1722, %v5421, 0.0
      %5438 = vadd.xlane.f32.xlu0 %v5437
      %v5439 = vpop.xlane.xlu0 %5438
      %v5440 = vsel %vm1722, %v5423, 0.0
      %5441 = vadd.xlane.f32.xlu0 %v5440
      %v5442 = vpop.xlane.xlu0 %5441
      %v5443 = vsel %vm1722, %v5425, 0.0
      %5444 = vadd.xlane.f32.xlu0 %v5443
      %v5445 = vpop.xlane.xlu0 %5444
      %v5446 = vsel %vm1722, %v5427, 0.0
      %5447 = vadd.xlane.f32.xlu0 %v5446
      %v5448 = vpop.xlane.xlu0 %5447
      %v5449 = vrcp.pop %v5430
      %v5450 = vrcp.pop %v5433
      %v5451 = vrcp.pop %v5436
      %v5452 = vrcp.pop %v5439
      %v5453 = vrcp.pop %v5442
      %v5454 = vrcp.pop %v5445
      %v5455 = vrcp.pop %v5448
      %5456 = vrot.lane.b32.xlu0 %v3795, 68
      %v5457 = vpop.permute.xlu0 %5456
      %v5459 = vsel %vm1722, %v5415, 0
      %v5462 = vsel %vm1722, %v5417, 0
      %v5465 = vsel %vm1722, %v5419, 0
      %v5468 = vsel %vm1722, %v5421, 0
      %v5471 = vsel %vm1722, %v5423, 0
      %v5474 = vsel %vm1722, %v5425, 0
      %v5477 = vsel %vm1722, %v5427, 0
      %v5479 = vsel %vm3959, %v5457, 0
      %5481 = vmatpush.msra.mxu0 0.0
      %5482 = vmatpush.msra.mxu0 0.0
      %5483 = vmatpush.msra.mxu0 0.0
      %5484 = vmatpush.msra.mxu0 0.0
      %5485 = vmatpush.msra.mxu0 0.0
      %5486 = vmatpush.msra.mxu0 0.0
      %5487 = vmatpush.msra.mxu0 0.0
      %5488 = vmatpush.msra.mxu0 0.0
      %5489 = vmatpush.msra.mxu0 0.0
      %5490 = vmatpush.msra.mxu0 0.0
      %5491 = vmatpush.msra.mxu0 0.0
      %5492 = vmatpush.msra.mxu0 0.0
      %5493 = vmatpush.msra.mxu0 0.0
      %5494 = vmatpush.msra.mxu0 0.0
      %5495 = vmatpush.msra.mxu0 0.0
      %5496 = vmatpush.msra.mxu0 %v5479
      %5497 = vmatmul.f32.gmra.mxu0 %v5459
      %v5498 = vpop.f32.mrf.mxu0
      %v5499 = vadd.f32 0.0, %v5498
      %5500 = vmatmul.f32.gmra.mxu0 %v5462
      %v5501 = vpop.f32.mrf.mxu0
      %v5502 = vadd.f32 0.0, %v5501
      %5503 = vmatmul.f32.gmra.mxu0 %v5465
      %v5504 = vpop.f32.mrf.mxu0
      %v5505 = vadd.f32 0.0, %v5504
      %5506 = vmatmul.f32.gmra.mxu0 %v5468
      %v5507 = vpop.f32.mrf.mxu0
      %v5508 = vadd.f32 0.0, %v5507
      %5509 = vmatmul.f32.gmra.mxu0 %v5471
      %v5510 = vpop.f32.mrf.mxu0
      %v5511 = vadd.f32 0.0, %v5510
      %5512 = vmatmul.f32.gmra.mxu0 %v5474
      %v5513 = vpop.f32.mrf.mxu0
      %v5514 = vadd.f32 0.0, %v5513
      %5515 = vmatmul.f32.gmra.mxu0 %v5477
      %v5516 = vpop.f32.mrf.mxu0
      %v5517 = vadd.f32 0.0, %v5516
      %5518 = vdwg.mxu0
      %v5519 = vmul.f32 %v5499, %v5449
      %v5520 = vmul.f32 %v5502, %v5450
      %v5521 = vmul.f32 %v5505, %v5451
      %v5522 = vmul.f32 %v5508, %v5452
      %v5523 = vmul.f32 %v5511, %v5453
      %v5524 = vmul.f32 %v5514, %v5454
      %v5525 = vmul.f32 %v5517, %v5455
      %5533 = vrot.lane.b32.xlu0 %v4217, 4
      %v5534 = vpop.permute.xlu0 %5533
      %5535 = vrot.lane.b32.xlu0 %v4218, 4
      %v5536 = vpop.permute.xlu0 %5535
      %5537 = vrot.lane.b32.xlu0 %v4219, 4
      %v5538 = vpop.permute.xlu0 %5537
      %5539 = vrot.lane.b32.xlu0 %v4220, 4
      %v5540 = vpop.permute.xlu0 %5539
      %5541 = vrot.lane.b32.xlu0 %v4221, 4
      %v5542 = vpop.permute.xlu0 %5541
      %5543 = vrot.lane.b32.xlu0 %v4222, 4
      %v5544 = vpop.permute.xlu0 %5543
      %5545 = vrot.lane.b32.xlu0 %v4223, 4
      %v5546 = vpop.permute.xlu0 %5545
      %5561 = vrot.lane.b32.xlu0 %v4434, 8
      %v5562 = vpop.permute.xlu0 %5561
      %5563 = vrot.lane.b32.xlu0 %v4435, 8
      %v5564 = vpop.permute.xlu0 %5563
      %5565 = vrot.lane.b32.xlu0 %v4436, 8
      %v5566 = vpop.permute.xlu0 %5565
      %5567 = vrot.lane.b32.xlu0 %v4437, 8
      %v5568 = vpop.permute.xlu0 %5567
      %5569 = vrot.lane.b32.xlu0 %v4438, 8
      %v5570 = vpop.permute.xlu0 %5569
      %5571 = vrot.lane.b32.xlu0 %v4439, 8
      %v5572 = vpop.permute.xlu0 %5571
      %5573 = vrot.lane.b32.xlu0 %v4440, 8
      %v5574 = vpop.permute.xlu0 %5573
      %5589 = vrot.lane.b32.xlu0 %v4651, 12
      %v5590 = vpop.permute.xlu0 %5589
      %5591 = vrot.lane.b32.xlu0 %v4652, 12
      %v5592 = vpop.permute.xlu0 %5591
      %5593 = vrot.lane.b32.xlu0 %v4653, 12
      %v5594 = vpop.permute.xlu0 %5593
      %5595 = vrot.lane.b32.xlu0 %v4654, 12
      %v5596 = vpop.permute.xlu0 %5595
      %5597 = vrot.lane.b32.xlu0 %v4655, 12
      %v5598 = vpop.permute.xlu0 %5597
      %5599 = vrot.lane.b32.xlu0 %v4656, 12
      %v5600 = vpop.permute.xlu0 %5599
      %5601 = vrot.lane.b32.xlu0 %v4657, 12
      %v5602 = vpop.permute.xlu0 %5601
      %5617 = vrot.lane.b32.xlu0 %v4868, 16
      %v5618 = vpop.permute.xlu0 %5617
      %5619 = vrot.lane.b32.xlu0 %v4869, 16
      %v5620 = vpop.permute.xlu0 %5619
      %5621 = vrot.lane.b32.xlu0 %v4870, 16
      %v5622 = vpop.permute.xlu0 %5621
      %5623 = vrot.lane.b32.xlu0 %v4871, 16
      %v5624 = vpop.permute.xlu0 %5623
      %5625 = vrot.lane.b32.xlu0 %v4872, 16
      %v5626 = vpop.permute.xlu0 %5625
      %5627 = vrot.lane.b32.xlu0 %v4873, 16
      %v5628 = vpop.permute.xlu0 %5627
      %5629 = vrot.lane.b32.xlu0 %v4874, 16
      %v5630 = vpop.permute.xlu0 %5629
      %5645 = vrot.lane.b32.xlu0 %v5085, 20
      %v5646 = vpop.permute.xlu0 %5645
      %5647 = vrot.lane.b32.xlu0 %v5086, 20
      %v5648 = vpop.permute.xlu0 %5647
      %5649 = vrot.lane.b32.xlu0 %v5087, 20
      %v5650 = vpop.permute.xlu0 %5649
      %5651 = vrot.lane.b32.xlu0 %v5088, 20
      %v5652 = vpop.permute.xlu0 %5651
      %5653 = vrot.lane.b32.xlu0 %v5089, 20
      %v5654 = vpop.permute.xlu0 %5653
      %5655 = vrot.lane.b32.xlu0 %v5090, 20
      %v5656 = vpop.permute.xlu0 %5655
      %5657 = vrot.lane.b32.xlu0 %v5091, 20
      %v5658 = vpop.permute.xlu0 %5657
      %5673 = vrot.lane.b32.xlu0 %v5302, 24
      %v5674 = vpop.permute.xlu0 %5673
      %5675 = vrot.lane.b32.xlu0 %v5303, 24
      %v5676 = vpop.permute.xlu0 %5675
      %5677 = vrot.lane.b32.xlu0 %v5304, 24
      %v5678 = vpop.permute.xlu0 %5677
      %5679 = vrot.lane.b32.xlu0 %v5305, 24
      %v5680 = vpop.permute.xlu0 %5679
      %5681 = vrot.lane.b32.xlu0 %v5306, 24
      %v5682 = vpop.permute.xlu0 %5681
      %5683 = vrot.lane.b32.xlu0 %v5307, 24
      %v5684 = vpop.permute.xlu0 %5683
      %5685 = vrot.lane.b32.xlu0 %v5308, 24
      %v5686 = vpop.permute.xlu0 %5685
      %5701 = vrot.lane.b32.xlu0 %v5519, 28
      %v5702 = vpop.permute.xlu0 %5701
      %5703 = vrot.lane.b32.xlu0 %v5520, 28
      %v5704 = vpop.permute.xlu0 %5703
      %5705 = vrot.lane.b32.xlu0 %v5521, 28
      %v5706 = vpop.permute.xlu0 %5705
      %5707 = vrot.lane.b32.xlu0 %v5522, 28
      %v5708 = vpop.permute.xlu0 %5707
      %5709 = vrot.lane.b32.xlu0 %v5523, 28
      %v5710 = vpop.permute.xlu0 %5709
      %5711 = vrot.lane.b32.xlu0 %v5524, 28
      %v5712 = vpop.permute.xlu0 %5711
      %5713 = vrot.lane.b32.xlu0 %v5525, 28
      %v5714 = vpop.permute.xlu0 %5713
      %v5722 = vsel %vm1722, %v4000, %v5534
      %v5723 = vsel %vm1722, %v4001, %v5536
      %v5724 = vsel %vm1722, %v4002, %v5538
      %v5725 = vsel %vm1722, %v4003, %v5540
      %v5726 = vsel %vm1722, %v4004, %v5542
      %v5727 = vsel %vm1722, %v4005, %v5544
      %v5728 = vsel %vm1722, %v4006, %v5546
      %v5729 = vsel %vm2610, %v5722, %v5562
      %v5730 = vsel %vm2610, %v5723, %v5564
      %v5731 = vsel %vm2610, %v5724, %v5566
      %v5732 = vsel %vm2610, %v5725, %v5568
      %v5733 = vsel %vm2610, %v5726, %v5570
      %v5734 = vsel %vm2610, %v5727, %v5572
      %v5735 = vsel %vm2610, %v5728, %v5574
      %v5736 = vsel %vm2612, %v5729, %v5590
      %v5737 = vsel %vm2612, %v5730, %v5592
      %v5738 = vsel %vm2612, %v5731, %v5594
      %v5739 = vsel %vm2612, %v5732, %v5596
      %v5740 = vsel %vm2612, %v5733, %v5598
      %v5741 = vsel %vm2612, %v5734, %v5600
      %v5742 = vsel %vm2612, %v5735, %v5602
      %v5743 = vsel %vm2614, %v5736, %v5618
      %v5744 = vsel %vm2614, %v5737, %v5620
      %v5745 = vsel %vm2614, %v5738, %v5622
      %v5746 = vsel %vm2614, %v5739, %v5624
      %v5747 = vsel %vm2614, %v5740, %v5626
      %v5748 = vsel %vm2614, %v5741, %v5628
      %v5749 = vsel %vm2614, %v5742, %v5630
      %v5750 = vsel %vm2616, %v5743, %v5646
      %v5751 = vsel %vm2616, %v5744, %v5648
      %v5752 = vsel %vm2616, %v5745, %v5650
      %v5753 = vsel %vm2616, %v5746, %v5652
      %v5754 = vsel %vm2616, %v5747, %v5654
      %v5755 = vsel %vm2616, %v5748, %v5656
      %v5756 = vsel %vm2616, %v5749, %v5658
      %v5757 = vsel %vm2618, %v5750, %v5674
      %v5758 = vsel %vm2618, %v5751, %v5676
      %v5759 = vsel %vm2618, %v5752, %v5678
      %v5760 = vsel %vm2618, %v5753, %v5680
      %v5761 = vsel %vm2618, %v5754, %v5682
      %v5762 = vsel %vm2618, %v5755, %v5684
      %v5763 = vsel %vm2618, %v5756, %v5686
      %v5764 = vsel %vm2620, %v5757, %v5702
      %v5765 = vsel %vm2620, %v5758, %v5704
      %v5766 = vsel %vm2620, %v5759, %v5706
      %v5767 = vsel %vm2620, %v5760, %v5708
      %v5768 = vsel %vm2620, %v5761, %v5710
      %v5769 = vsel %vm2620, %v5762, %v5712
      %v5770 = vsel %vm2620, %v5763, %v5714
      %v5771 = vperm.slane %v3714, 0
      %v5773 = vsel %vm809, %v5764, 0
      %v5776 = vsel %vm809, %v5765, 0
      %v5779 = vsel %vm809, %v5766, 0
      %v5782 = vsel %vm809, %v5767, 0
      %v5785 = vsel %vm809, %v5768, 0
      %v5788 = vsel %vm809, %v5769, 0
      %v5791 = vsel %vm809, %v5770, 0
      %5793 = vmatpush.msra.mxu0 0.0
      %5794 = vmatpush.msra.mxu0 0.0
      %5795 = vmatpush.msra.mxu0 0.0
      %5796 = vmatpush.msra.mxu0 0.0
      %5797 = vmatpush.msra.mxu0 0.0
      %5798 = vmatpush.msra.mxu0 0.0
      %5799 = vmatpush.msra.mxu0 0.0
      %5800 = vmatpush.msra.mxu0 0.0
      %5801 = vmatpush.msra.mxu0 0.0
      %5802 = vmatpush.msra.mxu0 0.0
      %5803 = vmatpush.msra.mxu0 0.0
      %5804 = vmatpush.msra.mxu0 0.0
      %5805 = vmatpush.msra.mxu0 %v3713
      %5806 = vmatpush.msra.mxu0 %v3712
      %5807 = vmatpush.msra.mxu0 %v3711
      %5808 = vmatpush.msra.mxu0 %v3710
      %5809 = vmatmul.f32.gmra.mxu0 %v5773
      %v5810 = vpop.f32.mrf.mxu0
      %v5811 = vadd.f32 %v5771, %v5810
      %5812 = vmatmul.f32.gmra.mxu0 %v5776
      %v5813 = vpop.f32.mrf.mxu0
      %v5814 = vadd.f32 %v5771, %v5813
      %5815 = vmatmul.f32.gmra.mxu0 %v5779
      %v5816 = vpop.f32.mrf.mxu0
      %v5817 = vadd.f32 %v5771, %v5816
      %5818 = vmatmul.f32.gmra.mxu0 %v5782
      %v5819 = vpop.f32.mrf.mxu0
      %v5820 = vadd.f32 %v5771, %v5819
      %5821 = vmatmul.f32.gmra.mxu0 %v5785
      %v5822 = vpop.f32.mrf.mxu0
      %v5823 = vadd.f32 %v5771, %v5822
      %5824 = vmatmul.f32.gmra.mxu0 %v5788
      %v5825 = vpop.f32.mrf.mxu0
      %v5826 = vadd.f32 %v5771, %v5825
      %5827 = vmatmul.f32.gmra.mxu0 %v5791
      %v5828 = vpop.f32.mrf.mxu0
      %v5829 = vadd.f32 %v5771, %v5828
      %5830 = vdwg.mxu0
      %v5831 = vadd.f32 %v977, %v5811
      %v5832 = vadd.f32 %v978, %v5814
      %v5833 = vadd.f32 %v979, %v5817
      %v5834 = vadd.f32 %v980, %v5820
      %v5835 = vadd.f32 %v981, %v5823
      %v5836 = vadd.f32 %v982, %v5826
      %v5837 = vadd.f32 %v983, %v5829
      %s5838 = scalar_lea.vmem %s13, 96
      %v5839 = vld [vmem:[%s5838] sm:$0xff]
      %v5840 = vld [vmem:[%s5838 + $0x8] sm:$0xff]
      %v5841 = vld [vmem:[%s5838 + $0x10] sm:$0xff]
      %v5842 = vld [vmem:[%s5838 + $0x18] sm:$0xff]
      %v5843 = vld [vmem:[%s14 + $0x3] sm:$0x1]
      %s5844 = scalar_lea.vmem %s15, 96
      %v5845 = vld [vmem:[%s5844] sm:$0xff]
      %v5846 = vld [vmem:[%s5844 + $0x8] sm:$0xff]
      %v5847 = vld [vmem:[%s5844 + $0x10] sm:$0xff]
      %v5848 = vld [vmem:[%s5844 + $0x18] sm:$0xff]
      %v5849 = vld [vmem:[%s16 + $0x3] sm:$0x1]
      %v5850 = vperm.slane %v5843, 0
      %5851 = vmatpush.msra.mxu0 0.0
      %5852 = vmatpush.msra.mxu0 0.0
      %5853 = vmatpush.msra.mxu0 0.0
      %5854 = vmatpush.msra.mxu0 0.0
      %5855 = vmatpush.msra.mxu0 0.0
      %5856 = vmatpush.msra.mxu0 0.0
      %5857 = vmatpush.msra.mxu0 0.0
      %5858 = vmatpush.msra.mxu0 0.0
      %5859 = vmatpush.msra.mxu0 0.0
      %5860 = vmatpush.msra.mxu0 0.0
      %5861 = vmatpush.msra.mxu0 0.0
      %5862 = vmatpush.msra.mxu0 0.0
      %5863 = vmatpush.msra.mxu0 %v5842
      %5864 = vmatpush.msra.mxu0 %v5841
      %5865 = vmatpush.msra.mxu0 %v5840
      %5866 = vmatpush.msra.mxu0 %v5839
      %5867 = vmatmul.f32.gmra.mxu0 %v2701
      %v5868 = vpop.f32.mrf.mxu0
      %v5869 = vadd.f32 %v5850, %v5868
      %5870 = vmatmul.f32.gmra.mxu0 %v2704
      %v5871 = vpop.f32.mrf.mxu0
      %v5872 = vadd.f32 %v5850, %v5871
      %5873 = vmatmul.f32.gmra.mxu0 %v2707
      %v5874 = vpop.f32.mrf.mxu0
      %v5875 = vadd.f32 %v5850, %v5874
      %5876 = vmatmul.f32.gmra.mxu0 %v2710
      %v5877 = vpop.f32.mrf.mxu0
      %v5878 = vadd.f32 %v5850, %v5877
      %5879 = vmatmul.f32.gmra.mxu0 %v2713
      %v5880 = vpop.f32.mrf.mxu0
      %v5881 = vadd.f32 %v5850, %v5880
      %5882 = vmatmul.f32.gmra.mxu0 %v2716
      %v5883 = vpop.f32.mrf.mxu0
      %v5884 = vadd.f32 %v5850, %v5883
      %5885 = vmatmul.f32.gmra.mxu0 %v2719
      %v5886 = vpop.f32.mrf.mxu0
      %v5887 = vadd.f32 %v5850, %v5886
      %5888 = vdwg.mxu0
      %5893 = vrot.lane.b32.xlu0 %v5839, 96
      %v5894 = vpop.permute.xlu0 %5893
      %5895 = vrot.lane.b32.xlu0 %v5840, 96
      %v5896 = vpop.permute.xlu0 %5895
      %5897 = vrot.lane.b32.xlu0 %v5841, 96
      %v5898 = vpop.permute.xlu0 %5897
      %5899 = vrot.lane.b32.xlu0 %v5842, 96
      %v5900 = vpop.permute.xlu0 %5899
      %5906 = vrot.lane.b32.xlu0 %v5850, 96
      %v5907 = vpop.permute.xlu0 %5906
      %5909 = vmatpush.msra.mxu0 0.0
      %5910 = vmatpush.msra.mxu0 0.0
      %5911 = vmatpush.msra.mxu0 0.0
      %5912 = vmatpush.msra.mxu0 0.0
      %5913 = vmatpush.msra.mxu0 0.0
      %5914 = vmatpush.msra.mxu0 0.0
      %5915 = vmatpush.msra.mxu0 0.0
      %5916 = vmatpush.msra.mxu0 0.0
      %5917 = vmatpush.msra.mxu0 0.0
      %5918 = vmatpush.msra.mxu0 0.0
      %5919 = vmatpush.msra.mxu0 0.0
      %5920 = vmatpush.msra.mxu0 0.0
      %5921 = vmatpush.msra.mxu0 %v5900
      %5922 = vmatpush.msra.mxu0 %v5898
      %5923 = vmatpush.msra.mxu0 %v5896
      %5924 = vmatpush.msra.mxu0 %v5894
      %5925 = vmatmul.f32.gmra.mxu0 %v3775
      %v5926 = vpop.f32.mrf.mxu0
      %v5927 = vadd.f32 %v5907, %v5926
      %5928 = vdwg.mxu0
      %v5930 = vsel %vm1722, %v5869, 0
      %v5933 = vsel %vm1722, %v5872, 0
      %v5936 = vsel %vm1722, %v5875, 0
      %v5939 = vsel %vm1722, %v5878, 0
      %v5942 = vsel %vm1722, %v5881, 0
      %v5945 = vsel %vm1722, %v5884, 0
      %v5948 = vsel %vm1722, %v5887, 0
      %v5951 = vsel %vm1722, %v5927, 0
      %5953 = vmatpush.xpose.msra.mxu0 0.0
      %5954 = vmatpush.xpose.msra.mxu0 0.0
      %5955 = vmatpush.xpose.msra.mxu0 0.0
      %5956 = vmatpush.xpose.msra.mxu0 0.0
      %5957 = vmatpush.xpose.msra.mxu0 0.0
      %5958 = vmatpush.xpose.msra.mxu0 0.0
      %5959 = vmatpush.xpose.msra.mxu0 0.0
      %5960 = vmatpush.xpose.msra.mxu0 0.0
      %5961 = vmatpush.xpose.msra.mxu0 0.0
      %5962 = vmatpush.xpose.msra.mxu0 0.0
      %5963 = vmatpush.xpose.msra.mxu0 0.0
      %5964 = vmatpush.xpose.msra.mxu0 0.0
      %5965 = vmatpush.xpose.msra.mxu0 0.0
      %5966 = vmatpush.xpose.msra.mxu0 0.0
      %5967 = vmatpush.xpose.msra.mxu0 0.0
      %5968 = vmatpush.xpose.msra.mxu0 %v5951
      %5969 = vmatmul.f32.gmra.mxu0 %v5930
      %v5970 = vpop.f32.mrf.mxu0
      %v5971 = vadd.f32 0.0, %v5970
      %5972 = vmatmul.f32.gmra.mxu0 %v5933
      %v5973 = vpop.f32.mrf.mxu0
      %v5974 = vadd.f32 0.0, %v5973
      %5975 = vmatmul.f32.gmra.mxu0 %v5936
      %v5976 = vpop.f32.mrf.mxu0
      %v5977 = vadd.f32 0.0, %v5976
      %5978 = vmatmul.f32.gmra.mxu0 %v5939
      %v5979 = vpop.f32.mrf.mxu0
      %v5980 = vadd.f32 0.0, %v5979
      %5981 = vmatmul.f32.gmra.mxu0 %v5942
      %v5982 = vpop.f32.mrf.mxu0
      %v5983 = vadd.f32 0.0, %v5982
      %5984 = vmatmul.f32.gmra.mxu0 %v5945
      %v5985 = vpop.f32.mrf.mxu0
      %v5986 = vadd.f32 0.0, %v5985
      %5987 = vmatmul.f32.gmra.mxu0 %v5948
      %v5988 = vpop.f32.mrf.mxu0
      %v5989 = vadd.f32 0.0, %v5988
      %5990 = vdwg.mxu0
      %v5991 = vmul.f32 %v5971, 0.5
      %v5992 = vmul.f32 %v5974, 0.5
      %v5993 = vmul.f32 %v5977, 0.5
      %v5994 = vmul.f32 %v5980, 0.5
      %v5995 = vmul.f32 %v5983, 0.5
      %v5996 = vmul.f32 %v5986, 0.5
      %v5997 = vmul.f32 %v5989, 0.5
      %v5998 = vsel %vm1722, %v5991, -inf
      %5999 = vmax.xlane.f32.xlu0 %v5998
      %v6000 = vpop.xlane.xlu0 %5999
      %v6001 = vsel %vm1722, %v5992, -inf
      %6002 = vmax.xlane.f32.xlu0 %v6001
      %v6003 = vpop.xlane.xlu0 %6002
      %v6004 = vsel %vm1722, %v5993, -inf
      %6005 = vmax.xlane.f32.xlu0 %v6004
      %v6006 = vpop.xlane.xlu0 %6005
      %v6007 = vsel %vm1722, %v5994, -inf
      %6008 = vmax.xlane.f32.xlu0 %v6007
      %v6009 = vpop.xlane.xlu0 %6008
      %v6010 = vsel %vm1722, %v5995, -inf
      %6011 = vmax.xlane.f32.xlu0 %v6010
      %v6012 = vpop.xlane.xlu0 %6011
      %v6013 = vsel %vm1722, %v5996, -inf
      %6014 = vmax.xlane.f32.xlu0 %v6013
      %v6015 = vpop.xlane.xlu0 %6014
      %v6016 = vsel %vm1722, %v5997, -inf
      %6017 = vmax.xlane.f32.xlu0 %v6016
      %v6018 = vpop.xlane.xlu0 %6017
      %v6019 = vsub.f32 %v5991, %v6000
      %v6020 = vsub.f32 %v5992, %v6003
      %v6021 = vsub.f32 %v5993, %v6006
      %v6022 = vsub.f32 %v5994, %v6009
      %v6023 = vsub.f32 %v5995, %v6012
      %v6024 = vsub.f32 %v5996, %v6015
      %v6025 = vsub.f32 %v5997, %v6018
      %v6026 = vmul.f32 %v6019, 1.442695
      %v6027 = vpow.pop %v6026
      %v6028 = vmul.f32 %v6020, 1.442695
      %v6029 = vpow.pop %v6028
      %v6030 = vmul.f32 %v6021, 1.442695
      %v6031 = vpow.pop %v6030
      %v6032 = vmul.f32 %v6022, 1.442695
      %v6033 = vpow.pop %v6032
      %v6034 = vmul.f32 %v6023, 1.442695
      %v6035 = vpow.pop %v6034
      %v6036 = vmul.f32 %v6024, 1.442695
      %v6037 = vpow.pop %v6036
      %v6038 = vmul.f32 %v6025, 1.442695
      %v6039 = vpow.pop %v6038
      %v6040 = vsel %vm1722, %v6027, 0.0
      %6041 = vadd.xlane.f32.xlu0 %v6040
      %v6042 = vpop.xlane.xlu0 %6041
      %v6043 = vsel %vm1722, %v6029, 0.0
      %6044 = vadd.xlane.f32.xlu0 %v6043
      %v6045 = vpop.xlane.xlu0 %6044
      %v6046 = vsel %vm1722, %v6031, 0.0
      %6047 = vadd.xlane.f32.xlu0 %v6046
      %v6048 = vpop.xlane.xlu0 %6047
      %v6049 = vsel %vm1722, %v6033, 0.0
      %6050 = vadd.xlane.f32.xlu0 %v6049
      %v6051 = vpop.xlane.xlu0 %6050
      %v6052 = vsel %vm1722, %v6035, 0.0
      %6053 = vadd.xlane.f32.xlu0 %v6052
      %v6054 = vpop.xlane.xlu0 %6053
      %v6055 = vsel %vm1722, %v6037, 0.0
      %6056 = vadd.xlane.f32.xlu0 %v6055
      %v6057 = vpop.xlane.xlu0 %6056
      %v6058 = vsel %vm1722, %v6039, 0.0
      %6059 = vadd.xlane.f32.xlu0 %v6058
      %v6060 = vpop.xlane.xlu0 %6059
      %v6061 = vrcp.pop %v6042
      %v6062 = vrcp.pop %v6045
      %v6063 = vrcp.pop %v6048
      %v6064 = vrcp.pop %v6051
      %v6065 = vrcp.pop %v6054
      %v6066 = vrcp.pop %v6057
      %v6067 = vrcp.pop %v6060
      %6068 = vrot.lane.b32.xlu0 %v5927, 96
      %v6069 = vpop.permute.xlu0 %6068
      %v6071 = vsel %vm1722, %v6027, 0
      %v6074 = vsel %vm1722, %v6029, 0
      %v6077 = vsel %vm1722, %v6031, 0
      %v6080 = vsel %vm1722, %v6033, 0
      %v6083 = vsel %vm1722, %v6035, 0
      %v6086 = vsel %vm1722, %v6037, 0
      %v6089 = vsel %vm1722, %v6039, 0
      %v6091 = vsel %vm3959, %v6069, 0
      %6093 = vmatpush.msra.mxu0 0.0
      %6094 = vmatpush.msra.mxu0 0.0
      %6095 = vmatpush.msra.mxu0 0.0
      %6096 = vmatpush.msra.mxu0 0.0
      %6097 = vmatpush.msra.mxu0 0.0
      %6098 = vmatpush.msra.mxu0 0.0
      %6099 = vmatpush.msra.mxu0 0.0
      %6100 = vmatpush.msra.mxu0 0.0
      %6101 = vmatpush.msra.mxu0 0.0
      %6102 = vmatpush.msra.mxu0 0.0
      %6103 = vmatpush.msra.mxu0 0.0
      %6104 = vmatpush.msra.mxu0 0.0
      %6105 = vmatpush.msra.mxu0 0.0
      %6106 = vmatpush.msra.mxu0 0.0
      %6107 = vmatpush.msra.mxu0 0.0
      %6108 = vmatpush.msra.mxu0 %v6091
      %6109 = vmatmul.f32.gmra.mxu0 %v6071
      %v6110 = vpop.f32.mrf.mxu0
      %v6111 = vadd.f32 0.0, %v6110
      %6112 = vmatmul.f32.gmra.mxu0 %v6074
      %v6113 = vpop.f32.mrf.mxu0
      %v6114 = vadd.f32 0.0, %v6113
      %6115 = vmatmul.f32.gmra.mxu0 %v6077
      %v6116 = vpop.f32.mrf.mxu0
      %v6117 = vadd.f32 0.0, %v6116
      %6118 = vmatmul.f32.gmra.mxu0 %v6080
      %v6119 = vpop.f32.mrf.mxu0
      %v6120 = vadd.f32 0.0, %v6119
      %6121 = vmatmul.f32.gmra.mxu0 %v6083
      %v6122 = vpop.f32.mrf.mxu0
      %v6123 = vadd.f32 0.0, %v6122
      %6124 = vmatmul.f32.gmra.mxu0 %v6086
      %v6125 = vpop.f32.mrf.mxu0
      %v6126 = vadd.f32 0.0, %v6125
      %6127 = vmatmul.f32.gmra.mxu0 %v6089
      %v6128 = vpop.f32.mrf.mxu0
      %v6129 = vadd.f32 0.0, %v6128
      %6130 = vdwg.mxu0
      %v6131 = vmul.f32 %v6111, %v6061
      %v6132 = vmul.f32 %v6114, %v6062
      %v6133 = vmul.f32 %v6117, %v6063
      %v6134 = vmul.f32 %v6120, %v6064
      %v6135 = vmul.f32 %v6123, %v6065
      %v6136 = vmul.f32 %v6126, %v6066
      %v6137 = vmul.f32 %v6129, %v6067
      %6138 = vrot.lane.b32.xlu0 %v5869, 124
      %v6139 = vpop.permute.xlu0 %6138
      %6140 = vrot.lane.b32.xlu0 %v5872, 124
      %v6141 = vpop.permute.xlu0 %6140
      %6142 = vrot.lane.b32.xlu0 %v5875, 124
      %v6143 = vpop.permute.xlu0 %6142
      %6144 = vrot.lane.b32.xlu0 %v5878, 124
      %v6145 = vpop.permute.xlu0 %6144
      %6146 = vrot.lane.b32.xlu0 %v5881, 124
      %v6147 = vpop.permute.xlu0 %6146
      %6148 = vrot.lane.b32.xlu0 %v5884, 124
      %v6149 = vpop.permute.xlu0 %6148
      %6150 = vrot.lane.b32.xlu0 %v5887, 124
      %v6151 = vpop.permute.xlu0 %6150
      %6152 = vrot.lane.b32.xlu0 %v5927, 124
      %v6153 = vpop.permute.xlu0 %6152
      %v6154 = vsel %vm1722, %v6139, 0
      %v6156 = vsel %vm1722, %v6141, 0
      %v6158 = vsel %vm1722, %v6143, 0
      %v6160 = vsel %vm1722, %v6145, 0
      %v6162 = vsel %vm1722, %v6147, 0
      %v6164 = vsel %vm1722, %v6149, 0
      %v6166 = vsel %vm1722, %v6151, 0
      %v6168 = vsel %vm1722, %v6153, 0
      %6170 = vmatpush.xpose.msra.mxu0 0.0
      %6171 = vmatpush.xpose.msra.mxu0 0.0
      %6172 = vmatpush.xpose.msra.mxu0 0.0
      %6173 = vmatpush.xpose.msra.mxu0 0.0
      %6174 = vmatpush.xpose.msra.mxu0 0.0
      %6175 = vmatpush.xpose.msra.mxu0 0.0
      %6176 = vmatpush.xpose.msra.mxu0 0.0
      %6177 = vmatpush.xpose.msra.mxu0 0.0
      %6178 = vmatpush.xpose.msra.mxu0 0.0
      %6179 = vmatpush.xpose.msra.mxu0 0.0
      %6180 = vmatpush.xpose.msra.mxu0 0.0
      %6181 = vmatpush.xpose.msra.mxu0 0.0
      %6182 = vmatpush.xpose.msra.mxu0 0.0
      %6183 = vmatpush.xpose.msra.mxu0 0.0
      %6184 = vmatpush.xpose.msra.mxu0 0.0
      %6185 = vmatpush.xpose.msra.mxu0 %v6168
      %6186 = vmatmul.f32.gmra.mxu0 %v6154
      %v6187 = vpop.f32.mrf.mxu0
      %v6188 = vadd.f32 0.0, %v6187
      %6189 = vmatmul.f32.gmra.mxu0 %v6156
      %v6190 = vpop.f32.mrf.mxu0
      %v6191 = vadd.f32 0.0, %v6190
      %6192 = vmatmul.f32.gmra.mxu0 %v6158
      %v6193 = vpop.f32.mrf.mxu0
      %v6194 = vadd.f32 0.0, %v6193
      %6195 = vmatmul.f32.gmra.mxu0 %v6160
      %v6196 = vpop.f32.mrf.mxu0
      %v6197 = vadd.f32 0.0, %v6196
      %6198 = vmatmul.f32.gmra.mxu0 %v6162
      %v6199 = vpop.f32.mrf.mxu0
      %v6200 = vadd.f32 0.0, %v6199
      %6201 = vmatmul.f32.gmra.mxu0 %v6164
      %v6202 = vpop.f32.mrf.mxu0
      %v6203 = vadd.f32 0.0, %v6202
      %6204 = vmatmul.f32.gmra.mxu0 %v6166
      %v6205 = vpop.f32.mrf.mxu0
      %v6206 = vadd.f32 0.0, %v6205
      %6207 = vdwg.mxu0
      %v6208 = vmul.f32 %v6188, 0.5
      %v6209 = vmul.f32 %v6191, 0.5
      %v6210 = vmul.f32 %v6194, 0.5
      %v6211 = vmul.f32 %v6197, 0.5
      %v6212 = vmul.f32 %v6200, 0.5
      %v6213 = vmul.f32 %v6203, 0.5
      %v6214 = vmul.f32 %v6206, 0.5
      %v6215 = vsel %vm1722, %v6208, -inf
      %6216 = vmax.xlane.f32.xlu0 %v6215
      %v6217 = vpop.xlane.xlu0 %6216
      %v6218 = vsel %vm1722, %v6209, -inf
      %6219 = vmax.xlane.f32.xlu0 %v6218
      %v6220 = vpop.xlane.xlu0 %6219
      %v6221 = vsel %vm1722, %v6210, -inf
      %6222 = vmax.xlane.f32.xlu0 %v6221
      %v6223 = vpop.xlane.xlu0 %6222
      %v6224 = vsel %vm1722, %v6211, -inf
      %6225 = vmax.xlane.f32.xlu0 %v6224
      %v6226 = vpop.xlane.xlu0 %6225
      %v6227 = vsel %vm1722, %v6212, -inf
      %6228 = vmax.xlane.f32.xlu0 %v6227
      %v6229 = vpop.xlane.xlu0 %6228
      %v6230 = vsel %vm1722, %v6213, -inf
      %6231 = vmax.xlane.f32.xlu0 %v6230
      %v6232 = vpop.xlane.xlu0 %6231
      %v6233 = vsel %vm1722, %v6214, -inf
      %6234 = vmax.xlane.f32.xlu0 %v6233
      %v6235 = vpop.xlane.xlu0 %6234
      %v6236 = vsub.f32 %v6208, %v6217
      %v6237 = vsub.f32 %v6209, %v6220
      %v6238 = vsub.f32 %v6210, %v6223
      %v6239 = vsub.f32 %v6211, %v6226
      %v6240 = vsub.f32 %v6212, %v6229
      %v6241 = vsub.f32 %v6213, %v6232
      %v6242 = vsub.f32 %v6214, %v6235
      %v6243 = vmul.f32 %v6236, 1.442695
      %v6244 = vpow.pop %v6243
      %v6245 = vmul.f32 %v6237, 1.442695
      %v6246 = vpow.pop %v6245
      %v6247 = vmul.f32 %v6238, 1.442695
      %v6248 = vpow.pop %v6247
      %v6249 = vmul.f32 %v6239, 1.442695
      %v6250 = vpow.pop %v6249
      %v6251 = vmul.f32 %v6240, 1.442695
      %v6252 = vpow.pop %v6251
      %v6253 = vmul.f32 %v6241, 1.442695
      %v6254 = vpow.pop %v6253
      %v6255 = vmul.f32 %v6242, 1.442695
      %v6256 = vpow.pop %v6255
      %v6257 = vsel %vm1722, %v6244, 0.0
      %6258 = vadd.xlane.f32.xlu0 %v6257
      %v6259 = vpop.xlane.xlu0 %6258
      %v6260 = vsel %vm1722, %v6246, 0.0
      %6261 = vadd.xlane.f32.xlu0 %v6260
      %v6262 = vpop.xlane.xlu0 %6261
      %v6263 = vsel %vm1722, %v6248, 0.0
      %6264 = vadd.xlane.f32.xlu0 %v6263
      %v6265 = vpop.xlane.xlu0 %6264
      %v6266 = vsel %vm1722, %v6250, 0.0
      %6267 = vadd.xlane.f32.xlu0 %v6266
      %v6268 = vpop.xlane.xlu0 %6267
      %v6269 = vsel %vm1722, %v6252, 0.0
      %6270 = vadd.xlane.f32.xlu0 %v6269
      %v6271 = vpop.xlane.xlu0 %6270
      %v6272 = vsel %vm1722, %v6254, 0.0
      %6273 = vadd.xlane.f32.xlu0 %v6272
      %v6274 = vpop.xlane.xlu0 %6273
      %v6275 = vsel %vm1722, %v6256, 0.0
      %6276 = vadd.xlane.f32.xlu0 %v6275
      %v6277 = vpop.xlane.xlu0 %6276
      %v6278 = vrcp.pop %v6259
      %v6279 = vrcp.pop %v6262
      %v6280 = vrcp.pop %v6265
      %v6281 = vrcp.pop %v6268
      %v6282 = vrcp.pop %v6271
      %v6283 = vrcp.pop %v6274
      %v6284 = vrcp.pop %v6277
      %6285 = vrot.lane.b32.xlu0 %v5927, 92
      %v6286 = vpop.permute.xlu0 %6285
      %v6288 = vsel %vm1722, %v6244, 0
      %v6291 = vsel %vm1722, %v6246, 0
      %v6294 = vsel %vm1722, %v6248, 0
      %v6297 = vsel %vm1722, %v6250, 0
      %v6300 = vsel %vm1722, %v6252, 0
      %v6303 = vsel %vm1722, %v6254, 0
      %v6306 = vsel %vm1722, %v6256, 0
      %v6308 = vsel %vm3959, %v6286, 0
      %6310 = vmatpush.msra.mxu0 0.0
      %6311 = vmatpush.msra.mxu0 0.0
      %6312 = vmatpush.msra.mxu0 0.0
      %6313 = vmatpush.msra.mxu0 0.0
      %6314 = vmatpush.msra.mxu0 0.0
      %6315 = vmatpush.msra.mxu0 0.0
      %6316 = vmatpush.msra.mxu0 0.0
      %6317 = vmatpush.msra.mxu0 0.0
      %6318 = vmatpush.msra.mxu0 0.0
      %6319 = vmatpush.msra.mxu0 0.0
      %6320 = vmatpush.msra.mxu0 0.0
      %6321 = vmatpush.msra.mxu0 0.0
      %6322 = vmatpush.msra.mxu0 0.0
      %6323 = vmatpush.msra.mxu0 0.0
      %6324 = vmatpush.msra.mxu0 0.0
      %6325 = vmatpush.msra.mxu0 %v6308
      %6326 = vmatmul.f32.gmra.mxu0 %v6288
      %v6327 = vpop.f32.mrf.mxu0
      %v6328 = vadd.f32 0.0, %v6327
      %6329 = vmatmul.f32.gmra.mxu0 %v6291
      %v6330 = vpop.f32.mrf.mxu0
      %v6331 = vadd.f32 0.0, %v6330
      %6332 = vmatmul.f32.gmra.mxu0 %v6294
      %v6333 = vpop.f32.mrf.mxu0
      %v6334 = vadd.f32 0.0, %v6333
      %6335 = vmatmul.f32.gmra.mxu0 %v6297
      %v6336 = vpop.f32.mrf.mxu0
      %v6337 = vadd.f32 0.0, %v6336
      %6338 = vmatmul.f32.gmra.mxu0 %v6300
      %v6339 = vpop.f32.mrf.mxu0
      %v6340 = vadd.f32 0.0, %v6339
      %6341 = vmatmul.f32.gmra.mxu0 %v6303
      %v6342 = vpop.f32.mrf.mxu0
      %v6343 = vadd.f32 0.0, %v6342
      %6344 = vmatmul.f32.gmra.mxu0 %v6306
      %v6345 = vpop.f32.mrf.mxu0
      %v6346 = vadd.f32 0.0, %v6345
      %6347 = vdwg.mxu0
      %v6348 = vmul.f32 %v6328, %v6278
      %v6349 = vmul.f32 %v6331, %v6279
      %v6350 = vmul.f32 %v6334, %v6280
      %v6351 = vmul.f32 %v6337, %v6281
      %v6352 = vmul.f32 %v6340, %v6282
      %v6353 = vmul.f32 %v6343, %v6283
      %v6354 = vmul.f32 %v6346, %v6284
      %6355 = vrot.lane.b32.xlu0 %v5869, 120
      %v6356 = vpop.permute.xlu0 %6355
      %6357 = vrot.lane.b32.xlu0 %v5872, 120
      %v6358 = vpop.permute.xlu0 %6357
      %6359 = vrot.lane.b32.xlu0 %v5875, 120
      %v6360 = vpop.permute.xlu0 %6359
      %6361 = vrot.lane.b32.xlu0 %v5878, 120
      %v6362 = vpop.permute.xlu0 %6361
      %6363 = vrot.lane.b32.xlu0 %v5881, 120
      %v6364 = vpop.permute.xlu0 %6363
      %6365 = vrot.lane.b32.xlu0 %v5884, 120
      %v6366 = vpop.permute.xlu0 %6365
      %6367 = vrot.lane.b32.xlu0 %v5887, 120
      %v6368 = vpop.permute.xlu0 %6367
      %6369 = vrot.lane.b32.xlu0 %v5927, 120
      %v6370 = vpop.permute.xlu0 %6369
      %v6371 = vsel %vm1722, %v6356, 0
      %v6373 = vsel %vm1722, %v6358, 0
      %v6375 = vsel %vm1722, %v6360, 0
      %v6377 = vsel %vm1722, %v6362, 0
      %v6379 = vsel %vm1722, %v6364, 0
      %v6381 = vsel %vm1722, %v6366, 0
      %v6383 = vsel %vm1722, %v6368, 0
      %v6385 = vsel %vm1722, %v6370, 0
      %6387 = vmatpush.xpose.msra.mxu0 0.0
      %6388 = vmatpush.xpose.msra.mxu0 0.0
      %6389 = vmatpush.xpose.msra.mxu0 0.0
      %6390 = vmatpush.xpose.msra.mxu0 0.0
      %6391 = vmatpush.xpose.msra.mxu0 0.0
      %6392 = vmatpush.xpose.msra.mxu0 0.0
      %6393 = vmatpush.xpose.msra.mxu0 0.0
      %6394 = vmatpush.xpose.msra.mxu0 0.0
      %6395 = vmatpush.xpose.msra.mxu0 0.0
      %6396 = vmatpush.xpose.msra.mxu0 0.0
      %6397 = vmatpush.xpose.msra.mxu0 0.0
      %6398 = vmatpush.xpose.msra.mxu0 0.0
      %6399 = vmatpush.xpose.msra.mxu0 0.0
      %6400 = vmatpush.xpose.msra.mxu0 0.0
      %6401 = vmatpush.xpose.msra.mxu0 0.0
      %6402 = vmatpush.xpose.msra.mxu0 %v6385
      %6403 = vmatmul.f32.gmra.mxu0 %v6371
      %v6404 = vpop.f32.mrf.mxu0
      %v6405 = vadd.f32 0.0, %v6404
      %6406 = vmatmul.f32.gmra.mxu0 %v6373
      %v6407 = vpop.f32.mrf.mxu0
      %v6408 = vadd.f32 0.0, %v6407
      %6409 = vmatmul.f32.gmra.mxu0 %v6375
      %v6410 = vpop.f32.mrf.mxu0
      %v6411 = vadd.f32 0.0, %v6410
      %6412 = vmatmul.f32.gmra.mxu0 %v6377
      %v6413 = vpop.f32.mrf.mxu0
      %v6414 = vadd.f32 0.0, %v6413
      %6415 = vmatmul.f32.gmra.mxu0 %v6379
      %v6416 = vpop.f32.mrf.mxu0
      %v6417 = vadd.f32 0.0, %v6416
      %6418 = vmatmul.f32.gmra.mxu0 %v6381
      %v6419 = vpop.f32.mrf.mxu0
      %v6420 = vadd.f32 0.0, %v6419
      %6421 = vmatmul.f32.gmra.mxu0 %v6383
      %v6422 = vpop.f32.mrf.mxu0
      %v6423 = vadd.f32 0.0, %v6422
      %6424 = vdwg.mxu0
      %v6425 = vmul.f32 %v6405, 0.5
      %v6426 = vmul.f32 %v6408, 0.5
      %v6427 = vmul.f32 %v6411, 0.5
      %v6428 = vmul.f32 %v6414, 0.5
      %v6429 = vmul.f32 %v6417, 0.5
      %v6430 = vmul.f32 %v6420, 0.5
      %v6431 = vmul.f32 %v6423, 0.5
      %v6432 = vsel %vm1722, %v6425, -inf
      %6433 = vmax.xlane.f32.xlu0 %v6432
      %v6434 = vpop.xlane.xlu0 %6433
      %v6435 = vsel %vm1722, %v6426, -inf
      %6436 = vmax.xlane.f32.xlu0 %v6435
      %v6437 = vpop.xlane.xlu0 %6436
      %v6438 = vsel %vm1722, %v6427, -inf
      %6439 = vmax.xlane.f32.xlu0 %v6438
      %v6440 = vpop.xlane.xlu0 %6439
      %v6441 = vsel %vm1722, %v6428, -inf
      %6442 = vmax.xlane.f32.xlu0 %v6441
      %v6443 = vpop.xlane.xlu0 %6442
      %v6444 = vsel %vm1722, %v6429, -inf
      %6445 = vmax.xlane.f32.xlu0 %v6444
      %v6446 = vpop.xlane.xlu0 %6445
      %v6447 = vsel %vm1722, %v6430, -inf
      %6448 = vmax.xlane.f32.xlu0 %v6447
      %v6449 = vpop.xlane.xlu0 %6448
      %v6450 = vsel %vm1722, %v6431, -inf
      %6451 = vmax.xlane.f32.xlu0 %v6450
      %v6452 = vpop.xlane.xlu0 %6451
      %v6453 = vsub.f32 %v6425, %v6434
      %v6454 = vsub.f32 %v6426, %v6437
      %v6455 = vsub.f32 %v6427, %v6440
      %v6456 = vsub.f32 %v6428, %v6443
      %v6457 = vsub.f32 %v6429, %v6446
      %v6458 = vsub.f32 %v6430, %v6449
      %v6459 = vsub.f32 %v6431, %v6452
      %v6460 = vmul.f32 %v6453, 1.442695
      %v6461 = vpow.pop %v6460
      %v6462 = vmul.f32 %v6454, 1.442695
      %v6463 = vpow.pop %v6462
      %v6464 = vmul.f32 %v6455, 1.442695
      %v6465 = vpow.pop %v6464
      %v6466 = vmul.f32 %v6456, 1.442695
      %v6467 = vpow.pop %v6466
      %v6468 = vmul.f32 %v6457, 1.442695
      %v6469 = vpow.pop %v6468
      %v6470 = vmul.f32 %v6458, 1.442695
      %v6471 = vpow.pop %v6470
      %v6472 = vmul.f32 %v6459, 1.442695
      %v6473 = vpow.pop %v6472
      %v6474 = vsel %vm1722, %v6461, 0.0
      %6475 = vadd.xlane.f32.xlu0 %v6474
      %v6476 = vpop.xlane.xlu0 %6475
      %v6477 = vsel %vm1722, %v6463, 0.0
      %6478 = vadd.xlane.f32.xlu0 %v6477
      %v6479 = vpop.xlane.xlu0 %6478
      %v6480 = vsel %vm1722, %v6465, 0.0
      %6481 = vadd.xlane.f32.xlu0 %v6480
      %v6482 = vpop.xlane.xlu0 %6481
      %v6483 = vsel %vm1722, %v6467, 0.0
      %6484 = vadd.xlane.f32.xlu0 %v6483
      %v6485 = vpop.xlane.xlu0 %6484
      %v6486 = vsel %vm1722, %v6469, 0.0
      %6487 = vadd.xlane.f32.xlu0 %v6486
      %v6488 = vpop.xlane.xlu0 %6487
      %v6489 = vsel %vm1722, %v6471, 0.0
      %6490 = vadd.xlane.f32.xlu0 %v6489
      %v6491 = vpop.xlane.xlu0 %6490
      %v6492 = vsel %vm1722, %v6473, 0.0
      %6493 = vadd.xlane.f32.xlu0 %v6492
      %v6494 = vpop.xlane.xlu0 %6493
      %v6495 = vrcp.pop %v6476
      %v6496 = vrcp.pop %v6479
      %v6497 = vrcp.pop %v6482
      %v6498 = vrcp.pop %v6485
      %v6499 = vrcp.pop %v6488
      %v6500 = vrcp.pop %v6491
      %v6501 = vrcp.pop %v6494
      %6502 = vrot.lane.b32.xlu0 %v5927, 88
      %v6503 = vpop.permute.xlu0 %6502
      %v6505 = vsel %vm1722, %v6461, 0
      %v6508 = vsel %vm1722, %v6463, 0
      %v6511 = vsel %vm1722, %v6465, 0
      %v6514 = vsel %vm1722, %v6467, 0
      %v6517 = vsel %vm1722, %v6469, 0
      %v6520 = vsel %vm1722, %v6471, 0
      %v6523 = vsel %vm1722, %v6473, 0
      %v6525 = vsel %vm3959, %v6503, 0
      %6527 = vmatpush.msra.mxu0 0.0
      %6528 = vmatpush.msra.mxu0 0.0
      %6529 = vmatpush.msra.mxu0 0.0
      %6530 = vmatpush.msra.mxu0 0.0
      %6531 = vmatpush.msra.mxu0 0.0
      %6532 = vmatpush.msra.mxu0 0.0
      %6533 = vmatpush.msra.mxu0 0.0
      %6534 = vmatpush.msra.mxu0 0.0
      %6535 = vmatpush.msra.mxu0 0.0
      %6536 = vmatpush.msra.mxu0 0.0
      %6537 = vmatpush.msra.mxu0 0.0
      %6538 = vmatpush.msra.mxu0 0.0
      %6539 = vmatpush.msra.mxu0 0.0
      %6540 = vmatpush.msra.mxu0 0.0
      %6541 = vmatpush.msra.mxu0 0.0
      %6542 = vmatpush.msra.mxu0 %v6525
      %6543 = vmatmul.f32.gmra.mxu0 %v6505
      %v6544 = vpop.f32.mrf.mxu0
      %v6545 = vadd.f32 0.0, %v6544
      %6546 = vmatmul.f32.gmra.mxu0 %v6508
      %v6547 = vpop.f32.mrf.mxu0
      %v6548 = vadd.f32 0.0, %v6547
      %6549 = vmatmul.f32.gmra.mxu0 %v6511
      %v6550 = vpop.f32.mrf.mxu0
      %v6551 = vadd.f32 0.0, %v6550
      %6552 = vmatmul.f32.gmra.mxu0 %v6514
      %v6553 = vpop.f32.mrf.mxu0
      %v6554 = vadd.f32 0.0, %v6553
      %6555 = vmatmul.f32.gmra.mxu0 %v6517
      %v6556 = vpop.f32.mrf.mxu0
      %v6557 = vadd.f32 0.0, %v6556
      %6558 = vmatmul.f32.gmra.mxu0 %v6520
      %v6559 = vpop.f32.mrf.mxu0
      %v6560 = vadd.f32 0.0, %v6559
      %6561 = vmatmul.f32.gmra.mxu0 %v6523
      %v6562 = vpop.f32.mrf.mxu0
      %v6563 = vadd.f32 0.0, %v6562
      %6564 = vdwg.mxu0
      %v6565 = vmul.f32 %v6545, %v6495
      %v6566 = vmul.f32 %v6548, %v6496
      %v6567 = vmul.f32 %v6551, %v6497
      %v6568 = vmul.f32 %v6554, %v6498
      %v6569 = vmul.f32 %v6557, %v6499
      %v6570 = vmul.f32 %v6560, %v6500
      %v6571 = vmul.f32 %v6563, %v6501
      %6572 = vrot.lane.b32.xlu0 %v5869, 116
      %v6573 = vpop.permute.xlu0 %6572
      %6574 = vrot.lane.b32.xlu0 %v5872, 116
      %v6575 = vpop.permute.xlu0 %6574
      %6576 = vrot.lane.b32.xlu0 %v5875, 116
      %v6577 = vpop.permute.xlu0 %6576
      %6578 = vrot.lane.b32.xlu0 %v5878, 116
      %v6579 = vpop.permute.xlu0 %6578
      %6580 = vrot.lane.b32.xlu0 %v5881, 116
      %v6581 = vpop.permute.xlu0 %6580
      %6582 = vrot.lane.b32.xlu0 %v5884, 116
      %v6583 = vpop.permute.xlu0 %6582
      %6584 = vrot.lane.b32.xlu0 %v5887, 116
      %v6585 = vpop.permute.xlu0 %6584
      %6586 = vrot.lane.b32.xlu0 %v5927, 116
      %v6587 = vpop.permute.xlu0 %6586
      %v6588 = vsel %vm1722, %v6573, 0
      %v6590 = vsel %vm1722, %v6575, 0
      %v6592 = vsel %vm1722, %v6577, 0
      %v6594 = vsel %vm1722, %v6579, 0
      %v6596 = vsel %vm1722, %v6581, 0
      %v6598 = vsel %vm1722, %v6583, 0
      %v6600 = vsel %vm1722, %v6585, 0
      %v6602 = vsel %vm1722, %v6587, 0
      %6604 = vmatpush.xpose.msra.mxu0 0.0
      %6605 = vmatpush.xpose.msra.mxu0 0.0
      %6606 = vmatpush.xpose.msra.mxu0 0.0
      %6607 = vmatpush.xpose.msra.mxu0 0.0
      %6608 = vmatpush.xpose.msra.mxu0 0.0
      %6609 = vmatpush.xpose.msra.mxu0 0.0
      %6610 = vmatpush.xpose.msra.mxu0 0.0
      %6611 = vmatpush.xpose.msra.mxu0 0.0
      %6612 = vmatpush.xpose.msra.mxu0 0.0
      %6613 = vmatpush.xpose.msra.mxu0 0.0
      %6614 = vmatpush.xpose.msra.mxu0 0.0
      %6615 = vmatpush.xpose.msra.mxu0 0.0
      %6616 = vmatpush.xpose.msra.mxu0 0.0
      %6617 = vmatpush.xpose.msra.mxu0 0.0
      %6618 = vmatpush.xpose.msra.mxu0 0.0
      %6619 = vmatpush.xpose.msra.mxu0 %v6602
      %6620 = vmatmul.f32.gmra.mxu0 %v6588
      %v6621 = vpop.f32.mrf.mxu0
      %v6622 = vadd.f32 0.0, %v6621
      %6623 = vmatmul.f32.gmra.mxu0 %v6590
      %v6624 = vpop.f32.mrf.mxu0
      %v6625 = vadd.f32 0.0, %v6624
      %6626 = vmatmul.f32.gmra.mxu0 %v6592
      %v6627 = vpop.f32.mrf.mxu0
      %v6628 = vadd.f32 0.0, %v6627
      %6629 = vmatmul.f32.gmra.mxu0 %v6594
      %v6630 = vpop.f32.mrf.mxu0
      %v6631 = vadd.f32 0.0, %v6630
      %6632 = vmatmul.f32.gmra.mxu0 %v6596
      %v6633 = vpop.f32.mrf.mxu0
      %v6634 = vadd.f32 0.0, %v6633
      %6635 = vmatmul.f32.gmra.mxu0 %v6598
      %v6636 = vpop.f32.mrf.mxu0
      %v6637 = vadd.f32 0.0, %v6636
      %6638 = vmatmul.f32.gmra.mxu0 %v6600
      %v6639 = vpop.f32.mrf.mxu0
      %v6640 = vadd.f32 0.0, %v6639
      %6641 = vdwg.mxu0
      %v6642 = vmul.f32 %v6622, 0.5
      %v6643 = vmul.f32 %v6625, 0.5
      %v6644 = vmul.f32 %v6628, 0.5
      %v6645 = vmul.f32 %v6631, 0.5
      %v6646 = vmul.f32 %v6634, 0.5
      %v6647 = vmul.f32 %v6637, 0.5
      %v6648 = vmul.f32 %v6640, 0.5
      %v6649 = vsel %vm1722, %v6642, -inf
      %6650 = vmax.xlane.f32.xlu0 %v6649
      %v6651 = vpop.xlane.xlu0 %6650
      %v6652 = vsel %vm1722, %v6643, -inf
      %6653 = vmax.xlane.f32.xlu0 %v6652
      %v6654 = vpop.xlane.xlu0 %6653
      %v6655 = vsel %vm1722, %v6644, -inf
      %6656 = vmax.xlane.f32.xlu0 %v6655
      %v6657 = vpop.xlane.xlu0 %6656
      %v6658 = vsel %vm1722, %v6645, -inf
      %6659 = vmax.xlane.f32.xlu0 %v6658
      %v6660 = vpop.xlane.xlu0 %6659
      %v6661 = vsel %vm1722, %v6646, -inf
      %6662 = vmax.xlane.f32.xlu0 %v6661
      %v6663 = vpop.xlane.xlu0 %6662
      %v6664 = vsel %vm1722, %v6647, -inf
      %6665 = vmax.xlane.f32.xlu0 %v6664
      %v6666 = vpop.xlane.xlu0 %6665
      %v6667 = vsel %vm1722, %v6648, -inf
      %6668 = vmax.xlane.f32.xlu0 %v6667
      %v6669 = vpop.xlane.xlu0 %6668
      %v6670 = vsub.f32 %v6642, %v6651
      %v6671 = vsub.f32 %v6643, %v6654
      %v6672 = vsub.f32 %v6644, %v6657
      %v6673 = vsub.f32 %v6645, %v6660
      %v6674 = vsub.f32 %v6646, %v6663
      %v6675 = vsub.f32 %v6647, %v6666
      %v6676 = vsub.f32 %v6648, %v6669
      %v6677 = vmul.f32 %v6670, 1.442695
      %v6678 = vpow.pop %v6677
      %v6679 = vmul.f32 %v6671, 1.442695
      %v6680 = vpow.pop %v6679
      %v6681 = vmul.f32 %v6672, 1.442695
      %v6682 = vpow.pop %v6681
      %v6683 = vmul.f32 %v6673, 1.442695
      %v6684 = vpow.pop %v6683
      %v6685 = vmul.f32 %v6674, 1.442695
      %v6686 = vpow.pop %v6685
      %v6687 = vmul.f32 %v6675, 1.442695
      %v6688 = vpow.pop %v6687
      %v6689 = vmul.f32 %v6676, 1.442695
      %v6690 = vpow.pop %v6689
      %v6691 = vsel %vm1722, %v6678, 0.0
      %6692 = vadd.xlane.f32.xlu0 %v6691
      %v6693 = vpop.xlane.xlu0 %6692
      %v6694 = vsel %vm1722, %v6680, 0.0
      %6695 = vadd.xlane.f32.xlu0 %v6694
      %v6696 = vpop.xlane.xlu0 %6695
      %v6697 = vsel %vm1722, %v6682, 0.0
      %6698 = vadd.xlane.f32.xlu0 %v6697
      %v6699 = vpop.xlane.xlu0 %6698
      %v6700 = vsel %vm1722, %v6684, 0.0
      %6701 = vadd.xlane.f32.xlu0 %v6700
      %v6702 = vpop.xlane.xlu0 %6701
      %v6703 = vsel %vm1722, %v6686, 0.0
      %6704 = vadd.xlane.f32.xlu0 %v6703
      %v6705 = vpop.xlane.xlu0 %6704
      %v6706 = vsel %vm1722, %v6688, 0.0
      %6707 = vadd.xlane.f32.xlu0 %v6706
      %v6708 = vpop.xlane.xlu0 %6707
      %v6709 = vsel %vm1722, %v6690, 0.0
      %6710 = vadd.xlane.f32.xlu0 %v6709
      %v6711 = vpop.xlane.xlu0 %6710
      %v6712 = vrcp.pop %v6693
      %v6713 = vrcp.pop %v6696
      %v6714 = vrcp.pop %v6699
      %v6715 = vrcp.pop %v6702
      %v6716 = vrcp.pop %v6705
      %v6717 = vrcp.pop %v6708
      %v6718 = vrcp.pop %v6711
      %6719 = vrot.lane.b32.xlu0 %v5927, 84
      %v6720 = vpop.permute.xlu0 %6719
      %v6722 = vsel %vm1722, %v6678, 0
      %v6725 = vsel %vm1722, %v6680, 0
      %v6728 = vsel %vm1722, %v6682, 0
      %v6731 = vsel %vm1722, %v6684, 0
      %v6734 = vsel %vm1722, %v6686, 0
      %v6737 = vsel %vm1722, %v6688, 0
      %v6740 = vsel %vm1722, %v6690, 0
      %v6742 = vsel %vm3959, %v6720, 0
      %6744 = vmatpush.msra.mxu0 0.0
      %6745 = vmatpush.msra.mxu0 0.0
      %6746 = vmatpush.msra.mxu0 0.0
      %6747 = vmatpush.msra.mxu0 0.0
      %6748 = vmatpush.msra.mxu0 0.0
      %6749 = vmatpush.msra.mxu0 0.0
      %6750 = vmatpush.msra.mxu0 0.0
      %6751 = vmatpush.msra.mxu0 0.0
      %6752 = vmatpush.msra.mxu0 0.0
      %6753 = vmatpush.msra.mxu0 0.0
      %6754 = vmatpush.msra.mxu0 0.0
      %6755 = vmatpush.msra.mxu0 0.0
      %6756 = vmatpush.msra.mxu0 0.0
      %6757 = vmatpush.msra.mxu0 0.0
      %6758 = vmatpush.msra.mxu0 0.0
      %6759 = vmatpush.msra.mxu0 %v6742
      %6760 = vmatmul.f32.gmra.mxu0 %v6722
      %v6761 = vpop.f32.mrf.mxu0
      %v6762 = vadd.f32 0.0, %v6761
      %6763 = vmatmul.f32.gmra.mxu0 %v6725
      %v6764 = vpop.f32.mrf.mxu0
      %v6765 = vadd.f32 0.0, %v6764
      %6766 = vmatmul.f32.gmra.mxu0 %v6728
      %v6767 = vpop.f32.mrf.mxu0
      %v6768 = vadd.f32 0.0, %v6767
      %6769 = vmatmul.f32.gmra.mxu0 %v6731
      %v6770 = vpop.f32.mrf.mxu0
      %v6771 = vadd.f32 0.0, %v6770
      %6772 = vmatmul.f32.gmra.mxu0 %v6734
      %v6773 = vpop.f32.mrf.mxu0
      %v6774 = vadd.f32 0.0, %v6773
      %6775 = vmatmul.f32.gmra.mxu0 %v6737
      %v6776 = vpop.f32.mrf.mxu0
      %v6777 = vadd.f32 0.0, %v6776
      %6778 = vmatmul.f32.gmra.mxu0 %v6740
      %v6779 = vpop.f32.mrf.mxu0
      %v6780 = vadd.f32 0.0, %v6779
      %6781 = vdwg.mxu0
      %v6782 = vmul.f32 %v6762, %v6712
      %v6783 = vmul.f32 %v6765, %v6713
      %v6784 = vmul.f32 %v6768, %v6714
      %v6785 = vmul.f32 %v6771, %v6715
      %v6786 = vmul.f32 %v6774, %v6716
      %v6787 = vmul.f32 %v6777, %v6717
      %v6788 = vmul.f32 %v6780, %v6718
      %6789 = vrot.lane.b32.xlu0 %v5869, 112
      %v6790 = vpop.permute.xlu0 %6789
      %6791 = vrot.lane.b32.xlu0 %v5872, 112
      %v6792 = vpop.permute.xlu0 %6791
      %6793 = vrot.lane.b32.xlu0 %v5875, 112
      %v6794 = vpop.permute.xlu0 %6793
      %6795 = vrot.lane.b32.xlu0 %v5878, 112
      %v6796 = vpop.permute.xlu0 %6795
      %6797 = vrot.lane.b32.xlu0 %v5881, 112
      %v6798 = vpop.permute.xlu0 %6797
      %6799 = vrot.lane.b32.xlu0 %v5884, 112
      %v6800 = vpop.permute.xlu0 %6799
      %6801 = vrot.lane.b32.xlu0 %v5887, 112
      %v6802 = vpop.permute.xlu0 %6801
      %6803 = vrot.lane.b32.xlu0 %v5927, 112
      %v6804 = vpop.permute.xlu0 %6803
      %v6805 = vsel %vm1722, %v6790, 0
      %v6807 = vsel %vm1722, %v6792, 0
      %v6809 = vsel %vm1722, %v6794, 0
      %v6811 = vsel %vm1722, %v6796, 0
      %v6813 = vsel %vm1722, %v6798, 0
      %v6815 = vsel %vm1722, %v6800, 0
      %v6817 = vsel %vm1722, %v6802, 0
      %v6819 = vsel %vm1722, %v6804, 0
      %6821 = vmatpush.xpose.msra.mxu0 0.0
      %6822 = vmatpush.xpose.msra.mxu0 0.0
      %6823 = vmatpush.xpose.msra.mxu0 0.0
      %6824 = vmatpush.xpose.msra.mxu0 0.0
      %6825 = vmatpush.xpose.msra.mxu0 0.0
      %6826 = vmatpush.xpose.msra.mxu0 0.0
      %6827 = vmatpush.xpose.msra.mxu0 0.0
      %6828 = vmatpush.xpose.msra.mxu0 0.0
      %6829 = vmatpush.xpose.msra.mxu0 0.0
      %6830 = vmatpush.xpose.msra.mxu0 0.0
      %6831 = vmatpush.xpose.msra.mxu0 0.0
      %6832 = vmatpush.xpose.msra.mxu0 0.0
      %6833 = vmatpush.xpose.msra.mxu0 0.0
      %6834 = vmatpush.xpose.msra.mxu0 0.0
      %6835 = vmatpush.xpose.msra.mxu0 0.0
      %6836 = vmatpush.xpose.msra.mxu0 %v6819
      %6837 = vmatmul.f32.gmra.mxu0 %v6805
      %v6838 = vpop.f32.mrf.mxu0
      %v6839 = vadd.f32 0.0, %v6838
      %6840 = vmatmul.f32.gmra.mxu0 %v6807
      %v6841 = vpop.f32.mrf.mxu0
      %v6842 = vadd.f32 0.0, %v6841
      %6843 = vmatmul.f32.gmra.mxu0 %v6809
      %v6844 = vpop.f32.mrf.mxu0
      %v6845 = vadd.f32 0.0, %v6844
      %6846 = vmatmul.f32.gmra.mxu0 %v6811
      %v6847 = vpop.f32.mrf.mxu0
      %v6848 = vadd.f32 0.0, %v6847
      %6849 = vmatmul.f32.gmra.mxu0 %v6813
      %v6850 = vpop.f32.mrf.mxu0
      %v6851 = vadd.f32 0.0, %v6850
      %6852 = vmatmul.f32.gmra.mxu0 %v6815
      %v6853 = vpop.f32.mrf.mxu0
      %v6854 = vadd.f32 0.0, %v6853
      %6855 = vmatmul.f32.gmra.mxu0 %v6817
      %v6856 = vpop.f32.mrf.mxu0
      %v6857 = vadd.f32 0.0, %v6856
      %6858 = vdwg.mxu0
      %v6859 = vmul.f32 %v6839, 0.5
      %v6860 = vmul.f32 %v6842, 0.5
      %v6861 = vmul.f32 %v6845, 0.5
      %v6862 = vmul.f32 %v6848, 0.5
      %v6863 = vmul.f32 %v6851, 0.5
      %v6864 = vmul.f32 %v6854, 0.5
      %v6865 = vmul.f32 %v6857, 0.5
      %v6866 = vsel %vm1722, %v6859, -inf
      %6867 = vmax.xlane.f32.xlu0 %v6866
      %v6868 = vpop.xlane.xlu0 %6867
      %v6869 = vsel %vm1722, %v6860, -inf
      %6870 = vmax.xlane.f32.xlu0 %v6869
      %v6871 = vpop.xlane.xlu0 %6870
      %v6872 = vsel %vm1722, %v6861, -inf
      %6873 = vmax.xlane.f32.xlu0 %v6872
      %v6874 = vpop.xlane.xlu0 %6873
      %v6875 = vsel %vm1722, %v6862, -inf
      %6876 = vmax.xlane.f32.xlu0 %v6875
      %v6877 = vpop.xlane.xlu0 %6876
      %v6878 = vsel %vm1722, %v6863, -inf
      %6879 = vmax.xlane.f32.xlu0 %v6878
      %v6880 = vpop.xlane.xlu0 %6879
      %v6881 = vsel %vm1722, %v6864, -inf
      %6882 = vmax.xlane.f32.xlu0 %v6881
      %v6883 = vpop.xlane.xlu0 %6882
      %v6884 = vsel %vm1722, %v6865, -inf
      %6885 = vmax.xlane.f32.xlu0 %v6884
      %v6886 = vpop.xlane.xlu0 %6885
      %v6887 = vsub.f32 %v6859, %v6868
      %v6888 = vsub.f32 %v6860, %v6871
      %v6889 = vsub.f32 %v6861, %v6874
      %v6890 = vsub.f32 %v6862, %v6877
      %v6891 = vsub.f32 %v6863, %v6880
      %v6892 = vsub.f32 %v6864, %v6883
      %v6893 = vsub.f32 %v6865, %v6886
      %v6894 = vmul.f32 %v6887, 1.442695
      %v6895 = vpow.pop %v6894
      %v6896 = vmul.f32 %v6888, 1.442695
      %v6897 = vpow.pop %v6896
      %v6898 = vmul.f32 %v6889, 1.442695
      %v6899 = vpow.pop %v6898
      %v6900 = vmul.f32 %v6890, 1.442695
      %v6901 = vpow.pop %v6900
      %v6902 = vmul.f32 %v6891, 1.442695
      %v6903 = vpow.pop %v6902
      %v6904 = vmul.f32 %v6892, 1.442695
      %v6905 = vpow.pop %v6904
      %v6906 = vmul.f32 %v6893, 1.442695
      %v6907 = vpow.pop %v6906
      %v6908 = vsel %vm1722, %v6895, 0.0
      %6909 = vadd.xlane.f32.xlu0 %v6908
      %v6910 = vpop.xlane.xlu0 %6909
      %v6911 = vsel %vm1722, %v6897, 0.0
      %6912 = vadd.xlane.f32.xlu0 %v6911
      %v6913 = vpop.xlane.xlu0 %6912
      %v6914 = vsel %vm1722, %v6899, 0.0
      %6915 = vadd.xlane.f32.xlu0 %v6914
      %v6916 = vpop.xlane.xlu0 %6915
      %v6917 = vsel %vm1722, %v6901, 0.0
      %6918 = vadd.xlane.f32.xlu0 %v6917
      %v6919 = vpop.xlane.xlu0 %6918
      %v6920 = vsel %vm1722, %v6903, 0.0
      %6921 = vadd.xlane.f32.xlu0 %v6920
      %v6922 = vpop.xlane.xlu0 %6921
      %v6923 = vsel %vm1722, %v6905, 0.0
      %6924 = vadd.xlane.f32.xlu0 %v6923
      %v6925 = vpop.xlane.xlu0 %6924
      %v6926 = vsel %vm1722, %v6907, 0.0
      %6927 = vadd.xlane.f32.xlu0 %v6926
      %v6928 = vpop.xlane.xlu0 %6927
      %v6929 = vrcp.pop %v6910
      %v6930 = vrcp.pop %v6913
      %v6931 = vrcp.pop %v6916
      %v6932 = vrcp.pop %v6919
      %v6933 = vrcp.pop %v6922
      %v6934 = vrcp.pop %v6925
      %v6935 = vrcp.pop %v6928
      %6936 = vrot.lane.b32.xlu0 %v5927, 80
      %v6937 = vpop.permute.xlu0 %6936
      %v6939 = vsel %vm1722, %v6895, 0
      %v6942 = vsel %vm1722, %v6897, 0
      %v6945 = vsel %vm1722, %v6899, 0
      %v6948 = vsel %vm1722, %v6901, 0
      %v6951 = vsel %vm1722, %v6903, 0
      %v6954 = vsel %vm1722, %v6905, 0
      %v6957 = vsel %vm1722, %v6907, 0
      %v6959 = vsel %vm3959, %v6937, 0
      %6961 = vmatpush.msra.mxu0 0.0
      %6962 = vmatpush.msra.mxu0 0.0
      %6963 = vmatpush.msra.mxu0 0.0
      %6964 = vmatpush.msra.mxu0 0.0
      %6965 = vmatpush.msra.mxu0 0.0
      %6966 = vmatpush.msra.mxu0 0.0
      %6967 = vmatpush.msra.mxu0 0.0
      %6968 = vmatpush.msra.mxu0 0.0
      %6969 = vmatpush.msra.mxu0 0.0
      %6970 = vmatpush.msra.mxu0 0.0
      %6971 = vmatpush.msra.mxu0 0.0
      %6972 = vmatpush.msra.mxu0 0.0
      %6973 = vmatpush.msra.mxu0 0.0
      %6974 = vmatpush.msra.mxu0 0.0
      %6975 = vmatpush.msra.mxu0 0.0
      %6976 = vmatpush.msra.mxu0 %v6959
      %6977 = vmatmul.f32.gmra.mxu0 %v6939
      %v6978 = vpop.f32.mrf.mxu0
      %v6979 = vadd.f32 0.0, %v6978
      %6980 = vmatmul.f32.gmra.mxu0 %v6942
      %v6981 = vpop.f32.mrf.mxu0
      %v6982 = vadd.f32 0.0, %v6981
      %6983 = vmatmul.f32.gmra.mxu0 %v6945
      %v6984 = vpop.f32.mrf.mxu0
      %v6985 = vadd.f32 0.0, %v6984
      %6986 = vmatmul.f32.gmra.mxu0 %v6948
      %v6987 = vpop.f32.mrf.mxu0
      %v6988 = vadd.f32 0.0, %v6987
      %6989 = vmatmul.f32.gmra.mxu0 %v6951
      %v6990 = vpop.f32.mrf.mxu0
      %v6991 = vadd.f32 0.0, %v6990
      %6992 = vmatmul.f32.gmra.mxu0 %v6954
      %v6993 = vpop.f32.mrf.mxu0
      %v6994 = vadd.f32 0.0, %v6993
      %6995 = vmatmul.f32.gmra.mxu0 %v6957
      %v6996 = vpop.f32.mrf.mxu0
      %v6997 = vadd.f32 0.0, %v6996
      %6998 = vdwg.mxu0
      %v6999 = vmul.f32 %v6979, %v6929
      %v7000 = vmul.f32 %v6982, %v6930
      %v7001 = vmul.f32 %v6985, %v6931
      %v7002 = vmul.f32 %v6988, %v6932
      %v7003 = vmul.f32 %v6991, %v6933
      %v7004 = vmul.f32 %v6994, %v6934
      %v7005 = vmul.f32 %v6997, %v6935
      %7006 = vrot.lane.b32.xlu0 %v5869, 108
      %v7007 = vpop.permute.xlu0 %7006
      %7008 = vrot.lane.b32.xlu0 %v5872, 108
      %v7009 = vpop.permute.xlu0 %7008
      %7010 = vrot.lane.b32.xlu0 %v5875, 108
      %v7011 = vpop.permute.xlu0 %7010
      %7012 = vrot.lane.b32.xlu0 %v5878, 108
      %v7013 = vpop.permute.xlu0 %7012
      %7014 = vrot.lane.b32.xlu0 %v5881, 108
      %v7015 = vpop.permute.xlu0 %7014
      %7016 = vrot.lane.b32.xlu0 %v5884, 108
      %v7017 = vpop.permute.xlu0 %7016
      %7018 = vrot.lane.b32.xlu0 %v5887, 108
      %v7019 = vpop.permute.xlu0 %7018
      %7020 = vrot.lane.b32.xlu0 %v5927, 108
      %v7021 = vpop.permute.xlu0 %7020
      %v7022 = vsel %vm1722, %v7007, 0
      %v7024 = vsel %vm1722, %v7009, 0
      %v7026 = vsel %vm1722, %v7011, 0
      %v7028 = vsel %vm1722, %v7013, 0
      %v7030 = vsel %vm1722, %v7015, 0
      %v7032 = vsel %vm1722, %v7017, 0
      %v7034 = vsel %vm1722, %v7019, 0
      %v7036 = vsel %vm1722, %v7021, 0
      %7038 = vmatpush.xpose.msra.mxu0 0.0
      %7039 = vmatpush.xpose.msra.mxu0 0.0
      %7040 = vmatpush.xpose.msra.mxu0 0.0
      %7041 = vmatpush.xpose.msra.mxu0 0.0
      %7042 = vmatpush.xpose.msra.mxu0 0.0
      %7043 = vmatpush.xpose.msra.mxu0 0.0
      %7044 = vmatpush.xpose.msra.mxu0 0.0
      %7045 = vmatpush.xpose.msra.mxu0 0.0
      %7046 = vmatpush.xpose.msra.mxu0 0.0
      %7047 = vmatpush.xpose.msra.mxu0 0.0
      %7048 = vmatpush.xpose.msra.mxu0 0.0
      %7049 = vmatpush.xpose.msra.mxu0 0.0
      %7050 = vmatpush.xpose.msra.mxu0 0.0
      %7051 = vmatpush.xpose.msra.mxu0 0.0
      %7052 = vmatpush.xpose.msra.mxu0 0.0
      %7053 = vmatpush.xpose.msra.mxu0 %v7036
      %7054 = vmatmul.f32.gmra.mxu0 %v7022
      %v7055 = vpop.f32.mrf.mxu0
      %v7056 = vadd.f32 0.0, %v7055
      %7057 = vmatmul.f32.gmra.mxu0 %v7024
      %v7058 = vpop.f32.mrf.mxu0
      %v7059 = vadd.f32 0.0, %v7058
      %7060 = vmatmul.f32.gmra.mxu0 %v7026
      %v7061 = vpop.f32.mrf.mxu0
      %v7062 = vadd.f32 0.0, %v7061
      %7063 = vmatmul.f32.gmra.mxu0 %v7028
      %v7064 = vpop.f32.mrf.mxu0
      %v7065 = vadd.f32 0.0, %v7064
      %7066 = vmatmul.f32.gmra.mxu0 %v7030
      %v7067 = vpop.f32.mrf.mxu0
      %v7068 = vadd.f32 0.0, %v7067
      %7069 = vmatmul.f32.gmra.mxu0 %v7032
      %v7070 = vpop.f32.mrf.mxu0
      %v7071 = vadd.f32 0.0, %v7070
      %7072 = vmatmul.f32.gmra.mxu0 %v7034
      %v7073 = vpop.f32.mrf.mxu0
      %v7074 = vadd.f32 0.0, %v7073
      %7075 = vdwg.mxu0
      %v7076 = vmul.f32 %v7056, 0.5
      %v7077 = vmul.f32 %v7059, 0.5
      %v7078 = vmul.f32 %v7062, 0.5
      %v7079 = vmul.f32 %v7065, 0.5
      %v7080 = vmul.f32 %v7068, 0.5
      %v7081 = vmul.f32 %v7071, 0.5
      %v7082 = vmul.f32 %v7074, 0.5
      %v7083 = vsel %vm1722, %v7076, -inf
      %7084 = vmax.xlane.f32.xlu0 %v7083
      %v7085 = vpop.xlane.xlu0 %7084
      %v7086 = vsel %vm1722, %v7077, -inf
      %7087 = vmax.xlane.f32.xlu0 %v7086
      %v7088 = vpop.xlane.xlu0 %7087
      %v7089 = vsel %vm1722, %v7078, -inf
      %7090 = vmax.xlane.f32.xlu0 %v7089
      %v7091 = vpop.xlane.xlu0 %7090
      %v7092 = vsel %vm1722, %v7079, -inf
      %7093 = vmax.xlane.f32.xlu0 %v7092
      %v7094 = vpop.xlane.xlu0 %7093
      %v7095 = vsel %vm1722, %v7080, -inf
      %7096 = vmax.xlane.f32.xlu0 %v7095
      %v7097 = vpop.xlane.xlu0 %7096
      %v7098 = vsel %vm1722, %v7081, -inf
      %7099 = vmax.xlane.f32.xlu0 %v7098
      %v7100 = vpop.xlane.xlu0 %7099
      %v7101 = vsel %vm1722, %v7082, -inf
      %7102 = vmax.xlane.f32.xlu0 %v7101
      %v7103 = vpop.xlane.xlu0 %7102
      %v7104 = vsub.f32 %v7076, %v7085
      %v7105 = vsub.f32 %v7077, %v7088
      %v7106 = vsub.f32 %v7078, %v7091
      %v7107 = vsub.f32 %v7079, %v7094
      %v7108 = vsub.f32 %v7080, %v7097
      %v7109 = vsub.f32 %v7081, %v7100
      %v7110 = vsub.f32 %v7082, %v7103
      %v7111 = vmul.f32 %v7104, 1.442695
      %v7112 = vpow.pop %v7111
      %v7113 = vmul.f32 %v7105, 1.442695
      %v7114 = vpow.pop %v7113
      %v7115 = vmul.f32 %v7106, 1.442695
      %v7116 = vpow.pop %v7115
      %v7117 = vmul.f32 %v7107, 1.442695
      %v7118 = vpow.pop %v7117
      %v7119 = vmul.f32 %v7108, 1.442695
      %v7120 = vpow.pop %v7119
      %v7121 = vmul.f32 %v7109, 1.442695
      %v7122 = vpow.pop %v7121
      %v7123 = vmul.f32 %v7110, 1.442695
      %v7124 = vpow.pop %v7123
      %v7125 = vsel %vm1722, %v7112, 0.0
      %7126 = vadd.xlane.f32.xlu0 %v7125
      %v7127 = vpop.xlane.xlu0 %7126
      %v7128 = vsel %vm1722, %v7114, 0.0
      %7129 = vadd.xlane.f32.xlu0 %v7128
      %v7130 = vpop.xlane.xlu0 %7129
      %v7131 = vsel %vm1722, %v7116, 0.0
      %7132 = vadd.xlane.f32.xlu0 %v7131
      %v7133 = vpop.xlane.xlu0 %7132
      %v7134 = vsel %vm1722, %v7118, 0.0
      %7135 = vadd.xlane.f32.xlu0 %v7134
      %v7136 = vpop.xlane.xlu0 %7135
      %v7137 = vsel %vm1722, %v7120, 0.0
      %7138 = vadd.xlane.f32.xlu0 %v7137
      %v7139 = vpop.xlane.xlu0 %7138
      %v7140 = vsel %vm1722, %v7122, 0.0
      %7141 = vadd.xlane.f32.xlu0 %v7140
      %v7142 = vpop.xlane.xlu0 %7141
      %v7143 = vsel %vm1722, %v7124, 0.0
      %7144 = vadd.xlane.f32.xlu0 %v7143
      %v7145 = vpop.xlane.xlu0 %7144
      %v7146 = vrcp.pop %v7127
      %v7147 = vrcp.pop %v7130
      %v7148 = vrcp.pop %v7133
      %v7149 = vrcp.pop %v7136
      %v7150 = vrcp.pop %v7139
      %v7151 = vrcp.pop %v7142
      %v7152 = vrcp.pop %v7145
      %7153 = vrot.lane.b32.xlu0 %v5927, 76
      %v7154 = vpop.permute.xlu0 %7153
      %v7156 = vsel %vm1722, %v7112, 0
      %v7159 = vsel %vm1722, %v7114, 0
      %v7162 = vsel %vm1722, %v7116, 0
      %v7165 = vsel %vm1722, %v7118, 0
      %v7168 = vsel %vm1722, %v7120, 0
      %v7171 = vsel %vm1722, %v7122, 0
      %v7174 = vsel %vm1722, %v7124, 0
      %v7176 = vsel %vm3959, %v7154, 0
      %7178 = vmatpush.msra.mxu0 0.0
      %7179 = vmatpush.msra.mxu0 0.0
      %7180 = vmatpush.msra.mxu0 0.0
      %7181 = vmatpush.msra.mxu0 0.0
      %7182 = vmatpush.msra.mxu0 0.0
      %7183 = vmatpush.msra.mxu0 0.0
      %7184 = vmatpush.msra.mxu0 0.0
      %7185 = vmatpush.msra.mxu0 0.0
      %7186 = vmatpush.msra.mxu0 0.0
      %7187 = vmatpush.msra.mxu0 0.0
      %7188 = vmatpush.msra.mxu0 0.0
      %7189 = vmatpush.msra.mxu0 0.0
      %7190 = vmatpush.msra.mxu0 0.0
      %7191 = vmatpush.msra.mxu0 0.0
      %7192 = vmatpush.msra.mxu0 0.0
      %7193 = vmatpush.msra.mxu0 %v7176
      %7194 = vmatmul.f32.gmra.mxu0 %v7156
      %v7195 = vpop.f32.mrf.mxu0
      %v7196 = vadd.f32 0.0, %v7195
      %7197 = vmatmul.f32.gmra.mxu0 %v7159
      %v7198 = vpop.f32.mrf.mxu0
      %v7199 = vadd.f32 0.0, %v7198
      %7200 = vmatmul.f32.gmra.mxu0 %v7162
      %v7201 = vpop.f32.mrf.mxu0
      %v7202 = vadd.f32 0.0, %v7201
      %7203 = vmatmul.f32.gmra.mxu0 %v7165
      %v7204 = vpop.f32.mrf.mxu0
      %v7205 = vadd.f32 0.0, %v7204
      %7206 = vmatmul.f32.gmra.mxu0 %v7168
      %v7207 = vpop.f32.mrf.mxu0
      %v7208 = vadd.f32 0.0, %v7207
      %7209 = vmatmul.f32.gmra.mxu0 %v7171
      %v7210 = vpop.f32.mrf.mxu0
      %v7211 = vadd.f32 0.0, %v7210
      %7212 = vmatmul.f32.gmra.mxu0 %v7174
      %v7213 = vpop.f32.mrf.mxu0
      %v7214 = vadd.f32 0.0, %v7213
      %7215 = vdwg.mxu0
      %v7216 = vmul.f32 %v7196, %v7146
      %v7217 = vmul.f32 %v7199, %v7147
      %v7218 = vmul.f32 %v7202, %v7148
      %v7219 = vmul.f32 %v7205, %v7149
      %v7220 = vmul.f32 %v7208, %v7150
      %v7221 = vmul.f32 %v7211, %v7151
      %v7222 = vmul.f32 %v7214, %v7152
      %7223 = vrot.lane.b32.xlu0 %v5869, 104
      %v7224 = vpop.permute.xlu0 %7223
      %7225 = vrot.lane.b32.xlu0 %v5872, 104
      %v7226 = vpop.permute.xlu0 %7225
      %7227 = vrot.lane.b32.xlu0 %v5875, 104
      %v7228 = vpop.permute.xlu0 %7227
      %7229 = vrot.lane.b32.xlu0 %v5878, 104
      %v7230 = vpop.permute.xlu0 %7229
      %7231 = vrot.lane.b32.xlu0 %v5881, 104
      %v7232 = vpop.permute.xlu0 %7231
      %7233 = vrot.lane.b32.xlu0 %v5884, 104
      %v7234 = vpop.permute.xlu0 %7233
      %7235 = vrot.lane.b32.xlu0 %v5887, 104
      %v7236 = vpop.permute.xlu0 %7235
      %7237 = vrot.lane.b32.xlu0 %v5927, 104
      %v7238 = vpop.permute.xlu0 %7237
      %v7239 = vsel %vm1722, %v7224, 0
      %v7241 = vsel %vm1722, %v7226, 0
      %v7243 = vsel %vm1722, %v7228, 0
      %v7245 = vsel %vm1722, %v7230, 0
      %v7247 = vsel %vm1722, %v7232, 0
      %v7249 = vsel %vm1722, %v7234, 0
      %v7251 = vsel %vm1722, %v7236, 0
      %v7253 = vsel %vm1722, %v7238, 0
      %7255 = vmatpush.xpose.msra.mxu0 0.0
      %7256 = vmatpush.xpose.msra.mxu0 0.0
      %7257 = vmatpush.xpose.msra.mxu0 0.0
      %7258 = vmatpush.xpose.msra.mxu0 0.0
      %7259 = vmatpush.xpose.msra.mxu0 0.0
      %7260 = vmatpush.xpose.msra.mxu0 0.0
      %7261 = vmatpush.xpose.msra.mxu0 0.0
      %7262 = vmatpush.xpose.msra.mxu0 0.0
      %7263 = vmatpush.xpose.msra.mxu0 0.0
      %7264 = vmatpush.xpose.msra.mxu0 0.0
      %7265 = vmatpush.xpose.msra.mxu0 0.0
      %7266 = vmatpush.xpose.msra.mxu0 0.0
      %7267 = vmatpush.xpose.msra.mxu0 0.0
      %7268 = vmatpush.xpose.msra.mxu0 0.0
      %7269 = vmatpush.xpose.msra.mxu0 0.0
      %7270 = vmatpush.xpose.msra.mxu0 %v7253
      %7271 = vmatmul.f32.gmra.mxu0 %v7239
      %v7272 = vpop.f32.mrf.mxu0
      %v7273 = vadd.f32 0.0, %v7272
      %7274 = vmatmul.f32.gmra.mxu0 %v7241
      %v7275 = vpop.f32.mrf.mxu0
      %v7276 = vadd.f32 0.0, %v7275
      %7277 = vmatmul.f32.gmra.mxu0 %v7243
      %v7278 = vpop.f32.mrf.mxu0
      %v7279 = vadd.f32 0.0, %v7278
      %7280 = vmatmul.f32.gmra.mxu0 %v7245
      %v7281 = vpop.f32.mrf.mxu0
      %v7282 = vadd.f32 0.0, %v7281
      %7283 = vmatmul.f32.gmra.mxu0 %v7247
      %v7284 = vpop.f32.mrf.mxu0
      %v7285 = vadd.f32 0.0, %v7284
      %7286 = vmatmul.f32.gmra.mxu0 %v7249
      %v7287 = vpop.f32.mrf.mxu0
      %v7288 = vadd.f32 0.0, %v7287
      %7289 = vmatmul.f32.gmra.mxu0 %v7251
      %v7290 = vpop.f32.mrf.mxu0
      %v7291 = vadd.f32 0.0, %v7290
      %7292 = vdwg.mxu0
      %v7293 = vmul.f32 %v7273, 0.5
      %v7294 = vmul.f32 %v7276, 0.5
      %v7295 = vmul.f32 %v7279, 0.5
      %v7296 = vmul.f32 %v7282, 0.5
      %v7297 = vmul.f32 %v7285, 0.5
      %v7298 = vmul.f32 %v7288, 0.5
      %v7299 = vmul.f32 %v7291, 0.5
      %v7300 = vsel %vm1722, %v7293, -inf
      %7301 = vmax.xlane.f32.xlu0 %v7300
      %v7302 = vpop.xlane.xlu0 %7301
      %v7303 = vsel %vm1722, %v7294, -inf
      %7304 = vmax.xlane.f32.xlu0 %v7303
      %v7305 = vpop.xlane.xlu0 %7304
      %v7306 = vsel %vm1722, %v7295, -inf
      %7307 = vmax.xlane.f32.xlu0 %v7306
      %v7308 = vpop.xlane.xlu0 %7307
      %v7309 = vsel %vm1722, %v7296, -inf
      %7310 = vmax.xlane.f32.xlu0 %v7309
      %v7311 = vpop.xlane.xlu0 %7310
      %v7312 = vsel %vm1722, %v7297, -inf
      %7313 = vmax.xlane.f32.xlu0 %v7312
      %v7314 = vpop.xlane.xlu0 %7313
      %v7315 = vsel %vm1722, %v7298, -inf
      %7316 = vmax.xlane.f32.xlu0 %v7315
      %v7317 = vpop.xlane.xlu0 %7316
      %v7318 = vsel %vm1722, %v7299, -inf
      %7319 = vmax.xlane.f32.xlu0 %v7318
      %v7320 = vpop.xlane.xlu0 %7319
      %v7321 = vsub.f32 %v7293, %v7302
      %v7322 = vsub.f32 %v7294, %v7305
      %v7323 = vsub.f32 %v7295, %v7308
      %v7324 = vsub.f32 %v7296, %v7311
      %v7325 = vsub.f32 %v7297, %v7314
      %v7326 = vsub.f32 %v7298, %v7317
      %v7327 = vsub.f32 %v7299, %v7320
      %v7328 = vmul.f32 %v7321, 1.442695
      %v7329 = vpow.pop %v7328
      %v7330 = vmul.f32 %v7322, 1.442695
      %v7331 = vpow.pop %v7330
      %v7332 = vmul.f32 %v7323, 1.442695
      %v7333 = vpow.pop %v7332
      %v7334 = vmul.f32 %v7324, 1.442695
      %v7335 = vpow.pop %v7334
      %v7336 = vmul.f32 %v7325, 1.442695
      %v7337 = vpow.pop %v7336
      %v7338 = vmul.f32 %v7326, 1.442695
      %v7339 = vpow.pop %v7338
      %v7340 = vmul.f32 %v7327, 1.442695
      %v7341 = vpow.pop %v7340
      %v7342 = vsel %vm1722, %v7329, 0.0
      %7343 = vadd.xlane.f32.xlu0 %v7342
      %v7344 = vpop.xlane.xlu0 %7343
      %v7345 = vsel %vm1722, %v7331, 0.0
      %7346 = vadd.xlane.f32.xlu0 %v7345
      %v7347 = vpop.xlane.xlu0 %7346
      %v7348 = vsel %vm1722, %v7333, 0.0
      %7349 = vadd.xlane.f32.xlu0 %v7348
      %v7350 = vpop.xlane.xlu0 %7349
      %v7351 = vsel %vm1722, %v7335, 0.0
      %7352 = vadd.xlane.f32.xlu0 %v7351
      %v7353 = vpop.xlane.xlu0 %7352
      %v7354 = vsel %vm1722, %v7337, 0.0
      %7355 = vadd.xlane.f32.xlu0 %v7354
      %v7356 = vpop.xlane.xlu0 %7355
      %v7357 = vsel %vm1722, %v7339, 0.0
      %7358 = vadd.xlane.f32.xlu0 %v7357
      %v7359 = vpop.xlane.xlu0 %7358
      %v7360 = vsel %vm1722, %v7341, 0.0
      %7361 = vadd.xlane.f32.xlu0 %v7360
      %v7362 = vpop.xlane.xlu0 %7361
      %v7363 = vrcp.pop %v7344
      %v7364 = vrcp.pop %v7347
      %v7365 = vrcp.pop %v7350
      %v7366 = vrcp.pop %v7353
      %v7367 = vrcp.pop %v7356
      %v7368 = vrcp.pop %v7359
      %v7369 = vrcp.pop %v7362
      %7370 = vrot.lane.b32.xlu0 %v5927, 72
      %v7371 = vpop.permute.xlu0 %7370
      %v7373 = vsel %vm1722, %v7329, 0
      %v7376 = vsel %vm1722, %v7331, 0
      %v7379 = vsel %vm1722, %v7333, 0
      %v7382 = vsel %vm1722, %v7335, 0
      %v7385 = vsel %vm1722, %v7337, 0
      %v7388 = vsel %vm1722, %v7339, 0
      %v7391 = vsel %vm1722, %v7341, 0
      %v7393 = vsel %vm3959, %v7371, 0
      %7395 = vmatpush.msra.mxu0 0.0
      %7396 = vmatpush.msra.mxu0 0.0
      %7397 = vmatpush.msra.mxu0 0.0
      %7398 = vmatpush.msra.mxu0 0.0
      %7399 = vmatpush.msra.mxu0 0.0
      %7400 = vmatpush.msra.mxu0 0.0
      %7401 = vmatpush.msra.mxu0 0.0
      %7402 = vmatpush.msra.mxu0 0.0
      %7403 = vmatpush.msra.mxu0 0.0
      %7404 = vmatpush.msra.mxu0 0.0
      %7405 = vmatpush.msra.mxu0 0.0
      %7406 = vmatpush.msra.mxu0 0.0
      %7407 = vmatpush.msra.mxu0 0.0
      %7408 = vmatpush.msra.mxu0 0.0
      %7409 = vmatpush.msra.mxu0 0.0
      %7410 = vmatpush.msra.mxu0 %v7393
      %7411 = vmatmul.f32.gmra.mxu0 %v7373
      %v7412 = vpop.f32.mrf.mxu0
      %v7413 = vadd.f32 0.0, %v7412
      %7414 = vmatmul.f32.gmra.mxu0 %v7376
      %v7415 = vpop.f32.mrf.mxu0
      %v7416 = vadd.f32 0.0, %v7415
      %7417 = vmatmul.f32.gmra.mxu0 %v7379
      %v7418 = vpop.f32.mrf.mxu0
      %v7419 = vadd.f32 0.0, %v7418
      %7420 = vmatmul.f32.gmra.mxu0 %v7382
      %v7421 = vpop.f32.mrf.mxu0
      %v7422 = vadd.f32 0.0, %v7421
      %7423 = vmatmul.f32.gmra.mxu0 %v7385
      %v7424 = vpop.f32.mrf.mxu0
      %v7425 = vadd.f32 0.0, %v7424
      %7426 = vmatmul.f32.gmra.mxu0 %v7388
      %v7427 = vpop.f32.mrf.mxu0
      %v7428 = vadd.f32 0.0, %v7427
      %7429 = vmatmul.f32.gmra.mxu0 %v7391
      %v7430 = vpop.f32.mrf.mxu0
      %v7431 = vadd.f32 0.0, %v7430
      %7432 = vdwg.mxu0
      %v7433 = vmul.f32 %v7413, %v7363
      %v7434 = vmul.f32 %v7416, %v7364
      %v7435 = vmul.f32 %v7419, %v7365
      %v7436 = vmul.f32 %v7422, %v7366
      %v7437 = vmul.f32 %v7425, %v7367
      %v7438 = vmul.f32 %v7428, %v7368
      %v7439 = vmul.f32 %v7431, %v7369
      %7440 = vrot.lane.b32.xlu0 %v5869, 100
      %v7441 = vpop.permute.xlu0 %7440
      %7442 = vrot.lane.b32.xlu0 %v5872, 100
      %v7443 = vpop.permute.xlu0 %7442
      %7444 = vrot.lane.b32.xlu0 %v5875, 100
      %v7445 = vpop.permute.xlu0 %7444
      %7446 = vrot.lane.b32.xlu0 %v5878, 100
      %v7447 = vpop.permute.xlu0 %7446
      %7448 = vrot.lane.b32.xlu0 %v5881, 100
      %v7449 = vpop.permute.xlu0 %7448
      %7450 = vrot.lane.b32.xlu0 %v5884, 100
      %v7451 = vpop.permute.xlu0 %7450
      %7452 = vrot.lane.b32.xlu0 %v5887, 100
      %v7453 = vpop.permute.xlu0 %7452
      %7454 = vrot.lane.b32.xlu0 %v5927, 100
      %v7455 = vpop.permute.xlu0 %7454
      %v7456 = vsel %vm1722, %v7441, 0
      %v7458 = vsel %vm1722, %v7443, 0
      %v7460 = vsel %vm1722, %v7445, 0
      %v7462 = vsel %vm1722, %v7447, 0
      %v7464 = vsel %vm1722, %v7449, 0
      %v7466 = vsel %vm1722, %v7451, 0
      %v7468 = vsel %vm1722, %v7453, 0
      %v7470 = vsel %vm1722, %v7455, 0
      %7472 = vmatpush.xpose.msra.mxu0 0.0
      %7473 = vmatpush.xpose.msra.mxu0 0.0
      %7474 = vmatpush.xpose.msra.mxu0 0.0
      %7475 = vmatpush.xpose.msra.mxu0 0.0
      %7476 = vmatpush.xpose.msra.mxu0 0.0
      %7477 = vmatpush.xpose.msra.mxu0 0.0
      %7478 = vmatpush.xpose.msra.mxu0 0.0
      %7479 = vmatpush.xpose.msra.mxu0 0.0
      %7480 = vmatpush.xpose.msra.mxu0 0.0
      %7481 = vmatpush.xpose.msra.mxu0 0.0
      %7482 = vmatpush.xpose.msra.mxu0 0.0
      %7483 = vmatpush.xpose.msra.mxu0 0.0
      %7484 = vmatpush.xpose.msra.mxu0 0.0
      %7485 = vmatpush.xpose.msra.mxu0 0.0
      %7486 = vmatpush.xpose.msra.mxu0 0.0
      %7487 = vmatpush.xpose.msra.mxu0 %v7470
      %7488 = vmatmul.f32.gmra.mxu0 %v7456
      %v7489 = vpop.f32.mrf.mxu0
      %v7490 = vadd.f32 0.0, %v7489
      %7491 = vmatmul.f32.gmra.mxu0 %v7458
      %v7492 = vpop.f32.mrf.mxu0
      %v7493 = vadd.f32 0.0, %v7492
      %7494 = vmatmul.f32.gmra.mxu0 %v7460
      %v7495 = vpop.f32.mrf.mxu0
      %v7496 = vadd.f32 0.0, %v7495
      %7497 = vmatmul.f32.gmra.mxu0 %v7462
      %v7498 = vpop.f32.mrf.mxu0
      %v7499 = vadd.f32 0.0, %v7498
      %7500 = vmatmul.f32.gmra.mxu0 %v7464
      %v7501 = vpop.f32.mrf.mxu0
      %v7502 = vadd.f32 0.0, %v7501
      %7503 = vmatmul.f32.gmra.mxu0 %v7466
      %v7504 = vpop.f32.mrf.mxu0
      %v7505 = vadd.f32 0.0, %v7504
      %7506 = vmatmul.f32.gmra.mxu0 %v7468
      %v7507 = vpop.f32.mrf.mxu0
      %v7508 = vadd.f32 0.0, %v7507
      %7509 = vdwg.mxu0
      %v7510 = vmul.f32 %v7490, 0.5
      %v7511 = vmul.f32 %v7493, 0.5
      %v7512 = vmul.f32 %v7496, 0.5
      %v7513 = vmul.f32 %v7499, 0.5
      %v7514 = vmul.f32 %v7502, 0.5
      %v7515 = vmul.f32 %v7505, 0.5
      %v7516 = vmul.f32 %v7508, 0.5
      %v7517 = vsel %vm1722, %v7510, -inf
      %7518 = vmax.xlane.f32.xlu0 %v7517
      %v7519 = vpop.xlane.xlu0 %7518
      %v7520 = vsel %vm1722, %v7511, -inf
      %7521 = vmax.xlane.f32.xlu0 %v7520
      %v7522 = vpop.xlane.xlu0 %7521
      %v7523 = vsel %vm1722, %v7512, -inf
      %7524 = vmax.xlane.f32.xlu0 %v7523
      %v7525 = vpop.xlane.xlu0 %7524
      %v7526 = vsel %vm1722, %v7513, -inf
      %7527 = vmax.xlane.f32.xlu0 %v7526
      %v7528 = vpop.xlane.xlu0 %7527
      %v7529 = vsel %vm1722, %v7514, -inf
      %7530 = vmax.xlane.f32.xlu0 %v7529
      %v7531 = vpop.xlane.xlu0 %7530
      %v7532 = vsel %vm1722, %v7515, -inf
      %7533 = vmax.xlane.f32.xlu0 %v7532
      %v7534 = vpop.xlane.xlu0 %7533
      %v7535 = vsel %vm1722, %v7516, -inf
      %7536 = vmax.xlane.f32.xlu0 %v7535
      %v7537 = vpop.xlane.xlu0 %7536
      %v7538 = vsub.f32 %v7510, %v7519
      %v7539 = vsub.f32 %v7511, %v7522
      %v7540 = vsub.f32 %v7512, %v7525
      %v7541 = vsub.f32 %v7513, %v7528
      %v7542 = vsub.f32 %v7514, %v7531
      %v7543 = vsub.f32 %v7515, %v7534
      %v7544 = vsub.f32 %v7516, %v7537
      %v7545 = vmul.f32 %v7538, 1.442695
      %v7546 = vpow.pop %v7545
      %v7547 = vmul.f32 %v7539, 1.442695
      %v7548 = vpow.pop %v7547
      %v7549 = vmul.f32 %v7540, 1.442695
      %v7550 = vpow.pop %v7549
      %v7551 = vmul.f32 %v7541, 1.442695
      %v7552 = vpow.pop %v7551
      %v7553 = vmul.f32 %v7542, 1.442695
      %v7554 = vpow.pop %v7553
      %v7555 = vmul.f32 %v7543, 1.442695
      %v7556 = vpow.pop %v7555
      %v7557 = vmul.f32 %v7544, 1.442695
      %v7558 = vpow.pop %v7557
      %v7559 = vsel %vm1722, %v7546, 0.0
      %7560 = vadd.xlane.f32.xlu0 %v7559
      %v7561 = vpop.xlane.xlu0 %7560
      %v7562 = vsel %vm1722, %v7548, 0.0
      %7563 = vadd.xlane.f32.xlu0 %v7562
      %v7564 = vpop.xlane.xlu0 %7563
      %v7565 = vsel %vm1722, %v7550, 0.0
      %7566 = vadd.xlane.f32.xlu0 %v7565
      %v7567 = vpop.xlane.xlu0 %7566
      %v7568 = vsel %vm1722, %v7552, 0.0
      %7569 = vadd.xlane.f32.xlu0 %v7568
      %v7570 = vpop.xlane.xlu0 %7569
      %v7571 = vsel %vm1722, %v7554, 0.0
      %7572 = vadd.xlane.f32.xlu0 %v7571
      %v7573 = vpop.xlane.xlu0 %7572
      %v7574 = vsel %vm1722, %v7556, 0.0
      %7575 = vadd.xlane.f32.xlu0 %v7574
      %v7576 = vpop.xlane.xlu0 %7575
      %v7577 = vsel %vm1722, %v7558, 0.0
      %7578 = vadd.xlane.f32.xlu0 %v7577
      %v7579 = vpop.xlane.xlu0 %7578
      %v7580 = vrcp.pop %v7561
      %v7581 = vrcp.pop %v7564
      %v7582 = vrcp.pop %v7567
      %v7583 = vrcp.pop %v7570
      %v7584 = vrcp.pop %v7573
      %v7585 = vrcp.pop %v7576
      %v7586 = vrcp.pop %v7579
      %7587 = vrot.lane.b32.xlu0 %v5927, 68
      %v7588 = vpop.permute.xlu0 %7587
      %v7590 = vsel %vm1722, %v7546, 0
      %v7593 = vsel %vm1722, %v7548, 0
      %v7596 = vsel %vm1722, %v7550, 0
      %v7599 = vsel %vm1722, %v7552, 0
      %v7602 = vsel %vm1722, %v7554, 0
      %v7605 = vsel %vm1722, %v7556, 0
      %v7608 = vsel %vm1722, %v7558, 0
      %v7610 = vsel %vm3959, %v7588, 0
      %7612 = vmatpush.msra.mxu0 0.0
      %7613 = vmatpush.msra.mxu0 0.0
      %7614 = vmatpush.msra.mxu0 0.0
      %7615 = vmatpush.msra.mxu0 0.0
      %7616 = vmatpush.msra.mxu0 0.0
      %7617 = vmatpush.msra.mxu0 0.0
      %7618 = vmatpush.msra.mxu0 0.0
      %7619 = vmatpush.msra.mxu0 0.0
      %7620 = vmatpush.msra.mxu0 0.0
      %7621 = vmatpush.msra.mxu0 0.0
      %7622 = vmatpush.msra.mxu0 0.0
      %7623 = vmatpush.msra.mxu0 0.0
      %7624 = vmatpush.msra.mxu0 0.0
      %7625 = vmatpush.msra.mxu0 0.0
      %7626 = vmatpush.msra.mxu0 0.0
      %7627 = vmatpush.msra.mxu0 %v7610
      %7628 = vmatmul.f32.gmra.mxu0 %v7590
      %v7629 = vpop.f32.mrf.mxu0
      %v7630 = vadd.f32 0.0, %v7629
      %7631 = vmatmul.f32.gmra.mxu0 %v7593
      %v7632 = vpop.f32.mrf.mxu0
      %v7633 = vadd.f32 0.0, %v7632
      %7634 = vmatmul.f32.gmra.mxu0 %v7596
      %v7635 = vpop.f32.mrf.mxu0
      %v7636 = vadd.f32 0.0, %v7635
      %7637 = vmatmul.f32.gmra.mxu0 %v7599
      %v7638 = vpop.f32.mrf.mxu0
      %v7639 = vadd.f32 0.0, %v7638
      %7640 = vmatmul.f32.gmra.mxu0 %v7602
      %v7641 = vpop.f32.mrf.mxu0
      %v7642 = vadd.f32 0.0, %v7641
      %7643 = vmatmul.f32.gmra.mxu0 %v7605
      %v7644 = vpop.f32.mrf.mxu0
      %v7645 = vadd.f32 0.0, %v7644
      %7646 = vmatmul.f32.gmra.mxu0 %v7608
      %v7647 = vpop.f32.mrf.mxu0
      %v7648 = vadd.f32 0.0, %v7647
      %7649 = vdwg.mxu0
      %v7650 = vmul.f32 %v7630, %v7580
      %v7651 = vmul.f32 %v7633, %v7581
      %v7652 = vmul.f32 %v7636, %v7582
      %v7653 = vmul.f32 %v7639, %v7583
      %v7654 = vmul.f32 %v7642, %v7584
      %v7655 = vmul.f32 %v7645, %v7585
      %v7656 = vmul.f32 %v7648, %v7586
      %7664 = vrot.lane.b32.xlu0 %v6348, 4
      %v7665 = vpop.permute.xlu0 %7664
      %7666 = vrot.lane.b32.xlu0 %v6349, 4
      %v7667 = vpop.permute.xlu0 %7666
      %7668 = vrot.lane.b32.xlu0 %v6350, 4
      %v7669 = vpop.permute.xlu0 %7668
      %7670 = vrot.lane.b32.xlu0 %v6351, 4
      %v7671 = vpop.permute.xlu0 %7670
      %7672 = vrot.lane.b32.xlu0 %v6352, 4
      %v7673 = vpop.permute.xlu0 %7672
      %7674 = vrot.lane.b32.xlu0 %v6353, 4
      %v7675 = vpop.permute.xlu0 %7674
      %7676 = vrot.lane.b32.xlu0 %v6354, 4
      %v7677 = vpop.permute.xlu0 %7676
      %7692 = vrot.lane.b32.xlu0 %v6565, 8
      %v7693 = vpop.permute.xlu0 %7692
      %7694 = vrot.lane.b32.xlu0 %v6566, 8
      %v7695 = vpop.permute.xlu0 %7694
      %7696 = vrot.lane.b32.xlu0 %v6567, 8
      %v7697 = vpop.permute.xlu0 %7696
      %7698 = vrot.lane.b32.xlu0 %v6568, 8
      %v7699 = vpop.permute.xlu0 %7698
      %7700 = vrot.lane.b32.xlu0 %v6569, 8
      %v7701 = vpop.permute.xlu0 %7700
      %7702 = vrot.lane.b32.xlu0 %v6570, 8
      %v7703 = vpop.permute.xlu0 %7702
      %7704 = vrot.lane.b32.xlu0 %v6571, 8
      %v7705 = vpop.permute.xlu0 %7704
      %7720 = vrot.lane.b32.xlu0 %v6782, 12
      %v7721 = vpop.permute.xlu0 %7720
      %7722 = vrot.lane.b32.xlu0 %v6783, 12
      %v7723 = vpop.permute.xlu0 %7722
      %7724 = vrot.lane.b32.xlu0 %v6784, 12
      %v7725 = vpop.permute.xlu0 %7724
      %7726 = vrot.lane.b32.xlu0 %v6785, 12
      %v7727 = vpop.permute.xlu0 %7726
      %7728 = vrot.lane.b32.xlu0 %v6786, 12
      %v7729 = vpop.permute.xlu0 %7728
      %7730 = vrot.lane.b32.xlu0 %v6787, 12
      %v7731 = vpop.permute.xlu0 %7730
      %7732 = vrot.lane.b32.xlu0 %v6788, 12
      %v7733 = vpop.permute.xlu0 %7732
      %7748 = vrot.lane.b32.xlu0 %v6999, 16
      %v7749 = vpop.permute.xlu0 %7748
      %7750 = vrot.lane.b32.xlu0 %v7000, 16
      %v7751 = vpop.permute.xlu0 %7750
      %7752 = vrot.lane.b32.xlu0 %v7001, 16
      %v7753 = vpop.permute.xlu0 %7752
      %7754 = vrot.lane.b32.xlu0 %v7002, 16
      %v7755 = vpop.permute.xlu0 %7754
      %7756 = vrot.lane.b32.xlu0 %v7003, 16
      %v7757 = vpop.permute.xlu0 %7756
      %7758 = vrot.lane.b32.xlu0 %v7004, 16
      %v7759 = vpop.permute.xlu0 %7758
      %7760 = vrot.lane.b32.xlu0 %v7005, 16
      %v7761 = vpop.permute.xlu0 %7760
      %7776 = vrot.lane.b32.xlu0 %v7216, 20
      %v7777 = vpop.permute.xlu0 %7776
      %7778 = vrot.lane.b32.xlu0 %v7217, 20
      %v7779 = vpop.permute.xlu0 %7778
      %7780 = vrot.lane.b32.xlu0 %v7218, 20
      %v7781 = vpop.permute.xlu0 %7780
      %7782 = vrot.lane.b32.xlu0 %v7219, 20
      %v7783 = vpop.permute.xlu0 %7782
      %7784 = vrot.lane.b32.xlu0 %v7220, 20
      %v7785 = vpop.permute.xlu0 %7784
      %7786 = vrot.lane.b32.xlu0 %v7221, 20
      %v7787 = vpop.permute.xlu0 %7786
      %7788 = vrot.lane.b32.xlu0 %v7222, 20
      %v7789 = vpop.permute.xlu0 %7788
      %7804 = vrot.lane.b32.xlu0 %v7433, 24
      %v7805 = vpop.permute.xlu0 %7804
      %7806 = vrot.lane.b32.xlu0 %v7434, 24
      %v7807 = vpop.permute.xlu0 %7806
      %7808 = vrot.lane.b32.xlu0 %v7435, 24
      %v7809 = vpop.permute.xlu0 %7808
      %7810 = vrot.lane.b32.xlu0 %v7436, 24
      %v7811 = vpop.permute.xlu0 %7810
      %7812 = vrot.lane.b32.xlu0 %v7437, 24
      %v7813 = vpop.permute.xlu0 %7812
      %7814 = vrot.lane.b32.xlu0 %v7438, 24
      %v7815 = vpop.permute.xlu0 %7814
      %7816 = vrot.lane.b32.xlu0 %v7439, 24
      %v7817 = vpop.permute.xlu0 %7816
      %7832 = vrot.lane.b32.xlu0 %v7650, 28
      %v7833 = vpop.permute.xlu0 %7832
      %7834 = vrot.lane.b32.xlu0 %v7651, 28
      %v7835 = vpop.permute.xlu0 %7834
      %7836 = vrot.lane.b32.xlu0 %v7652, 28
      %v7837 = vpop.permute.xlu0 %7836
      %7838 = vrot.lane.b32.xlu0 %v7653, 28
      %v7839 = vpop.permute.xlu0 %7838
      %7840 = vrot.lane.b32.xlu0 %v7654, 28
      %v7841 = vpop.permute.xlu0 %7840
      %7842 = vrot.lane.b32.xlu0 %v7655, 28
      %v7843 = vpop.permute.xlu0 %7842
      %7844 = vrot.lane.b32.xlu0 %v7656, 28
      %v7845 = vpop.permute.xlu0 %7844
      %v7853 = vsel %vm1722, %v6131, %v7665
      %v7854 = vsel %vm1722, %v6132, %v7667
      %v7855 = vsel %vm1722, %v6133, %v7669
      %v7856 = vsel %vm1722, %v6134, %v7671
      %v7857 = vsel %vm1722, %v6135, %v7673
      %v7858 = vsel %vm1722, %v6136, %v7675
      %v7859 = vsel %vm1722, %v6137, %v7677
      %v7860 = vsel %vm2610, %v7853, %v7693
      %v7861 = vsel %vm2610, %v7854, %v7695
      %v7862 = vsel %vm2610, %v7855, %v7697
      %v7863 = vsel %vm2610, %v7856, %v7699
      %v7864 = vsel %vm2610, %v7857, %v7701
      %v7865 = vsel %vm2610, %v7858, %v7703
      %v7866 = vsel %vm2610, %v7859, %v7705
      %v7867 = vsel %vm2612, %v7860, %v7721
      %v7868 = vsel %vm2612, %v7861, %v7723
      %v7869 = vsel %vm2612, %v7862, %v7725
      %v7870 = vsel %vm2612, %v7863, %v7727
      %v7871 = vsel %vm2612, %v7864, %v7729
      %v7872 = vsel %vm2612, %v7865, %v7731
      %v7873 = vsel %vm2612, %v7866, %v7733
      %v7874 = vsel %vm2614, %v7867, %v7749
      %v7875 = vsel %vm2614, %v7868, %v7751
      %v7876 = vsel %vm2614, %v7869, %v7753
      %v7877 = vsel %vm2614, %v7870, %v7755
      %v7878 = vsel %vm2614, %v7871, %v7757
      %v7879 = vsel %vm2614, %v7872, %v7759
      %v7880 = vsel %vm2614, %v7873, %v7761
      %v7881 = vsel %vm2616, %v7874, %v7777
      %v7882 = vsel %vm2616, %v7875, %v7779
      %v7883 = vsel %vm2616, %v7876, %v7781
      %v7884 = vsel %vm2616, %v7877, %v7783
      %v7885 = vsel %vm2616, %v7878, %v7785
      %v7886 = vsel %vm2616, %v7879, %v7787
      %v7887 = vsel %vm2616, %v7880, %v7789
      %v7888 = vsel %vm2618, %v7881, %v7805
      %v7889 = vsel %vm2618, %v7882, %v7807
      %v7890 = vsel %vm2618, %v7883, %v7809
      %v7891 = vsel %vm2618, %v7884, %v7811
      %v7892 = vsel %vm2618, %v7885, %v7813
      %v7893 = vsel %vm2618, %v7886, %v7815
      %v7894 = vsel %vm2618, %v7887, %v7817
      %v7895 = vsel %vm2620, %v7888, %v7833
      %v7896 = vsel %vm2620, %v7889, %v7835
      %v7897 = vsel %vm2620, %v7890, %v7837
      %v7898 = vsel %vm2620, %v7891, %v7839
      %v7899 = vsel %vm2620, %v7892, %v7841
      %v7900 = vsel %vm2620, %v7893, %v7843
      %v7901 = vsel %vm2620, %v7894, %v7845
      %v7902 = vperm.slane %v5849, 0
      %v7904 = vsel %vm809, %v7895, 0
      %v7907 = vsel %vm809, %v7896, 0
      %v7910 = vsel %vm809, %v7897, 0
      %v7913 = vsel %vm809, %v7898, 0
      %v7916 = vsel %vm809, %v7899, 0
      %v7919 = vsel %vm809, %v7900, 0
      %v7922 = vsel %vm809, %v7901, 0
      %7924 = vmatpush.msra.mxu0 0.0
      %7925 = vmatpush.msra.mxu0 0.0
      %7926 = vmatpush.msra.mxu0 0.0
      %7927 = vmatpush.msra.mxu0 0.0
      %7928 = vmatpush.msra.mxu0 0.0
      %7929 = vmatpush.msra.mxu0 0.0
      %7930 = vmatpush.msra.mxu0 0.0
      %7931 = vmatpush.msra.mxu0 0.0
      %7932 = vmatpush.msra.mxu0 0.0
      %7933 = vmatpush.msra.mxu0 0.0
      %7934 = vmatpush.msra.mxu0 0.0
      %7935 = vmatpush.msra.mxu0 0.0
      %7936 = vmatpush.msra.mxu0 %v5848
      %7937 = vmatpush.msra.mxu0 %v5847
      %7938 = vmatpush.msra.mxu0 %v5846
      %7939 = vmatpush.msra.mxu0 %v5845
      %7940 = vmatmul.f32.gmra.mxu0 %v7904
      %v7941 = vpop.f32.mrf.mxu0
      %v7942 = vadd.f32 %v7902, %v7941
      %7943 = vmatmul.f32.gmra.mxu0 %v7907
      %v7944 = vpop.f32.mrf.mxu0
      %v7945 = vadd.f32 %v7902, %v7944
      %7946 = vmatmul.f32.gmra.mxu0 %v7910
      %v7947 = vpop.f32.mrf.mxu0
      %v7948 = vadd.f32 %v7902, %v7947
      %7949 = vmatmul.f32.gmra.mxu0 %v7913
      %v7950 = vpop.f32.mrf.mxu0
      %v7951 = vadd.f32 %v7902, %v7950
      %7952 = vmatmul.f32.gmra.mxu0 %v7916
      %v7953 = vpop.f32.mrf.mxu0
      %v7954 = vadd.f32 %v7902, %v7953
      %7955 = vmatmul.f32.gmra.mxu0 %v7919
      %v7956 = vpop.f32.mrf.mxu0
      %v7957 = vadd.f32 %v7902, %v7956
      %7958 = vmatmul.f32.gmra.mxu0 %v7922
      %v7959 = vpop.f32.mrf.mxu0
      %v7960 = vadd.f32 %v7902, %v7959
      %7961 = vdwg.mxu0
      %v7962 = vadd.f32 %v1228, %v7942
      %v7963 = vadd.f32 %v1229, %v7945
      %v7964 = vadd.f32 %v1230, %v7948
      %v7965 = vadd.f32 %v1231, %v7951
      %v7966 = vadd.f32 %v1232, %v7954
      %v7967 = vadd.f32 %v1233, %v7957
      %v7968 = vadd.f32 %v1234, %v7960
      %v7969 = vld [vmem:[%s11 + $0x4] sm:$0x1]
      %v7970 = vld [vmem:[%s12 + $0x4] sm:$0x1]
      %v7971 = vsel %vm809, %v5831, 0.0
      %7972 = vadd.xlane.f32.xlu0 %v7971
      %v7973 = vpop.xlane.xlu0 %7972
      %v7974 = vsel %vm809, %v5832, 0.0
      %7975 = vadd.xlane.f32.xlu0 %v7974
      %v7976 = vpop.xlane.xlu0 %7975
      %v7977 = vsel %vm809, %v5833, 0.0
      %7978 = vadd.xlane.f32.xlu0 %v7977
      %v7979 = vpop.xlane.xlu0 %7978
      %v7980 = vsel %vm809, %v5834, 0.0
      %7981 = vadd.xlane.f32.xlu0 %v7980
      %v7982 = vpop.xlane.xlu0 %7981
      %v7983 = vsel %vm809, %v5835, 0.0
      %7984 = vadd.xlane.f32.xlu0 %v7983
      %v7985 = vpop.xlane.xlu0 %7984
      %v7986 = vsel %vm809, %v5836, 0.0
      %7987 = vadd.xlane.f32.xlu0 %v7986
      %v7988 = vpop.xlane.xlu0 %7987
      %v7989 = vsel %vm809, %v5837, 0.0
      %7990 = vadd.xlane.f32.xlu0 %v7989
      %v7991 = vpop.xlane.xlu0 %7990
      %v7992 = vmul.f32 %v7973, 0.03125
      %v7993 = vmul.f32 %v7976, 0.03125
      %v7994 = vmul.f32 %v7979, 0.03125
      %v7995 = vmul.f32 %v7982, 0.03125
      %v7996 = vmul.f32 %v7985, 0.03125
      %v7997 = vmul.f32 %v7988, 0.03125
      %v7998 = vmul.f32 %v7991, 0.03125
      %v7999 = vsub.f32 %v5831, %v7992
      %v8000 = vsub.f32 %v5832, %v7993
      %v8001 = vsub.f32 %v5833, %v7994
      %v8002 = vsub.f32 %v5834, %v7995
      %v8003 = vsub.f32 %v5835, %v7996
      %v8004 = vsub.f32 %v5836, %v7997
      %v8005 = vsub.f32 %v5837, %v7998
      %v8006 = vmul.f32 %v7999, %v7999
      %v8007 = vmul.f32 %v8000, %v8000
      %v8008 = vmul.f32 %v8001, %v8001
      %v8009 = vmul.f32 %v8002, %v8002
      %v8010 = vmul.f32 %v8003, %v8003
      %v8011 = vmul.f32 %v8004, %v8004
      %v8012 = vmul.f32 %v8005, %v8005
      %v8013 = vsel %vm809, %v8006, 0.0
      %8014 = vadd.xlane.f32.xlu0 %v8013
      %v8015 = vpop.xlane.xlu0 %8014
      %v8016 = vsel %vm809, %v8007, 0.0
      %8017 = vadd.xlane.f32.xlu0 %v8016
      %v8018 = vpop.xlane.xlu0 %8017
      %v8019 = vsel %vm809, %v8008, 0.0
      %8020 = vadd.xlane.f32.xlu0 %v8019
      %v8021 = vpop.xlane.xlu0 %8020
      %v8022 = vsel %vm809, %v8009, 0.0
      %8023 = vadd.xlane.f32.xlu0 %v8022
      %v8024 = vpop.xlane.xlu0 %8023
      %v8025 = vsel %vm809, %v8010, 0.0
      %8026 = vadd.xlane.f32.xlu0 %v8025
      %v8027 = vpop.xlane.xlu0 %8026
      %v8028 = vsel %vm809, %v8011, 0.0
      %8029 = vadd.xlane.f32.xlu0 %v8028
      %v8030 = vpop.xlane.xlu0 %8029
      %v8031 = vsel %vm809, %v8012, 0.0
      %8032 = vadd.xlane.f32.xlu0 %v8031
      %v8033 = vpop.xlane.xlu0 %8032
      %v8034 = vmul.f32 %v8015, 0.03125
      %v8035 = vmul.f32 %v8018, 0.03125
      %v8036 = vmul.f32 %v8021, 0.03125
      %v8037 = vmul.f32 %v8024, 0.03125
      %v8038 = vmul.f32 %v8027, 0.03125
      %v8039 = vmul.f32 %v8030, 0.03125
      %v8040 = vmul.f32 %v8033, 0.03125
      %v8041 = vadd.f32 %v8034, 1e-05
      %v8042 = vadd.f32 %v8035, 1e-05
      %v8043 = vadd.f32 %v8036, 1e-05
      %v8044 = vadd.f32 %v8037, 1e-05
      %v8045 = vadd.f32 %v8038, 1e-05
      %v8046 = vadd.f32 %v8039, 1e-05
      %v8047 = vadd.f32 %v8040, 1e-05
      %v8048 = vrsqrt.pop %v8041
      %v8049 = vmul.f32 %v8048, %v8041
      %v8050 = vmul.f32 %v8049, %v8048
      %v8051 = vmul.f32 0.5, %v8050
      %v8052 = vsub.f32 1.5, %v8051
      %v8053 = vmul.f32 %v8048, %v8052
      %vm8054 = vweird.f32 %v8041
      %vm8055 = vweird.f32 %v8048
      %vm8056 = vmor %vm8054, %vm8055
      %v8057 = vsel %vm8056, %v8048, %v8053
      %v8058 = vrsqrt.pop %v8042
      %v8059 = vmul.f32 %v8058, %v8042
      %v8060 = vmul.f32 %v8059, %v8058
      %v8061 = vmul.f32 0.5, %v8060
      %v8062 = vsub.f32 1.5, %v8061
      %v8063 = vmul.f32 %v8058, %v8062
      %vm8064 = vweird.f32 %v8042
      %vm8065 = vweird.f32 %v8058
      %vm8066 = vmor %vm8064, %vm8065
      %v8067 = vsel %vm8066, %v8058, %v8063
      %v8068 = vrsqrt.pop %v8043
      %v8069 = vmul.f32 %v8068, %v8043
      %v8070 = vmul.f32 %v8069, %v8068
      %v8071 = vmul.f32 0.5, %v8070
      %v8072 = vsub.f32 1.5, %v8071
      %v8073 = vmul.f32 %v8068, %v8072
      %vm8074 = vweird.f32 %v8043
      %vm8075 = vweird.f32 %v8068
      %vm8076 = vmor %vm8074, %vm8075
      %v8077 = vsel %vm8076, %v8068, %v8073
      %v8078 = vrsqrt.pop %v8044
      %v8079 = vmul.f32 %v8078, %v8044
      %v8080 = vmul.f32 %v8079, %v8078
      %v8081 = vmul.f32 0.5, %v8080
      %v8082 = vsub.f32 1.5, %v8081
      %v8083 = vmul.f32 %v8078, %v8082
      %vm8084 = vweird.f32 %v8044
      %vm8085 = vweird.f32 %v8078
      %vm8086 = vmor %vm8084, %vm8085
      %v8087 = vsel %vm8086, %v8078, %v8083
      %v8088 = vrsqrt.pop %v8045
      %v8089 = vmul.f32 %v8088, %v8045
      %v8090 = vmul.f32 %v8089, %v8088
      %v8091 = vmul.f32 0.5, %v8090
      %v8092 = vsub.f32 1.5, %v8091
      %v8093 = vmul.f32 %v8088, %v8092
      %vm8094 = vweird.f32 %v8045
      %vm8095 = vweird.f32 %v8088
      %vm8096 = vmor %vm8094, %vm8095
      %v8097 = vsel %vm8096, %v8088, %v8093
      %v8098 = vrsqrt.pop %v8046
      %v8099 = vmul.f32 %v8098, %v8046
      %v8100 = vmul.f32 %v8099, %v8098
      %v8101 = vmul.f32 0.5, %v8100
      %v8102 = vsub.f32 1.5, %v8101
      %v8103 = vmul.f32 %v8098, %v8102
      %vm8104 = vweird.f32 %v8046
      %vm8105 = vweird.f32 %v8098
      %vm8106 = vmor %vm8104, %vm8105
      %v8107 = vsel %vm8106, %v8098, %v8103
      %v8108 = vrsqrt.pop %v8047
      %v8109 = vmul.f32 %v8108, %v8047
      %v8110 = vmul.f32 %v8109, %v8108
      %v8111 = vmul.f32 0.5, %v8110
      %v8112 = vsub.f32 1.5, %v8111
      %v8113 = vmul.f32 %v8108, %v8112
      %vm8114 = vweird.f32 %v8047
      %vm8115 = vweird.f32 %v8108
      %vm8116 = vmor %vm8114, %vm8115
      %v8117 = vsel %vm8116, %v8108, %v8113
      %v8118 = vmul.f32 %v7999, %v8057
      %v8119 = vmul.f32 %v8000, %v8067
      %v8120 = vmul.f32 %v8001, %v8077
      %v8121 = vmul.f32 %v8002, %v8087
      %v8122 = vmul.f32 %v8003, %v8097
      %v8123 = vmul.f32 %v8004, %v8107
      %v8124 = vmul.f32 %v8005, %v8117
      %v8125 = vperm.slane %v7969, 0
      %v8126 = vmul.f32 %v8118, %v8125
      %v8127 = vmul.f32 %v8119, %v8125
      %v8128 = vmul.f32 %v8120, %v8125
      %v8129 = vmul.f32 %v8121, %v8125
      %v8130 = vmul.f32 %v8122, %v8125
      %v8131 = vmul.f32 %v8123, %v8125
      %v8132 = vmul.f32 %v8124, %v8125
      %v8133 = vperm.slane %v7970, 0
      %v8134 = vadd.f32 %v8126, %v8133
      %v8135 = vadd.f32 %v8127, %v8133
      %v8136 = vadd.f32 %v8128, %v8133
      %v8137 = vadd.f32 %v8129, %v8133
      %v8138 = vadd.f32 %v8130, %v8133
      %v8139 = vadd.f32 %v8131, %v8133
      %v8140 = vadd.f32 %v8132, %v8133
      %v8141 = vld [vmem:[%s11 + $0x5] sm:$0x1]
      %v8142 = vld [vmem:[%s12 + $0x5] sm:$0x1]
      %v8143 = vsel %vm809, %v7962, 0.0
      %8144 = vadd.xlane.f32.xlu0 %v8143
      %v8145 = vpop.xlane.xlu0 %8144
      %v8146 = vsel %vm809, %v7963, 0.0
      %8147 = vadd.xlane.f32.xlu0 %v8146
      %v8148 = vpop.xlane.xlu0 %8147
      %v8149 = vsel %vm809, %v7964, 0.0
      %8150 = vadd.xlane.f32.xlu0 %v8149
      %v8151 = vpop.xlane.xlu0 %8150
      %v8152 = vsel %vm809, %v7965, 0.0
      %8153 = vadd.xlane.f32.xlu0 %v8152
      %v8154 = vpop.xlane.xlu0 %8153
      %v8155 = vsel %vm809, %v7966, 0.0
      %8156 = vadd.xlane.f32.xlu0 %v8155
      %v8157 = vpop.xlane.xlu0 %8156
      %v8158 = vsel %vm809, %v7967, 0.0
      %8159 = vadd.xlane.f32.xlu0 %v8158
      %v8160 = vpop.xlane.xlu0 %8159
      %v8161 = vsel %vm809, %v7968, 0.0
      %8162 = vadd.xlane.f32.xlu0 %v8161
      %v8163 = vpop.xlane.xlu0 %8162
      %v8164 = vmul.f32 %v8145, 0.03125
      %v8165 = vmul.f32 %v8148, 0.03125
      %v8166 = vmul.f32 %v8151, 0.03125
      %v8167 = vmul.f32 %v8154, 0.03125
      %v8168 = vmul.f32 %v8157, 0.03125
      %v8169 = vmul.f32 %v8160, 0.03125
      %v8170 = vmul.f32 %v8163, 0.03125
      %v8171 = vsub.f32 %v7962, %v8164
      %v8172 = vsub.f32 %v7963, %v8165
      %v8173 = vsub.f32 %v7964, %v8166
      %v8174 = vsub.f32 %v7965, %v8167
      %v8175 = vsub.f32 %v7966, %v8168
      %v8176 = vsub.f32 %v7967, %v8169
      %v8177 = vsub.f32 %v7968, %v8170
      %v8178 = vmul.f32 %v8171, %v8171
      %v8179 = vmul.f32 %v8172, %v8172
      %v8180 = vmul.f32 %v8173, %v8173
      %v8181 = vmul.f32 %v8174, %v8174
      %v8182 = vmul.f32 %v8175, %v8175
      %v8183 = vmul.f32 %v8176, %v8176
      %v8184 = vmul.f32 %v8177, %v8177
      %v8185 = vsel %vm809, %v8178, 0.0
      %8186 = vadd.xlane.f32.xlu0 %v8185
      %v8187 = vpop.xlane.xlu0 %8186
      %v8188 = vsel %vm809, %v8179, 0.0
      %8189 = vadd.xlane.f32.xlu0 %v8188
      %v8190 = vpop.xlane.xlu0 %8189
      %v8191 = vsel %vm809, %v8180, 0.0
      %8192 = vadd.xlane.f32.xlu0 %v8191
      %v8193 = vpop.xlane.xlu0 %8192
      %v8194 = vsel %vm809, %v8181, 0.0
      %8195 = vadd.xlane.f32.xlu0 %v8194
      %v8196 = vpop.xlane.xlu0 %8195
      %v8197 = vsel %vm809, %v8182, 0.0
      %8198 = vadd.xlane.f32.xlu0 %v8197
      %v8199 = vpop.xlane.xlu0 %8198
      %v8200 = vsel %vm809, %v8183, 0.0
      %8201 = vadd.xlane.f32.xlu0 %v8200
      %v8202 = vpop.xlane.xlu0 %8201
      %v8203 = vsel %vm809, %v8184, 0.0
      %8204 = vadd.xlane.f32.xlu0 %v8203
      %v8205 = vpop.xlane.xlu0 %8204
      %v8206 = vmul.f32 %v8187, 0.03125
      %v8207 = vmul.f32 %v8190, 0.03125
      %v8208 = vmul.f32 %v8193, 0.03125
      %v8209 = vmul.f32 %v8196, 0.03125
      %v8210 = vmul.f32 %v8199, 0.03125
      %v8211 = vmul.f32 %v8202, 0.03125
      %v8212 = vmul.f32 %v8205, 0.03125
      %v8213 = vadd.f32 %v8206, 1e-05
      %v8214 = vadd.f32 %v8207, 1e-05
      %v8215 = vadd.f32 %v8208, 1e-05
      %v8216 = vadd.f32 %v8209, 1e-05
      %v8217 = vadd.f32 %v8210, 1e-05
      %v8218 = vadd.f32 %v8211, 1e-05
      %v8219 = vadd.f32 %v8212, 1e-05
      %v8220 = vrsqrt.pop %v8213
      %v8221 = vmul.f32 %v8220, %v8213
      %v8222 = vmul.f32 %v8221, %v8220
      %v8223 = vmul.f32 0.5, %v8222
      %v8224 = vsub.f32 1.5, %v8223
      %v8225 = vmul.f32 %v8220, %v8224
      %vm8226 = vweird.f32 %v8213
      %vm8227 = vweird.f32 %v8220
      %vm8228 = vmor %vm8226, %vm8227
      %v8229 = vsel %vm8228, %v8220, %v8225
      %v8230 = vrsqrt.pop %v8214
      %v8231 = vmul.f32 %v8230, %v8214
      %v8232 = vmul.f32 %v8231, %v8230
      %v8233 = vmul.f32 0.5, %v8232
      %v8234 = vsub.f32 1.5, %v8233
      %v8235 = vmul.f32 %v8230, %v8234
      %vm8236 = vweird.f32 %v8214
      %vm8237 = vweird.f32 %v8230
      %vm8238 = vmor %vm8236, %vm8237
      %v8239 = vsel %vm8238, %v8230, %v8235
      %v8240 = vrsqrt.pop %v8215
      %v8241 = vmul.f32 %v8240, %v8215
      %v8242 = vmul.f32 %v8241, %v8240
      %v8243 = vmul.f32 0.5, %v8242
      %v8244 = vsub.f32 1.5, %v8243
      %v8245 = vmul.f32 %v8240, %v8244
      %vm8246 = vweird.f32 %v8215
      %vm8247 = vweird.f32 %v8240
      %vm8248 = vmor %vm8246, %vm8247
      %v8249 = vsel %vm8248, %v8240, %v8245
      %v8250 = vrsqrt.pop %v8216
      %v8251 = vmul.f32 %v8250, %v8216
      %v8252 = vmul.f32 %v8251, %v8250
      %v8253 = vmul.f32 0.5, %v8252
      %v8254 = vsub.f32 1.5, %v8253
      %v8255 = vmul.f32 %v8250, %v8254
      %vm8256 = vweird.f32 %v8216
      %vm8257 = vweird.f32 %v8250
      %vm8258 = vmor %vm8256, %vm8257
      %v8259 = vsel %vm8258, %v8250, %v8255
      %v8260 = vrsqrt.pop %v8217
      %v8261 = vmul.f32 %v8260, %v8217
      %v8262 = vmul.f32 %v8261, %v8260
      %v8263 = vmul.f32 0.5, %v8262
      %v8264 = vsub.f32 1.5, %v8263
      %v8265 = vmul.f32 %v8260, %v8264
      %vm8266 = vweird.f32 %v8217
      %vm8267 = vweird.f32 %v8260
      %vm8268 = vmor %vm8266, %vm8267
      %v8269 = vsel %vm8268, %v8260, %v8265
      %v8270 = vrsqrt.pop %v8218
      %v8271 = vmul.f32 %v8270, %v8218
      %v8272 = vmul.f32 %v8271, %v8270
      %v8273 = vmul.f32 0.5, %v8272
      %v8274 = vsub.f32 1.5, %v8273
      %v8275 = vmul.f32 %v8270, %v8274
      %vm8276 = vweird.f32 %v8218
      %vm8277 = vweird.f32 %v8270
      %vm8278 = vmor %vm8276, %vm8277
      %v8279 = vsel %vm8278, %v8270, %v8275
      %v8280 = vrsqrt.pop %v8219
      %v8281 = vmul.f32 %v8280, %v8219
      %v8282 = vmul.f32 %v8281, %v8280
      %v8283 = vmul.f32 0.5, %v8282
      %v8284 = vsub.f32 1.5, %v8283
      %v8285 = vmul.f32 %v8280, %v8284
      %vm8286 = vweird.f32 %v8219
      %vm8287 = vweird.f32 %v8280
      %vm8288 = vmor %vm8286, %vm8287
      %v8289 = vsel %vm8288, %v8280, %v8285
      %v8290 = vmul.f32 %v8171, %v8229
      %v8291 = vmul.f32 %v8172, %v8239
      %v8292 = vmul.f32 %v8173, %v8249
      %v8293 = vmul.f32 %v8174, %v8259
      %v8294 = vmul.f32 %v8175, %v8269
      %v8295 = vmul.f32 %v8176, %v8279
      %v8296 = vmul.f32 %v8177, %v8289
      %v8297 = vperm.slane %v8141, 0
      %v8298 = vmul.f32 %v8290, %v8297
      %v8299 = vmul.f32 %v8291, %v8297
      %v8300 = vmul.f32 %v8292, %v8297
      %v8301 = vmul.f32 %v8293, %v8297
      %v8302 = vmul.f32 %v8294, %v8297
      %v8303 = vmul.f32 %v8295, %v8297
      %v8304 = vmul.f32 %v8296, %v8297
      %v8305 = vperm.slane %v8142, 0
      %v8306 = vadd.f32 %v8298, %v8305
      %v8307 = vadd.f32 %v8299, %v8305
      %v8308 = vadd.f32 %v8300, %v8305
      %v8309 = vadd.f32 %v8301, %v8305
      %v8310 = vadd.f32 %v8302, %v8305
      %v8311 = vadd.f32 %v8303, %v8305
      %v8312 = vadd.f32 %v8304, %v8305
      %v8313 = vld [vmem:[%s17] sm:$0xff]
      %v8314 = vld [vmem:[%s17 + $0x8] sm:$0xff]
      %v8315 = vld [vmem:[%s17 + $0x10] sm:$0xff]
      %v8316 = vld [vmem:[%s17 + $0x18] sm:$0xff]
      %v8317 = vld [vmem:[%s18] sm:$0x1]
      %v8318 = vld [vmem:[%s19] sm:$0xff]
      %v8319 = vld [vmem:[%s19 + $0x8] sm:$0xff]
      %v8320 = vld [vmem:[%s19 + $0x10] sm:$0xff]
      %v8321 = vld [vmem:[%s19 + $0x18] sm:$0xff]
      %v8322 = vld [vmem:[%s19 + $0x20] sm:$0xff]
      %v8323 = vld [vmem:[%s19 + $0x28] sm:$0xff]
      %v8324 = vld [vmem:[%s19 + $0x30] sm:$0xff]
      %v8325 = vld [vmem:[%s19 + $0x38] sm:$0xff]
      %v8326 = vld [vmem:[%s19 + $0x40] sm:$0xff]
      %v8327 = vld [vmem:[%s19 + $0x48] sm:$0xff]
      %v8328 = vld [vmem:[%s19 + $0x50] sm:$0xff]
      %v8329 = vld [vmem:[%s19 + $0x58] sm:$0xff]
      %v8330 = vld [vmem:[%s19 + $0x60] sm:$0xff]
      %v8331 = vld [vmem:[%s19 + $0x68] sm:$0xff]
      %v8332 = vld [vmem:[%s19 + $0x70] sm:$0xff]
      %v8333 = vld [vmem:[%s19 + $0x78] sm:$0xff]
      %v8334 = vld [vmem:[%s20] sm:$0x1]
      %v8335 = vperm.slane %v8317, 0
      %v8337 = vsel %vm809, %v8134, 0
      %v8340 = vsel %vm809, %v8135, 0
      %v8343 = vsel %vm809, %v8136, 0
      %v8346 = vsel %vm809, %v8137, 0
      %v8349 = vsel %vm809, %v8138, 0
      %v8352 = vsel %vm809, %v8139, 0
      %v8355 = vsel %vm809, %v8140, 0
      %8357 = vmatpush.msra.mxu0 0.0
      %8358 = vmatpush.msra.mxu0 0.0
      %8359 = vmatpush.msra.mxu0 0.0
      %8360 = vmatpush.msra.mxu0 0.0
      %8361 = vmatpush.msra.mxu0 0.0
      %8362 = vmatpush.msra.mxu0 0.0
      %8363 = vmatpush.msra.mxu0 0.0
      %8364 = vmatpush.msra.mxu0 0.0
      %8365 = vmatpush.msra.mxu0 0.0
      %8366 = vmatpush.msra.mxu0 0.0
      %8367 = vmatpush.msra.mxu0 0.0
      %8368 = vmatpush.msra.mxu0 0.0
      %8369 = vmatpush.msra.mxu0 %v8316
      %8370 = vmatpush.msra.mxu0 %v8315
      %8371 = vmatpush.msra.mxu0 %v8314
      %8372 = vmatpush.msra.mxu0 %v8313
      %8373 = vmatmul.f32.gmra.mxu0 %v8337
      %v8374 = vpop.f32.mrf.mxu0
      %v8375 = vadd.f32 %v8335, %v8374
      %8376 = vmatmul.f32.gmra.mxu0 %v8340
      %v8377 = vpop.f32.mrf.mxu0
      %v8378 = vadd.f32 %v8335, %v8377
      %8379 = vmatmul.f32.gmra.mxu0 %v8343
      %v8380 = vpop.f32.mrf.mxu0
      %v8381 = vadd.f32 %v8335, %v8380
      %8382 = vmatmul.f32.gmra.mxu0 %v8346
      %v8383 = vpop.f32.mrf.mxu0
      %v8384 = vadd.f32 %v8335, %v8383
      %8385 = vmatmul.f32.gmra.mxu0 %v8349
      %v8386 = vpop.f32.mrf.mxu0
      %v8387 = vadd.f32 %v8335, %v8386
      %8388 = vmatmul.f32.gmra.mxu0 %v8352
      %v8389 = vpop.f32.mrf.mxu0
      %v8390 = vadd.f32 %v8335, %v8389
      %8391 = vmatmul.f32.gmra.mxu0 %v8355
      %v8392 = vpop.f32.mrf.mxu0
      %v8393 = vadd.f32 %v8335, %v8392
      %8394 = vdwg.mxu0
      %v8395 = vmax.f32 %v8375, 0.0
      %v8396 = vmax.f32 %v8378, 0.0
      %v8397 = vmax.f32 %v8381, 0.0
      %v8398 = vmax.f32 %v8384, 0.0
      %v8399 = vmax.f32 %v8387, 0.0
      %v8400 = vmax.f32 %v8390, 0.0
      %v8401 = vmax.f32 %v8393, 0.0
      %v8402 = vperm.slane %v8334, 0
      %8403 = vmatpush.msra.mxu0 %v8333
      %8404 = vmatpush.msra.mxu0 %v8332
      %8405 = vmatpush.msra.mxu0 %v8331
      %8406 = vmatpush.msra.mxu0 %v8330
      %8407 = vmatpush.msra.mxu0 %v8329
      %8408 = vmatpush.msra.mxu0 %v8328
      %8409 = vmatpush.msra.mxu0 %v8327
      %8410 = vmatpush.msra.mxu0 %v8326
      %8411 = vmatpush.msra.mxu0 %v8325
      %8412 = vmatpush.msra.mxu0 %v8324
      %8413 = vmatpush.msra.mxu0 %v8323
      %8414 = vmatpush.msra.mxu0 %v8322
      %8415 = vmatpush.msra.mxu0 %v8321
      %8416 = vmatpush.msra.mxu0 %v8320
      %8417 = vmatpush.msra.mxu0 %v8319
      %8418 = vmatpush.msra.mxu0 %v8318
      %8419 = vmatmul.f32.gmra.mxu0 %v8395
      %v8420 = vpop.f32.mrf.mxu0
      %v8421 = vadd.f32 %v8402, %v8420
      %8422 = vmatmul.f32.gmra.mxu0 %v8396
      %v8423 = vpop.f32.mrf.mxu0
      %v8424 = vadd.f32 %v8402, %v8423
      %8425 = vmatmul.f32.gmra.mxu0 %v8397
      %v8426 = vpop.f32.mrf.mxu0
      %v8427 = vadd.f32 %v8402, %v8426
      %8428 = vmatmul.f32.gmra.mxu0 %v8398
      %v8429 = vpop.f32.mrf.mxu0
      %v8430 = vadd.f32 %v8402, %v8429
      %8431 = vmatmul.f32.gmra.mxu0 %v8399
      %v8432 = vpop.f32.mrf.mxu0
      %v8433 = vadd.f32 %v8402, %v8432
      %8434 = vmatmul.f32.gmra.mxu0 %v8400
      %v8435 = vpop.f32.mrf.mxu0
      %v8436 = vadd.f32 %v8402, %v8435
      %8437 = vmatmul.f32.gmra.mxu0 %v8401
      %v8438 = vpop.f32.mrf.mxu0
      %v8439 = vadd.f32 %v8402, %v8438
      %8440 = vdwg.mxu0
      %v8441 = vadd.f32 %v5831, %v8421
      %v8442 = vadd.f32 %v5832, %v8424
      %v8443 = vadd.f32 %v5833, %v8427
      %v8444 = vadd.f32 %v5834, %v8430
      %v8445 = vadd.f32 %v5835, %v8433
      %v8446 = vadd.f32 %v5836, %v8436
      %v8447 = vadd.f32 %v5837, %v8439
      %s8448 = scalar_lea.vmem %s17, 32
      %v8449 = vld [vmem:[%s8448] sm:$0xff]
      %v8450 = vld [vmem:[%s8448 + $0x8] sm:$0xff]
      %v8451 = vld [vmem:[%s8448 + $0x10] sm:$0xff]
      %v8452 = vld [vmem:[%s8448 + $0x18] sm:$0xff]
      %v8453 = vld [vmem:[%s18 + $0x1] sm:$0x1]
      %s8454 = scalar_lea.vmem %s19, 128
      %v8455 = vld [vmem:[%s8454] sm:$0xff]
      %v8456 = vld [vmem:[%s8454 + $0x8] sm:$0xff]
      %v8457 = vld [vmem:[%s8454 + $0x10] sm:$0xff]
      %v8458 = vld [vmem:[%s8454 + $0x18] sm:$0xff]
      %v8459 = vld [vmem:[%s8454 + $0x20] sm:$0xff]
      %v8460 = vld [vmem:[%s8454 + $0x28] sm:$0xff]
      %v8461 = vld [vmem:[%s8454 + $0x30] sm:$0xff]
      %v8462 = vld [vmem:[%s8454 + $0x38] sm:$0xff]
      %v8463 = vld [vmem:[%s8454 + $0x40] sm:$0xff]
      %v8464 = vld [vmem:[%s8454 + $0x48] sm:$0xff]
      %v8465 = vld [vmem:[%s8454 + $0x50] sm:$0xff]
      %v8466 = vld [vmem:[%s8454 + $0x58] sm:$0xff]
      %v8467 = vld [vmem:[%s8454 + $0x60] sm:$0xff]
      %v8468 = vld [vmem:[%s8454 + $0x68] sm:$0xff]
      %v8469 = vld [vmem:[%s8454 + $0x70] sm:$0xff]
      %v8470 = vld [vmem:[%s8454 + $0x78] sm:$0xff]
      %v8471 = vld [vmem:[%s20 + $0x1] sm:$0x1]
      %v8472 = vperm.slane %v8453, 0
      %v8474 = vsel %vm809, %v8306, 0
      %v8477 = vsel %vm809, %v8307, 0
      %v8480 = vsel %vm809, %v8308, 0
      %v8483 = vsel %vm809, %v8309, 0
      %v8486 = vsel %vm809, %v8310, 0
      %v8489 = vsel %vm809, %v8311, 0
      %v8492 = vsel %vm809, %v8312, 0
      %8494 = vmatpush.msra.mxu0 0.0
      %8495 = vmatpush.msra.mxu0 0.0
      %8496 = vmatpush.msra.mxu0 0.0
      %8497 = vmatpush.msra.mxu0 0.0
      %8498 = vmatpush.msra.mxu0 0.0
      %8499 = vmatpush.msra.mxu0 0.0
      %8500 = vmatpush.msra.mxu0 0.0
      %8501 = vmatpush.msra.mxu0 0.0
      %8502 = vmatpush.msra.mxu0 0.0
      %8503 = vmatpush.msra.mxu0 0.0
      %8504 = vmatpush.msra.mxu0 0.0
      %8505 = vmatpush.msra.mxu0 0.0
      %8506 = vmatpush.msra.mxu0 %v8452
      %8507 = vmatpush.msra.mxu0 %v8451
      %8508 = vmatpush.msra.mxu0 %v8450
      %8509 = vmatpush.msra.mxu0 %v8449
      %8510 = vmatmul.f32.gmra.mxu0 %v8474
      %v8511 = vpop.f32.mrf.mxu0
      %v8512 = vadd.f32 %v8472, %v8511
      %8513 = vmatmul.f32.gmra.mxu0 %v8477
      %v8514 = vpop.f32.mrf.mxu0
      %v8515 = vadd.f32 %v8472, %v8514
      %8516 = vmatmul.f32.gmra.mxu0 %v8480
      %v8517 = vpop.f32.mrf.mxu0
      %v8518 = vadd.f32 %v8472, %v8517
      %8519 = vmatmul.f32.gmra.mxu0 %v8483
      %v8520 = vpop.f32.mrf.mxu0
      %v8521 = vadd.f32 %v8472, %v8520
      %8522 = vmatmul.f32.gmra.mxu0 %v8486
      %v8523 = vpop.f32.mrf.mxu0
      %v8524 = vadd.f32 %v8472, %v8523
      %8525 = vmatmul.f32.gmra.mxu0 %v8489
      %v8526 = vpop.f32.mrf.mxu0
      %v8527 = vadd.f32 %v8472, %v8526
      %8528 = vmatmul.f32.gmra.mxu0 %v8492
      %v8529 = vpop.f32.mrf.mxu0
      %v8530 = vadd.f32 %v8472, %v8529
      %8531 = vdwg.mxu0
      %v8532 = vmax.f32 %v8512, 0.0
      %v8533 = vmax.f32 %v8515, 0.0
      %v8534 = vmax.f32 %v8518, 0.0
      %v8535 = vmax.f32 %v8521, 0.0
      %v8536 = vmax.f32 %v8524, 0.0
      %v8537 = vmax.f32 %v8527, 0.0
      %v8538 = vmax.f32 %v8530, 0.0
      %v8539 = vperm.slane %v8471, 0
      %8540 = vmatpush.msra.mxu0 %v8470
      %8541 = vmatpush.msra.mxu0 %v8469
      %8542 = vmatpush.msra.mxu0 %v8468
      %8543 = vmatpush.msra.mxu0 %v8467
      %8544 = vmatpush.msra.mxu0 %v8466
      %8545 = vmatpush.msra.mxu0 %v8465
      %8546 = vmatpush.msra.mxu0 %v8464
      %8547 = vmatpush.msra.mxu0 %v8463
      %8548 = vmatpush.msra.mxu0 %v8462
      %8549 = vmatpush.msra.mxu0 %v8461
      %8550 = vmatpush.msra.mxu0 %v8460
      %8551 = vmatpush.msra.mxu0 %v8459
      %8552 = vmatpush.msra.mxu0 %v8458
      %8553 = vmatpush.msra.mxu0 %v8457
      %8554 = vmatpush.msra.mxu0 %v8456
      %8555 = vmatpush.msra.mxu0 %v8455
      %8556 = vmatmul.f32.gmra.mxu0 %v8532
      %v8557 = vpop.f32.mrf.mxu0
      %v8558 = vadd.f32 %v8539, %v8557
      %8559 = vmatmul.f32.gmra.mxu0 %v8533
      %v8560 = vpop.f32.mrf.mxu0
      %v8561 = vadd.f32 %v8539, %v8560
      %8562 = vmatmul.f32.gmra.mxu0 %v8534
      %v8563 = vpop.f32.mrf.mxu0
      %v8564 = vadd.f32 %v8539, %v8563
      %8565 = vmatmul.f32.gmra.mxu0 %v8535
      %v8566 = vpop.f32.mrf.mxu0
      %v8567 = vadd.f32 %v8539, %v8566
      %8568 = vmatmul.f32.gmra.mxu0 %v8536
      %v8569 = vpop.f32.mrf.mxu0
      %v8570 = vadd.f32 %v8539, %v8569
      %8571 = vmatmul.f32.gmra.mxu0 %v8537
      %v8572 = vpop.f32.mrf.mxu0
      %v8573 = vadd.f32 %v8539, %v8572
      %8574 = vmatmul.f32.gmra.mxu0 %v8538
      %v8575 = vpop.f32.mrf.mxu0
      %v8576 = vadd.f32 %v8539, %v8575
      %8577 = vdwg.mxu0
      %v8578 = vadd.f32 %v7962, %v8558
      %v8579 = vadd.f32 %v7963, %v8561
      %v8580 = vadd.f32 %v7964, %v8564
      %v8581 = vadd.f32 %v7965, %v8567
      %v8582 = vadd.f32 %v7966, %v8570
      %v8583 = vadd.f32 %v7967, %v8573
      %v8584 = vadd.f32 %v7968, %v8576
      %8585 = vst.msk [vmem:[%s711] sm:$0xff] %vm809, %v8441
      %8586 = vst.msk [vmem:[%s711 + $0x8] sm:$0xff] %vm809, %v8442
      %8587 = vst.msk [vmem:[%s711 + $0x10] sm:$0xff] %vm809, %v8443
      %8588 = vst.msk [vmem:[%s711 + $0x18] sm:$0xff] %vm809, %v8444
      %8589 = vst.msk [vmem:[%s711 + $0x20] sm:$0xff] %vm809, %v8445
      %8590 = vst.msk [vmem:[%s711 + $0x28] sm:$0xff] %vm809, %v8446
      %8591 = vst.msk [vmem:[%s711 + $0x30] sm:$0xff] %vm809, %v8447
      %8592 = vst.msk [vmem:[%s716] sm:$0xff] %vm809, %v8578
      %8593 = vst.msk [vmem:[%s716 + $0x8] sm:$0xff] %vm809, %v8579
      %8594 = vst.msk [vmem:[%s716 + $0x10] sm:$0xff] %vm809, %v8580
      %8595 = vst.msk [vmem:[%s716 + $0x18] sm:$0xff] %vm809, %v8581
      %8596 = vst.msk [vmem:[%s716 + $0x20] sm:$0xff] %vm809, %v8582
      %8597 = vst.msk [vmem:[%s716 + $0x28] sm:$0xff] %vm809, %v8583
      %8598 = vst.msk [vmem:[%s716 + $0x30] sm:$0xff] %vm809, %v8584
      %p8599 = scmp.lt.s32.totalorder %s34, 1
      %s8600 = scalar_select %p8599, %s34, 1
      %s8601 = smul.addr %s8600, 7
      %s8602 = smul.addr %s8601, 8
      %s8603 = scalar_lea.vmem %s21, %s8602
      %p8604 = scmp.lt.s32.totalorder %s34, 1
      %s8605 = scalar_select %p8604, %s34, 1
      %s8606 = smul.addr %s8605, 7
      %s8607 = smul.addr %s8606, 8
      %s8608 = scalar_lea.vmem %s22, %s8607
      // Predicated region
      $region105: #{bottleneck_transformer.1} parent=103 // pred_check
        %p8609 = pneg %p503
      $region106: #{bottleneck_transformer.1} parent=103 // pred_check_branch
        %8611 = sbr.rel (%p8609) target = $region108
      $region107: #{bottleneck_transformer.1} parent=103 // pred_region
        _
      $region108: #{bottleneck_transformer.1} parent=103 // pred_fallthru
        _
      // Predicated region
      $region109: #{bottleneck_transformer.1} parent=103 // pred_check
        %p8612 = pneg %p529
      $region110: #{bottleneck_transformer.1} parent=103 // pred_check_branch
        %8614 = sbr.rel (%p8612) target = $region112
      $region111: #{bottleneck_transformer.1} parent=103 // pred_region
        _
      $region112: #{bottleneck_transformer.1} parent=103 // pred_fallthru
        _
    $region104: #{bottleneck_transformer.1} parent=5 // pred_fallthru
      _
    %p8615 = scmp.le.s32.totalorder 2, %s29
    // Predicated region
    $region113: #{bottleneck_transformer.1} parent=5 // pred_check
      %p8616 = pneg %p8615
    $region114: #{bottleneck_transformer.1} parent=5 // pred_check_branch
      %8618 = sbr.rel (%p8616) target = $region116
    $region115: #{bottleneck_transformer.1} parent=5 // pred_region
      %s8619 = ssub.s32 %s29, 2
      // Predicated region
      $region117: #{bottleneck_transformer.1} parent=115 // pred_check
        %p8620 = pneg %p509
      $region118: #{bottleneck_transformer.1} parent=115 // pred_check_branch
        %8622 = sbr.rel (%p8620) target = $region120
      $region119: #{bottleneck_transformer.1} parent=115 // pred_region
        %p8623 = scmp.lt.s32.totalorder %s35, 1
        %s8624 = scalar_select %p8623, %s35, 1
        %s8625 = smul.addr %s8624, 7
        %s8626 = smul.addr %s8625, 8
        %s8627 = scalar_lea.vmem %s21, %s8626
      $region120: #{bottleneck_transformer.1} parent=115 // pred_fallthru
        _
      // Predicated region
      $region121: #{bottleneck_transformer.1} parent=115 // pred_check
        %p8628 = pneg %p535
      $region122: #{bottleneck_transformer.1} parent=115 // pred_check_branch
        %8630 = sbr.rel (%p8628) target = $region124
      $region123: #{bottleneck_transformer.1} parent=115 // pred_region
        %p8631 = scmp.lt.s32.totalorder %s35, 1
        %s8632 = scalar_select %p8631, %s35, 1
        %s8633 = smul.addr %s8632, 7
        %s8634 = smul.addr %s8633, 8
        %s8635 = scalar_lea.vmem %s22, %s8634
      $region124: #{bottleneck_transformer.1} parent=115 // pred_fallthru
        _
    $region116: #{bottleneck_transformer.1} parent=5 // pred_fallthru
      _
  $region6: #{bottleneck_transformer.1} parent=0 // loop_footer
    %s33 = sadd.s32 1, %s29
  $region7: #{bottleneck_transformer.1} parent=0 // loop_footer_branch
    %28 = sbr.rel target = $region3
  $region8: #{bottleneck_transformer.1} parent=0 // loop_exit
    _

</llo_original>
